<compile_context>
chip_gen: v7x
topology: tpu7x:2x2x1
jax: 0.10.0
libtpu: 0.0.40
codegen_flags: <defaults>
</compile_context>

<pallas_src>
import functools

import jax
import jax.numpy as jnp
from jax.experimental import pallas as pl
from jax.experimental.pallas import tpu as pltpu

NEG_SLOPE = 0.1


def _round_up(x, m):
    return ((x + m - 1) // m) * m


def _leaky_relu(x, negative_slope=NEG_SLOPE):
    return jnp.where(x > 0, x, negative_slope * x)


@functools.lru_cache(maxsize=1)
def _default_act_dtype():
    """bf16 elementwise only pays off on chips with bf16 VALUs (v6e / v7x)."""
    try:
        kind = jax.devices()[0].device_kind.lower()
    except Exception:  # pragma: no cover - defensive
        kind = ""
    old = any(tag in kind for tag in ("v2", "v3", "v4", "v5"))
    return jnp.float32 if old else jnp.bfloat16


def make_ae_kernel(act_dtype):
    """Build the kernel with a static elementwise dtype (bf16 on v6e/v7x)."""

    def ae_kernel(x_ref,
                  w1, b1, w2, b2, w3, b3, w4, b4,   # encoder
                  w5, b5, w6, b6, w7, b7, w8, b8,   # decoder
                  out_ref):
        def hidden(h, w_ref, b_ref):
            # bf16 LHS straight into the MXU, f32 accumulation.
            acc = jnp.dot(h, w_ref[...], preferred_element_type=jnp.float32)
            y = acc.astype(act_dtype) + b_ref[...].astype(act_dtype)
            # Next layer's LHS must be bf16 anyway; store it directly.
            return _leaky_relu(y).astype(jnp.bfloat16)

        h = x_ref[...]                      # already bf16 — no f32 round trip
        # ---- encoder ----
        h = hidden(h, w1, b1)
        h = hidden(h, w2, b2)
        h = hidden(h, w3, b3)
        h = hidden(h, w4, b4)
        # ---- decoder ----
        h = hidden(h, w5, b5)
        h = hidden(h, w6, b6)
        h = hidden(h, w7, b7)
        y = jnp.dot(h, w8[...], preferred_element_type=jnp.float32) + b8[...]
        out_ref[...] = jax.nn.sigmoid(y).astype(out_ref.dtype)

    return ae_kernel


def make_params(key, in_dims=784, hid_dims=100, dtype=jnp.float32):
    """Matches the PyTorch module's _init_weights: W ~ N(0, 0.01), b = 0.
       Weights stored [in, out] (i.e. transposed vs torch's [out, in])."""
    enc_dims = [in_dims, 512, 256, 128, hid_dims]
    dec_dims = [hid_dims, 128, 256, 512, in_dims]
    dims = list(zip(enc_dims[:-1], enc_dims[1:])) + list(zip(dec_dims[:-1], dec_dims[1:]))
    params = []
    for (din, dout) in dims:
        key, wk = jax.random.split(key)
        w = (0.01 * jax.random.normal(wk, (din, dout))).astype(dtype)
        b = jnp.zeros((1, dout), dtype=dtype)
        params += [w, b]
    return params  # [w1, b1, ..., w8, b8]


def pad_params(params):
    """Pad every weight's in/out dims to multiples of 128; weights -> bf16,
       biases stay f32 (cast per-layer inside the kernel if needed).
       Zero padding leaves the math unchanged."""
    out = []
    for i in range(0, len(params), 2):
        w, b = params[i], params[i + 1]
        din, dout = w.shape
        dp, op = _round_up(din, 128), _round_up(dout, 128)
        w_p = jnp.zeros((dp, op), jnp.bfloat16).at[:din, :dout].set(w.astype(jnp.bfloat16))
        b_p = jnp.zeros((1, op), jnp.float32).at[:, :dout].set(b.astype(jnp.float32))
        out += [w_p, b_p]
    return out


def _pick_tb(B):
    if B < 128:
        # Small-batch inference: 16-row tiles (bf16 min sublane tile) instead
        # of a forced 128-row tile -> up to 8-16x less wasted matmul/DMA work.
        return _round_up(max(B, 1), 16)
    # Big tiles amortize the ~0.35 us/step pipeline overhead (v5e/v6e have
    # 128 MiB VMEM); cap at 1024 so v7x (64 MiB) also fits comfortably.
    tb = min(1024, _round_up(B, 128))
    # v7x megacore: prefer >= 2 grid steps so both TensorCores get a tile.
    if B > 128:
        while tb > 128 and pl.cdiv(B, tb) < 2:
            tb = _round_up(tb // 2, 128)
    return tb


def ae_forward(x, padded_params, *, tb=None, out_dtype=jnp.float32,
               act_dtype=None, vmem_limit_bytes=48 << 20):
    B, in_dims = x.shape
    in_pad = padded_params[0].shape[0]     # padded input width  (rows of W1)
    out_pad = padded_params[-2].shape[1]   # padded output width (cols of W8)
    assert in_pad == out_pad

    if act_dtype is None:
        act_dtype = _default_act_dtype()
    if tb is None:
        tb = _pick_tb(B)
    b_pad = _round_up(B, tb)

    # Zero-pad batch / feature dims; bf16 input halves its DMA.
    x_p = jnp.zeros((b_pad, in_pad), jnp.bfloat16).at[:B, :in_dims].set(
        x.astype(jnp.bfloat16))

    x_spec = pl.BlockSpec((tb, in_pad), lambda i: (i, 0))
    out_spec = pl.BlockSpec((tb, out_pad), lambda i: (i, 0))

    # Advisory cost estimate for XLA's scheduler.
    flops = 2 * b_pad * sum(
        padded_params[2 * j].shape[0] * padded_params[2 * j].shape[1]
        for j in range(8))
    bytes_accessed = (int(x_p.size) * x_p.dtype.itemsize
                      + sum(int(p.size) * p.dtype.itemsize for p in padded_params)
                      + b_pad * out_pad * jnp.dtype(out_dtype).itemsize)
    cost = pl.CostEstimate(flops=int(flops),
                           transcendentals=int(b_pad * out_pad),
                           bytes_accessed=int(bytes_accessed))

    kernel = make_ae_kernel(act_dtype)

    def build(single_buffer_params):
        if single_buffer_params:
            # Constant index_map -> resident params; single-buffer them so the
            # ~2.6 MB of bf16 weights is not allocated twice (v7x headroom).
            param_specs = [pl.BlockSpec(p.shape, lambda i: (0, 0),
                                        pipeline_mode=pl.Buffered(1))
                           for p in padded_params]
        else:
            param_specs = [pl.BlockSpec(p.shape, lambda i: (0, 0))
                           for p in padded_params]
        return pl.pallas_call(
            kernel,
            out_shape=jax.ShapeDtypeStruct((b_pad, out_pad), out_dtype),
            grid=(b_pad // tb,),
            in_specs=[x_spec] + param_specs,
            out_specs=out_spec,
            compiler_params=pltpu.CompilerParams(
                dimension_semantics=("parallel",),   # shard batch over TCs
                vmem_limit_bytes=vmem_limit_bytes),
            cost_estimate=cost,
        )

    try:
        y_p = build(True)(x_p, *padded_params)
    except Exception:
        # Fallback if this jax build rejects Buffered(1) on constant inputs.
        y_p = build(False)(x_p, *padded_params)

    return y_p[:B, :in_dims]


def ref_forward(x, params, act_dtype, out_dtype=jnp.float32):
    """Pure-JAX reference mirroring the kernel's dtype path exactly."""
    h = x.astype(jnp.bfloat16)
    for i in range(7):
        w, b = params[2 * i], params[2 * i + 1]
        acc = jnp.dot(h, w.astype(jnp.bfloat16),
                      preferred_element_type=jnp.float32)
        y = acc.astype(act_dtype) + b.astype(act_dtype)
        h = _leaky_relu(y).astype(jnp.bfloat16)
    w, b = params[14], params[15]
    y = jnp.dot(h, w.astype(jnp.bfloat16),
                preferred_element_type=jnp.float32) + b.astype(jnp.float32)
    return jax.nn.sigmoid(y).astype(out_dtype)


if __name__ == "__main__":
    key = jax.random.PRNGKey(0)
    key, xk = jax.random.split(key)

    B, in_dims, hid_dims = 8, 784, 100
    x = jax.random.uniform(xk, (B, in_dims), dtype=jnp.float32)

    key, pk = jax.random.split(key)
    params = make_params(pk, in_dims=in_dims, hid_dims=hid_dims)
    padded = pad_params(params)
    act_dtype = _default_act_dtype()

    # 1) f32 output path (default), zero biases (matches the torch init).
    y = jax.block_until_ready(ae_forward(x, padded, out_dtype=jnp.float32))
    y_ref = ref_forward(x, params, act_dtype, jnp.float32)
    assert y.shape == (B, in_dims)
    assert jnp.allclose(y, y_ref, atol=2e-3, rtol=2e-3), \
        float(jnp.max(jnp.abs(y - y_ref)))

    # 2) Nonzero biases (exercises the bias broadcast path).
    params_nz = list(params)
    for i in range(8):
        key, bk = jax.random.split(key)
        params_nz[2 * i + 1] = (0.05 * jax.random.normal(
            bk, params[2 * i + 1].shape)).astype(jnp.float32)
    padded_nz = pad_params(params_nz)
    y_nz = jax.block_until_ready(ae_forward(x, padded_nz))
    y_nz_ref = ref_forward(x, params_nz, act_dtype, jnp.float32)
    assert jnp.allclose(y_nz, y_nz_ref, atol=2e-3, rtol=2e-3), \
        float(jnp.max(jnp.abs(y_nz - y_nz_ref)))

    # 3) Optional bf16 output (halves HBM writeback on v6e); looser tolerance.
    y_bf16 = jax.block_until_ready(ae_forward(x, padded, out_dtype=jnp.bfloat16))
    assert jnp.allclose(y_bf16.astype(jnp.float32), y_ref, atol=1e-2, rtol=1e-2)

    print("KERNEL_OK")
</pallas_src>

<mosaic_0001>
module attributes {stable_mosaic.version = 11 : i64} {
  func.func @ae_kernel(%arg0: i32, %arg1: memref<16x896xbf16, #tpu.memory_space<vmem>>, %arg2: memref<896x512xbf16, #tpu.memory_space<vmem>>, %arg3: memref<1x512xf32, #tpu.memory_space<vmem>>, %arg4: memref<512x256xbf16, #tpu.memory_space<vmem>>, %arg5: memref<1x256xf32, #tpu.memory_space<vmem>>, %arg6: memref<256x128xbf16, #tpu.memory_space<vmem>>, %arg7: memref<1x128xf32, #tpu.memory_space<vmem>>, %arg8: memref<128x128xbf16, #tpu.memory_space<vmem>>, %arg9: memref<1x128xf32, #tpu.memory_space<vmem>>, %arg10: memref<128x128xbf16, #tpu.memory_space<vmem>>, %arg11: memref<1x128xf32, #tpu.memory_space<vmem>>, %arg12: memref<128x256xbf16, #tpu.memory_space<vmem>>, %arg13: memref<1x256xf32, #tpu.memory_space<vmem>>, %arg14: memref<256x512xbf16, #tpu.memory_space<vmem>>, %arg15: memref<1x512xf32, #tpu.memory_space<vmem>>, %arg16: memref<512x896xbf16, #tpu.memory_space<vmem>>, %arg17: memref<1x896xf32, #tpu.memory_space<vmem>>, %arg18: memref<16x896xf32, #tpu.memory_space<vmem>>) attributes {dimension_semantics = [#tpu.dimension_semantics<parallel>], iteration_bounds = array<i64: 1>, scalar_prefetch = 0 : i64, scratch_operands = 0 : i64, tpu.core_type = #tpu.core_type<tc>, window_params = [{transform_indices = @transform_0, window_bounds = array<i64: 16, 896>}, {pipeline_mode = #tpu.pipeline_mode<synchronous>, transform_indices = @transform_1, window_bounds = array<i64: 896, 512>}, {pipeline_mode = #tpu.pipeline_mode<synchronous>, transform_indices = @transform_2, window_bounds = array<i64: 1, 512>}, {pipeline_mode = #tpu.pipeline_mode<synchronous>, transform_indices = @transform_3, window_bounds = array<i64: 512, 256>}, {pipeline_mode = #tpu.pipeline_mode<synchronous>, transform_indices = @transform_4, window_bounds = array<i64: 1, 256>}, {pipeline_mode = #tpu.pipeline_mode<synchronous>, transform_indices = @transform_5, window_bounds = array<i64: 256, 128>}, {pipeline_mode = #tpu.pipeline_mode<synchronous>, transform_indices = @transform_6, window_bounds = array<i64: 1, 128>}, {pipeline_mode = #tpu.pipeline_mode<synchronous>, transform_indices = @transform_7, window_bounds = array<i64: 128, 128>}, {pipeline_mode = #tpu.pipeline_mode<synchronous>, transform_indices = @transform_8, window_bounds = array<i64: 1, 128>}, {pipeline_mode = #tpu.pipeline_mode<synchronous>, transform_indices = @transform_9, window_bounds = array<i64: 128, 128>}, {pipeline_mode = #tpu.pipeline_mode<synchronous>, transform_indices = @transform_10, window_bounds = array<i64: 1, 128>}, {pipeline_mode = #tpu.pipeline_mode<synchronous>, transform_indices = @transform_11, window_bounds = array<i64: 128, 256>}, {pipeline_mode = #tpu.pipeline_mode<synchronous>, transform_indices = @transform_12, window_bounds = array<i64: 1, 256>}, {pipeline_mode = #tpu.pipeline_mode<synchronous>, transform_indices = @transform_13, window_bounds = array<i64: 256, 512>}, {pipeline_mode = #tpu.pipeline_mode<synchronous>, transform_indices = @transform_14, window_bounds = array<i64: 1, 512>}, {pipeline_mode = #tpu.pipeline_mode<synchronous>, transform_indices = @transform_15, window_bounds = array<i64: 512, 896>}, {pipeline_mode = #tpu.pipeline_mode<synchronous>, transform_indices = @transform_16, window_bounds = array<i64: 1, 896>}, {transform_indices = @transform_17, window_bounds = array<i64: 16, 896>}]} {
    %c0 = arith.constant 0 : index
    %c0_0 = arith.constant 0 : index
    %0 = vector.load %arg1[%c0, %c0_0] : memref<16x896xbf16, #tpu.memory_space<vmem>>, vector<16x896xbf16>
    %c0_1 = arith.constant 0 : index
    %c0_2 = arith.constant 0 : index
    %1 = vector.load %arg2[%c0_1, %c0_2] : memref<896x512xbf16, #tpu.memory_space<vmem>>, vector<896x512xbf16>
    %cst = arith.constant dense<0.000000e+00> : vector<16x512xf32>
    %2 = tpu.matmul %0, %1, %cst {dimension_numbers = #tpu.dot_dimension_numbers<[1], [0], [0], [1], [0, 0, 1, 1], [], []>} : vector<16x896xbf16>, vector<896x512xbf16>, vector<16x512xf32> -> vector<16x512xf32>
    %3 = arith.truncf %2 : vector<16x512xf32> to vector<16x512xbf16>
    %c0_3 = arith.constant 0 : index
    %c0_4 = arith.constant 0 : index
    %4 = vector.load %arg3[%c0_3, %c0_4] : memref<1x512xf32, #tpu.memory_space<vmem>>, vector<1x512xf32>
    %5 = arith.truncf %4 : vector<1x512xf32> to vector<1x512xbf16>
    %6 = vector.broadcast %5 : vector<1x512xbf16> to vector<16x512xbf16>
    %7 = arith.addf %3, %6 : vector<16x512xbf16>
    %cst_5 = arith.constant 0.000000e+00 : bf16
    %8 = vector.broadcast %cst_5 : bf16 to vector<16x512xbf16>
    %9 = arith.cmpf ogt, %7, %8 : vector<16x512xbf16>
    %cst_6 = arith.constant 1.000980e-01 : bf16
    %10 = vector.broadcast %cst_6 : bf16 to vector<16x512xbf16>
    %11 = arith.mulf %10, %7 : vector<16x512xbf16>
    %12 = arith.select %9, %7, %11 : vector<16x512xi1>, vector<16x512xbf16>
    %c0_7 = arith.constant 0 : index
    %c0_8 = arith.constant 0 : index
    %13 = vector.load %arg4[%c0_7, %c0_8] : memref<512x256xbf16, #tpu.memory_space<vmem>>, vector<512x256xbf16>
    %cst_9 = arith.constant dense<0.000000e+00> : vector<16x256xf32>
    %14 = tpu.matmul %12, %13, %cst_9 {dimension_numbers = #tpu.dot_dimension_numbers<[1], [0], [0], [1], [0, 0, 1, 1], [], []>} : vector<16x512xbf16>, vector<512x256xbf16>, vector<16x256xf32> -> vector<16x256xf32>
    %15 = arith.truncf %14 : vector<16x256xf32> to vector<16x256xbf16>
    %c0_10 = arith.constant 0 : index
    %c0_11 = arith.constant 0 : index
    %16 = vector.load %arg5[%c0_10, %c0_11] : memref<1x256xf32, #tpu.memory_space<vmem>>, vector<1x256xf32>
    %17 = arith.truncf %16 : vector<1x256xf32> to vector<1x256xbf16>
    %18 = vector.broadcast %17 : vector<1x256xbf16> to vector<16x256xbf16>
    %19 = arith.addf %15, %18 : vector<16x256xbf16>
    %cst_12 = arith.constant 0.000000e+00 : bf16
    %20 = vector.broadcast %cst_12 : bf16 to vector<16x256xbf16>
    %21 = arith.cmpf ogt, %19, %20 : vector<16x256xbf16>
    %cst_13 = arith.constant 1.000980e-01 : bf16
    %22 = vector.broadcast %cst_13 : bf16 to vector<16x256xbf16>
    %23 = arith.mulf %22, %19 : vector<16x256xbf16>
    %24 = arith.select %21, %19, %23 : vector<16x256xi1>, vector<16x256xbf16>
    %c0_14 = arith.constant 0 : index
    %c0_15 = arith.constant 0 : index
    %25 = vector.load %arg6[%c0_14, %c0_15] : memref<256x128xbf16, #tpu.memory_space<vmem>>, vector<256x128xbf16>
    %cst_16 = arith.constant dense<0.000000e+00> : vector<16x128xf32>
    %26 = tpu.matmul %24, %25, %cst_16 {dimension_numbers = #tpu.dot_dimension_numbers<[1], [0], [0], [1], [0, 0, 1, 1], [], []>} : vector<16x256xbf16>, vector<256x128xbf16>, vector<16x128xf32> -> vector<16x128xf32>
    %27 = arith.truncf %26 : vector<16x128xf32> to vector<16x128xbf16>
    %c0_17 = arith.constant 0 : index
    %c0_18 = arith.constant 0 : index
    %28 = vector.load %arg7[%c0_17, %c0_18] : memref<1x128xf32, #tpu.memory_space<vmem>>, vector<1x128xf32>
    %29 = arith.truncf %28 : vector<1x128xf32> to vector<1x128xbf16>
    %30 = vector.broadcast %29 : vector<1x128xbf16> to vector<16x128xbf16>
    %31 = arith.addf %27, %30 : vector<16x128xbf16>
    %cst_19 = arith.constant 0.000000e+00 : bf16
    %32 = vector.broadcast %cst_19 : bf16 to vector<16x128xbf16>
    %33 = arith.cmpf ogt, %31, %32 : vector<16x128xbf16>
    %cst_20 = arith.constant 1.000980e-01 : bf16
    %34 = vector.broadcast %cst_20 : bf16 to vector<16x128xbf16>
    %35 = arith.mulf %34, %31 : vector<16x128xbf16>
    %36 = arith.select %33, %31, %35 : vector<16x128xi1>, vector<16x128xbf16>
    %c0_21 = arith.constant 0 : index
    %c0_22 = arith.constant 0 : index
    %37 = vector.load %arg8[%c0_21, %c0_22] : memref<128x128xbf16, #tpu.memory_space<vmem>>, vector<128x128xbf16>
    %cst_23 = arith.constant dense<0.000000e+00> : vector<16x128xf32>
    %38 = tpu.matmul %36, %37, %cst_23 {dimension_numbers = #tpu.dot_dimension_numbers<[1], [0], [0], [1], [0, 0, 1, 1], [], []>} : vector<16x128xbf16>, vector<128x128xbf16>, vector<16x128xf32> -> vector<16x128xf32>
    %39 = arith.truncf %38 : vector<16x128xf32> to vector<16x128xbf16>
    %c0_24 = arith.constant 0 : index
    %c0_25 = arith.constant 0 : index
    %40 = vector.load %arg9[%c0_24, %c0_25] : memref<1x128xf32, #tpu.memory_space<vmem>>, vector<1x128xf32>
    %41 = arith.truncf %40 : vector<1x128xf32> to vector<1x128xbf16>
    %42 = vector.broadcast %41 : vector<1x128xbf16> to vector<16x128xbf16>
    %43 = arith.addf %39, %42 : vector<16x128xbf16>
    %cst_26 = arith.constant 0.000000e+00 : bf16
    %44 = vector.broadcast %cst_26 : bf16 to vector<16x128xbf16>
    %45 = arith.cmpf ogt, %43, %44 : vector<16x128xbf16>
    %cst_27 = arith.constant 1.000980e-01 : bf16
    %46 = vector.broadcast %cst_27 : bf16 to vector<16x128xbf16>
    %47 = arith.mulf %46, %43 : vector<16x128xbf16>
    %48 = arith.select %45, %43, %47 : vector<16x128xi1>, vector<16x128xbf16>
    %c0_28 = arith.constant 0 : index
    %c0_29 = arith.constant 0 : index
    %49 = vector.load %arg10[%c0_28, %c0_29] : memref<128x128xbf16, #tpu.memory_space<vmem>>, vector<128x128xbf16>
    %cst_30 = arith.constant dense<0.000000e+00> : vector<16x128xf32>
    %50 = tpu.matmul %48, %49, %cst_30 {dimension_numbers = #tpu.dot_dimension_numbers<[1], [0], [0], [1], [0, 0, 1, 1], [], []>} : vector<16x128xbf16>, vector<128x128xbf16>, vector<16x128xf32> -> vector<16x128xf32>
    %51 = arith.truncf %50 : vector<16x128xf32> to vector<16x128xbf16>
    %c0_31 = arith.constant 0 : index
    %c0_32 = arith.constant 0 : index
    %52 = vector.load %arg11[%c0_31, %c0_32] : memref<1x128xf32, #tpu.memory_space<vmem>>, vector<1x128xf32>
    %53 = arith.truncf %52 : vector<1x128xf32> to vector<1x128xbf16>
    %54 = vector.broadcast %53 : vector<1x128xbf16> to vector<16x128xbf16>
    %55 = arith.addf %51, %54 : vector<16x128xbf16>
    %cst_33 = arith.constant 0.000000e+00 : bf16
    %56 = vector.broadcast %cst_33 : bf16 to vector<16x128xbf16>
    %57 = arith.cmpf ogt, %55, %56 : vector<16x128xbf16>
    %cst_34 = arith.constant 1.000980e-01 : bf16
    %58 = vector.broadcast %cst_34 : bf16 to vector<16x128xbf16>
    %59 = arith.mulf %58, %55 : vector<16x128xbf16>
    %60 = arith.select %57, %55, %59 : vector<16x128xi1>, vector<16x128xbf16>
    %c0_35 = arith.constant 0 : index
    %c0_36 = arith.constant 0 : index
    %61 = vector.load %arg12[%c0_35, %c0_36] : memref<128x256xbf16, #tpu.memory_space<vmem>>, vector<128x256xbf16>
    %cst_37 = arith.constant dense<0.000000e+00> : vector<16x256xf32>
    %62 = tpu.matmul %60, %61, %cst_37 {dimension_numbers = #tpu.dot_dimension_numbers<[1], [0], [0], [1], [0, 0, 1, 1], [], []>} : vector<16x128xbf16>, vector<128x256xbf16>, vector<16x256xf32> -> vector<16x256xf32>
    %63 = arith.truncf %62 : vector<16x256xf32> to vector<16x256xbf16>
    %c0_38 = arith.constant 0 : index
    %c0_39 = arith.constant 0 : index
    %64 = vector.load %arg13[%c0_38, %c0_39] : memref<1x256xf32, #tpu.memory_space<vmem>>, vector<1x256xf32>
    %65 = arith.truncf %64 : vector<1x256xf32> to vector<1x256xbf16>
    %66 = vector.broadcast %65 : vector<1x256xbf16> to vector<16x256xbf16>
    %67 = arith.addf %63, %66 : vector<16x256xbf16>
    %cst_40 = arith.constant 0.000000e+00 : bf16
    %68 = vector.broadcast %cst_40 : bf16 to vector<16x256xbf16>
    %69 = arith.cmpf ogt, %67, %68 : vector<16x256xbf16>
    %cst_41 = arith.constant 1.000980e-01 : bf16
    %70 = vector.broadcast %cst_41 : bf16 to vector<16x256xbf16>
    %71 = arith.mulf %70, %67 : vector<16x256xbf16>
    %72 = arith.select %69, %67, %71 : vector<16x256xi1>, vector<16x256xbf16>
    %c0_42 = arith.constant 0 : index
    %c0_43 = arith.constant 0 : index
    %73 = vector.load %arg14[%c0_42, %c0_43] : memref<256x512xbf16, #tpu.memory_space<vmem>>, vector<256x512xbf16>
    %cst_44 = arith.constant dense<0.000000e+00> : vector<16x512xf32>
    %74 = tpu.matmul %72, %73, %cst_44 {dimension_numbers = #tpu.dot_dimension_numbers<[1], [0], [0], [1], [0, 0, 1, 1], [], []>} : vector<16x256xbf16>, vector<256x512xbf16>, vector<16x512xf32> -> vector<16x512xf32>
    %75 = arith.truncf %74 : vector<16x512xf32> to vector<16x512xbf16>
    %c0_45 = arith.constant 0 : index
    %c0_46 = arith.constant 0 : index
    %76 = vector.load %arg15[%c0_45, %c0_46] : memref<1x512xf32, #tpu.memory_space<vmem>>, vector<1x512xf32>
    %77 = arith.truncf %76 : vector<1x512xf32> to vector<1x512xbf16>
    %78 = vector.broadcast %77 : vector<1x512xbf16> to vector<16x512xbf16>
    %79 = arith.addf %75, %78 : vector<16x512xbf16>
    %cst_47 = arith.constant 0.000000e+00 : bf16
    %80 = vector.broadcast %cst_47 : bf16 to vector<16x512xbf16>
    %81 = arith.cmpf ogt, %79, %80 : vector<16x512xbf16>
    %cst_48 = arith.constant 1.000980e-01 : bf16
    %82 = vector.broadcast %cst_48 : bf16 to vector<16x512xbf16>
    %83 = arith.mulf %82, %79 : vector<16x512xbf16>
    %84 = arith.select %81, %79, %83 : vector<16x512xi1>, vector<16x512xbf16>
    %c0_49 = arith.constant 0 : index
    %c0_50 = arith.constant 0 : index
    %85 = vector.load %arg16[%c0_49, %c0_50] : memref<512x896xbf16, #tpu.memory_space<vmem>>, vector<512x896xbf16>
    %cst_51 = arith.constant dense<0.000000e+00> : vector<16x896xf32>
    %86 = tpu.matmul %84, %85, %cst_51 {dimension_numbers = #tpu.dot_dimension_numbers<[1], [0], [0], [1], [0, 0, 1, 1], [], []>} : vector<16x512xbf16>, vector<512x896xbf16>, vector<16x896xf32> -> vector<16x896xf32>
    %c0_52 = arith.constant 0 : index
    %c0_53 = arith.constant 0 : index
    %87 = vector.load %arg17[%c0_52, %c0_53] : memref<1x896xf32, #tpu.memory_space<vmem>>, vector<1x896xf32>
    %88 = vector.broadcast %87 : vector<1x896xf32> to vector<16x896xf32>
    %89 = arith.addf %86, %88 : vector<16x896xf32>
    %90 = arith.negf %89 : vector<16x896xf32>
    %91 = math.exp %90 : vector<16x896xf32>
    %cst_54 = arith.constant 1.000000e+00 : f32
    %92 = vector.broadcast %cst_54 : f32 to vector<16x896xf32>
    %93 = arith.addf %92, %91 : vector<16x896xf32>
    %94 = arith.divf %92, %93 : vector<16x896xf32>
    %c0_55 = arith.constant 0 : index
    %c0_56 = arith.constant 0 : index
    %95 = vector.load %arg18[%c0_55, %c0_56] : memref<16x896xf32, #tpu.memory_space<vmem>>, vector<16x896xf32>
    tpu.vector_store %arg18[%c0_55, %c0_56], %94 {strides = array<i32>} : memref<16x896xf32, #tpu.memory_space<vmem>>, vector<16x896xf32>,
    return
  }
  func.func @transform_0(%arg0: i32) -> (i32, i32) {
    %c0_i32 = arith.constant 0 : i32
    %c0_i32_0 = arith.constant 0 : i32
    return %arg0, %c0_i32 : i32, i32
  }
  func.func @transform_1(%arg0: i32) -> (i32, i32) {
    %c0_i32 = arith.constant 0 : i32
    %c0_i32_0 = arith.constant 0 : i32
    %c0_i32_1 = arith.constant 0 : i32
    return %c0_i32, %c0_i32_0 : i32, i32
  }
  func.func @transform_2(%arg0: i32) -> (i32, i32) {
    %c0_i32 = arith.constant 0 : i32
    %c0_i32_0 = arith.constant 0 : i32
    %c0_i32_1 = arith.constant 0 : i32
    return %c0_i32, %c0_i32_0 : i32, i32
  }
  func.func @transform_3(%arg0: i32) -> (i32, i32) {
    %c0_i32 = arith.constant 0 : i32
    %c0_i32_0 = arith.constant 0 : i32
    %c0_i32_1 = arith.constant 0 : i32
    return %c0_i32, %c0_i32_0 : i32, i32
  }
  func.func @transform_4(%arg0: i32) -> (i32, i32) {
    %c0_i32 = arith.constant 0 : i32
    %c0_i32_0 = arith.constant 0 : i32
    %c0_i32_1 = arith.constant 0 : i32
    return %c0_i32, %c0_i32_0 : i32, i32
  }
  func.func @transform_5(%arg0: i32) -> (i32, i32) {
    %c0_i32 = arith.constant 0 : i32
    %c0_i32_0 = arith.constant 0 : i32
    %c0_i32_1 = arith.constant 0 : i32
    return %c0_i32, %c0_i32_0 : i32, i32
  }
  func.func @transform_6(%arg0: i32) -> (i32, i32) {
    %c0_i32 = arith.constant 0 : i32
    %c0_i32_0 = arith.constant 0 : i32
    %c0_i32_1 = arith.constant 0 : i32
    return %c0_i32, %c0_i32_0 : i32, i32
  }
  func.func @transform_7(%arg0: i32) -> (i32, i32) {
    %c0_i32 = arith.constant 0 : i32
    %c0_i32_0 = arith.constant 0 : i32
    %c0_i32_1 = arith.constant 0 : i32
    return %c0_i32, %c0_i32_0 : i32, i32
  }
  func.func @transform_8(%arg0: i32) -> (i32, i32) {
    %c0_i32 = arith.constant 0 : i32
    %c0_i32_0 = arith.constant 0 : i32
    %c0_i32_1 = arith.constant 0 : i32
    return %c0_i32, %c0_i32_0 : i32, i32
  }
  func.func @transform_9(%arg0: i32) -> (i32, i32) {
    %c0_i32 = arith.constant 0 : i32
    %c0_i32_0 = arith.constant 0 : i32
    %c0_i32_1 = arith.constant 0 : i32
    return %c0_i32, %c0_i32_0 : i32, i32
  }
  func.func @transform_10(%arg0: i32) -> (i32, i32) {
    %c0_i32 = arith.constant 0 : i32
    %c0_i32_0 = arith.constant 0 : i32
    %c0_i32_1 = arith.constant 0 : i32
    return %c0_i32, %c0_i32_0 : i32, i32
  }
  func.func @transform_11(%arg0: i32) -> (i32, i32) {
    %c0_i32 = arith.constant 0 : i32
    %c0_i32_0 = arith.constant 0 : i32
    %c0_i32_1 = arith.constant 0 : i32
    return %c0_i32, %c0_i32_0 : i32, i32
  }
  func.func @transform_12(%arg0: i32) -> (i32, i32) {
    %c0_i32 = arith.constant 0 : i32
    %c0_i32_0 = arith.constant 0 : i32
    %c0_i32_1 = arith.constant 0 : i32
    return %c0_i32, %c0_i32_0 : i32, i32
  }
  func.func @transform_13(%arg0: i32) -> (i32, i32) {
    %c0_i32 = arith.constant 0 : i32
    %c0_i32_0 = arith.constant 0 : i32
    %c0_i32_1 = arith.constant 0 : i32
    return %c0_i32, %c0_i32_0 : i32, i32
  }
  func.func @transform_14(%arg0: i32) -> (i32, i32) {
    %c0_i32 = arith.constant 0 : i32
    %c0_i32_0 = arith.constant 0 : i32
    %c0_i32_1 = arith.constant 0 : i32
    return %c0_i32, %c0_i32_0 : i32, i32
  }
  func.func @transform_15(%arg0: i32) -> (i32, i32) {
    %c0_i32 = arith.constant 0 : i32
    %c0_i32_0 = arith.constant 0 : i32
    %c0_i32_1 = arith.constant 0 : i32
    return %c0_i32, %c0_i32_0 : i32, i32
  }
  func.func @transform_16(%arg0: i32) -> (i32, i32) {
    %c0_i32 = arith.constant 0 : i32
    %c0_i32_0 = arith.constant 0 : i32
    %c0_i32_1 = arith.constant 0 : i32
    return %c0_i32, %c0_i32_0 : i32, i32
  }
  func.func @transform_17(%arg0: i32) -> (i32, i32) {
    %c0_i32 = arith.constant 0 : i32
    %c0_i32_0 = arith.constant 0 : i32
    return %arg0, %c0_i32 : i32, i32
  }
}

module attributes {stable_mosaic.version = 11 : i64} {
  func.func @ae_kernel(%arg0: i32, %arg1: memref<16x896xbf16, #tpu.memory_space<vmem>>, %arg2: memref<896x512xbf16, #tpu.memory_space<vmem>>, %arg3: memref<1x512xf32, #tpu.memory_space<vmem>>, %arg4: memref<512x256xbf16, #tpu.memory_space<vmem>>, %arg5: memref<1x256xf32, #tpu.memory_space<vmem>>, %arg6: memref<256x128xbf16, #tpu.memory_space<vmem>>, %arg7: memref<1x128xf32, #tpu.memory_space<vmem>>, %arg8: memref<128x128xbf16, #tpu.memory_space<vmem>>, %arg9: memref<1x128xf32, #tpu.memory_space<vmem>>, %arg10: memref<128x128xbf16, #tpu.memory_space<vmem>>, %arg11: memref<1x128xf32, #tpu.memory_space<vmem>>, %arg12: memref<128x256xbf16, #tpu.memory_space<vmem>>, %arg13: memref<1x256xf32, #tpu.memory_space<vmem>>, %arg14: memref<256x512xbf16, #tpu.memory_space<vmem>>, %arg15: memref<1x512xf32, #tpu.memory_space<vmem>>, %arg16: memref<512x896xbf16, #tpu.memory_space<vmem>>, %arg17: memref<1x896xf32, #tpu.memory_space<vmem>>, %arg18: memref<16x896xf32, #tpu.memory_space<vmem>>) attributes {dimension_semantics = [#tpu.dimension_semantics<parallel>], iteration_bounds = array<i64: 1>, scalar_prefetch = 0 : i64, scratch_operands = 0 : i64, tpu.core_type = #tpu.core_type<tc>, window_params = [{transform_indices = @transform_0, window_bounds = array<i64: 16, 896>}, {pipeline_mode = #tpu.pipeline_mode<synchronous>, transform_indices = @transform_1, window_bounds = array<i64: 896, 512>}, {pipeline_mode = #tpu.pipeline_mode<synchronous>, transform_indices = @transform_2, window_bounds = array<i64: 1, 512>}, {pipeline_mode = #tpu.pipeline_mode<synchronous>, transform_indices = @transform_3, window_bounds = array<i64: 512, 256>}, {pipeline_mode = #tpu.pipeline_mode<synchronous>, transform_indices = @transform_4, window_bounds = array<i64: 1, 256>}, {pipeline_mode = #tpu.pipeline_mode<synchronous>, transform_indices = @transform_5, window_bounds = array<i64: 256, 128>}, {pipeline_mode = #tpu.pipeline_mode<synchronous>, transform_indices = @transform_6, window_bounds = array<i64: 1, 128>}, {pipeline_mode = #tpu.pipeline_mode<synchronous>, transform_indices = @transform_7, window_bounds = array<i64: 128, 128>}, {pipeline_mode = #tpu.pipeline_mode<synchronous>, transform_indices = @transform_8, window_bounds = array<i64: 1, 128>}, {pipeline_mode = #tpu.pipeline_mode<synchronous>, transform_indices = @transform_9, window_bounds = array<i64: 128, 128>}, {pipeline_mode = #tpu.pipeline_mode<synchronous>, transform_indices = @transform_10, window_bounds = array<i64: 1, 128>}, {pipeline_mode = #tpu.pipeline_mode<synchronous>, transform_indices = @transform_11, window_bounds = array<i64: 128, 256>}, {pipeline_mode = #tpu.pipeline_mode<synchronous>, transform_indices = @transform_12, window_bounds = array<i64: 1, 256>}, {pipeline_mode = #tpu.pipeline_mode<synchronous>, transform_indices = @transform_13, window_bounds = array<i64: 256, 512>}, {pipeline_mode = #tpu.pipeline_mode<synchronous>, transform_indices = @transform_14, window_bounds = array<i64: 1, 512>}, {pipeline_mode = #tpu.pipeline_mode<synchronous>, transform_indices = @transform_15, window_bounds = array<i64: 512, 896>}, {pipeline_mode = #tpu.pipeline_mode<synchronous>, transform_indices = @transform_16, window_bounds = array<i64: 1, 896>}, {transform_indices = @transform_17, window_bounds = array<i64: 16, 896>}]} {
    %c0 = arith.constant 0 : index
    %c0_0 = arith.constant 0 : index
    %0 = vector.load %arg1[%c0, %c0_0] : memref<16x896xbf16, #tpu.memory_space<vmem>>, vector<16x896xbf16>
    %c0_1 = arith.constant 0 : index
    %c0_2 = arith.constant 0 : index
    %1 = vector.load %arg2[%c0_1, %c0_2] : memref<896x512xbf16, #tpu.memory_space<vmem>>, vector<896x512xbf16>
    %cst = arith.constant dense<0.000000e+00> : vector<16x512xf32>
    %2 = tpu.matmul %0, %1, %cst {dimension_numbers = #tpu.dot_dimension_numbers<[1], [0], [0], [1], [0, 0, 1, 1], [], []>} : vector<16x896xbf16>, vector<896x512xbf16>, vector<16x512xf32> -> vector<16x512xf32>
    %3 = arith.truncf %2 : vector<16x512xf32> to vector<16x512xbf16>
    %c0_3 = arith.constant 0 : index
    %c0_4 = arith.constant 0 : index
    %4 = vector.load %arg3[%c0_3, %c0_4] : memref<1x512xf32, #tpu.memory_space<vmem>>, vector<1x512xf32>
    %5 = arith.truncf %4 : vector<1x512xf32> to vector<1x512xbf16>
    %6 = vector.broadcast %5 : vector<1x512xbf16> to vector<16x512xbf16>
    %7 = arith.addf %3, %6 : vector<16x512xbf16>
    %cst_5 = arith.constant 0.000000e+00 : bf16
    %8 = vector.broadcast %cst_5 : bf16 to vector<16x512xbf16>
    %9 = arith.cmpf ogt, %7, %8 : vector<16x512xbf16>
    %cst_6 = arith.constant 1.000980e-01 : bf16
    %10 = vector.broadcast %cst_6 : bf16 to vector<16x512xbf16>
    %11 = arith.mulf %10, %7 : vector<16x512xbf16>
    %12 = arith.select %9, %7, %11 : vector<16x512xi1>, vector<16x512xbf16>
    %c0_7 = arith.constant 0 : index
    %c0_8 = arith.constant 0 : index
    %13 = vector.load %arg4[%c0_7, %c0_8] : memref<512x256xbf16, #tpu.memory_space<vmem>>, vector<512x256xbf16>
    %cst_9 = arith.constant dense<0.000000e+00> : vector<16x256xf32>
    %14 = tpu.matmul %12, %13, %cst_9 {dimension_numbers = #tpu.dot_dimension_numbers<[1], [0], [0], [1], [0, 0, 1, 1], [], []>} : vector<16x512xbf16>, vector<512x256xbf16>, vector<16x256xf32> -> vector<16x256xf32>
    %15 = arith.truncf %14 : vector<16x256xf32> to vector<16x256xbf16>
    %c0_10 = arith.constant 0 : index
    %c0_11 = arith.constant 0 : index
    %16 = vector.load %arg5[%c0_10, %c0_11] : memref<1x256xf32, #tpu.memory_space<vmem>>, vector<1x256xf32>
    %17 = arith.truncf %16 : vector<1x256xf32> to vector<1x256xbf16>
    %18 = vector.broadcast %17 : vector<1x256xbf16> to vector<16x256xbf16>
    %19 = arith.addf %15, %18 : vector<16x256xbf16>
    %cst_12 = arith.constant 0.000000e+00 : bf16
    %20 = vector.broadcast %cst_12 : bf16 to vector<16x256xbf16>
    %21 = arith.cmpf ogt, %19, %20 : vector<16x256xbf16>
    %cst_13 = arith.constant 1.000980e-01 : bf16
    %22 = vector.broadcast %cst_13 : bf16 to vector<16x256xbf16>
    %23 = arith.mulf %22, %19 : vector<16x256xbf16>
    %24 = arith.select %21, %19, %23 : vector<16x256xi1>, vector<16x256xbf16>
    %c0_14 = arith.constant 0 : index
    %c0_15 = arith.constant 0 : index
    %25 = vector.load %arg6[%c0_14, %c0_15] : memref<256x128xbf16, #tpu.memory_space<vmem>>, vector<256x128xbf16>
    %cst_16 = arith.constant dense<0.000000e+00> : vector<16x128xf32>
    %26 = tpu.matmul %24, %25, %cst_16 {dimension_numbers = #tpu.dot_dimension_numbers<[1], [0], [0], [1], [0, 0, 1, 1], [], []>} : vector<16x256xbf16>, vector<256x128xbf16>, vector<16x128xf32> -> vector<16x128xf32>
    %27 = arith.truncf %26 : vector<16x128xf32> to vector<16x128xbf16>
    %c0_17 = arith.constant 0 : index
    %c0_18 = arith.constant 0 : index
    %28 = vector.load %arg7[%c0_17, %c0_18] : memref<1x128xf32, #tpu.memory_space<vmem>>, vector<1x128xf32>
    %29 = arith.truncf %28 : vector<1x128xf32> to vector<1x128xbf16>
    %30 = vector.broadcast %29 : vector<1x128xbf16> to vector<16x128xbf16>
    %31 = arith.addf %27, %30 : vector<16x128xbf16>
    %cst_19 = arith.constant 0.000000e+00 : bf16
    %32 = vector.broadcast %cst_19 : bf16 to vector<16x128xbf16>
    %33 = arith.cmpf ogt, %31, %32 : vector<16x128xbf16>
    %cst_20 = arith.constant 1.000980e-01 : bf16
    %34 = vector.broadcast %cst_20 : bf16 to vector<16x128xbf16>
    %35 = arith.mulf %34, %31 : vector<16x128xbf16>
    %36 = arith.select %33, %31, %35 : vector<16x128xi1>, vector<16x128xbf16>
    %c0_21 = arith.constant 0 : index
    %c0_22 = arith.constant 0 : index
    %37 = vector.load %arg8[%c0_21, %c0_22] : memref<128x128xbf16, #tpu.memory_space<vmem>>, vector<128x128xbf16>
    %cst_23 = arith.constant dense<0.000000e+00> : vector<16x128xf32>
    %38 = tpu.matmul %36, %37, %cst_23 {dimension_numbers = #tpu.dot_dimension_numbers<[1], [0], [0], [1], [0, 0, 1, 1], [], []>} : vector<16x128xbf16>, vector<128x128xbf16>, vector<16x128xf32> -> vector<16x128xf32>
    %39 = arith.truncf %38 : vector<16x128xf32> to vector<16x128xbf16>
    %c0_24 = arith.constant 0 : index
    %c0_25 = arith.constant 0 : index
    %40 = vector.load %arg9[%c0_24, %c0_25] : memref<1x128xf32, #tpu.memory_space<vmem>>, vector<1x128xf32>
    %41 = arith.truncf %40 : vector<1x128xf32> to vector<1x128xbf16>
    %42 = vector.broadcast %41 : vector<1x128xbf16> to vector<16x128xbf16>
    %43 = arith.addf %39, %42 : vector<16x128xbf16>
    %cst_26 = arith.constant 0.000000e+00 : bf16
    %44 = vector.broadcast %cst_26 : bf16 to vector<16x128xbf16>
    %45 = arith.cmpf ogt, %43, %44 : vector<16x128xbf16>
    %cst_27 = arith.constant 1.000980e-01 : bf16
    %46 = vector.broadcast %cst_27 : bf16 to vector<16x128xbf16>
    %47 = arith.mulf %46, %43 : vector<16x128xbf16>
    %48 = arith.select %45, %43, %47 : vector<16x128xi1>, vector<16x128xbf16>
    %c0_28 = arith.constant 0 : index
    %c0_29 = arith.constant 0 : index
    %49 = vector.load %arg10[%c0_28, %c0_29] : memref<128x128xbf16, #tpu.memory_space<vmem>>, vector<128x128xbf16>
    %cst_30 = arith.constant dense<0.000000e+00> : vector<16x128xf32>
    %50 = tpu.matmul %48, %49, %cst_30 {dimension_numbers = #tpu.dot_dimension_numbers<[1], [0], [0], [1], [0, 0, 1, 1], [], []>} : vector<16x128xbf16>, vector<128x128xbf16>, vector<16x128xf32> -> vector<16x128xf32>
    %51 = arith.truncf %50 : vector<16x128xf32> to vector<16x128xbf16>
    %c0_31 = arith.constant 0 : index
    %c0_32 = arith.constant 0 : index
    %52 = vector.load %arg11[%c0_31, %c0_32] : memref<1x128xf32, #tpu.memory_space<vmem>>, vector<1x128xf32>
    %53 = arith.truncf %52 : vector<1x128xf32> to vector<1x128xbf16>
    %54 = vector.broadcast %53 : vector<1x128xbf16> to vector<16x128xbf16>
    %55 = arith.addf %51, %54 : vector<16x128xbf16>
    %cst_33 = arith.constant 0.000000e+00 : bf16
    %56 = vector.broadcast %cst_33 : bf16 to vector<16x128xbf16>
    %57 = arith.cmpf ogt, %55, %56 : vector<16x128xbf16>
    %cst_34 = arith.constant 1.000980e-01 : bf16
    %58 = vector.broadcast %cst_34 : bf16 to vector<16x128xbf16>
    %59 = arith.mulf %58, %55 : vector<16x128xbf16>
    %60 = arith.select %57, %55, %59 : vector<16x128xi1>, vector<16x128xbf16>
    %c0_35 = arith.constant 0 : index
    %c0_36 = arith.constant 0 : index
    %61 = vector.load %arg12[%c0_35, %c0_36] : memref<128x256xbf16, #tpu.memory_space<vmem>>, vector<128x256xbf16>
    %cst_37 = arith.constant dense<0.000000e+00> : vector<16x256xf32>
    %62 = tpu.matmul %60, %61, %cst_37 {dimension_numbers = #tpu.dot_dimension_numbers<[1], [0], [0], [1], [0, 0, 1, 1], [], []>} : vector<16x128xbf16>, vector<128x256xbf16>, vector<16x256xf32> -> vector<16x256xf32>
    %63 = arith.truncf %62 : vector<16x256xf32> to vector<16x256xbf16>
    %c0_38 = arith.constant 0 : index
    %c0_39 = arith.constant 0 : index
    %64 = vector.load %arg13[%c0_38, %c0_39] : memref<1x256xf32, #tpu.memory_space<vmem>>, vector<1x256xf32>
    %65 = arith.truncf %64 : vector<1x256xf32> to vector<1x256xbf16>
    %66 = vector.broadcast %65 : vector<1x256xbf16> to vector<16x256xbf16>
    %67 = arith.addf %63, %66 : vector<16x256xbf16>
    %cst_40 = arith.constant 0.000000e+00 : bf16
    %68 = vector.broadcast %cst_40 : bf16 to vector<16x256xbf16>
    %69 = arith.cmpf ogt, %67, %68 : vector<16x256xbf16>
    %cst_41 = arith.constant 1.000980e-01 : bf16
    %70 = vector.broadcast %cst_41 : bf16 to vector<16x256xbf16>
    %71 = arith.mulf %70, %67 : vector<16x256xbf16>
    %72 = arith.select %69, %67, %71 : vector<16x256xi1>, vector<16x256xbf16>
    %c0_42 = arith.constant 0 : index
    %c0_43 = arith.constant 0 : index
    %73 = vector.load %arg14[%c0_42, %c0_43] : memref<256x512xbf16, #tpu.memory_space<vmem>>, vector<256x512xbf16>
    %cst_44 = arith.constant dense<0.000000e+00> : vector<16x512xf32>
    %74 = tpu.matmul %72, %73, %cst_44 {dimension_numbers = #tpu.dot_dimension_numbers<[1], [0], [0], [1], [0, 0, 1, 1], [], []>} : vector<16x256xbf16>, vector<256x512xbf16>, vector<16x512xf32> -> vector<16x512xf32>
    %75 = arith.truncf %74 : vector<16x512xf32> to vector<16x512xbf16>
    %c0_45 = arith.constant 0 : index
    %c0_46 = arith.constant 0 : index
    %76 = vector.load %arg15[%c0_45, %c0_46] : memref<1x512xf32, #tpu.memory_space<vmem>>, vector<1x512xf32>
    %77 = arith.truncf %76 : vector<1x512xf32> to vector<1x512xbf16>
    %78 = vector.broadcast %77 : vector<1x512xbf16> to vector<16x512xbf16>
    %79 = arith.addf %75, %78 : vector<16x512xbf16>
    %cst_47 = arith.constant 0.000000e+00 : bf16
    %80 = vector.broadcast %cst_47 : bf16 to vector<16x512xbf16>
    %81 = arith.cmpf ogt, %79, %80 : vector<16x512xbf16>
    %cst_48 = arith.constant 1.000980e-01 : bf16
    %82 = vector.broadcast %cst_48 : bf16 to vector<16x512xbf16>
    %83 = arith.mulf %82, %79 : vector<16x512xbf16>
    %84 = arith.select %81, %79, %83 : vector<16x512xi1>, vector<16x512xbf16>
    %c0_49 = arith.constant 0 : index
    %c0_50 = arith.constant 0 : index
    %85 = vector.load %arg16[%c0_49, %c0_50] : memref<512x896xbf16, #tpu.memory_space<vmem>>, vector<512x896xbf16>
    %cst_51 = arith.constant dense<0.000000e+00> : vector<16x896xf32>
    %86 = tpu.matmul %84, %85, %cst_51 {dimension_numbers = #tpu.dot_dimension_numbers<[1], [0], [0], [1], [0, 0, 1, 1], [], []>} : vector<16x512xbf16>, vector<512x896xbf16>, vector<16x896xf32> -> vector<16x896xf32>
    %c0_52 = arith.constant 0 : index
    %c0_53 = arith.constant 0 : index
    %87 = vector.load %arg17[%c0_52, %c0_53] : memref<1x896xf32, #tpu.memory_space<vmem>>, vector<1x896xf32>
    %88 = vector.broadcast %87 : vector<1x896xf32> to vector<16x896xf32>
    %89 = arith.addf %86, %88 : vector<16x896xf32>
    %90 = arith.negf %89 : vector<16x896xf32>
    %91 = math.exp %90 : vector<16x896xf32>
    %cst_54 = arith.constant 1.000000e+00 : f32
    %92 = vector.broadcast %cst_54 : f32 to vector<16x896xf32>
    %93 = arith.addf %92, %91 : vector<16x896xf32>
    %94 = arith.divf %92, %93 : vector<16x896xf32>
    %c0_55 = arith.constant 0 : index
    %c0_56 = arith.constant 0 : index
    %95 = vector.load %arg18[%c0_55, %c0_56] : memref<16x896xf32, #tpu.memory_space<vmem>>, vector<16x896xf32>
    tpu.vector_store %arg18[%c0_55, %c0_56], %94 {strides = array<i32>} : memref<16x896xf32, #tpu.memory_space<vmem>>, vector<16x896xf32>,
    return
  }
  func.func @transform_0(%arg0: i32) -> (i32, i32) {
    %c0_i32 = arith.constant 0 : i32
    %c0_i32_0 = arith.constant 0 : i32
    return %arg0, %c0_i32 : i32, i32
  }
  func.func @transform_1(%arg0: i32) -> (i32, i32) {
    %c0_i32 = arith.constant 0 : i32
    %c0_i32_0 = arith.constant 0 : i32
    %c0_i32_1 = arith.constant 0 : i32
    return %c0_i32, %c0_i32_0 : i32, i32
  }
  func.func @transform_2(%arg0: i32) -> (i32, i32) {
    %c0_i32 = arith.constant 0 : i32
    %c0_i32_0 = arith.constant 0 : i32
    %c0_i32_1 = arith.constant 0 : i32
    return %c0_i32, %c0_i32_0 : i32, i32
  }
  func.func @transform_3(%arg0: i32) -> (i32, i32) {
    %c0_i32 = arith.constant 0 : i32
    %c0_i32_0 = arith.constant 0 : i32
    %c0_i32_1 = arith.constant 0 : i32
    return %c0_i32, %c0_i32_0 : i32, i32
  }
  func.func @transform_4(%arg0: i32) -> (i32, i32) {
    %c0_i32 = arith.constant 0 : i32
    %c0_i32_0 = arith.constant 0 : i32
    %c0_i32_1 = arith.constant 0 : i32
    return %c0_i32, %c0_i32_0 : i32, i32
  }
  func.func @transform_5(%arg0: i32) -> (i32, i32) {
    %c0_i32 = arith.constant 0 : i32
    %c0_i32_0 = arith.constant 0 : i32
    %c0_i32_1 = arith.constant 0 : i32
    return %c0_i32, %c0_i32_0 : i32, i32
  }
  func.func @transform_6(%arg0: i32) -> (i32, i32) {
    %c0_i32 = arith.constant 0 : i32
    %c0_i32_0 = arith.constant 0 : i32
    %c0_i32_1 = arith.constant 0 : i32
    return %c0_i32, %c0_i32_0 : i32, i32
  }
  func.func @transform_7(%arg0: i32) -> (i32, i32) {
    %c0_i32 = arith.constant 0 : i32
    %c0_i32_0 = arith.constant 0 : i32
    %c0_i32_1 = arith.constant 0 : i32
    return %c0_i32, %c0_i32_0 : i32, i32
  }
  func.func @transform_8(%arg0: i32) -> (i32, i32) {
    %c0_i32 = arith.constant 0 : i32
    %c0_i32_0 = arith.constant 0 : i32
    %c0_i32_1 = arith.constant 0 : i32
    return %c0_i32, %c0_i32_0 : i32, i32
  }
  func.func @transform_9(%arg0: i32) -> (i32, i32) {
    %c0_i32 = arith.constant 0 : i32
    %c0_i32_0 = arith.constant 0 : i32
    %c0_i32_1 = arith.constant 0 : i32
    return %c0_i32, %c0_i32_0 : i32, i32
  }
  func.func @transform_10(%arg0: i32) -> (i32, i32) {
    %c0_i32 = arith.constant 0 : i32
    %c0_i32_0 = arith.constant 0 : i32
    %c0_i32_1 = arith.constant 0 : i32
    return %c0_i32, %c0_i32_0 : i32, i32
  }
  func.func @transform_11(%arg0: i32) -> (i32, i32) {
    %c0_i32 = arith.constant 0 : i32
    %c0_i32_0 = arith.constant 0 : i32
    %c0_i32_1 = arith.constant 0 : i32
    return %c0_i32, %c0_i32_0 : i32, i32
  }
  func.func @transform_12(%arg0: i32) -> (i32, i32) {
    %c0_i32 = arith.constant 0 : i32
    %c0_i32_0 = arith.constant 0 : i32
    %c0_i32_1 = arith.constant 0 : i32
    return %c0_i32, %c0_i32_0 : i32, i32
  }
  func.func @transform_13(%arg0: i32) -> (i32, i32) {
    %c0_i32 = arith.constant 0 : i32
    %c0_i32_0 = arith.constant 0 : i32
    %c0_i32_1 = arith.constant 0 : i32
    return %c0_i32, %c0_i32_0 : i32, i32
  }
  func.func @transform_14(%arg0: i32) -> (i32, i32) {
    %c0_i32 = arith.constant 0 : i32
    %c0_i32_0 = arith.constant 0 : i32
    %c0_i32_1 = arith.constant 0 : i32
    return %c0_i32, %c0_i32_0 : i32, i32
  }
  func.func @transform_15(%arg0: i32) -> (i32, i32) {
    %c0_i32 = arith.constant 0 : i32
    %c0_i32_0 = arith.constant 0 : i32
    %c0_i32_1 = arith.constant 0 : i32
    return %c0_i32, %c0_i32_0 : i32, i32
  }
  func.func @transform_16(%arg0: i32) -> (i32, i32) {
    %c0_i32 = arith.constant 0 : i32
    %c0_i32_0 = arith.constant 0 : i32
    %c0_i32_1 = arith.constant 0 : i32
    return %c0_i32, %c0_i32_0 : i32, i32
  }
  func.func @transform_17(%arg0: i32) -> (i32, i32) {
    %c0_i32 = arith.constant 0 : i32
    %c0_i32_0 = arith.constant 0 : i32
    return %arg0, %c0_i32 : i32, i32
  }
}

</mosaic_0001>

<llo_original>
// kernel: tpu_custom_call.1
$region0: #{tpu_custom_call.1}
  #allocation0 [shape = 'u32[]', space=smem, size = 0x4, offset = 0x4, fixed_abs, tag = 'smem constant byte address 0x4 - core index']
  #allocation1 [shape = 'u32[144,128]{1,0:T(1,128)}', space=vmem, size = 0x12000, scoped, tag = 'internal scratch']
  %s0 = inlined_call_operand.hbm [shape: bf16[16,896], index: 0, kind: input, shape index: {}]
  %s1 = inlined_call_operand.hbm [shape: bf16[896,512], index: 1, kind: input, shape index: {}]
  %s2 = inlined_call_operand.vmem [shape: f32[1,512], index: 2, kind: input, shape index: {}]
  %s3 = inlined_call_operand.hbm [shape: bf16[512,256], index: 3, kind: input, shape index: {}]
  %s4 = inlined_call_operand.hbm [shape: f32[1,256], index: 4, kind: input, shape index: {}]
  %s5 = inlined_call_operand.hbm [shape: bf16[256,128], index: 5, kind: input, shape index: {}]
  %s6 = inlined_call_operand.vmem [shape: f32[1,128], index: 6, kind: input, shape index: {}]
  %s7 = inlined_call_operand.hbm [shape: bf16[128,128], index: 7, kind: input, shape index: {}]
  %s8 = inlined_call_operand.vmem [shape: f32[1,128], index: 8, kind: input, shape index: {}]
  %s9 = inlined_call_operand.hbm [shape: bf16[128,128], index: 9, kind: input, shape index: {}]
  %s10 = inlined_call_operand.vmem [shape: f32[1,128], index: 10, kind: input, shape index: {}]
  %s11 = inlined_call_operand.hbm [shape: bf16[128,256], index: 11, kind: input, shape index: {}]
  %s12 = inlined_call_operand.vmem [shape: f32[1,256], index: 12, kind: input, shape index: {}]
  %s13 = inlined_call_operand.hbm [shape: bf16[256,512], index: 13, kind: input, shape index: {}]
  %s14 = inlined_call_operand.vmem [shape: f32[1,512], index: 14, kind: input, shape index: {}]
  %s15 = inlined_call_operand.hbm [shape: bf16[512,896], index: 15, kind: input, shape index: {}]
  %s16 = inlined_call_operand.vmem [shape: f32[1,896], index: 16, kind: input, shape index: {}]
  %s17 = inlined_call_operand.hbm [shape: f32[16,896], index: 17, kind: output, shape index: {}]
  %s18 = sld [smem:[#allocation0]]
  $region118: #{tpu_custom_call.1} parent=0
    _
  %s20 = ssub.s32 1, %s18
  %s21 = scalar_select 0, %s20, %s18
  $region1: #{tpu_custom_call.1} parent=0
    #allocation2 [shape = 'u8[28672]{0}', space=vmem, size = 0x7000, scoped, tag = 'input window, operand 0, single buffered']
    #allocation3 [shape = 's32[1]{0}', space=sflag, size = 0x4, scoped, tag = 'scoped memory for tpu_custom_call.1']
    #allocation4 [shape = 's32[1]{0}', space=sflag, size = 0x4, scoped, tag = 'scoped memory for tpu_custom_call.1']
    #allocation5 [shape = 'u8[917504]{0}', space=vmem, size = 0xe0000, scoped, tag = 'input window, operand 1, single buffered']
    #allocation6 [shape = 's32[1]{0}', space=sflag, size = 0x4, scoped, tag = 'scoped memory for tpu_custom_call.1']
    #allocation7 [shape = 'u8[262144]{0}', space=vmem, size = 0x40000, scoped, tag = 'input window, operand 3, single buffered']
    #allocation8 [shape = 'u8[1024]{0}', space=vmem, size = 0x400, scoped, tag = 'input window, operand 4, single buffered']
    #allocation9 [shape = 's32[1]{0}', space=sflag, size = 0x4, scoped, tag = 'scoped memory for tpu_custom_call.1']
    #allocation10 [shape = 'u8[65536]{0}', space=vmem, size = 0x10000, scoped, tag = 'input window, operand 5, single buffered']
    #allocation11 [shape = 'u8[32768]{0}', space=vmem, size = 0x8000, scoped, tag = 'input window, operand 7, single buffered']
    #allocation12 [shape = 's32[1]{0}', space=sflag, size = 0x4, scoped, tag = 'scoped memory for tpu_custom_call.1']
    #allocation13 [shape = 'u8[32768]{0}', space=vmem, size = 0x8000, scoped, tag = 'input window, operand 9, single buffered']
    #allocation14 [shape = 'u8[65536]{0}', space=vmem, size = 0x10000, scoped, tag = 'input window, operand 11, single buffered']
    #allocation15 [shape = 's32[1]{0}', space=sflag, size = 0x4, scoped, tag = 'scoped memory for tpu_custom_call.1']
    #allocation16 [shape = 'u8[262144]{0}', space=vmem, size = 0x40000, scoped, tag = 'input window, operand 13, single buffered']
    #allocation17 [shape = 'u8[917504]{0}', space=vmem, size = 0xe0000, scoped, tag = 'input window, operand 15, single buffered']
    #allocation18 [shape = 's32[1]{0}', space=sflag, size = 0x4, scoped, tag = 'scoped memory for tpu_custom_call.1']
    #allocation19 [shape = 'u8[57344]{0}', space=vmem, size = 0xe000, scoped, tag = 'output window, operand 0, single buffered']
    %22 = vsyncpa [#allocation3], 0
    %23 = vsyncpa [#allocation6], 0
    %24 = vsyncpa [#allocation9], 0
    %25 = vsyncpa [#allocation12], 0
    %26 = vsyncpa [#allocation15], 0
    %27 = vsyncpa [#allocation18], 0
    %28 = vsyncpa [#allocation4], 0
    // Predicated region
    $region2: #{tpu_custom_call.1} parent=1 // pred_check
      _
    $region3: #{tpu_custom_call.1} parent=1 // pred_check_branch
      %30 = sbr.rel (0) target = $region5
    $region4: #{tpu_custom_call.1} parent=1 // pred_region
      %s32 = ssub.s32 896, 896
      %33 = vsyncadd [#allocation3], %s32
      %s34 = sshll.u32 [#allocation2], 4
      %s35 = int_to_ptr.vmem [resolvable:$true] %s34
      %40 = dma.hbm_to_vmem [thread:$0]  %s0, 896, %s35, [#allocation3], 448, 448, 28
    $region5: #{tpu_custom_call.1} parent=1 // pred_fallthru
      _
    // Predicated region
    $region6: #{tpu_custom_call.1} parent=1 // pred_check
      _
    $region7: #{tpu_custom_call.1} parent=1 // pred_check_branch
      %42 = sbr.rel (0) target = $region9
    $region8: #{tpu_custom_call.1} parent=1 // pred_region
      %s44 = ssub.s32 28672, 28672
      %45 = vsyncadd [#allocation6], %s44
      %s46 = sshll.u32 [#allocation5], 4
      %s47 = int_to_ptr.vmem [resolvable:$true] %s46
      %52 = dma.hbm_to_vmem [thread:$0]  %s1, 28672, %s47, [#allocation6], 256, 256, 16
    $region9: #{tpu_custom_call.1} parent=1 // pred_fallthru
      _
    // Predicated region
    $region10: #{tpu_custom_call.1} parent=1 // pred_check
      _
    $region11: #{tpu_custom_call.1} parent=1 // pred_check_branch
      %54 = sbr.rel (0) target = $region13
    $region12: #{tpu_custom_call.1} parent=1 // pred_region
      _
    $region13: #{tpu_custom_call.1} parent=1 // pred_fallthru
      _
    // Predicated region
    $region14: #{tpu_custom_call.1} parent=1 // pred_check
      _
    $region15: #{tpu_custom_call.1} parent=1 // pred_check_branch
      %56 = sbr.rel (0) target = $region17
    $region16: #{tpu_custom_call.1} parent=1 // pred_region
      %s58 = ssub.s32 8192, 8192
      %59 = vsyncadd [#allocation6], %s58
      %s60 = sshll.u32 [#allocation7], 4
      %s61 = int_to_ptr.vmem [resolvable:$true] %s60
      %66 = dma.hbm_to_vmem [thread:$0]  %s3, 8192, %s61, [#allocation6], 128, 128, 8
    $region17: #{tpu_custom_call.1} parent=1 // pred_fallthru
      _
    // Predicated region
    $region18: #{tpu_custom_call.1} parent=1 // pred_check
      _
    $region19: #{tpu_custom_call.1} parent=1 // pred_check_branch
      %68 = sbr.rel (0) target = $region21
    $region20: #{tpu_custom_call.1} parent=1 // pred_region
      %s70 = ssub.s32 32, 32
      %71 = vsyncadd [#allocation9], %s70
      %s73 = sshll.u32 [#allocation8], 4
      %s74 = int_to_ptr.vmem [resolvable:$true] %s73
      %76 = dma.hbm_to_vmem [thread:$0]  %s4, 32, %s74, [#allocation9]
    $region21: #{tpu_custom_call.1} parent=1 // pred_fallthru
      _
    // Predicated region
    $region22: #{tpu_custom_call.1} parent=1 // pred_check
      _
    $region23: #{tpu_custom_call.1} parent=1 // pred_check_branch
      %78 = sbr.rel (0) target = $region25
    $region24: #{tpu_custom_call.1} parent=1 // pred_region
      %s80 = ssub.s32 2048, 2048
      %81 = vsyncadd [#allocation9], %s80
      %s82 = sshll.u32 [#allocation10], 4
      %s83 = int_to_ptr.vmem [resolvable:$true] %s82
      %88 = dma.hbm_to_vmem [thread:$0]  %s5, 2048, %s83, [#allocation9], 64, 64, 4
    $region25: #{tpu_custom_call.1} parent=1 // pred_fallthru
      _
    // Predicated region
    $region26: #{tpu_custom_call.1} parent=1 // pred_check
      _
    $region27: #{tpu_custom_call.1} parent=1 // pred_check_branch
      %90 = sbr.rel (0) target = $region29
    $region28: #{tpu_custom_call.1} parent=1 // pred_region
      _
    $region29: #{tpu_custom_call.1} parent=1 // pred_fallthru
      _
    // Predicated region
    $region30: #{tpu_custom_call.1} parent=1 // pred_check
      _
    $region31: #{tpu_custom_call.1} parent=1 // pred_check_branch
      %92 = sbr.rel (0) target = $region33
    $region32: #{tpu_custom_call.1} parent=1 // pred_region
      %s94 = ssub.s32 1024, 1024
      %95 = vsyncadd [#allocation12], %s94
      %s96 = sshll.u32 [#allocation11], 4
      %s97 = int_to_ptr.vmem [resolvable:$true] %s96
      %102 = dma.hbm_to_vmem [thread:$0]  %s7, 1024, %s97, [#allocation12], 64, 64, 4
    $region33: #{tpu_custom_call.1} parent=1 // pred_fallthru
      _
    // Predicated region
    $region34: #{tpu_custom_call.1} parent=1 // pred_check
      _
    $region35: #{tpu_custom_call.1} parent=1 // pred_check_branch
      %104 = sbr.rel (0) target = $region37
    $region36: #{tpu_custom_call.1} parent=1 // pred_region
      _
    $region37: #{tpu_custom_call.1} parent=1 // pred_fallthru
      _
    // Predicated region
    $region38: #{tpu_custom_call.1} parent=1 // pred_check
      _
    $region39: #{tpu_custom_call.1} parent=1 // pred_check_branch
      %106 = sbr.rel (0) target = $region41
    $region40: #{tpu_custom_call.1} parent=1 // pred_region
      %s108 = ssub.s32 1024, 1024
      %109 = vsyncadd [#allocation12], %s108
      %s110 = sshll.u32 [#allocation13], 4
      %s111 = int_to_ptr.vmem [resolvable:$true] %s110
      %116 = dma.hbm_to_vmem [thread:$0]  %s9, 1024, %s111, [#allocation12], 64, 64, 4
    $region41: #{tpu_custom_call.1} parent=1 // pred_fallthru
      _
    // Predicated region
    $region42: #{tpu_custom_call.1} parent=1 // pred_check
      _
    $region43: #{tpu_custom_call.1} parent=1 // pred_check_branch
      %118 = sbr.rel (0) target = $region45
    $region44: #{tpu_custom_call.1} parent=1 // pred_region
      _
    $region45: #{tpu_custom_call.1} parent=1 // pred_fallthru
      _
    // Predicated region
    $region46: #{tpu_custom_call.1} parent=1 // pred_check
      _
    $region47: #{tpu_custom_call.1} parent=1 // pred_check_branch
      %120 = sbr.rel (0) target = $region49
    $region48: #{tpu_custom_call.1} parent=1 // pred_region
      %s122 = ssub.s32 2048, 2048
      %123 = vsyncadd [#allocation15], %s122
      %s124 = sshll.u32 [#allocation14], 4
      %s125 = int_to_ptr.vmem [resolvable:$true] %s124
      %130 = dma.hbm_to_vmem [thread:$0]  %s11, 2048, %s125, [#allocation15], 128, 128, 8
    $region49: #{tpu_custom_call.1} parent=1 // pred_fallthru
      _
    // Predicated region
    $region50: #{tpu_custom_call.1} parent=1 // pred_check
      _
    $region51: #{tpu_custom_call.1} parent=1 // pred_check_branch
      %132 = sbr.rel (0) target = $region53
    $region52: #{tpu_custom_call.1} parent=1 // pred_region
      _
    $region53: #{tpu_custom_call.1} parent=1 // pred_fallthru
      _
    // Predicated region
    $region54: #{tpu_custom_call.1} parent=1 // pred_check
      _
    $region55: #{tpu_custom_call.1} parent=1 // pred_check_branch
      %134 = sbr.rel (0) target = $region57
    $region56: #{tpu_custom_call.1} parent=1 // pred_region
      %s136 = ssub.s32 8192, 8192
      %137 = vsyncadd [#allocation15], %s136
      %s138 = sshll.u32 [#allocation16], 4
      %s139 = int_to_ptr.vmem [resolvable:$true] %s138
      %144 = dma.hbm_to_vmem [thread:$0]  %s13, 8192, %s139, [#allocation15], 256, 256, 16
    $region57: #{tpu_custom_call.1} parent=1 // pred_fallthru
      _
    // Predicated region
    $region58: #{tpu_custom_call.1} parent=1 // pred_check
      _
    $region59: #{tpu_custom_call.1} parent=1 // pred_check_branch
      %146 = sbr.rel (0) target = $region61
    $region60: #{tpu_custom_call.1} parent=1 // pred_region
      _
    $region61: #{tpu_custom_call.1} parent=1 // pred_fallthru
      _
    // Predicated region
    $region62: #{tpu_custom_call.1} parent=1 // pred_check
      _
    $region63: #{tpu_custom_call.1} parent=1 // pred_check_branch
      %148 = sbr.rel (0) target = $region65
    $region64: #{tpu_custom_call.1} parent=1 // pred_region
      %s150 = ssub.s32 28672, 28672
      %151 = vsyncadd [#allocation18], %s150
      %s152 = sshll.u32 [#allocation17], 4
      %s153 = int_to_ptr.vmem [resolvable:$true] %s152
      %158 = dma.hbm_to_vmem [thread:$0]  %s15, 28672, %s153, [#allocation18], 448, 448, 28
    $region65: #{tpu_custom_call.1} parent=1 // pred_fallthru
      _
    // Predicated region
    $region66: #{tpu_custom_call.1} parent=1 // pred_check
      _
    $region67: #{tpu_custom_call.1} parent=1 // pred_check_branch
      %160 = sbr.rel (0) target = $region69
    $region68: #{tpu_custom_call.1} parent=1 // pred_region
      _
    $region69: #{tpu_custom_call.1} parent=1 // pred_fallthru
      _
    // Predicated region
    $region70: #{tpu_custom_call.1} parent=1 // pred_check
      _
    $region71: #{tpu_custom_call.1} parent=1 // pred_check_branch
      %162 = sbr.rel (0) target = $region73
    $region72: #{tpu_custom_call.1} parent=1 // pred_region
      %163 = dma.done [#allocation3], 896
    $region73: #{tpu_custom_call.1} parent=1 // pred_fallthru
      _
    // Predicated region
    $region74: #{tpu_custom_call.1} parent=1 // pred_check
      _
    $region75: #{tpu_custom_call.1} parent=1 // pred_check_branch
      %165 = sbr.rel (0) target = $region77
    $region76: #{tpu_custom_call.1} parent=1 // pred_region
      %166 = dma.done [#allocation6], 28672
    $region77: #{tpu_custom_call.1} parent=1 // pred_fallthru
      _
    // Predicated region
    $region78: #{tpu_custom_call.1} parent=1 // pred_check
      _
    $region79: #{tpu_custom_call.1} parent=1 // pred_check_branch
      %168 = sbr.rel (0) target = $region81
    $region80: #{tpu_custom_call.1} parent=1 // pred_region
      %169 = dma.done [#allocation6], 8192
    $region81: #{tpu_custom_call.1} parent=1 // pred_fallthru
      _
    // Predicated region
    $region82: #{tpu_custom_call.1} parent=1 // pred_check
      _
    $region83: #{tpu_custom_call.1} parent=1 // pred_check_branch
      %171 = sbr.rel (0) target = $region85
    $region84: #{tpu_custom_call.1} parent=1 // pred_region
      %172 = dma.done [#allocation9], 32
    $region85: #{tpu_custom_call.1} parent=1 // pred_fallthru
      _
    // Predicated region
    $region86: #{tpu_custom_call.1} parent=1 // pred_check
      _
    $region87: #{tpu_custom_call.1} parent=1 // pred_check_branch
      %174 = sbr.rel (0) target = $region89
    $region88: #{tpu_custom_call.1} parent=1 // pred_region
      %175 = dma.done [#allocation9], 2048
    $region89: #{tpu_custom_call.1} parent=1 // pred_fallthru
      _
    // Predicated region
    $region90: #{tpu_custom_call.1} parent=1 // pred_check
      _
    $region91: #{tpu_custom_call.1} parent=1 // pred_check_branch
      %177 = sbr.rel (0) target = $region93
    $region92: #{tpu_custom_call.1} parent=1 // pred_region
      %178 = dma.done [#allocation12], 1024
    $region93: #{tpu_custom_call.1} parent=1 // pred_fallthru
      _
    // Predicated region
    $region94: #{tpu_custom_call.1} parent=1 // pred_check
      _
    $region95: #{tpu_custom_call.1} parent=1 // pred_check_branch
      %180 = sbr.rel (0) target = $region97
    $region96: #{tpu_custom_call.1} parent=1 // pred_region
      %181 = dma.done [#allocation12], 1024
    $region97: #{tpu_custom_call.1} parent=1 // pred_fallthru
      _
    // Predicated region
    $region98: #{tpu_custom_call.1} parent=1 // pred_check
      _
    $region99: #{tpu_custom_call.1} parent=1 // pred_check_branch
      %183 = sbr.rel (0) target = $region101
    $region100: #{tpu_custom_call.1} parent=1 // pred_region
      %184 = dma.done [#allocation15], 2048
    $region101: #{tpu_custom_call.1} parent=1 // pred_fallthru
      _
    // Predicated region
    $region102: #{tpu_custom_call.1} parent=1 // pred_check
      _
    $region103: #{tpu_custom_call.1} parent=1 // pred_check_branch
      %186 = sbr.rel (0) target = $region105
    $region104: #{tpu_custom_call.1} parent=1 // pred_region
      %187 = dma.done [#allocation15], 8192
    $region105: #{tpu_custom_call.1} parent=1 // pred_fallthru
      _
    // Predicated region
    $region106: #{tpu_custom_call.1} parent=1 // pred_check
      _
    $region107: #{tpu_custom_call.1} parent=1 // pred_check_branch
      %189 = sbr.rel (0) target = $region109
    $region108: #{tpu_custom_call.1} parent=1 // pred_region
      %190 = dma.done [#allocation18], 28672
    $region109: #{tpu_custom_call.1} parent=1 // pred_fallthru
      _
    %v193 = vld [vmem:[#allocation2] sm:$0xff]
    %v194 = vld [vmem:[#allocation2 + $0x8] sm:$0xff]
    %v195 = vld [vmem:[#allocation2 + $0x10] sm:$0xff]
    %v196 = vld [vmem:[#allocation2 + $0x18] sm:$0xf]
    %v197 = vld [vmem:[#allocation2 + $0x1c] sm:$0xff]
    %v198 = vld [vmem:[#allocation2 + $0x24] sm:$0xff]
    %v199 = vld [vmem:[#allocation2 + $0x2c] sm:$0xff]
    %v200 = vld [vmem:[#allocation2 + $0x34] sm:$0xf]
    %v201 = vld [vmem:[#allocation5] sm:$0xff]
    %v202 = vld [vmem:[#allocation5 + $0x8] sm:$0xff]
    %v203 = vld [vmem:[#allocation5 + $0x10] sm:$0xff]
    %v204 = vld [vmem:[#allocation5 + $0x18] sm:$0xff]
    %v205 = vld [vmem:[#allocation5 + $0x20] sm:$0xff]
    %v206 = vld [vmem:[#allocation5 + $0x28] sm:$0xff]
    %v207 = vld [vmem:[#allocation5 + $0x30] sm:$0xff]
    %v208 = vld [vmem:[#allocation5 + $0x38] sm:$0xff]
    %v209 = vld [vmem:[#allocation5 + $0x40] sm:$0xff]
    %v210 = vld [vmem:[#allocation5 + $0x48] sm:$0xff]
    %v211 = vld [vmem:[#allocation5 + $0x50] sm:$0xff]
    %v212 = vld [vmem:[#allocation5 + $0x58] sm:$0xff]
    %v213 = vld [vmem:[#allocation5 + $0x60] sm:$0xff]
    %v214 = vld [vmem:[#allocation5 + $0x68] sm:$0xff]
    %v215 = vld [vmem:[#allocation5 + $0x70] sm:$0xff]
    %v216 = vld [vmem:[#allocation5 + $0x78] sm:$0xff]
    %v217 = vld [vmem:[#allocation5 + $0x80] sm:$0xff]
    %v218 = vld [vmem:[#allocation5 + $0x88] sm:$0xff]
    %v219 = vld [vmem:[#allocation5 + $0x90] sm:$0xff]
    %v220 = vld [vmem:[#allocation5 + $0x98] sm:$0xff]
    %v221 = vld [vmem:[#allocation5 + $0xa0] sm:$0xff]
    %v222 = vld [vmem:[#allocation5 + $0xa8] sm:$0xff]
    %v223 = vld [vmem:[#allocation5 + $0xb0] sm:$0xff]
    %v224 = vld [vmem:[#allocation5 + $0xb8] sm:$0xff]
    %v225 = vld [vmem:[#allocation5 + $0xc0] sm:$0xff]
    %v226 = vld [vmem:[#allocation5 + $0xc8] sm:$0xff]
    %v227 = vld [vmem:[#allocation5 + $0xd0] sm:$0xff]
    %v228 = vld [vmem:[#allocation5 + $0xd8] sm:$0xff]
    %v229 = vld [vmem:[#allocation5 + $0xe0] sm:$0xff]
    %v230 = vld [vmem:[#allocation5 + $0xe8] sm:$0xff]
    %v231 = vld [vmem:[#allocation5 + $0xf0] sm:$0xff]
    %v232 = vld [vmem:[#allocation5 + $0xf8] sm:$0xff]
    %v233 = vld [vmem:[#allocation5 + $0x100] sm:$0xff]
    %v234 = vld [vmem:[#allocation5 + $0x108] sm:$0xff]
    %v235 = vld [vmem:[#allocation5 + $0x110] sm:$0xff]
    %v236 = vld [vmem:[#allocation5 + $0x118] sm:$0xff]
    %v237 = vld [vmem:[#allocation5 + $0x120] sm:$0xff]
    %v238 = vld [vmem:[#allocation5 + $0x128] sm:$0xff]
    %v239 = vld [vmem:[#allocation5 + $0x130] sm:$0xff]
    %v240 = vld [vmem:[#allocation5 + $0x138] sm:$0xff]
    %v241 = vld [vmem:[#allocation5 + $0x140] sm:$0xff]
    %v242 = vld [vmem:[#allocation5 + $0x148] sm:$0xff]
    %v243 = vld [vmem:[#allocation5 + $0x150] sm:$0xff]
    %v244 = vld [vmem:[#allocation5 + $0x158] sm:$0xff]
    %v245 = vld [vmem:[#allocation5 + $0x160] sm:$0xff]
    %v246 = vld [vmem:[#allocation5 + $0x168] sm:$0xff]
    %v247 = vld [vmem:[#allocation5 + $0x170] sm:$0xff]
    %v248 = vld [vmem:[#allocation5 + $0x178] sm:$0xff]
    %v249 = vld [vmem:[#allocation5 + $0x180] sm:$0xff]
    %v250 = vld [vmem:[#allocation5 + $0x188] sm:$0xff]
    %v251 = vld [vmem:[#allocation5 + $0x190] sm:$0xff]
    %v252 = vld [vmem:[#allocation5 + $0x198] sm:$0xff]
    %v253 = vld [vmem:[#allocation5 + $0x1a0] sm:$0xff]
    %v254 = vld [vmem:[#allocation5 + $0x1a8] sm:$0xff]
    %v255 = vld [vmem:[#allocation5 + $0x1b0] sm:$0xff]
    %v256 = vld [vmem:[#allocation5 + $0x1b8] sm:$0xff]
    %v257 = vld [vmem:[#allocation5 + $0x1c0] sm:$0xff]
    %v258 = vld [vmem:[#allocation5 + $0x1c8] sm:$0xff]
    %v259 = vld [vmem:[#allocation5 + $0x1d0] sm:$0xff]
    %v260 = vld [vmem:[#allocation5 + $0x1d8] sm:$0xff]
    %v261 = vld [vmem:[#allocation5 + $0x1e0] sm:$0xff]
    %v262 = vld [vmem:[#allocation5 + $0x1e8] sm:$0xff]
    %v263 = vld [vmem:[#allocation5 + $0x1f0] sm:$0xff]
    %v264 = vld [vmem:[#allocation5 + $0x1f8] sm:$0xff]
    %v265 = vld [vmem:[#allocation5 + $0x200] sm:$0xff]
    %v266 = vld [vmem:[#allocation5 + $0x208] sm:$0xff]
    %v267 = vld [vmem:[#allocation5 + $0x210] sm:$0xff]
    %v268 = vld [vmem:[#allocation5 + $0x218] sm:$0xff]
    %v269 = vld [vmem:[#allocation5 + $0x220] sm:$0xff]
    %v270 = vld [vmem:[#allocation5 + $0x228] sm:$0xff]
    %v271 = vld [vmem:[#allocation5 + $0x230] sm:$0xff]
    %v272 = vld [vmem:[#allocation5 + $0x238] sm:$0xff]
    %v273 = vld [vmem:[#allocation5 + $0x240] sm:$0xff]
    %v274 = vld [vmem:[#allocation5 + $0x248] sm:$0xff]
    %v275 = vld [vmem:[#allocation5 + $0x250] sm:$0xff]
    %v276 = vld [vmem:[#allocation5 + $0x258] sm:$0xff]
    %v277 = vld [vmem:[#allocation5 + $0x260] sm:$0xff]
    %v278 = vld [vmem:[#allocation5 + $0x268] sm:$0xff]
    %v279 = vld [vmem:[#allocation5 + $0x270] sm:$0xff]
    %v280 = vld [vmem:[#allocation5 + $0x278] sm:$0xff]
    %v281 = vld [vmem:[#allocation5 + $0x280] sm:$0xff]
    %v282 = vld [vmem:[#allocation5 + $0x288] sm:$0xff]
    %v283 = vld [vmem:[#allocation5 + $0x290] sm:$0xff]
    %v284 = vld [vmem:[#allocation5 + $0x298] sm:$0xff]
    %v285 = vld [vmem:[#allocation5 + $0x2a0] sm:$0xff]
    %v286 = vld [vmem:[#allocation5 + $0x2a8] sm:$0xff]
    %v287 = vld [vmem:[#allocation5 + $0x2b0] sm:$0xff]
    %v288 = vld [vmem:[#allocation5 + $0x2b8] sm:$0xff]
    %v289 = vld [vmem:[#allocation5 + $0x2c0] sm:$0xff]
    %v290 = vld [vmem:[#allocation5 + $0x2c8] sm:$0xff]
    %v291 = vld [vmem:[#allocation5 + $0x2d0] sm:$0xff]
    %v292 = vld [vmem:[#allocation5 + $0x2d8] sm:$0xff]
    %v293 = vld [vmem:[#allocation5 + $0x2e0] sm:$0xff]
    %v294 = vld [vmem:[#allocation5 + $0x2e8] sm:$0xff]
    %v295 = vld [vmem:[#allocation5 + $0x2f0] sm:$0xff]
    %v296 = vld [vmem:[#allocation5 + $0x2f8] sm:$0xff]
    %v297 = vld [vmem:[#allocation5 + $0x300] sm:$0xff]
    %v298 = vld [vmem:[#allocation5 + $0x308] sm:$0xff]
    %v299 = vld [vmem:[#allocation5 + $0x310] sm:$0xff]
    %v300 = vld [vmem:[#allocation5 + $0x318] sm:$0xff]
    %v301 = vld [vmem:[#allocation5 + $0x320] sm:$0xff]
    %v302 = vld [vmem:[#allocation5 + $0x328] sm:$0xff]
    %v303 = vld [vmem:[#allocation5 + $0x330] sm:$0xff]
    %v304 = vld [vmem:[#allocation5 + $0x338] sm:$0xff]
    %v305 = vld [vmem:[#allocation5 + $0x340] sm:$0xff]
    %v306 = vld [vmem:[#allocation5 + $0x348] sm:$0xff]
    %v307 = vld [vmem:[#allocation5 + $0x350] sm:$0xff]
    %v308 = vld [vmem:[#allocation5 + $0x358] sm:$0xff]
    %v309 = vld [vmem:[#allocation5 + $0x360] sm:$0xff]
    %v310 = vld [vmem:[#allocation5 + $0x368] sm:$0xff]
    %v311 = vld [vmem:[#allocation5 + $0x370] sm:$0xff]
    %v312 = vld [vmem:[#allocation5 + $0x378] sm:$0xff]
    %v313 = vld [vmem:[#allocation5 + $0x380] sm:$0xff]
    %v314 = vld [vmem:[#allocation5 + $0x388] sm:$0xff]
    %v315 = vld [vmem:[#allocation5 + $0x390] sm:$0xff]
    %v316 = vld [vmem:[#allocation5 + $0x398] sm:$0xff]
    %v317 = vld [vmem:[#allocation5 + $0x3a0] sm:$0xff]
    %v318 = vld [vmem:[#allocation5 + $0x3a8] sm:$0xff]
    %v319 = vld [vmem:[#allocation5 + $0x3b0] sm:$0xff]
    %v320 = vld [vmem:[#allocation5 + $0x3b8] sm:$0xff]
    %v321 = vld [vmem:[#allocation5 + $0x3c0] sm:$0xff]
    %v322 = vld [vmem:[#allocation5 + $0x3c8] sm:$0xff]
    %v323 = vld [vmem:[#allocation5 + $0x3d0] sm:$0xff]
    %v324 = vld [vmem:[#allocation5 + $0x3d8] sm:$0xff]
    %v325 = vld [vmem:[#allocation5 + $0x3e0] sm:$0xff]
    %v326 = vld [vmem:[#allocation5 + $0x3e8] sm:$0xff]
    %v327 = vld [vmem:[#allocation5 + $0x3f0] sm:$0xff]
    %v328 = vld [vmem:[#allocation5 + $0x3f8] sm:$0xff]
    %v329 = vld [vmem:[#allocation5 + $0x400] sm:$0xff]
    %v330 = vld [vmem:[#allocation5 + $0x408] sm:$0xff]
    %v331 = vld [vmem:[#allocation5 + $0x410] sm:$0xff]
    %v332 = vld [vmem:[#allocation5 + $0x418] sm:$0xff]
    %v333 = vld [vmem:[#allocation5 + $0x420] sm:$0xff]
    %v334 = vld [vmem:[#allocation5 + $0x428] sm:$0xff]
    %v335 = vld [vmem:[#allocation5 + $0x430] sm:$0xff]
    %v336 = vld [vmem:[#allocation5 + $0x438] sm:$0xff]
    %v337 = vld [vmem:[#allocation5 + $0x440] sm:$0xff]
    %v338 = vld [vmem:[#allocation5 + $0x448] sm:$0xff]
    %v339 = vld [vmem:[#allocation5 + $0x450] sm:$0xff]
    %v340 = vld [vmem:[#allocation5 + $0x458] sm:$0xff]
    %v341 = vld [vmem:[#allocation5 + $0x460] sm:$0xff]
    %v342 = vld [vmem:[#allocation5 + $0x468] sm:$0xff]
    %v343 = vld [vmem:[#allocation5 + $0x470] sm:$0xff]
    %v344 = vld [vmem:[#allocation5 + $0x478] sm:$0xff]
    %v345 = vld [vmem:[#allocation5 + $0x480] sm:$0xff]
    %v346 = vld [vmem:[#allocation5 + $0x488] sm:$0xff]
    %v347 = vld [vmem:[#allocation5 + $0x490] sm:$0xff]
    %v348 = vld [vmem:[#allocation5 + $0x498] sm:$0xff]
    %v349 = vld [vmem:[#allocation5 + $0x4a0] sm:$0xff]
    %v350 = vld [vmem:[#allocation5 + $0x4a8] sm:$0xff]
    %v351 = vld [vmem:[#allocation5 + $0x4b0] sm:$0xff]
    %v352 = vld [vmem:[#allocation5 + $0x4b8] sm:$0xff]
    %v353 = vld [vmem:[#allocation5 + $0x4c0] sm:$0xff]
    %v354 = vld [vmem:[#allocation5 + $0x4c8] sm:$0xff]
    %v355 = vld [vmem:[#allocation5 + $0x4d0] sm:$0xff]
    %v356 = vld [vmem:[#allocation5 + $0x4d8] sm:$0xff]
    %v357 = vld [vmem:[#allocation5 + $0x4e0] sm:$0xff]
    %v358 = vld [vmem:[#allocation5 + $0x4e8] sm:$0xff]
    %v359 = vld [vmem:[#allocation5 + $0x4f0] sm:$0xff]
    %v360 = vld [vmem:[#allocation5 + $0x4f8] sm:$0xff]
    %v361 = vld [vmem:[#allocation5 + $0x500] sm:$0xff]
    %v362 = vld [vmem:[#allocation5 + $0x508] sm:$0xff]
    %v363 = vld [vmem:[#allocation5 + $0x510] sm:$0xff]
    %v364 = vld [vmem:[#allocation5 + $0x518] sm:$0xff]
    %v365 = vld [vmem:[#allocation5 + $0x520] sm:$0xff]
    %v366 = vld [vmem:[#allocation5 + $0x528] sm:$0xff]
    %v367 = vld [vmem:[#allocation5 + $0x530] sm:$0xff]
    %v368 = vld [vmem:[#allocation5 + $0x538] sm:$0xff]
    %v369 = vld [vmem:[#allocation5 + $0x540] sm:$0xff]
    %v370 = vld [vmem:[#allocation5 + $0x548] sm:$0xff]
    %v371 = vld [vmem:[#allocation5 + $0x550] sm:$0xff]
    %v372 = vld [vmem:[#allocation5 + $0x558] sm:$0xff]
    %v373 = vld [vmem:[#allocation5 + $0x560] sm:$0xff]
    %v374 = vld [vmem:[#allocation5 + $0x568] sm:$0xff]
    %v375 = vld [vmem:[#allocation5 + $0x570] sm:$0xff]
    %v376 = vld [vmem:[#allocation5 + $0x578] sm:$0xff]
    %v377 = vld [vmem:[#allocation5 + $0x580] sm:$0xff]
    %v378 = vld [vmem:[#allocation5 + $0x588] sm:$0xff]
    %v379 = vld [vmem:[#allocation5 + $0x590] sm:$0xff]
    %v380 = vld [vmem:[#allocation5 + $0x598] sm:$0xff]
    %v381 = vld [vmem:[#allocation5 + $0x5a0] sm:$0xff]
    %v382 = vld [vmem:[#allocation5 + $0x5a8] sm:$0xff]
    %v383 = vld [vmem:[#allocation5 + $0x5b0] sm:$0xff]
    %v384 = vld [vmem:[#allocation5 + $0x5b8] sm:$0xff]
    %v385 = vld [vmem:[#allocation5 + $0x5c0] sm:$0xff]
    %v386 = vld [vmem:[#allocation5 + $0x5c8] sm:$0xff]
    %v387 = vld [vmem:[#allocation5 + $0x5d0] sm:$0xff]
    %v388 = vld [vmem:[#allocation5 + $0x5d8] sm:$0xff]
    %v389 = vld [vmem:[#allocation5 + $0x5e0] sm:$0xff]
    %v390 = vld [vmem:[#allocation5 + $0x5e8] sm:$0xff]
    %v391 = vld [vmem:[#allocation5 + $0x5f0] sm:$0xff]
    %v392 = vld [vmem:[#allocation5 + $0x5f8] sm:$0xff]
    %v393 = vld [vmem:[#allocation5 + $0x600] sm:$0xff]
    %v394 = vld [vmem:[#allocation5 + $0x608] sm:$0xff]
    %v395 = vld [vmem:[#allocation5 + $0x610] sm:$0xff]
    %v396 = vld [vmem:[#allocation5 + $0x618] sm:$0xff]
    %v397 = vld [vmem:[#allocation5 + $0x620] sm:$0xff]
    %v398 = vld [vmem:[#allocation5 + $0x628] sm:$0xff]
    %v399 = vld [vmem:[#allocation5 + $0x630] sm:$0xff]
    %v400 = vld [vmem:[#allocation5 + $0x638] sm:$0xff]
    %v401 = vld [vmem:[#allocation5 + $0x640] sm:$0xff]
    %v402 = vld [vmem:[#allocation5 + $0x648] sm:$0xff]
    %v403 = vld [vmem:[#allocation5 + $0x650] sm:$0xff]
    %v404 = vld [vmem:[#allocation5 + $0x658] sm:$0xff]
    %v405 = vld [vmem:[#allocation5 + $0x660] sm:$0xff]
    %v406 = vld [vmem:[#allocation5 + $0x668] sm:$0xff]
    %v407 = vld [vmem:[#allocation5 + $0x670] sm:$0xff]
    %v408 = vld [vmem:[#allocation5 + $0x678] sm:$0xff]
    %v409 = vld [vmem:[#allocation5 + $0x680] sm:$0xff]
    %v410 = vld [vmem:[#allocation5 + $0x688] sm:$0xff]
    %v411 = vld [vmem:[#allocation5 + $0x690] sm:$0xff]
    %v412 = vld [vmem:[#allocation5 + $0x698] sm:$0xff]
    %v413 = vld [vmem:[#allocation5 + $0x6a0] sm:$0xff]
    %v414 = vld [vmem:[#allocation5 + $0x6a8] sm:$0xff]
    %v415 = vld [vmem:[#allocation5 + $0x6b0] sm:$0xff]
    %v416 = vld [vmem:[#allocation5 + $0x6b8] sm:$0xff]
    %v417 = vld [vmem:[#allocation5 + $0x6c0] sm:$0xff]
    %v418 = vld [vmem:[#allocation5 + $0x6c8] sm:$0xff]
    %v419 = vld [vmem:[#allocation5 + $0x6d0] sm:$0xff]
    %v420 = vld [vmem:[#allocation5 + $0x6d8] sm:$0xff]
    %v421 = vld [vmem:[#allocation5 + $0x6e0] sm:$0xff]
    %v422 = vld [vmem:[#allocation5 + $0x6e8] sm:$0xff]
    %v423 = vld [vmem:[#allocation5 + $0x6f0] sm:$0xff]
    %v424 = vld [vmem:[#allocation5 + $0x6f8] sm:$0xff]
    %v433 = vunpack.c.l.b16 %v193
    %v434 = vunpack.c.h.b16 %v193
    %v435 = vunpack.c.l.b16 %v194
    %v436 = vunpack.c.h.b16 %v194
    %v437 = vunpack.c.l.b16 %v195
    %v438 = vunpack.c.h.b16 %v195
    %v439 = vunpack.c.l.b16 %v196
    %v440 = vunpack.c.l.b16 %v197
    %v441 = vunpack.c.h.b16 %v197
    %v442 = vunpack.c.l.b16 %v198
    %v443 = vunpack.c.h.b16 %v198
    %v444 = vunpack.c.l.b16 %v199
    %v445 = vunpack.c.h.b16 %v199
    %v446 = vunpack.c.l.b16 %v200
    %v447 = vpack.c.b16 %v440, %v433
    %v448 = vpack.c.b16 %v441, %v434
    %v449 = vpack.c.b16 %v442, %v435
    %v450 = vpack.c.b16 %v443, %v436
    %v451 = vpack.c.b16 %v444, %v437
    %v452 = vpack.c.b16 %v445, %v438
    %v453 = vpack.c.b16 %v446, %v439
    %v685 = vunpack.c.l.b16 %v201
    %v686 = vunpack.c.h.b16 %v201
    %v687 = vunpack.c.l.b16 %v202
    %v688 = vunpack.c.h.b16 %v202
    %v689 = vunpack.c.l.b16 %v203
    %v690 = vunpack.c.h.b16 %v203
    %v691 = vunpack.c.l.b16 %v204
    %v692 = vunpack.c.h.b16 %v204
    %v693 = vunpack.c.l.b16 %v205
    %v694 = vunpack.c.h.b16 %v205
    %v695 = vunpack.c.l.b16 %v206
    %v696 = vunpack.c.h.b16 %v206
    %v697 = vunpack.c.l.b16 %v207
    %v698 = vunpack.c.h.b16 %v207
    %v699 = vunpack.c.l.b16 %v208
    %v700 = vunpack.c.h.b16 %v208
    %v701 = vunpack.c.l.b16 %v209
    %v702 = vunpack.c.h.b16 %v209
    %v703 = vunpack.c.l.b16 %v210
    %v704 = vunpack.c.h.b16 %v210
    %v705 = vunpack.c.l.b16 %v211
    %v706 = vunpack.c.h.b16 %v211
    %v707 = vunpack.c.l.b16 %v212
    %v708 = vunpack.c.h.b16 %v212
    %v709 = vunpack.c.l.b16 %v213
    %v710 = vunpack.c.h.b16 %v213
    %v711 = vunpack.c.l.b16 %v214
    %v712 = vunpack.c.h.b16 %v214
    %v713 = vunpack.c.l.b16 %v215
    %v714 = vunpack.c.h.b16 %v215
    %v715 = vunpack.c.l.b16 %v216
    %v716 = vunpack.c.h.b16 %v216
    %v717 = vunpack.c.l.b16 %v217
    %v718 = vunpack.c.h.b16 %v217
    %v719 = vunpack.c.l.b16 %v218
    %v720 = vunpack.c.h.b16 %v218
    %v721 = vunpack.c.l.b16 %v219
    %v722 = vunpack.c.h.b16 %v219
    %v723 = vunpack.c.l.b16 %v220
    %v724 = vunpack.c.h.b16 %v220
    %v725 = vunpack.c.l.b16 %v221
    %v726 = vunpack.c.h.b16 %v221
    %v727 = vunpack.c.l.b16 %v222
    %v728 = vunpack.c.h.b16 %v222
    %v729 = vunpack.c.l.b16 %v223
    %v730 = vunpack.c.h.b16 %v223
    %v731 = vunpack.c.l.b16 %v224
    %v732 = vunpack.c.h.b16 %v224
    %v733 = vunpack.c.l.b16 %v225
    %v734 = vunpack.c.h.b16 %v225
    %v735 = vunpack.c.l.b16 %v226
    %v736 = vunpack.c.h.b16 %v226
    %v737 = vunpack.c.l.b16 %v227
    %v738 = vunpack.c.h.b16 %v227
    %v739 = vunpack.c.l.b16 %v228
    %v740 = vunpack.c.h.b16 %v228
    %v741 = vunpack.c.l.b16 %v229
    %v742 = vunpack.c.h.b16 %v229
    %v743 = vunpack.c.l.b16 %v230
    %v744 = vunpack.c.h.b16 %v230
    %v745 = vunpack.c.l.b16 %v231
    %v746 = vunpack.c.h.b16 %v231
    %v747 = vunpack.c.l.b16 %v232
    %v748 = vunpack.c.h.b16 %v232
    %v749 = vunpack.c.l.b16 %v233
    %v750 = vunpack.c.h.b16 %v233
    %v751 = vunpack.c.l.b16 %v234
    %v752 = vunpack.c.h.b16 %v234
    %v753 = vunpack.c.l.b16 %v235
    %v754 = vunpack.c.h.b16 %v235
    %v755 = vunpack.c.l.b16 %v236
    %v756 = vunpack.c.h.b16 %v236
    %v757 = vunpack.c.l.b16 %v237
    %v758 = vunpack.c.h.b16 %v237
    %v759 = vunpack.c.l.b16 %v238
    %v760 = vunpack.c.h.b16 %v238
    %v761 = vunpack.c.l.b16 %v239
    %v762 = vunpack.c.h.b16 %v239
    %v763 = vunpack.c.l.b16 %v240
    %v764 = vunpack.c.h.b16 %v240
    %v765 = vunpack.c.l.b16 %v241
    %v766 = vunpack.c.h.b16 %v241
    %v767 = vunpack.c.l.b16 %v242
    %v768 = vunpack.c.h.b16 %v242
    %v769 = vunpack.c.l.b16 %v243
    %v770 = vunpack.c.h.b16 %v243
    %v771 = vunpack.c.l.b16 %v244
    %v772 = vunpack.c.h.b16 %v244
    %v773 = vunpack.c.l.b16 %v245
    %v774 = vunpack.c.h.b16 %v245
    %v775 = vunpack.c.l.b16 %v246
    %v776 = vunpack.c.h.b16 %v246
    %v777 = vunpack.c.l.b16 %v247
    %v778 = vunpack.c.h.b16 %v247
    %v779 = vunpack.c.l.b16 %v248
    %v780 = vunpack.c.h.b16 %v248
    %v781 = vunpack.c.l.b16 %v249
    %v782 = vunpack.c.h.b16 %v249
    %v783 = vunpack.c.l.b16 %v250
    %v784 = vunpack.c.h.b16 %v250
    %v785 = vunpack.c.l.b16 %v251
    %v786 = vunpack.c.h.b16 %v251
    %v787 = vunpack.c.l.b16 %v252
    %v788 = vunpack.c.h.b16 %v252
    %v789 = vunpack.c.l.b16 %v253
    %v790 = vunpack.c.h.b16 %v253
    %v791 = vunpack.c.l.b16 %v254
    %v792 = vunpack.c.h.b16 %v254
    %v793 = vunpack.c.l.b16 %v255
    %v794 = vunpack.c.h.b16 %v255
    %v795 = vunpack.c.l.b16 %v256
    %v796 = vunpack.c.h.b16 %v256
    %v797 = vunpack.c.l.b16 %v257
    %v798 = vunpack.c.h.b16 %v257
    %v799 = vunpack.c.l.b16 %v258
    %v800 = vunpack.c.h.b16 %v258
    %v801 = vunpack.c.l.b16 %v259
    %v802 = vunpack.c.h.b16 %v259
    %v803 = vunpack.c.l.b16 %v260
    %v804 = vunpack.c.h.b16 %v260
    %v805 = vunpack.c.l.b16 %v261
    %v806 = vunpack.c.h.b16 %v261
    %v807 = vunpack.c.l.b16 %v262
    %v808 = vunpack.c.h.b16 %v262
    %v809 = vunpack.c.l.b16 %v263
    %v810 = vunpack.c.h.b16 %v263
    %v811 = vunpack.c.l.b16 %v264
    %v812 = vunpack.c.h.b16 %v264
    %v813 = vunpack.c.l.b16 %v265
    %v814 = vunpack.c.h.b16 %v265
    %v815 = vunpack.c.l.b16 %v266
    %v816 = vunpack.c.h.b16 %v266
    %v817 = vunpack.c.l.b16 %v267
    %v818 = vunpack.c.h.b16 %v267
    %v819 = vunpack.c.l.b16 %v268
    %v820 = vunpack.c.h.b16 %v268
    %v821 = vunpack.c.l.b16 %v269
    %v822 = vunpack.c.h.b16 %v269
    %v823 = vunpack.c.l.b16 %v270
    %v824 = vunpack.c.h.b16 %v270
    %v825 = vunpack.c.l.b16 %v271
    %v826 = vunpack.c.h.b16 %v271
    %v827 = vunpack.c.l.b16 %v272
    %v828 = vunpack.c.h.b16 %v272
    %v829 = vunpack.c.l.b16 %v273
    %v830 = vunpack.c.h.b16 %v273
    %v831 = vunpack.c.l.b16 %v274
    %v832 = vunpack.c.h.b16 %v274
    %v833 = vunpack.c.l.b16 %v275
    %v834 = vunpack.c.h.b16 %v275
    %v835 = vunpack.c.l.b16 %v276
    %v836 = vunpack.c.h.b16 %v276
    %v837 = vunpack.c.l.b16 %v277
    %v838 = vunpack.c.h.b16 %v277
    %v839 = vunpack.c.l.b16 %v278
    %v840 = vunpack.c.h.b16 %v278
    %v841 = vunpack.c.l.b16 %v279
    %v842 = vunpack.c.h.b16 %v279
    %v843 = vunpack.c.l.b16 %v280
    %v844 = vunpack.c.h.b16 %v280
    %v845 = vunpack.c.l.b16 %v281
    %v846 = vunpack.c.h.b16 %v281
    %v847 = vunpack.c.l.b16 %v282
    %v848 = vunpack.c.h.b16 %v282
    %v849 = vunpack.c.l.b16 %v283
    %v850 = vunpack.c.h.b16 %v283
    %v851 = vunpack.c.l.b16 %v284
    %v852 = vunpack.c.h.b16 %v284
    %v853 = vunpack.c.l.b16 %v285
    %v854 = vunpack.c.h.b16 %v285
    %v855 = vunpack.c.l.b16 %v286
    %v856 = vunpack.c.h.b16 %v286
    %v857 = vunpack.c.l.b16 %v287
    %v858 = vunpack.c.h.b16 %v287
    %v859 = vunpack.c.l.b16 %v288
    %v860 = vunpack.c.h.b16 %v288
    %v861 = vunpack.c.l.b16 %v289
    %v862 = vunpack.c.h.b16 %v289
    %v863 = vunpack.c.l.b16 %v290
    %v864 = vunpack.c.h.b16 %v290
    %v865 = vunpack.c.l.b16 %v291
    %v866 = vunpack.c.h.b16 %v291
    %v867 = vunpack.c.l.b16 %v292
    %v868 = vunpack.c.h.b16 %v292
    %v869 = vunpack.c.l.b16 %v293
    %v870 = vunpack.c.h.b16 %v293
    %v871 = vunpack.c.l.b16 %v294
    %v872 = vunpack.c.h.b16 %v294
    %v873 = vunpack.c.l.b16 %v295
    %v874 = vunpack.c.h.b16 %v295
    %v875 = vunpack.c.l.b16 %v296
    %v876 = vunpack.c.h.b16 %v296
    %v877 = vunpack.c.l.b16 %v297
    %v878 = vunpack.c.h.b16 %v297
    %v879 = vunpack.c.l.b16 %v298
    %v880 = vunpack.c.h.b16 %v298
    %v881 = vunpack.c.l.b16 %v299
    %v882 = vunpack.c.h.b16 %v299
    %v883 = vunpack.c.l.b16 %v300
    %v884 = vunpack.c.h.b16 %v300
    %v885 = vunpack.c.l.b16 %v301
    %v886 = vunpack.c.h.b16 %v301
    %v887 = vunpack.c.l.b16 %v302
    %v888 = vunpack.c.h.b16 %v302
    %v889 = vunpack.c.l.b16 %v303
    %v890 = vunpack.c.h.b16 %v303
    %v891 = vunpack.c.l.b16 %v304
    %v892 = vunpack.c.h.b16 %v304
    %v893 = vunpack.c.l.b16 %v305
    %v894 = vunpack.c.h.b16 %v305
    %v895 = vunpack.c.l.b16 %v306
    %v896 = vunpack.c.h.b16 %v306
    %v897 = vunpack.c.l.b16 %v307
    %v898 = vunpack.c.h.b16 %v307
    %v899 = vunpack.c.l.b16 %v308
    %v900 = vunpack.c.h.b16 %v308
    %v901 = vunpack.c.l.b16 %v309
    %v902 = vunpack.c.h.b16 %v309
    %v903 = vunpack.c.l.b16 %v310
    %v904 = vunpack.c.h.b16 %v310
    %v905 = vunpack.c.l.b16 %v311
    %v906 = vunpack.c.h.b16 %v311
    %v907 = vunpack.c.l.b16 %v312
    %v908 = vunpack.c.h.b16 %v312
    %v909 = vunpack.c.l.b16 %v313
    %v910 = vunpack.c.h.b16 %v313
    %v911 = vunpack.c.l.b16 %v314
    %v912 = vunpack.c.h.b16 %v314
    %v913 = vunpack.c.l.b16 %v315
    %v914 = vunpack.c.h.b16 %v315
    %v915 = vunpack.c.l.b16 %v316
    %v916 = vunpack.c.h.b16 %v316
    %v917 = vunpack.c.l.b16 %v317
    %v918 = vunpack.c.h.b16 %v317
    %v919 = vunpack.c.l.b16 %v318
    %v920 = vunpack.c.h.b16 %v318
    %v921 = vunpack.c.l.b16 %v319
    %v922 = vunpack.c.h.b16 %v319
    %v923 = vunpack.c.l.b16 %v320
    %v924 = vunpack.c.h.b16 %v320
    %v925 = vunpack.c.l.b16 %v321
    %v926 = vunpack.c.h.b16 %v321
    %v927 = vunpack.c.l.b16 %v322
    %v928 = vunpack.c.h.b16 %v322
    %v929 = vunpack.c.l.b16 %v323
    %v930 = vunpack.c.h.b16 %v323
    %v931 = vunpack.c.l.b16 %v324
    %v932 = vunpack.c.h.b16 %v324
    %v933 = vunpack.c.l.b16 %v325
    %v934 = vunpack.c.h.b16 %v325
    %v935 = vunpack.c.l.b16 %v326
    %v936 = vunpack.c.h.b16 %v326
    %v937 = vunpack.c.l.b16 %v327
    %v938 = vunpack.c.h.b16 %v327
    %v939 = vunpack.c.l.b16 %v328
    %v940 = vunpack.c.h.b16 %v328
    %v941 = vunpack.c.l.b16 %v329
    %v942 = vunpack.c.h.b16 %v329
    %v943 = vunpack.c.l.b16 %v330
    %v944 = vunpack.c.h.b16 %v330
    %v945 = vunpack.c.l.b16 %v331
    %v946 = vunpack.c.h.b16 %v331
    %v947 = vunpack.c.l.b16 %v332
    %v948 = vunpack.c.h.b16 %v332
    %v949 = vunpack.c.l.b16 %v333
    %v950 = vunpack.c.h.b16 %v333
    %v951 = vunpack.c.l.b16 %v334
    %v952 = vunpack.c.h.b16 %v334
    %v953 = vunpack.c.l.b16 %v335
    %v954 = vunpack.c.h.b16 %v335
    %v955 = vunpack.c.l.b16 %v336
    %v956 = vunpack.c.h.b16 %v336
    %v957 = vunpack.c.l.b16 %v337
    %v958 = vunpack.c.h.b16 %v337
    %v959 = vunpack.c.l.b16 %v338
    %v960 = vunpack.c.h.b16 %v338
    %v961 = vunpack.c.l.b16 %v339
    %v962 = vunpack.c.h.b16 %v339
    %v963 = vunpack.c.l.b16 %v340
    %v964 = vunpack.c.h.b16 %v340
    %v965 = vunpack.c.l.b16 %v341
    %v966 = vunpack.c.h.b16 %v341
    %v967 = vunpack.c.l.b16 %v342
    %v968 = vunpack.c.h.b16 %v342
    %v969 = vunpack.c.l.b16 %v343
    %v970 = vunpack.c.h.b16 %v343
    %v971 = vunpack.c.l.b16 %v344
    %v972 = vunpack.c.h.b16 %v344
    %v973 = vunpack.c.l.b16 %v345
    %v974 = vunpack.c.h.b16 %v345
    %v975 = vunpack.c.l.b16 %v346
    %v976 = vunpack.c.h.b16 %v346
    %v977 = vunpack.c.l.b16 %v347
    %v978 = vunpack.c.h.b16 %v347
    %v979 = vunpack.c.l.b16 %v348
    %v980 = vunpack.c.h.b16 %v348
    %v981 = vunpack.c.l.b16 %v349
    %v982 = vunpack.c.h.b16 %v349
    %v983 = vunpack.c.l.b16 %v350
    %v984 = vunpack.c.h.b16 %v350
    %v985 = vunpack.c.l.b16 %v351
    %v986 = vunpack.c.h.b16 %v351
    %v987 = vunpack.c.l.b16 %v352
    %v988 = vunpack.c.h.b16 %v352
    %v989 = vunpack.c.l.b16 %v353
    %v990 = vunpack.c.h.b16 %v353
    %v991 = vunpack.c.l.b16 %v354
    %v992 = vunpack.c.h.b16 %v354
    %v993 = vunpack.c.l.b16 %v355
    %v994 = vunpack.c.h.b16 %v355
    %v995 = vunpack.c.l.b16 %v356
    %v996 = vunpack.c.h.b16 %v356
    %v997 = vunpack.c.l.b16 %v357
    %v998 = vunpack.c.h.b16 %v357
    %v999 = vunpack.c.l.b16 %v358
    %v1000 = vunpack.c.h.b16 %v358
    %v1001 = vunpack.c.l.b16 %v359
    %v1002 = vunpack.c.h.b16 %v359
    %v1003 = vunpack.c.l.b16 %v360
    %v1004 = vunpack.c.h.b16 %v360
    %v1005 = vunpack.c.l.b16 %v361
    %v1006 = vunpack.c.h.b16 %v361
    %v1007 = vunpack.c.l.b16 %v362
    %v1008 = vunpack.c.h.b16 %v362
    %v1009 = vunpack.c.l.b16 %v363
    %v1010 = vunpack.c.h.b16 %v363
    %v1011 = vunpack.c.l.b16 %v364
    %v1012 = vunpack.c.h.b16 %v364
    %v1013 = vunpack.c.l.b16 %v365
    %v1014 = vunpack.c.h.b16 %v365
    %v1015 = vunpack.c.l.b16 %v366
    %v1016 = vunpack.c.h.b16 %v366
    %v1017 = vunpack.c.l.b16 %v367
    %v1018 = vunpack.c.h.b16 %v367
    %v1019 = vunpack.c.l.b16 %v368
    %v1020 = vunpack.c.h.b16 %v368
    %v1021 = vunpack.c.l.b16 %v369
    %v1022 = vunpack.c.h.b16 %v369
    %v1023 = vunpack.c.l.b16 %v370
    %v1024 = vunpack.c.h.b16 %v370
    %v1025 = vunpack.c.l.b16 %v371
    %v1026 = vunpack.c.h.b16 %v371
    %v1027 = vunpack.c.l.b16 %v372
    %v1028 = vunpack.c.h.b16 %v372
    %v1029 = vunpack.c.l.b16 %v373
    %v1030 = vunpack.c.h.b16 %v373
    %v1031 = vunpack.c.l.b16 %v374
    %v1032 = vunpack.c.h.b16 %v374
    %v1033 = vunpack.c.l.b16 %v375
    %v1034 = vunpack.c.h.b16 %v375
    %v1035 = vunpack.c.l.b16 %v376
    %v1036 = vunpack.c.h.b16 %v376
    %v1037 = vunpack.c.l.b16 %v377
    %v1038 = vunpack.c.h.b16 %v377
    %v1039 = vunpack.c.l.b16 %v378
    %v1040 = vunpack.c.h.b16 %v378
    %v1041 = vunpack.c.l.b16 %v379
    %v1042 = vunpack.c.h.b16 %v379
    %v1043 = vunpack.c.l.b16 %v380
    %v1044 = vunpack.c.h.b16 %v380
    %v1045 = vunpack.c.l.b16 %v381
    %v1046 = vunpack.c.h.b16 %v381
    %v1047 = vunpack.c.l.b16 %v382
    %v1048 = vunpack.c.h.b16 %v382
    %v1049 = vunpack.c.l.b16 %v383
    %v1050 = vunpack.c.h.b16 %v383
    %v1051 = vunpack.c.l.b16 %v384
    %v1052 = vunpack.c.h.b16 %v384
    %v1053 = vunpack.c.l.b16 %v385
    %v1054 = vunpack.c.h.b16 %v385
    %v1055 = vunpack.c.l.b16 %v386
    %v1056 = vunpack.c.h.b16 %v386
    %v1057 = vunpack.c.l.b16 %v387
    %v1058 = vunpack.c.h.b16 %v387
    %v1059 = vunpack.c.l.b16 %v388
    %v1060 = vunpack.c.h.b16 %v388
    %v1061 = vunpack.c.l.b16 %v389
    %v1062 = vunpack.c.h.b16 %v389
    %v1063 = vunpack.c.l.b16 %v390
    %v1064 = vunpack.c.h.b16 %v390
    %v1065 = vunpack.c.l.b16 %v391
    %v1066 = vunpack.c.h.b16 %v391
    %v1067 = vunpack.c.l.b16 %v392
    %v1068 = vunpack.c.h.b16 %v392
    %v1069 = vunpack.c.l.b16 %v393
    %v1070 = vunpack.c.h.b16 %v393
    %v1071 = vunpack.c.l.b16 %v394
    %v1072 = vunpack.c.h.b16 %v394
    %v1073 = vunpack.c.l.b16 %v395
    %v1074 = vunpack.c.h.b16 %v395
    %v1075 = vunpack.c.l.b16 %v396
    %v1076 = vunpack.c.h.b16 %v396
    %v1077 = vunpack.c.l.b16 %v397
    %v1078 = vunpack.c.h.b16 %v397
    %v1079 = vunpack.c.l.b16 %v398
    %v1080 = vunpack.c.h.b16 %v398
    %v1081 = vunpack.c.l.b16 %v399
    %v1082 = vunpack.c.h.b16 %v399
    %v1083 = vunpack.c.l.b16 %v400
    %v1084 = vunpack.c.h.b16 %v400
    %v1085 = vunpack.c.l.b16 %v401
    %v1086 = vunpack.c.h.b16 %v401
    %v1087 = vunpack.c.l.b16 %v402
    %v1088 = vunpack.c.h.b16 %v402
    %v1089 = vunpack.c.l.b16 %v403
    %v1090 = vunpack.c.h.b16 %v403
    %v1091 = vunpack.c.l.b16 %v404
    %v1092 = vunpack.c.h.b16 %v404
    %v1093 = vunpack.c.l.b16 %v405
    %v1094 = vunpack.c.h.b16 %v405
    %v1095 = vunpack.c.l.b16 %v406
    %v1096 = vunpack.c.h.b16 %v406
    %v1097 = vunpack.c.l.b16 %v407
    %v1098 = vunpack.c.h.b16 %v407
    %v1099 = vunpack.c.l.b16 %v408
    %v1100 = vunpack.c.h.b16 %v408
    %v1101 = vunpack.c.l.b16 %v409
    %v1102 = vunpack.c.h.b16 %v409
    %v1103 = vunpack.c.l.b16 %v410
    %v1104 = vunpack.c.h.b16 %v410
    %v1105 = vunpack.c.l.b16 %v411
    %v1106 = vunpack.c.h.b16 %v411
    %v1107 = vunpack.c.l.b16 %v412
    %v1108 = vunpack.c.h.b16 %v412
    %v1109 = vunpack.c.l.b16 %v413
    %v1110 = vunpack.c.h.b16 %v413
    %v1111 = vunpack.c.l.b16 %v414
    %v1112 = vunpack.c.h.b16 %v414
    %v1113 = vunpack.c.l.b16 %v415
    %v1114 = vunpack.c.h.b16 %v415
    %v1115 = vunpack.c.l.b16 %v416
    %v1116 = vunpack.c.h.b16 %v416
    %v1117 = vunpack.c.l.b16 %v417
    %v1118 = vunpack.c.h.b16 %v417
    %v1119 = vunpack.c.l.b16 %v418
    %v1120 = vunpack.c.h.b16 %v418
    %v1121 = vunpack.c.l.b16 %v419
    %v1122 = vunpack.c.h.b16 %v419
    %v1123 = vunpack.c.l.b16 %v420
    %v1124 = vunpack.c.h.b16 %v420
    %v1125 = vunpack.c.l.b16 %v421
    %v1126 = vunpack.c.h.b16 %v421
    %v1127 = vunpack.c.l.b16 %v422
    %v1128 = vunpack.c.h.b16 %v422
    %v1129 = vunpack.c.l.b16 %v423
    %v1130 = vunpack.c.h.b16 %v423
    %v1131 = vunpack.c.l.b16 %v424
    %v1132 = vunpack.c.h.b16 %v424
    %v1133 = vpack.c.b16 %v689, %v685
    %v1134 = vpack.c.b16 %v690, %v686
    %v1135 = vpack.c.b16 %v691, %v687
    %v1136 = vpack.c.b16 %v692, %v688
    %v1137 = vpack.c.b16 %v697, %v693
    %v1138 = vpack.c.b16 %v698, %v694
    %v1139 = vpack.c.b16 %v699, %v695
    %v1140 = vpack.c.b16 %v700, %v696
    %v1141 = vpack.c.b16 %v705, %v701
    %v1142 = vpack.c.b16 %v706, %v702
    %v1143 = vpack.c.b16 %v707, %v703
    %v1144 = vpack.c.b16 %v708, %v704
    %v1145 = vpack.c.b16 %v713, %v709
    %v1146 = vpack.c.b16 %v714, %v710
    %v1147 = vpack.c.b16 %v715, %v711
    %v1148 = vpack.c.b16 %v716, %v712
    %v1149 = vpack.c.b16 %v721, %v717
    %v1150 = vpack.c.b16 %v722, %v718
    %v1151 = vpack.c.b16 %v723, %v719
    %v1152 = vpack.c.b16 %v724, %v720
    %v1153 = vpack.c.b16 %v729, %v725
    %v1154 = vpack.c.b16 %v730, %v726
    %v1155 = vpack.c.b16 %v731, %v727
    %v1156 = vpack.c.b16 %v732, %v728
    %v1157 = vpack.c.b16 %v737, %v733
    %v1158 = vpack.c.b16 %v738, %v734
    %v1159 = vpack.c.b16 %v739, %v735
    %v1160 = vpack.c.b16 %v740, %v736
    %v1161 = vpack.c.b16 %v745, %v741
    %v1162 = vpack.c.b16 %v746, %v742
    %v1163 = vpack.c.b16 %v747, %v743
    %v1164 = vpack.c.b16 %v748, %v744
    %v1165 = vpack.c.b16 %v753, %v749
    %v1166 = vpack.c.b16 %v754, %v750
    %v1167 = vpack.c.b16 %v755, %v751
    %v1168 = vpack.c.b16 %v756, %v752
    %v1169 = vpack.c.b16 %v761, %v757
    %v1170 = vpack.c.b16 %v762, %v758
    %v1171 = vpack.c.b16 %v763, %v759
    %v1172 = vpack.c.b16 %v764, %v760
    %v1173 = vpack.c.b16 %v769, %v765
    %v1174 = vpack.c.b16 %v770, %v766
    %v1175 = vpack.c.b16 %v771, %v767
    %v1176 = vpack.c.b16 %v772, %v768
    %v1177 = vpack.c.b16 %v777, %v773
    %v1178 = vpack.c.b16 %v778, %v774
    %v1179 = vpack.c.b16 %v779, %v775
    %v1180 = vpack.c.b16 %v780, %v776
    %v1181 = vpack.c.b16 %v785, %v781
    %v1182 = vpack.c.b16 %v786, %v782
    %v1183 = vpack.c.b16 %v787, %v783
    %v1184 = vpack.c.b16 %v788, %v784
    %v1185 = vpack.c.b16 %v793, %v789
    %v1186 = vpack.c.b16 %v794, %v790
    %v1187 = vpack.c.b16 %v795, %v791
    %v1188 = vpack.c.b16 %v796, %v792
    %v1189 = vpack.c.b16 %v801, %v797
    %v1190 = vpack.c.b16 %v802, %v798
    %v1191 = vpack.c.b16 %v803, %v799
    %v1192 = vpack.c.b16 %v804, %v800
    %v1193 = vpack.c.b16 %v809, %v805
    %v1194 = vpack.c.b16 %v810, %v806
    %v1195 = vpack.c.b16 %v811, %v807
    %v1196 = vpack.c.b16 %v812, %v808
    %v1197 = vpack.c.b16 %v817, %v813
    %v1198 = vpack.c.b16 %v818, %v814
    %v1199 = vpack.c.b16 %v819, %v815
    %v1200 = vpack.c.b16 %v820, %v816
    %v1201 = vpack.c.b16 %v825, %v821
    %v1202 = vpack.c.b16 %v826, %v822
    %v1203 = vpack.c.b16 %v827, %v823
    %v1204 = vpack.c.b16 %v828, %v824
    %v1205 = vpack.c.b16 %v833, %v829
    %v1206 = vpack.c.b16 %v834, %v830
    %v1207 = vpack.c.b16 %v835, %v831
    %v1208 = vpack.c.b16 %v836, %v832
    %v1209 = vpack.c.b16 %v841, %v837
    %v1210 = vpack.c.b16 %v842, %v838
    %v1211 = vpack.c.b16 %v843, %v839
    %v1212 = vpack.c.b16 %v844, %v840
    %v1213 = vpack.c.b16 %v849, %v845
    %v1214 = vpack.c.b16 %v850, %v846
    %v1215 = vpack.c.b16 %v851, %v847
    %v1216 = vpack.c.b16 %v852, %v848
    %v1217 = vpack.c.b16 %v857, %v853
    %v1218 = vpack.c.b16 %v858, %v854
    %v1219 = vpack.c.b16 %v859, %v855
    %v1220 = vpack.c.b16 %v860, %v856
    %v1221 = vpack.c.b16 %v865, %v861
    %v1222 = vpack.c.b16 %v866, %v862
    %v1223 = vpack.c.b16 %v867, %v863
    %v1224 = vpack.c.b16 %v868, %v864
    %v1225 = vpack.c.b16 %v873, %v869
    %v1226 = vpack.c.b16 %v874, %v870
    %v1227 = vpack.c.b16 %v875, %v871
    %v1228 = vpack.c.b16 %v876, %v872
    %v1229 = vpack.c.b16 %v881, %v877
    %v1230 = vpack.c.b16 %v882, %v878
    %v1231 = vpack.c.b16 %v883, %v879
    %v1232 = vpack.c.b16 %v884, %v880
    %v1233 = vpack.c.b16 %v889, %v885
    %v1234 = vpack.c.b16 %v890, %v886
    %v1235 = vpack.c.b16 %v891, %v887
    %v1236 = vpack.c.b16 %v892, %v888
    %v1237 = vpack.c.b16 %v897, %v893
    %v1238 = vpack.c.b16 %v898, %v894
    %v1239 = vpack.c.b16 %v899, %v895
    %v1240 = vpack.c.b16 %v900, %v896
    %v1241 = vpack.c.b16 %v905, %v901
    %v1242 = vpack.c.b16 %v906, %v902
    %v1243 = vpack.c.b16 %v907, %v903
    %v1244 = vpack.c.b16 %v908, %v904
    %v1245 = vpack.c.b16 %v913, %v909
    %v1246 = vpack.c.b16 %v914, %v910
    %v1247 = vpack.c.b16 %v915, %v911
    %v1248 = vpack.c.b16 %v916, %v912
    %v1249 = vpack.c.b16 %v921, %v917
    %v1250 = vpack.c.b16 %v922, %v918
    %v1251 = vpack.c.b16 %v923, %v919
    %v1252 = vpack.c.b16 %v924, %v920
    %v1253 = vpack.c.b16 %v929, %v925
    %v1254 = vpack.c.b16 %v930, %v926
    %v1255 = vpack.c.b16 %v931, %v927
    %v1256 = vpack.c.b16 %v932, %v928
    %v1257 = vpack.c.b16 %v937, %v933
    %v1258 = vpack.c.b16 %v938, %v934
    %v1259 = vpack.c.b16 %v939, %v935
    %v1260 = vpack.c.b16 %v940, %v936
    %v1261 = vpack.c.b16 %v945, %v941
    %v1262 = vpack.c.b16 %v946, %v942
    %v1263 = vpack.c.b16 %v947, %v943
    %v1264 = vpack.c.b16 %v948, %v944
    %v1265 = vpack.c.b16 %v953, %v949
    %v1266 = vpack.c.b16 %v954, %v950
    %v1267 = vpack.c.b16 %v955, %v951
    %v1268 = vpack.c.b16 %v956, %v952
    %v1269 = vpack.c.b16 %v961, %v957
    %v1270 = vpack.c.b16 %v962, %v958
    %v1271 = vpack.c.b16 %v963, %v959
    %v1272 = vpack.c.b16 %v964, %v960
    %v1273 = vpack.c.b16 %v969, %v965
    %v1274 = vpack.c.b16 %v970, %v966
    %v1275 = vpack.c.b16 %v971, %v967
    %v1276 = vpack.c.b16 %v972, %v968
    %v1277 = vpack.c.b16 %v977, %v973
    %v1278 = vpack.c.b16 %v978, %v974
    %v1279 = vpack.c.b16 %v979, %v975
    %v1280 = vpack.c.b16 %v980, %v976
    %v1281 = vpack.c.b16 %v985, %v981
    %v1282 = vpack.c.b16 %v986, %v982
    %v1283 = vpack.c.b16 %v987, %v983
    %v1284 = vpack.c.b16 %v988, %v984
    %v1285 = vpack.c.b16 %v993, %v989
    %v1286 = vpack.c.b16 %v994, %v990
    %v1287 = vpack.c.b16 %v995, %v991
    %v1288 = vpack.c.b16 %v996, %v992
    %v1289 = vpack.c.b16 %v1001, %v997
    %v1290 = vpack.c.b16 %v1002, %v998
    %v1291 = vpack.c.b16 %v1003, %v999
    %v1292 = vpack.c.b16 %v1004, %v1000
    %v1293 = vpack.c.b16 %v1009, %v1005
    %v1294 = vpack.c.b16 %v1010, %v1006
    %v1295 = vpack.c.b16 %v1011, %v1007
    %v1296 = vpack.c.b16 %v1012, %v1008
    %v1297 = vpack.c.b16 %v1017, %v1013
    %v1298 = vpack.c.b16 %v1018, %v1014
    %v1299 = vpack.c.b16 %v1019, %v1015
    %v1300 = vpack.c.b16 %v1020, %v1016
    %v1301 = vpack.c.b16 %v1025, %v1021
    %v1302 = vpack.c.b16 %v1026, %v1022
    %v1303 = vpack.c.b16 %v1027, %v1023
    %v1304 = vpack.c.b16 %v1028, %v1024
    %v1305 = vpack.c.b16 %v1033, %v1029
    %v1306 = vpack.c.b16 %v1034, %v1030
    %v1307 = vpack.c.b16 %v1035, %v1031
    %v1308 = vpack.c.b16 %v1036, %v1032
    %v1309 = vpack.c.b16 %v1041, %v1037
    %v1310 = vpack.c.b16 %v1042, %v1038
    %v1311 = vpack.c.b16 %v1043, %v1039
    %v1312 = vpack.c.b16 %v1044, %v1040
    %v1313 = vpack.c.b16 %v1049, %v1045
    %v1314 = vpack.c.b16 %v1050, %v1046
    %v1315 = vpack.c.b16 %v1051, %v1047
    %v1316 = vpack.c.b16 %v1052, %v1048
    %v1317 = vpack.c.b16 %v1057, %v1053
    %v1318 = vpack.c.b16 %v1058, %v1054
    %v1319 = vpack.c.b16 %v1059, %v1055
    %v1320 = vpack.c.b16 %v1060, %v1056
    %v1321 = vpack.c.b16 %v1065, %v1061
    %v1322 = vpack.c.b16 %v1066, %v1062
    %v1323 = vpack.c.b16 %v1067, %v1063
    %v1324 = vpack.c.b16 %v1068, %v1064
    %v1325 = vpack.c.b16 %v1073, %v1069
    %v1326 = vpack.c.b16 %v1074, %v1070
    %v1327 = vpack.c.b16 %v1075, %v1071
    %v1328 = vpack.c.b16 %v1076, %v1072
    %v1329 = vpack.c.b16 %v1081, %v1077
    %v1330 = vpack.c.b16 %v1082, %v1078
    %v1331 = vpack.c.b16 %v1083, %v1079
    %v1332 = vpack.c.b16 %v1084, %v1080
    %v1333 = vpack.c.b16 %v1089, %v1085
    %v1334 = vpack.c.b16 %v1090, %v1086
    %v1335 = vpack.c.b16 %v1091, %v1087
    %v1336 = vpack.c.b16 %v1092, %v1088
    %v1337 = vpack.c.b16 %v1097, %v1093
    %v1338 = vpack.c.b16 %v1098, %v1094
    %v1339 = vpack.c.b16 %v1099, %v1095
    %v1340 = vpack.c.b16 %v1100, %v1096
    %v1341 = vpack.c.b16 %v1105, %v1101
    %v1342 = vpack.c.b16 %v1106, %v1102
    %v1343 = vpack.c.b16 %v1107, %v1103
    %v1344 = vpack.c.b16 %v1108, %v1104
    %v1345 = vpack.c.b16 %v1113, %v1109
    %v1346 = vpack.c.b16 %v1114, %v1110
    %v1347 = vpack.c.b16 %v1115, %v1111
    %v1348 = vpack.c.b16 %v1116, %v1112
    %v1349 = vpack.c.b16 %v1121, %v1117
    %v1350 = vpack.c.b16 %v1122, %v1118
    %v1351 = vpack.c.b16 %v1123, %v1119
    %v1352 = vpack.c.b16 %v1124, %v1120
    %v1353 = vpack.c.b16 %v1129, %v1125
    %v1354 = vpack.c.b16 %v1130, %v1126
    %v1355 = vpack.c.b16 %v1131, %v1127
    %v1356 = vpack.c.b16 %v1132, %v1128
    %1581 = vmatprep.subr.bf16.mxu0 %v1134
    %1582 = vmatpush1.bf16.msra.mxu0 %v1133
    %1583 = vmatprep.subr.bf16.mxu0 %v1138
    %1584 = vmatpush1.bf16.msra.mxu0 %v1137
    %1585 = vmatprep.subr.bf16.mxu0 %v1142
    %1586 = vmatpush1.bf16.msra.mxu0 %v1141
    %1587 = vmatprep.subr.bf16.mxu0 %v1146
    %1588 = vmatpush1.bf16.msra.mxu0 %v1145
    %1589 = vmatprep.subr.bf16.mxu0 %v1150
    %1590 = vmatpush1.bf16.msra.mxu0 %v1149
    %1591 = vmatprep.subr.bf16.mxu0 %v1154
    %1592 = vmatpush1.bf16.msra.mxu0 %v1153
    %1593 = vmatprep.subr.bf16.mxu0 %v1158
    %1594 = vmatpush1.bf16.msra.mxu0 %v1157
    %1595 = vmatprep.subr.bf16.mxu0 %v1162
    %1596 = vmatpush1.bf16.msra.mxu0 %v1161
    %1597 = vmatprep.subr.bf16.mxu0 %v1166
    %1598 = vmatpush1.bf16.msra.mxu0 %v1165
    %1599 = vmatprep.subr.bf16.mxu0 %v1170
    %1600 = vmatpush1.bf16.msra.mxu0 %v1169
    %1601 = vmatprep.subr.bf16.mxu0 %v1174
    %1602 = vmatpush1.bf16.msra.mxu0 %v1173
    %1603 = vmatprep.subr.bf16.mxu0 %v1178
    %1604 = vmatpush1.bf16.msra.mxu0 %v1177
    %1605 = vmatprep.subr.bf16.mxu0 %v1182
    %1606 = vmatpush1.bf16.msra.mxu0 %v1181
    %1607 = vmatprep.subr.bf16.mxu0 %v1186
    %1608 = vmatpush1.bf16.msra.mxu0 %v1185
    %1609 = vmatprep.subr.bf16.mxu0 %v1190
    %1610 = vmatpush1.bf16.msra.mxu0 %v1189
    %1611 = vmatprep.subr.bf16.mxu0 %v1194
    %1612 = vmatpush1.bf16.msra.mxu0 %v1193
    %1613 = vmatprep.mubr.bf16.mxu0 %v448
    %1614 = vmatmul.mubr.bf16.gmra.mrb[0].mxu0 %v447
    %v1615 = vpop.f32.mrb[0].mxu0
    %v1616 = vadd.f32 0.0, %v1615
    %v1617 = vpop.f32.mrb[0].mxu0
    %v1618 = vadd.f32 0.0, %v1617
    %v1619 = vpop.f32.mrb[0].mxu0
    %v1620 = vadd.f32 0.0, %v1619
    %v1621 = vpop.f32.mrb[0].mxu0
    %v1622 = vadd.f32 0.0, %v1621
    %1623 = vdwg.mxu0
    %1624 = vmatprep.subr.bf16.mxu0 %v1198
    %1625 = vmatpush1.bf16.msra.mxu0 %v1197
    %1626 = vmatprep.subr.bf16.mxu0 %v1202
    %1627 = vmatpush1.bf16.msra.mxu0 %v1201
    %1628 = vmatprep.subr.bf16.mxu0 %v1206
    %1629 = vmatpush1.bf16.msra.mxu0 %v1205
    %1630 = vmatprep.subr.bf16.mxu0 %v1210
    %1631 = vmatpush1.bf16.msra.mxu0 %v1209
    %1632 = vmatprep.subr.bf16.mxu0 %v1214
    %1633 = vmatpush1.bf16.msra.mxu0 %v1213
    %1634 = vmatprep.subr.bf16.mxu0 %v1218
    %1635 = vmatpush1.bf16.msra.mxu0 %v1217
    %1636 = vmatprep.subr.bf16.mxu0 %v1222
    %1637 = vmatpush1.bf16.msra.mxu0 %v1221
    %1638 = vmatprep.subr.bf16.mxu0 %v1226
    %1639 = vmatpush1.bf16.msra.mxu0 %v1225
    %1640 = vmatprep.subr.bf16.mxu0 %v1230
    %1641 = vmatpush1.bf16.msra.mxu0 %v1229
    %1642 = vmatprep.subr.bf16.mxu0 %v1234
    %1643 = vmatpush1.bf16.msra.mxu0 %v1233
    %1644 = vmatprep.subr.bf16.mxu0 %v1238
    %1645 = vmatpush1.bf16.msra.mxu0 %v1237
    %1646 = vmatprep.subr.bf16.mxu0 %v1242
    %1647 = vmatpush1.bf16.msra.mxu0 %v1241
    %1648 = vmatprep.subr.bf16.mxu0 %v1246
    %1649 = vmatpush1.bf16.msra.mxu0 %v1245
    %1650 = vmatprep.subr.bf16.mxu0 %v1250
    %1651 = vmatpush1.bf16.msra.mxu0 %v1249
    %1652 = vmatprep.subr.bf16.mxu0 %v1254
    %1653 = vmatpush1.bf16.msra.mxu0 %v1253
    %1654 = vmatprep.subr.bf16.mxu0 %v1258
    %1655 = vmatpush1.bf16.msra.mxu0 %v1257
    %1656 = vmatprep.mubr.bf16.mxu0 %v450
    %1657 = vmatmul.mubr.bf16.gmra.mrb[0].mxu0 %v449
    %v1658 = vpop.f32.mrb[0].mxu0
    %v1659 = vadd.f32 %v1616, %v1658
    %v1660 = vpop.f32.mrb[0].mxu0
    %v1661 = vadd.f32 %v1618, %v1660
    %v1662 = vpop.f32.mrb[0].mxu0
    %v1663 = vadd.f32 %v1620, %v1662
    %v1664 = vpop.f32.mrb[0].mxu0
    %v1665 = vadd.f32 %v1622, %v1664
    %1666 = vdwg.mxu0
    %1667 = vmatprep.subr.bf16.mxu0 %v1262
    %1668 = vmatpush1.bf16.msra.mxu0 %v1261
    %1669 = vmatprep.subr.bf16.mxu0 %v1266
    %1670 = vmatpush1.bf16.msra.mxu0 %v1265
    %1671 = vmatprep.subr.bf16.mxu0 %v1270
    %1672 = vmatpush1.bf16.msra.mxu0 %v1269
    %1673 = vmatprep.subr.bf16.mxu0 %v1274
    %1674 = vmatpush1.bf16.msra.mxu0 %v1273
    %1675 = vmatprep.subr.bf16.mxu0 %v1278
    %1676 = vmatpush1.bf16.msra.mxu0 %v1277
    %1677 = vmatprep.subr.bf16.mxu0 %v1282
    %1678 = vmatpush1.bf16.msra.mxu0 %v1281
    %1679 = vmatprep.subr.bf16.mxu0 %v1286
    %1680 = vmatpush1.bf16.msra.mxu0 %v1285
    %1681 = vmatprep.subr.bf16.mxu0 %v1290
    %1682 = vmatpush1.bf16.msra.mxu0 %v1289
    %1683 = vmatprep.subr.bf16.mxu0 %v1294
    %1684 = vmatpush1.bf16.msra.mxu0 %v1293
    %1685 = vmatprep.subr.bf16.mxu0 %v1298
    %1686 = vmatpush1.bf16.msra.mxu0 %v1297
    %1687 = vmatprep.subr.bf16.mxu0 %v1302
    %1688 = vmatpush1.bf16.msra.mxu0 %v1301
    %1689 = vmatprep.subr.bf16.mxu0 %v1306
    %1690 = vmatpush1.bf16.msra.mxu0 %v1305
    %1691 = vmatprep.subr.bf16.mxu0 %v1310
    %1692 = vmatpush1.bf16.msra.mxu0 %v1309
    %1693 = vmatprep.subr.bf16.mxu0 %v1314
    %1694 = vmatpush1.bf16.msra.mxu0 %v1313
    %1695 = vmatprep.subr.bf16.mxu0 %v1318
    %1696 = vmatpush1.bf16.msra.mxu0 %v1317
    %1697 = vmatprep.subr.bf16.mxu0 %v1322
    %1698 = vmatpush1.bf16.msra.mxu0 %v1321
    %1699 = vmatprep.mubr.bf16.mxu0 %v452
    %1700 = vmatmul.mubr.bf16.gmra.mrb[0].mxu0 %v451
    %v1701 = vpop.f32.mrb[0].mxu0
    %v1702 = vadd.f32 %v1659, %v1701
    %v1703 = vpop.f32.mrb[0].mxu0
    %v1704 = vadd.f32 %v1661, %v1703
    %v1705 = vpop.f32.mrb[0].mxu0
    %v1706 = vadd.f32 %v1663, %v1705
    %v1707 = vpop.f32.mrb[0].mxu0
    %v1708 = vadd.f32 %v1665, %v1707
    %1709 = vdwg.mxu0
    %1710 = vmatprep.subr.bf16.mxu0 %v1326
    %1711 = vmatpush1.bf16.msra.mxu0 %v1325
    %1712 = vmatprep.subr.bf16.mxu0 %v1330
    %1713 = vmatpush1.bf16.msra.mxu0 %v1329
    %1714 = vmatprep.subr.bf16.mxu0 %v1334
    %1715 = vmatpush1.bf16.msra.mxu0 %v1333
    %1716 = vmatprep.subr.bf16.mxu0 %v1338
    %1717 = vmatpush1.bf16.msra.mxu0 %v1337
    %1718 = vmatprep.subr.bf16.mxu0 %v1342
    %1719 = vmatpush1.bf16.msra.mxu0 %v1341
    %1720 = vmatprep.subr.bf16.mxu0 %v1346
    %1721 = vmatpush1.bf16.msra.mxu0 %v1345
    %1722 = vmatprep.subr.bf16.mxu0 %v1350
    %1723 = vmatpush1.bf16.msra.mxu0 %v1349
    %1724 = vmatprep.subr.bf16.mxu0 %v1354
    %1725 = vmatpush1.bf16.msra.mxu0 %v1353
    %1726 = vmatprep.subr.bf16.mxu0 0
    %1727 = vmatpush1.bf16.msra.mxu0 0
    %1728 = vmatprep.subr.bf16.mxu0 0
    %1729 = vmatpush1.bf16.msra.mxu0 0
    %1730 = vmatprep.subr.bf16.mxu0 0
    %1731 = vmatpush1.bf16.msra.mxu0 0
    %1732 = vmatprep.subr.bf16.mxu0 0
    %1733 = vmatpush1.bf16.msra.mxu0 0
    %1734 = vmatprep.subr.bf16.mxu0 0
    %1735 = vmatpush1.bf16.msra.mxu0 0
    %1736 = vmatprep.subr.bf16.mxu0 0
    %1737 = vmatpush1.bf16.msra.mxu0 0
    %1738 = vmatprep.subr.bf16.mxu0 0
    %1739 = vmatpush1.bf16.msra.mxu0 0
    %1740 = vmatprep.subr.bf16.mxu0 0
    %1741 = vmatpush1.bf16.msra.mxu0 0
    %1742 = vmatprep.mubr.bf16.mxu0 0
    %1743 = vmatmul.mubr.bf16.gmra.mrb[0].mxu0 %v453
    %v1744 = vpop.f32.mrb[0].mxu0
    %v1745 = vadd.f32 %v1702, %v1744
    %v1746 = vpop.f32.mrb[0].mxu0
    %v1747 = vadd.f32 %v1704, %v1746
    %v1748 = vpop.f32.mrb[0].mxu0
    %v1749 = vadd.f32 %v1706, %v1748
    %v1750 = vpop.f32.mrb[0].mxu0
    %v1751 = vadd.f32 %v1708, %v1750
    %1752 = vdwg.mxu0
    %1753 = vmatprep.subr.bf16.mxu0 %v1136
    %1754 = vmatpush1.bf16.msra.mxu0 %v1135
    %1755 = vmatprep.subr.bf16.mxu0 %v1140
    %1756 = vmatpush1.bf16.msra.mxu0 %v1139
    %1757 = vmatprep.subr.bf16.mxu0 %v1144
    %1758 = vmatpush1.bf16.msra.mxu0 %v1143
    %1759 = vmatprep.subr.bf16.mxu0 %v1148
    %1760 = vmatpush1.bf16.msra.mxu0 %v1147
    %1761 = vmatprep.subr.bf16.mxu0 %v1152
    %1762 = vmatpush1.bf16.msra.mxu0 %v1151
    %1763 = vmatprep.subr.bf16.mxu0 %v1156
    %1764 = vmatpush1.bf16.msra.mxu0 %v1155
    %1765 = vmatprep.subr.bf16.mxu0 %v1160
    %1766 = vmatpush1.bf16.msra.mxu0 %v1159
    %1767 = vmatprep.subr.bf16.mxu0 %v1164
    %1768 = vmatpush1.bf16.msra.mxu0 %v1163
    %1769 = vmatprep.subr.bf16.mxu0 %v1168
    %1770 = vmatpush1.bf16.msra.mxu0 %v1167
    %1771 = vmatprep.subr.bf16.mxu0 %v1172
    %1772 = vmatpush1.bf16.msra.mxu0 %v1171
    %1773 = vmatprep.subr.bf16.mxu0 %v1176
    %1774 = vmatpush1.bf16.msra.mxu0 %v1175
    %1775 = vmatprep.subr.bf16.mxu0 %v1180
    %1776 = vmatpush1.bf16.msra.mxu0 %v1179
    %1777 = vmatprep.subr.bf16.mxu0 %v1184
    %1778 = vmatpush1.bf16.msra.mxu0 %v1183
    %1779 = vmatprep.subr.bf16.mxu0 %v1188
    %1780 = vmatpush1.bf16.msra.mxu0 %v1187
    %1781 = vmatprep.subr.bf16.mxu0 %v1192
    %1782 = vmatpush1.bf16.msra.mxu0 %v1191
    %1783 = vmatprep.subr.bf16.mxu0 %v1196
    %1784 = vmatpush1.bf16.msra.mxu0 %v1195
    %1785 = vmatprep.mubr.bf16.mxu0 %v448
    %1786 = vmatmul.mubr.bf16.gmra.mrb[0].mxu0 %v447
    %v1787 = vpop.f32.mrb[0].mxu0
    %v1788 = vadd.f32 0.0, %v1787
    %v1789 = vpop.f32.mrb[0].mxu0
    %v1790 = vadd.f32 0.0, %v1789
    %v1791 = vpop.f32.mrb[0].mxu0
    %v1792 = vadd.f32 0.0, %v1791
    %v1793 = vpop.f32.mrb[0].mxu0
    %v1794 = vadd.f32 0.0, %v1793
    %1795 = vdwg.mxu0
    %1796 = vmatprep.subr.bf16.mxu0 %v1200
    %1797 = vmatpush1.bf16.msra.mxu0 %v1199
    %1798 = vmatprep.subr.bf16.mxu0 %v1204
    %1799 = vmatpush1.bf16.msra.mxu0 %v1203
    %1800 = vmatprep.subr.bf16.mxu0 %v1208
    %1801 = vmatpush1.bf16.msra.mxu0 %v1207
    %1802 = vmatprep.subr.bf16.mxu0 %v1212
    %1803 = vmatpush1.bf16.msra.mxu0 %v1211
    %1804 = vmatprep.subr.bf16.mxu0 %v1216
    %1805 = vmatpush1.bf16.msra.mxu0 %v1215
    %1806 = vmatprep.subr.bf16.mxu0 %v1220
    %1807 = vmatpush1.bf16.msra.mxu0 %v1219
    %1808 = vmatprep.subr.bf16.mxu0 %v1224
    %1809 = vmatpush1.bf16.msra.mxu0 %v1223
    %1810 = vmatprep.subr.bf16.mxu0 %v1228
    %1811 = vmatpush1.bf16.msra.mxu0 %v1227
    %1812 = vmatprep.subr.bf16.mxu0 %v1232
    %1813 = vmatpush1.bf16.msra.mxu0 %v1231
    %1814 = vmatprep.subr.bf16.mxu0 %v1236
    %1815 = vmatpush1.bf16.msra.mxu0 %v1235
    %1816 = vmatprep.subr.bf16.mxu0 %v1240
    %1817 = vmatpush1.bf16.msra.mxu0 %v1239
    %1818 = vmatprep.subr.bf16.mxu0 %v1244
    %1819 = vmatpush1.bf16.msra.mxu0 %v1243
    %1820 = vmatprep.subr.bf16.mxu0 %v1248
    %1821 = vmatpush1.bf16.msra.mxu0 %v1247
    %1822 = vmatprep.subr.bf16.mxu0 %v1252
    %1823 = vmatpush1.bf16.msra.mxu0 %v1251
    %1824 = vmatprep.subr.bf16.mxu0 %v1256
    %1825 = vmatpush1.bf16.msra.mxu0 %v1255
    %1826 = vmatprep.subr.bf16.mxu0 %v1260
    %1827 = vmatpush1.bf16.msra.mxu0 %v1259
    %1828 = vmatprep.mubr.bf16.mxu0 %v450
    %1829 = vmatmul.mubr.bf16.gmra.mrb[0].mxu0 %v449
    %v1830 = vpop.f32.mrb[0].mxu0
    %v1831 = vadd.f32 %v1788, %v1830
    %v1832 = vpop.f32.mrb[0].mxu0
    %v1833 = vadd.f32 %v1790, %v1832
    %v1834 = vpop.f32.mrb[0].mxu0
    %v1835 = vadd.f32 %v1792, %v1834
    %v1836 = vpop.f32.mrb[0].mxu0
    %v1837 = vadd.f32 %v1794, %v1836
    %1838 = vdwg.mxu0
    %1839 = vmatprep.subr.bf16.mxu0 %v1264
    %1840 = vmatpush1.bf16.msra.mxu0 %v1263
    %1841 = vmatprep.subr.bf16.mxu0 %v1268
    %1842 = vmatpush1.bf16.msra.mxu0 %v1267
    %1843 = vmatprep.subr.bf16.mxu0 %v1272
    %1844 = vmatpush1.bf16.msra.mxu0 %v1271
    %1845 = vmatprep.subr.bf16.mxu0 %v1276
    %1846 = vmatpush1.bf16.msra.mxu0 %v1275
    %1847 = vmatprep.subr.bf16.mxu0 %v1280
    %1848 = vmatpush1.bf16.msra.mxu0 %v1279
    %1849 = vmatprep.subr.bf16.mxu0 %v1284
    %1850 = vmatpush1.bf16.msra.mxu0 %v1283
    %1851 = vmatprep.subr.bf16.mxu0 %v1288
    %1852 = vmatpush1.bf16.msra.mxu0 %v1287
    %1853 = vmatprep.subr.bf16.mxu0 %v1292
    %1854 = vmatpush1.bf16.msra.mxu0 %v1291
    %1855 = vmatprep.subr.bf16.mxu0 %v1296
    %1856 = vmatpush1.bf16.msra.mxu0 %v1295
    %1857 = vmatprep.subr.bf16.mxu0 %v1300
    %1858 = vmatpush1.bf16.msra.mxu0 %v1299
    %1859 = vmatprep.subr.bf16.mxu0 %v1304
    %1860 = vmatpush1.bf16.msra.mxu0 %v1303
    %1861 = vmatprep.subr.bf16.mxu0 %v1308
    %1862 = vmatpush1.bf16.msra.mxu0 %v1307
    %1863 = vmatprep.subr.bf16.mxu0 %v1312
    %1864 = vmatpush1.bf16.msra.mxu0 %v1311
    %1865 = vmatprep.subr.bf16.mxu0 %v1316
    %1866 = vmatpush1.bf16.msra.mxu0 %v1315
    %1867 = vmatprep.subr.bf16.mxu0 %v1320
    %1868 = vmatpush1.bf16.msra.mxu0 %v1319
    %1869 = vmatprep.subr.bf16.mxu0 %v1324
    %1870 = vmatpush1.bf16.msra.mxu0 %v1323
    %1871 = vmatprep.mubr.bf16.mxu0 %v452
    %1872 = vmatmul.mubr.bf16.gmra.mrb[0].mxu0 %v451
    %v1873 = vpop.f32.mrb[0].mxu0
    %v1874 = vadd.f32 %v1831, %v1873
    %v1875 = vpop.f32.mrb[0].mxu0
    %v1876 = vadd.f32 %v1833, %v1875
    %v1877 = vpop.f32.mrb[0].mxu0
    %v1878 = vadd.f32 %v1835, %v1877
    %v1879 = vpop.f32.mrb[0].mxu0
    %v1880 = vadd.f32 %v1837, %v1879
    %1881 = vdwg.mxu0
    %1882 = vmatprep.subr.bf16.mxu0 %v1328
    %1883 = vmatpush1.bf16.msra.mxu0 %v1327
    %1884 = vmatprep.subr.bf16.mxu0 %v1332
    %1885 = vmatpush1.bf16.msra.mxu0 %v1331
    %1886 = vmatprep.subr.bf16.mxu0 %v1336
    %1887 = vmatpush1.bf16.msra.mxu0 %v1335
    %1888 = vmatprep.subr.bf16.mxu0 %v1340
    %1889 = vmatpush1.bf16.msra.mxu0 %v1339
    %1890 = vmatprep.subr.bf16.mxu0 %v1344
    %1891 = vmatpush1.bf16.msra.mxu0 %v1343
    %1892 = vmatprep.subr.bf16.mxu0 %v1348
    %1893 = vmatpush1.bf16.msra.mxu0 %v1347
    %1894 = vmatprep.subr.bf16.mxu0 %v1352
    %1895 = vmatpush1.bf16.msra.mxu0 %v1351
    %1896 = vmatprep.subr.bf16.mxu0 %v1356
    %1897 = vmatpush1.bf16.msra.mxu0 %v1355
    %1898 = vmatprep.subr.bf16.mxu0 0
    %1899 = vmatpush1.bf16.msra.mxu0 0
    %1900 = vmatprep.subr.bf16.mxu0 0
    %1901 = vmatpush1.bf16.msra.mxu0 0
    %1902 = vmatprep.subr.bf16.mxu0 0
    %1903 = vmatpush1.bf16.msra.mxu0 0
    %1904 = vmatprep.subr.bf16.mxu0 0
    %1905 = vmatpush1.bf16.msra.mxu0 0
    %1906 = vmatprep.subr.bf16.mxu0 0
    %1907 = vmatpush1.bf16.msra.mxu0 0
    %1908 = vmatprep.subr.bf16.mxu0 0
    %1909 = vmatpush1.bf16.msra.mxu0 0
    %1910 = vmatprep.subr.bf16.mxu0 0
    %1911 = vmatpush1.bf16.msra.mxu0 0
    %1912 = vmatprep.subr.bf16.mxu0 0
    %1913 = vmatpush1.bf16.msra.mxu0 0
    %1914 = vmatprep.mubr.bf16.mxu0 0
    %1915 = vmatmul.mubr.bf16.gmra.mrb[0].mxu0 %v453
    %v1916 = vpop.f32.mrb[0].mxu0
    %v1917 = vadd.f32 %v1874, %v1916
    %v1918 = vpop.f32.mrb[0].mxu0
    %v1919 = vadd.f32 %v1876, %v1918
    %v1920 = vpop.f32.mrb[0].mxu0
    %v1921 = vadd.f32 %v1878, %v1920
    %v1922 = vpop.f32.mrb[0].mxu0
    %v1923 = vadd.f32 %v1880, %v1922
    %1924 = vdwg.mxu0
    %v1925 = vpack.c.bf16 %v1749, %v1745
    %v1926 = vpack.c.bf16 %v1751, %v1747
    %v1927 = vpack.c.bf16 %v1921, %v1917
    %v1928 = vpack.c.bf16 %v1923, %v1919
    %v1929 = vld [vmem:[%s2] sm:$0xf]
    %v1931 = vlaneseq
    %v1932 = vshrl.u32 %v1931, 7
    %v1933 = vsub.s32 0, %v1932
    %v1934 = vrot.slane %v1929, %v1933
    %v1935 = vlaneseq
    %v1936 = vshrl.u32 %v1935, 7
    %v1937 = vsub.s32 1, %v1936
    %v1938 = vrot.slane %v1929, %v1937
    %v1939 = vlaneseq
    %v1940 = vshrl.u32 %v1939, 7
    %v1941 = vsub.s32 2, %v1940
    %v1942 = vrot.slane %v1929, %v1941
    %v1943 = vlaneseq
    %v1944 = vshrl.u32 %v1943, 7
    %v1945 = vsub.s32 3, %v1944
    %v1946 = vrot.slane %v1929, %v1945
    %v1951 = vpack.c.bf16 %v1934, %v1934
    %v1952 = vpack.c.bf16 %v1938, %v1938
    %v1953 = vpack.c.bf16 %v1942, %v1942
    %v1954 = vpack.c.bf16 %v1946, %v1946
    %v1956 = vpack.i.b16 %v1951, %v1951
    %v1958 = vlaneseq
    %v1959 = vshrl.u32 %v1958, 7
    %v1960 = vsub.s32 0, %v1959
    %v1961 = vrot.slane %v1956, %v1960
    %v1963 = vpack.i.b16 %v1952, %v1952
    %v1965 = vlaneseq
    %v1966 = vshrl.u32 %v1965, 7
    %v1967 = vsub.s32 0, %v1966
    %v1968 = vrot.slane %v1963, %v1967
    %v1970 = vpack.i.b16 %v1953, %v1953
    %v1972 = vlaneseq
    %v1973 = vshrl.u32 %v1972, 7
    %v1974 = vsub.s32 0, %v1973
    %v1975 = vrot.slane %v1970, %v1974
    %v1977 = vpack.i.b16 %v1954, %v1954
    %v1979 = vlaneseq
    %v1980 = vshrl.u32 %v1979, 7
    %v1981 = vsub.s32 0, %v1980
    %v1982 = vrot.slane %v1977, %v1981
    %v1983 = vadd.bf16 %v1925, %v1961
    %v1984 = vadd.bf16 %v1926, %v1968
    %v1985 = vadd.bf16 %v1927, %v1975
    %v1986 = vadd.bf16 %v1928, %v1982
    %vm1987 = vcmp.gt.bf16.partialorder %v1983, 0
    %vm1988 = vcmp.gt.bf16.partialorder %v1984, 0
    %vm1989 = vcmp.gt.bf16.partialorder %v1985, 0
    %vm1990 = vcmp.gt.bf16.partialorder %v1986, 0
    %v1991 = vmul.bf16 %v1983, 1036860877
    %v1992 = vmul.bf16 %v1984, 1036860877
    %v1993 = vmul.bf16 %v1985, 1036860877
    %v1994 = vmul.bf16 %v1986, 1036860877
    %v1995 = vsel %vm1987, %v1983, %v1991
    %v1996 = vsel %vm1988, %v1984, %v1992
    %v1997 = vsel %vm1989, %v1985, %v1993
    %v1998 = vsel %vm1990, %v1986, %v1994
    %v1999 = vld [vmem:[#allocation7] sm:$0xff]
    %v2000 = vld [vmem:[#allocation7 + $0x8] sm:$0xff]
    %v2001 = vld [vmem:[#allocation7 + $0x10] sm:$0xff]
    %v2002 = vld [vmem:[#allocation7 + $0x18] sm:$0xff]
    %v2003 = vld [vmem:[#allocation7 + $0x20] sm:$0xff]
    %v2004 = vld [vmem:[#allocation7 + $0x28] sm:$0xff]
    %v2005 = vld [vmem:[#allocation7 + $0x30] sm:$0xff]
    %v2006 = vld [vmem:[#allocation7 + $0x38] sm:$0xff]
    %v2007 = vld [vmem:[#allocation7 + $0x40] sm:$0xff]
    %v2008 = vld [vmem:[#allocation7 + $0x48] sm:$0xff]
    %v2009 = vld [vmem:[#allocation7 + $0x50] sm:$0xff]
    %v2010 = vld [vmem:[#allocation7 + $0x58] sm:$0xff]
    %v2011 = vld [vmem:[#allocation7 + $0x60] sm:$0xff]
    %v2012 = vld [vmem:[#allocation7 + $0x68] sm:$0xff]
    %v2013 = vld [vmem:[#allocation7 + $0x70] sm:$0xff]
    %v2014 = vld [vmem:[#allocation7 + $0x78] sm:$0xff]
    %v2015 = vld [vmem:[#allocation7 + $0x80] sm:$0xff]
    %v2016 = vld [vmem:[#allocation7 + $0x88] sm:$0xff]
    %v2017 = vld [vmem:[#allocation7 + $0x90] sm:$0xff]
    %v2018 = vld [vmem:[#allocation7 + $0x98] sm:$0xff]
    %v2019 = vld [vmem:[#allocation7 + $0xa0] sm:$0xff]
    %v2020 = vld [vmem:[#allocation7 + $0xa8] sm:$0xff]
    %v2021 = vld [vmem:[#allocation7 + $0xb0] sm:$0xff]
    %v2022 = vld [vmem:[#allocation7 + $0xb8] sm:$0xff]
    %v2023 = vld [vmem:[#allocation7 + $0xc0] sm:$0xff]
    %v2024 = vld [vmem:[#allocation7 + $0xc8] sm:$0xff]
    %v2025 = vld [vmem:[#allocation7 + $0xd0] sm:$0xff]
    %v2026 = vld [vmem:[#allocation7 + $0xd8] sm:$0xff]
    %v2027 = vld [vmem:[#allocation7 + $0xe0] sm:$0xff]
    %v2028 = vld [vmem:[#allocation7 + $0xe8] sm:$0xff]
    %v2029 = vld [vmem:[#allocation7 + $0xf0] sm:$0xff]
    %v2030 = vld [vmem:[#allocation7 + $0xf8] sm:$0xff]
    %v2031 = vld [vmem:[#allocation7 + $0x100] sm:$0xff]
    %v2032 = vld [vmem:[#allocation7 + $0x108] sm:$0xff]
    %v2033 = vld [vmem:[#allocation7 + $0x110] sm:$0xff]
    %v2034 = vld [vmem:[#allocation7 + $0x118] sm:$0xff]
    %v2035 = vld [vmem:[#allocation7 + $0x120] sm:$0xff]
    %v2036 = vld [vmem:[#allocation7 + $0x128] sm:$0xff]
    %v2037 = vld [vmem:[#allocation7 + $0x130] sm:$0xff]
    %v2038 = vld [vmem:[#allocation7 + $0x138] sm:$0xff]
    %v2039 = vld [vmem:[#allocation7 + $0x140] sm:$0xff]
    %v2040 = vld [vmem:[#allocation7 + $0x148] sm:$0xff]
    %v2041 = vld [vmem:[#allocation7 + $0x150] sm:$0xff]
    %v2042 = vld [vmem:[#allocation7 + $0x158] sm:$0xff]
    %v2043 = vld [vmem:[#allocation7 + $0x160] sm:$0xff]
    %v2044 = vld [vmem:[#allocation7 + $0x168] sm:$0xff]
    %v2045 = vld [vmem:[#allocation7 + $0x170] sm:$0xff]
    %v2046 = vld [vmem:[#allocation7 + $0x178] sm:$0xff]
    %v2047 = vld [vmem:[#allocation7 + $0x180] sm:$0xff]
    %v2048 = vld [vmem:[#allocation7 + $0x188] sm:$0xff]
    %v2049 = vld [vmem:[#allocation7 + $0x190] sm:$0xff]
    %v2050 = vld [vmem:[#allocation7 + $0x198] sm:$0xff]
    %v2051 = vld [vmem:[#allocation7 + $0x1a0] sm:$0xff]
    %v2052 = vld [vmem:[#allocation7 + $0x1a8] sm:$0xff]
    %v2053 = vld [vmem:[#allocation7 + $0x1b0] sm:$0xff]
    %v2054 = vld [vmem:[#allocation7 + $0x1b8] sm:$0xff]
    %v2055 = vld [vmem:[#allocation7 + $0x1c0] sm:$0xff]
    %v2056 = vld [vmem:[#allocation7 + $0x1c8] sm:$0xff]
    %v2057 = vld [vmem:[#allocation7 + $0x1d0] sm:$0xff]
    %v2058 = vld [vmem:[#allocation7 + $0x1d8] sm:$0xff]
    %v2059 = vld [vmem:[#allocation7 + $0x1e0] sm:$0xff]
    %v2060 = vld [vmem:[#allocation7 + $0x1e8] sm:$0xff]
    %v2061 = vld [vmem:[#allocation7 + $0x1f0] sm:$0xff]
    %v2062 = vld [vmem:[#allocation7 + $0x1f8] sm:$0xff]
    %v2127 = vunpack.c.l.b16 %v1999
    %v2128 = vunpack.c.h.b16 %v1999
    %v2129 = vunpack.c.l.b16 %v2000
    %v2130 = vunpack.c.h.b16 %v2000
    %v2131 = vunpack.c.l.b16 %v2001
    %v2132 = vunpack.c.h.b16 %v2001
    %v2133 = vunpack.c.l.b16 %v2002
    %v2134 = vunpack.c.h.b16 %v2002
    %v2135 = vunpack.c.l.b16 %v2003
    %v2136 = vunpack.c.h.b16 %v2003
    %v2137 = vunpack.c.l.b16 %v2004
    %v2138 = vunpack.c.h.b16 %v2004
    %v2139 = vunpack.c.l.b16 %v2005
    %v2140 = vunpack.c.h.b16 %v2005
    %v2141 = vunpack.c.l.b16 %v2006
    %v2142 = vunpack.c.h.b16 %v2006
    %v2143 = vunpack.c.l.b16 %v2007
    %v2144 = vunpack.c.h.b16 %v2007
    %v2145 = vunpack.c.l.b16 %v2008
    %v2146 = vunpack.c.h.b16 %v2008
    %v2147 = vunpack.c.l.b16 %v2009
    %v2148 = vunpack.c.h.b16 %v2009
    %v2149 = vunpack.c.l.b16 %v2010
    %v2150 = vunpack.c.h.b16 %v2010
    %v2151 = vunpack.c.l.b16 %v2011
    %v2152 = vunpack.c.h.b16 %v2011
    %v2153 = vunpack.c.l.b16 %v2012
    %v2154 = vunpack.c.h.b16 %v2012
    %v2155 = vunpack.c.l.b16 %v2013
    %v2156 = vunpack.c.h.b16 %v2013
    %v2157 = vunpack.c.l.b16 %v2014
    %v2158 = vunpack.c.h.b16 %v2014
    %v2159 = vunpack.c.l.b16 %v2015
    %v2160 = vunpack.c.h.b16 %v2015
    %v2161 = vunpack.c.l.b16 %v2016
    %v2162 = vunpack.c.h.b16 %v2016
    %v2163 = vunpack.c.l.b16 %v2017
    %v2164 = vunpack.c.h.b16 %v2017
    %v2165 = vunpack.c.l.b16 %v2018
    %v2166 = vunpack.c.h.b16 %v2018
    %v2167 = vunpack.c.l.b16 %v2019
    %v2168 = vunpack.c.h.b16 %v2019
    %v2169 = vunpack.c.l.b16 %v2020
    %v2170 = vunpack.c.h.b16 %v2020
    %v2171 = vunpack.c.l.b16 %v2021
    %v2172 = vunpack.c.h.b16 %v2021
    %v2173 = vunpack.c.l.b16 %v2022
    %v2174 = vunpack.c.h.b16 %v2022
    %v2175 = vunpack.c.l.b16 %v2023
    %v2176 = vunpack.c.h.b16 %v2023
    %v2177 = vunpack.c.l.b16 %v2024
    %v2178 = vunpack.c.h.b16 %v2024
    %v2179 = vunpack.c.l.b16 %v2025
    %v2180 = vunpack.c.h.b16 %v2025
    %v2181 = vunpack.c.l.b16 %v2026
    %v2182 = vunpack.c.h.b16 %v2026
    %v2183 = vunpack.c.l.b16 %v2027
    %v2184 = vunpack.c.h.b16 %v2027
    %v2185 = vunpack.c.l.b16 %v2028
    %v2186 = vunpack.c.h.b16 %v2028
    %v2187 = vunpack.c.l.b16 %v2029
    %v2188 = vunpack.c.h.b16 %v2029
    %v2189 = vunpack.c.l.b16 %v2030
    %v2190 = vunpack.c.h.b16 %v2030
    %v2191 = vunpack.c.l.b16 %v2031
    %v2192 = vunpack.c.h.b16 %v2031
    %v2193 = vunpack.c.l.b16 %v2032
    %v2194 = vunpack.c.h.b16 %v2032
    %v2195 = vunpack.c.l.b16 %v2033
    %v2196 = vunpack.c.h.b16 %v2033
    %v2197 = vunpack.c.l.b16 %v2034
    %v2198 = vunpack.c.h.b16 %v2034
    %v2199 = vunpack.c.l.b16 %v2035
    %v2200 = vunpack.c.h.b16 %v2035
    %v2201 = vunpack.c.l.b16 %v2036
    %v2202 = vunpack.c.h.b16 %v2036
    %v2203 = vunpack.c.l.b16 %v2037
    %v2204 = vunpack.c.h.b16 %v2037
    %v2205 = vunpack.c.l.b16 %v2038
    %v2206 = vunpack.c.h.b16 %v2038
    %v2207 = vunpack.c.l.b16 %v2039
    %v2208 = vunpack.c.h.b16 %v2039
    %v2209 = vunpack.c.l.b16 %v2040
    %v2210 = vunpack.c.h.b16 %v2040
    %v2211 = vunpack.c.l.b16 %v2041
    %v2212 = vunpack.c.h.b16 %v2041
    %v2213 = vunpack.c.l.b16 %v2042
    %v2214 = vunpack.c.h.b16 %v2042
    %v2215 = vunpack.c.l.b16 %v2043
    %v2216 = vunpack.c.h.b16 %v2043
    %v2217 = vunpack.c.l.b16 %v2044
    %v2218 = vunpack.c.h.b16 %v2044
    %v2219 = vunpack.c.l.b16 %v2045
    %v2220 = vunpack.c.h.b16 %v2045
    %v2221 = vunpack.c.l.b16 %v2046
    %v2222 = vunpack.c.h.b16 %v2046
    %v2223 = vunpack.c.l.b16 %v2047
    %v2224 = vunpack.c.h.b16 %v2047
    %v2225 = vunpack.c.l.b16 %v2048
    %v2226 = vunpack.c.h.b16 %v2048
    %v2227 = vunpack.c.l.b16 %v2049
    %v2228 = vunpack.c.h.b16 %v2049
    %v2229 = vunpack.c.l.b16 %v2050
    %v2230 = vunpack.c.h.b16 %v2050
    %v2231 = vunpack.c.l.b16 %v2051
    %v2232 = vunpack.c.h.b16 %v2051
    %v2233 = vunpack.c.l.b16 %v2052
    %v2234 = vunpack.c.h.b16 %v2052
    %v2235 = vunpack.c.l.b16 %v2053
    %v2236 = vunpack.c.h.b16 %v2053
    %v2237 = vunpack.c.l.b16 %v2054
    %v2238 = vunpack.c.h.b16 %v2054
    %v2239 = vunpack.c.l.b16 %v2055
    %v2240 = vunpack.c.h.b16 %v2055
    %v2241 = vunpack.c.l.b16 %v2056
    %v2242 = vunpack.c.h.b16 %v2056
    %v2243 = vunpack.c.l.b16 %v2057
    %v2244 = vunpack.c.h.b16 %v2057
    %v2245 = vunpack.c.l.b16 %v2058
    %v2246 = vunpack.c.h.b16 %v2058
    %v2247 = vunpack.c.l.b16 %v2059
    %v2248 = vunpack.c.h.b16 %v2059
    %v2249 = vunpack.c.l.b16 %v2060
    %v2250 = vunpack.c.h.b16 %v2060
    %v2251 = vunpack.c.l.b16 %v2061
    %v2252 = vunpack.c.h.b16 %v2061
    %v2253 = vunpack.c.l.b16 %v2062
    %v2254 = vunpack.c.h.b16 %v2062
    %v2255 = vpack.c.b16 %v2129, %v2127
    %v2256 = vpack.c.b16 %v2130, %v2128
    %v2257 = vpack.c.b16 %v2133, %v2131
    %v2258 = vpack.c.b16 %v2134, %v2132
    %v2259 = vpack.c.b16 %v2137, %v2135
    %v2260 = vpack.c.b16 %v2138, %v2136
    %v2261 = vpack.c.b16 %v2141, %v2139
    %v2262 = vpack.c.b16 %v2142, %v2140
    %v2263 = vpack.c.b16 %v2145, %v2143
    %v2264 = vpack.c.b16 %v2146, %v2144
    %v2265 = vpack.c.b16 %v2149, %v2147
    %v2266 = vpack.c.b16 %v2150, %v2148
    %v2267 = vpack.c.b16 %v2153, %v2151
    %v2268 = vpack.c.b16 %v2154, %v2152
    %v2269 = vpack.c.b16 %v2157, %v2155
    %v2270 = vpack.c.b16 %v2158, %v2156
    %v2271 = vpack.c.b16 %v2161, %v2159
    %v2272 = vpack.c.b16 %v2162, %v2160
    %v2273 = vpack.c.b16 %v2165, %v2163
    %v2274 = vpack.c.b16 %v2166, %v2164
    %v2275 = vpack.c.b16 %v2169, %v2167
    %v2276 = vpack.c.b16 %v2170, %v2168
    %v2277 = vpack.c.b16 %v2173, %v2171
    %v2278 = vpack.c.b16 %v2174, %v2172
    %v2279 = vpack.c.b16 %v2177, %v2175
    %v2280 = vpack.c.b16 %v2178, %v2176
    %v2281 = vpack.c.b16 %v2181, %v2179
    %v2282 = vpack.c.b16 %v2182, %v2180
    %v2283 = vpack.c.b16 %v2185, %v2183
    %v2284 = vpack.c.b16 %v2186, %v2184
    %v2285 = vpack.c.b16 %v2189, %v2187
    %v2286 = vpack.c.b16 %v2190, %v2188
    %v2287 = vpack.c.b16 %v2193, %v2191
    %v2288 = vpack.c.b16 %v2194, %v2192
    %v2289 = vpack.c.b16 %v2197, %v2195
    %v2290 = vpack.c.b16 %v2198, %v2196
    %v2291 = vpack.c.b16 %v2201, %v2199
    %v2292 = vpack.c.b16 %v2202, %v2200
    %v2293 = vpack.c.b16 %v2205, %v2203
    %v2294 = vpack.c.b16 %v2206, %v2204
    %v2295 = vpack.c.b16 %v2209, %v2207
    %v2296 = vpack.c.b16 %v2210, %v2208
    %v2297 = vpack.c.b16 %v2213, %v2211
    %v2298 = vpack.c.b16 %v2214, %v2212
    %v2299 = vpack.c.b16 %v2217, %v2215
    %v2300 = vpack.c.b16 %v2218, %v2216
    %v2301 = vpack.c.b16 %v2221, %v2219
    %v2302 = vpack.c.b16 %v2222, %v2220
    %v2303 = vpack.c.b16 %v2225, %v2223
    %v2304 = vpack.c.b16 %v2226, %v2224
    %v2305 = vpack.c.b16 %v2229, %v2227
    %v2306 = vpack.c.b16 %v2230, %v2228
    %v2307 = vpack.c.b16 %v2233, %v2231
    %v2308 = vpack.c.b16 %v2234, %v2232
    %v2309 = vpack.c.b16 %v2237, %v2235
    %v2310 = vpack.c.b16 %v2238, %v2236
    %v2311 = vpack.c.b16 %v2241, %v2239
    %v2312 = vpack.c.b16 %v2242, %v2240
    %v2313 = vpack.c.b16 %v2245, %v2243
    %v2314 = vpack.c.b16 %v2246, %v2244
    %v2315 = vpack.c.b16 %v2249, %v2247
    %v2316 = vpack.c.b16 %v2250, %v2248
    %v2317 = vpack.c.b16 %v2253, %v2251
    %v2318 = vpack.c.b16 %v2254, %v2252
    %2383 = vmatprep.subr.bf16.mxu0 %v2256
    %2384 = vmatpush1.bf16.msra.mxu0 %v2255
    %2385 = vmatprep.subr.bf16.mxu0 %v2258
    %2386 = vmatpush1.bf16.msra.mxu0 %v2257
    %2387 = vmatprep.subr.bf16.mxu0 %v2260
    %2388 = vmatpush1.bf16.msra.mxu0 %v2259
    %2389 = vmatprep.subr.bf16.mxu0 %v2262
    %2390 = vmatpush1.bf16.msra.mxu0 %v2261
    %2391 = vmatprep.subr.bf16.mxu0 %v2264
    %2392 = vmatpush1.bf16.msra.mxu0 %v2263
    %2393 = vmatprep.subr.bf16.mxu0 %v2266
    %2394 = vmatpush1.bf16.msra.mxu0 %v2265
    %2395 = vmatprep.subr.bf16.mxu0 %v2268
    %2396 = vmatpush1.bf16.msra.mxu0 %v2267
    %2397 = vmatprep.subr.bf16.mxu0 %v2270
    %2398 = vmatpush1.bf16.msra.mxu0 %v2269
    %2399 = vmatprep.subr.bf16.mxu0 %v2272
    %2400 = vmatpush1.bf16.msra.mxu0 %v2271
    %2401 = vmatprep.subr.bf16.mxu0 %v2274
    %2402 = vmatpush1.bf16.msra.mxu0 %v2273
    %2403 = vmatprep.subr.bf16.mxu0 %v2276
    %2404 = vmatpush1.bf16.msra.mxu0 %v2275
    %2405 = vmatprep.subr.bf16.mxu0 %v2278
    %2406 = vmatpush1.bf16.msra.mxu0 %v2277
    %2407 = vmatprep.subr.bf16.mxu0 %v2280
    %2408 = vmatpush1.bf16.msra.mxu0 %v2279
    %2409 = vmatprep.subr.bf16.mxu0 %v2282
    %2410 = vmatpush1.bf16.msra.mxu0 %v2281
    %2411 = vmatprep.subr.bf16.mxu0 %v2284
    %2412 = vmatpush1.bf16.msra.mxu0 %v2283
    %2413 = vmatprep.subr.bf16.mxu0 %v2286
    %2414 = vmatpush1.bf16.msra.mxu0 %v2285
    %2415 = vmatprep.mubr.bf16.mxu0 %v1996
    %2416 = vmatmul.mubr.bf16.gmra.mrb[0].mxu0 %v1995
    %v2417 = vpop.f32.mrb[0].mxu0
    %v2418 = vadd.f32 0.0, %v2417
    %v2419 = vpop.f32.mrb[0].mxu0
    %v2420 = vadd.f32 0.0, %v2419
    %v2421 = vpop.f32.mrb[0].mxu0
    %v2422 = vadd.f32 0.0, %v2421
    %v2423 = vpop.f32.mrb[0].mxu0
    %v2424 = vadd.f32 0.0, %v2423
    %2425 = vdwg.mxu0
    %2426 = vmatprep.subr.bf16.mxu0 %v2288
    %2427 = vmatpush1.bf16.msra.mxu0 %v2287
    %2428 = vmatprep.subr.bf16.mxu0 %v2290
    %2429 = vmatpush1.bf16.msra.mxu0 %v2289
    %2430 = vmatprep.subr.bf16.mxu0 %v2292
    %2431 = vmatpush1.bf16.msra.mxu0 %v2291
    %2432 = vmatprep.subr.bf16.mxu0 %v2294
    %2433 = vmatpush1.bf16.msra.mxu0 %v2293
    %2434 = vmatprep.subr.bf16.mxu0 %v2296
    %2435 = vmatpush1.bf16.msra.mxu0 %v2295
    %2436 = vmatprep.subr.bf16.mxu0 %v2298
    %2437 = vmatpush1.bf16.msra.mxu0 %v2297
    %2438 = vmatprep.subr.bf16.mxu0 %v2300
    %2439 = vmatpush1.bf16.msra.mxu0 %v2299
    %2440 = vmatprep.subr.bf16.mxu0 %v2302
    %2441 = vmatpush1.bf16.msra.mxu0 %v2301
    %2442 = vmatprep.subr.bf16.mxu0 %v2304
    %2443 = vmatpush1.bf16.msra.mxu0 %v2303
    %2444 = vmatprep.subr.bf16.mxu0 %v2306
    %2445 = vmatpush1.bf16.msra.mxu0 %v2305
    %2446 = vmatprep.subr.bf16.mxu0 %v2308
    %2447 = vmatpush1.bf16.msra.mxu0 %v2307
    %2448 = vmatprep.subr.bf16.mxu0 %v2310
    %2449 = vmatpush1.bf16.msra.mxu0 %v2309
    %2450 = vmatprep.subr.bf16.mxu0 %v2312
    %2451 = vmatpush1.bf16.msra.mxu0 %v2311
    %2452 = vmatprep.subr.bf16.mxu0 %v2314
    %2453 = vmatpush1.bf16.msra.mxu0 %v2313
    %2454 = vmatprep.subr.bf16.mxu0 %v2316
    %2455 = vmatpush1.bf16.msra.mxu0 %v2315
    %2456 = vmatprep.subr.bf16.mxu0 %v2318
    %2457 = vmatpush1.bf16.msra.mxu0 %v2317
    %2458 = vmatprep.mubr.bf16.mxu0 %v1998
    %2459 = vmatmul.mubr.bf16.gmra.mrb[0].mxu0 %v1997
    %v2460 = vpop.f32.mrb[0].mxu0
    %v2461 = vadd.f32 %v2418, %v2460
    %v2462 = vpop.f32.mrb[0].mxu0
    %v2463 = vadd.f32 %v2420, %v2462
    %v2464 = vpop.f32.mrb[0].mxu0
    %v2465 = vadd.f32 %v2422, %v2464
    %v2466 = vpop.f32.mrb[0].mxu0
    %v2467 = vadd.f32 %v2424, %v2466
    %2468 = vdwg.mxu0
    %v2469 = vpack.c.bf16 %v2465, %v2461
    %v2470 = vpack.c.bf16 %v2467, %v2463
    %v2471 = vld [vmem:[#allocation8] sm:$0x3]
    %v2473 = vlaneseq
    %v2474 = vshrl.u32 %v2473, 7
    %v2475 = vsub.s32 0, %v2474
    %v2476 = vrot.slane %v2471, %v2475
    %v2477 = vlaneseq
    %v2478 = vshrl.u32 %v2477, 7
    %v2479 = vsub.s32 1, %v2478
    %v2480 = vrot.slane %v2471, %v2479
    %v2483 = vpack.c.bf16 %v2476, %v2476
    %v2484 = vpack.c.bf16 %v2480, %v2480
    %v2486 = vpack.i.b16 %v2483, %v2483
    %v2488 = vlaneseq
    %v2489 = vshrl.u32 %v2488, 7
    %v2490 = vsub.s32 0, %v2489
    %v2491 = vrot.slane %v2486, %v2490
    %v2493 = vpack.i.b16 %v2484, %v2484
    %v2495 = vlaneseq
    %v2496 = vshrl.u32 %v2495, 7
    %v2497 = vsub.s32 0, %v2496
    %v2498 = vrot.slane %v2493, %v2497
    %v2499 = vadd.bf16 %v2469, %v2491
    %v2500 = vadd.bf16 %v2470, %v2498
    %vm2501 = vcmp.gt.bf16.partialorder %v2499, 0
    %vm2502 = vcmp.gt.bf16.partialorder %v2500, 0
    %v2503 = vmul.bf16 %v2499, 1036860877
    %v2504 = vmul.bf16 %v2500, 1036860877
    %v2505 = vsel %vm2501, %v2499, %v2503
    %v2506 = vsel %vm2502, %v2500, %v2504
    %v2507 = vld [vmem:[#allocation10] sm:$0xf]
    %v2508 = vld [vmem:[#allocation10 + $0x4] sm:$0xf]
    %v2509 = vld [vmem:[#allocation10 + $0x8] sm:$0xf]
    %v2510 = vld [vmem:[#allocation10 + $0xc] sm:$0xf]
    %v2511 = vld [vmem:[#allocation10 + $0x10] sm:$0xf]
    %v2512 = vld [vmem:[#allocation10 + $0x14] sm:$0xf]
    %v2513 = vld [vmem:[#allocation10 + $0x18] sm:$0xf]
    %v2514 = vld [vmem:[#allocation10 + $0x1c] sm:$0xf]
    %v2515 = vld [vmem:[#allocation10 + $0x20] sm:$0xf]
    %v2516 = vld [vmem:[#allocation10 + $0x24] sm:$0xf]
    %v2517 = vld [vmem:[#allocation10 + $0x28] sm:$0xf]
    %v2518 = vld [vmem:[#allocation10 + $0x2c] sm:$0xf]
    %v2519 = vld [vmem:[#allocation10 + $0x30] sm:$0xf]
    %v2520 = vld [vmem:[#allocation10 + $0x34] sm:$0xf]
    %v2521 = vld [vmem:[#allocation10 + $0x38] sm:$0xf]
    %v2522 = vld [vmem:[#allocation10 + $0x3c] sm:$0xf]
    %v2523 = vld [vmem:[#allocation10 + $0x40] sm:$0xf]
    %v2524 = vld [vmem:[#allocation10 + $0x44] sm:$0xf]
    %v2525 = vld [vmem:[#allocation10 + $0x48] sm:$0xf]
    %v2526 = vld [vmem:[#allocation10 + $0x4c] sm:$0xf]
    %v2527 = vld [vmem:[#allocation10 + $0x50] sm:$0xf]
    %v2528 = vld [vmem:[#allocation10 + $0x54] sm:$0xf]
    %v2529 = vld [vmem:[#allocation10 + $0x58] sm:$0xf]
    %v2530 = vld [vmem:[#allocation10 + $0x5c] sm:$0xf]
    %v2531 = vld [vmem:[#allocation10 + $0x60] sm:$0xf]
    %v2532 = vld [vmem:[#allocation10 + $0x64] sm:$0xf]
    %v2533 = vld [vmem:[#allocation10 + $0x68] sm:$0xf]
    %v2534 = vld [vmem:[#allocation10 + $0x6c] sm:$0xf]
    %v2535 = vld [vmem:[#allocation10 + $0x70] sm:$0xf]
    %v2536 = vld [vmem:[#allocation10 + $0x74] sm:$0xf]
    %v2537 = vld [vmem:[#allocation10 + $0x78] sm:$0xf]
    %v2538 = vld [vmem:[#allocation10 + $0x7c] sm:$0xf]
    %v2571 = vunpack.c.l.b16 %v2507
    %v2572 = vunpack.c.l.b16 %v2508
    %v2573 = vunpack.c.l.b16 %v2509
    %v2574 = vunpack.c.l.b16 %v2510
    %v2575 = vunpack.c.l.b16 %v2511
    %v2576 = vunpack.c.l.b16 %v2512
    %v2577 = vunpack.c.l.b16 %v2513
    %v2578 = vunpack.c.l.b16 %v2514
    %v2579 = vunpack.c.l.b16 %v2515
    %v2580 = vunpack.c.l.b16 %v2516
    %v2581 = vunpack.c.l.b16 %v2517
    %v2582 = vunpack.c.l.b16 %v2518
    %v2583 = vunpack.c.l.b16 %v2519
    %v2584 = vunpack.c.l.b16 %v2520
    %v2585 = vunpack.c.l.b16 %v2521
    %v2586 = vunpack.c.l.b16 %v2522
    %v2587 = vunpack.c.l.b16 %v2523
    %v2588 = vunpack.c.l.b16 %v2524
    %v2589 = vunpack.c.l.b16 %v2525
    %v2590 = vunpack.c.l.b16 %v2526
    %v2591 = vunpack.c.l.b16 %v2527
    %v2592 = vunpack.c.l.b16 %v2528
    %v2593 = vunpack.c.l.b16 %v2529
    %v2594 = vunpack.c.l.b16 %v2530
    %v2595 = vunpack.c.l.b16 %v2531
    %v2596 = vunpack.c.l.b16 %v2532
    %v2597 = vunpack.c.l.b16 %v2533
    %v2598 = vunpack.c.l.b16 %v2534
    %v2599 = vunpack.c.l.b16 %v2535
    %v2600 = vunpack.c.l.b16 %v2536
    %v2601 = vunpack.c.l.b16 %v2537
    %v2602 = vunpack.c.l.b16 %v2538
    %v2603 = vpack.c.b16 %v2572, %v2571
    %v2604 = vpack.c.b16 %v2574, %v2573
    %v2605 = vpack.c.b16 %v2576, %v2575
    %v2606 = vpack.c.b16 %v2578, %v2577
    %v2607 = vpack.c.b16 %v2580, %v2579
    %v2608 = vpack.c.b16 %v2582, %v2581
    %v2609 = vpack.c.b16 %v2584, %v2583
    %v2610 = vpack.c.b16 %v2586, %v2585
    %v2611 = vpack.c.b16 %v2588, %v2587
    %v2612 = vpack.c.b16 %v2590, %v2589
    %v2613 = vpack.c.b16 %v2592, %v2591
    %v2614 = vpack.c.b16 %v2594, %v2593
    %v2615 = vpack.c.b16 %v2596, %v2595
    %v2616 = vpack.c.b16 %v2598, %v2597
    %v2617 = vpack.c.b16 %v2600, %v2599
    %v2618 = vpack.c.b16 %v2602, %v2601
    %2635 = vmatprep.subr.bf16.mxu0 0
    %2636 = vmatpush1.bf16.msra.mxu0 %v2603
    %2637 = vmatprep.subr.bf16.mxu0 0
    %2638 = vmatpush1.bf16.msra.mxu0 %v2604
    %2639 = vmatprep.subr.bf16.mxu0 0
    %2640 = vmatpush1.bf16.msra.mxu0 %v2605
    %2641 = vmatprep.subr.bf16.mxu0 0
    %2642 = vmatpush1.bf16.msra.mxu0 %v2606
    %2643 = vmatprep.subr.bf16.mxu0 0
    %2644 = vmatpush1.bf16.msra.mxu0 %v2607
    %2645 = vmatprep.subr.bf16.mxu0 0
    %2646 = vmatpush1.bf16.msra.mxu0 %v2608
    %2647 = vmatprep.subr.bf16.mxu0 0
    %2648 = vmatpush1.bf16.msra.mxu0 %v2609
    %2649 = vmatprep.subr.bf16.mxu0 0
    %2650 = vmatpush1.bf16.msra.mxu0 %v2610
    %2651 = vmatprep.subr.bf16.mxu0 0
    %2652 = vmatpush1.bf16.msra.mxu0 %v2611
    %2653 = vmatprep.subr.bf16.mxu0 0
    %2654 = vmatpush1.bf16.msra.mxu0 %v2612
    %2655 = vmatprep.subr.bf16.mxu0 0
    %2656 = vmatpush1.bf16.msra.mxu0 %v2613
    %2657 = vmatprep.subr.bf16.mxu0 0
    %2658 = vmatpush1.bf16.msra.mxu0 %v2614
    %2659 = vmatprep.subr.bf16.mxu0 0
    %2660 = vmatpush1.bf16.msra.mxu0 %v2615
    %2661 = vmatprep.subr.bf16.mxu0 0
    %2662 = vmatpush1.bf16.msra.mxu0 %v2616
    %2663 = vmatprep.subr.bf16.mxu0 0
    %2664 = vmatpush1.bf16.msra.mxu0 %v2617
    %2665 = vmatprep.subr.bf16.mxu0 0
    %2666 = vmatpush1.bf16.msra.mxu0 %v2618
    %2667 = vmatprep.mubr.bf16.mxu0 %v2506
    %2668 = vmatmul.mubr.bf16.gmra.mrb[0].mxu0 %v2505
    %v2669 = vpop.f32.mrb[0].mxu0
    %v2670 = vadd.f32 0.0, %v2669
    %v2671 = vpop.f32.mrb[0].mxu0
    %v2672 = vpop.f32.mrb[0].mxu0
    %v2673 = vadd.f32 0.0, %v2672
    %v2674 = vpop.f32.mrb[0].mxu0
    %2675 = vdwg.mxu0
    %v2676 = vpack.c.bf16 %v2673, %v2670
    %v2677 = vld [vmem:[%s6] sm:$0x1]
    %v2678 = vpack.c.bf16 %v2677, %v2677
    %v2680 = vpack.i.b16 %v2678, %v2678
    %v2682 = vlaneseq
    %v2683 = vshrl.u32 %v2682, 7
    %v2684 = vsub.s32 0, %v2683
    %v2685 = vrot.slane %v2680, %v2684
    %v2686 = vadd.bf16 %v2676, %v2685
    %vm2687 = vcmp.gt.bf16.partialorder %v2686, 0
    %v2688 = vmul.bf16 %v2686, 1036860877
    %v2689 = vsel %vm2687, %v2686, %v2688
    %v2690 = vld [vmem:[#allocation11] sm:$0xf]
    %v2691 = vld [vmem:[#allocation11 + $0x4] sm:$0xf]
    %v2692 = vld [vmem:[#allocation11 + $0x8] sm:$0xf]
    %v2693 = vld [vmem:[#allocation11 + $0xc] sm:$0xf]
    %v2694 = vld [vmem:[#allocation11 + $0x10] sm:$0xf]
    %v2695 = vld [vmem:[#allocation11 + $0x14] sm:$0xf]
    %v2696 = vld [vmem:[#allocation11 + $0x18] sm:$0xf]
    %v2697 = vld [vmem:[#allocation11 + $0x1c] sm:$0xf]
    %v2698 = vld [vmem:[#allocation11 + $0x20] sm:$0xf]
    %v2699 = vld [vmem:[#allocation11 + $0x24] sm:$0xf]
    %v2700 = vld [vmem:[#allocation11 + $0x28] sm:$0xf]
    %v2701 = vld [vmem:[#allocation11 + $0x2c] sm:$0xf]
    %v2702 = vld [vmem:[#allocation11 + $0x30] sm:$0xf]
    %v2703 = vld [vmem:[#allocation11 + $0x34] sm:$0xf]
    %v2704 = vld [vmem:[#allocation11 + $0x38] sm:$0xf]
    %v2705 = vld [vmem:[#allocation11 + $0x3c] sm:$0xf]
    %v2722 = vunpack.c.l.b16 %v2690
    %v2723 = vunpack.c.l.b16 %v2691
    %v2724 = vunpack.c.l.b16 %v2692
    %v2725 = vunpack.c.l.b16 %v2693
    %v2726 = vunpack.c.l.b16 %v2694
    %v2727 = vunpack.c.l.b16 %v2695
    %v2728 = vunpack.c.l.b16 %v2696
    %v2729 = vunpack.c.l.b16 %v2697
    %v2730 = vunpack.c.l.b16 %v2698
    %v2731 = vunpack.c.l.b16 %v2699
    %v2732 = vunpack.c.l.b16 %v2700
    %v2733 = vunpack.c.l.b16 %v2701
    %v2734 = vunpack.c.l.b16 %v2702
    %v2735 = vunpack.c.l.b16 %v2703
    %v2736 = vunpack.c.l.b16 %v2704
    %v2737 = vunpack.c.l.b16 %v2705
    %v2738 = vpack.c.b16 %v2723, %v2722
    %v2739 = vpack.c.b16 %v2725, %v2724
    %v2740 = vpack.c.b16 %v2727, %v2726
    %v2741 = vpack.c.b16 %v2729, %v2728
    %v2742 = vpack.c.b16 %v2731, %v2730
    %v2743 = vpack.c.b16 %v2733, %v2732
    %v2744 = vpack.c.b16 %v2735, %v2734
    %v2745 = vpack.c.b16 %v2737, %v2736
    %2754 = vmatprep.subr.bf16.mxu0 0
    %2755 = vmatpush1.bf16.msra.mxu0 %v2738
    %2756 = vmatprep.subr.bf16.mxu0 0
    %2757 = vmatpush1.bf16.msra.mxu0 %v2739
    %2758 = vmatprep.subr.bf16.mxu0 0
    %2759 = vmatpush1.bf16.msra.mxu0 %v2740
    %2760 = vmatprep.subr.bf16.mxu0 0
    %2761 = vmatpush1.bf16.msra.mxu0 %v2741
    %2762 = vmatprep.subr.bf16.mxu0 0
    %2763 = vmatpush1.bf16.msra.mxu0 %v2742
    %2764 = vmatprep.subr.bf16.mxu0 0
    %2765 = vmatpush1.bf16.msra.mxu0 %v2743
    %2766 = vmatprep.subr.bf16.mxu0 0
    %2767 = vmatpush1.bf16.msra.mxu0 %v2744
    %2768 = vmatprep.subr.bf16.mxu0 0
    %2769 = vmatpush1.bf16.msra.mxu0 %v2745
    %2770 = vmatprep.subr.bf16.mxu0 0
    %2771 = vmatpush1.bf16.msra.mxu0 0
    %2772 = vmatprep.subr.bf16.mxu0 0
    %2773 = vmatpush1.bf16.msra.mxu0 0
    %2774 = vmatprep.subr.bf16.mxu0 0
    %2775 = vmatpush1.bf16.msra.mxu0 0
    %2776 = vmatprep.subr.bf16.mxu0 0
    %2777 = vmatpush1.bf16.msra.mxu0 0
    %2778 = vmatprep.subr.bf16.mxu0 0
    %2779 = vmatpush1.bf16.msra.mxu0 0
    %2780 = vmatprep.subr.bf16.mxu0 0
    %2781 = vmatpush1.bf16.msra.mxu0 0
    %2782 = vmatprep.subr.bf16.mxu0 0
    %2783 = vmatpush1.bf16.msra.mxu0 0
    %2784 = vmatprep.subr.bf16.mxu0 0
    %2785 = vmatpush1.bf16.msra.mxu0 0
    %2786 = vmatprep.mubr.bf16.mxu0 0
    %2787 = vmatmul.mubr.bf16.gmra.mrb[0].mxu0 %v2689
    %v2788 = vpop.f32.mrb[0].mxu0
    %v2789 = vadd.f32 0.0, %v2788
    %v2790 = vpop.f32.mrb[0].mxu0
    %v2791 = vpop.f32.mrb[0].mxu0
    %v2792 = vadd.f32 0.0, %v2791
    %v2793 = vpop.f32.mrb[0].mxu0
    %2794 = vdwg.mxu0
    %v2795 = vpack.c.bf16 %v2792, %v2789
    %v2796 = vld [vmem:[%s8] sm:$0x1]
    %v2797 = vpack.c.bf16 %v2796, %v2796
    %v2799 = vpack.i.b16 %v2797, %v2797
    %v2801 = vlaneseq
    %v2802 = vshrl.u32 %v2801, 7
    %v2803 = vsub.s32 0, %v2802
    %v2804 = vrot.slane %v2799, %v2803
    %v2805 = vadd.bf16 %v2795, %v2804
    %vm2806 = vcmp.gt.bf16.partialorder %v2805, 0
    %v2807 = vmul.bf16 %v2805, 1036860877
    %v2808 = vsel %vm2806, %v2805, %v2807
    %v2809 = vld [vmem:[#allocation13] sm:$0xf]
    %v2810 = vld [vmem:[#allocation13 + $0x4] sm:$0xf]
    %v2811 = vld [vmem:[#allocation13 + $0x8] sm:$0xf]
    %v2812 = vld [vmem:[#allocation13 + $0xc] sm:$0xf]
    %v2813 = vld [vmem:[#allocation13 + $0x10] sm:$0xf]
    %v2814 = vld [vmem:[#allocation13 + $0x14] sm:$0xf]
    %v2815 = vld [vmem:[#allocation13 + $0x18] sm:$0xf]
    %v2816 = vld [vmem:[#allocation13 + $0x1c] sm:$0xf]
    %v2817 = vld [vmem:[#allocation13 + $0x20] sm:$0xf]
    %v2818 = vld [vmem:[#allocation13 + $0x24] sm:$0xf]
    %v2819 = vld [vmem:[#allocation13 + $0x28] sm:$0xf]
    %v2820 = vld [vmem:[#allocation13 + $0x2c] sm:$0xf]
    %v2821 = vld [vmem:[#allocation13 + $0x30] sm:$0xf]
    %v2822 = vld [vmem:[#allocation13 + $0x34] sm:$0xf]
    %v2823 = vld [vmem:[#allocation13 + $0x38] sm:$0xf]
    %v2824 = vld [vmem:[#allocation13 + $0x3c] sm:$0xf]
    %v2841 = vunpack.c.l.b16 %v2809
    %v2842 = vunpack.c.l.b16 %v2810
    %v2843 = vunpack.c.l.b16 %v2811
    %v2844 = vunpack.c.l.b16 %v2812
    %v2845 = vunpack.c.l.b16 %v2813
    %v2846 = vunpack.c.l.b16 %v2814
    %v2847 = vunpack.c.l.b16 %v2815
    %v2848 = vunpack.c.l.b16 %v2816
    %v2849 = vunpack.c.l.b16 %v2817
    %v2850 = vunpack.c.l.b16 %v2818
    %v2851 = vunpack.c.l.b16 %v2819
    %v2852 = vunpack.c.l.b16 %v2820
    %v2853 = vunpack.c.l.b16 %v2821
    %v2854 = vunpack.c.l.b16 %v2822
    %v2855 = vunpack.c.l.b16 %v2823
    %v2856 = vunpack.c.l.b16 %v2824
    %v2857 = vpack.c.b16 %v2842, %v2841
    %v2858 = vpack.c.b16 %v2844, %v2843
    %v2859 = vpack.c.b16 %v2846, %v2845
    %v2860 = vpack.c.b16 %v2848, %v2847
    %v2861 = vpack.c.b16 %v2850, %v2849
    %v2862 = vpack.c.b16 %v2852, %v2851
    %v2863 = vpack.c.b16 %v2854, %v2853
    %v2864 = vpack.c.b16 %v2856, %v2855
    %2873 = vmatprep.subr.bf16.mxu0 0
    %2874 = vmatpush1.bf16.msra.mxu0 %v2857
    %2875 = vmatprep.subr.bf16.mxu0 0
    %2876 = vmatpush1.bf16.msra.mxu0 %v2858
    %2877 = vmatprep.subr.bf16.mxu0 0
    %2878 = vmatpush1.bf16.msra.mxu0 %v2859
    %2879 = vmatprep.subr.bf16.mxu0 0
    %2880 = vmatpush1.bf16.msra.mxu0 %v2860
    %2881 = vmatprep.subr.bf16.mxu0 0
    %2882 = vmatpush1.bf16.msra.mxu0 %v2861
    %2883 = vmatprep.subr.bf16.mxu0 0
    %2884 = vmatpush1.bf16.msra.mxu0 %v2862
    %2885 = vmatprep.subr.bf16.mxu0 0
    %2886 = vmatpush1.bf16.msra.mxu0 %v2863
    %2887 = vmatprep.subr.bf16.mxu0 0
    %2888 = vmatpush1.bf16.msra.mxu0 %v2864
    %2889 = vmatprep.subr.bf16.mxu0 0
    %2890 = vmatpush1.bf16.msra.mxu0 0
    %2891 = vmatprep.subr.bf16.mxu0 0
    %2892 = vmatpush1.bf16.msra.mxu0 0
    %2893 = vmatprep.subr.bf16.mxu0 0
    %2894 = vmatpush1.bf16.msra.mxu0 0
    %2895 = vmatprep.subr.bf16.mxu0 0
    %2896 = vmatpush1.bf16.msra.mxu0 0
    %2897 = vmatprep.subr.bf16.mxu0 0
    %2898 = vmatpush1.bf16.msra.mxu0 0
    %2899 = vmatprep.subr.bf16.mxu0 0
    %2900 = vmatpush1.bf16.msra.mxu0 0
    %2901 = vmatprep.subr.bf16.mxu0 0
    %2902 = vmatpush1.bf16.msra.mxu0 0
    %2903 = vmatprep.subr.bf16.mxu0 0
    %2904 = vmatpush1.bf16.msra.mxu0 0
    %2905 = vmatprep.mubr.bf16.mxu0 0
    %2906 = vmatmul.mubr.bf16.gmra.mrb[0].mxu0 %v2808
    %v2907 = vpop.f32.mrb[0].mxu0
    %v2908 = vadd.f32 0.0, %v2907
    %v2909 = vpop.f32.mrb[0].mxu0
    %v2910 = vpop.f32.mrb[0].mxu0
    %v2911 = vadd.f32 0.0, %v2910
    %v2912 = vpop.f32.mrb[0].mxu0
    %2913 = vdwg.mxu0
    %v2914 = vpack.c.bf16 %v2911, %v2908
    %v2915 = vld [vmem:[%s10] sm:$0x1]
    %v2916 = vpack.c.bf16 %v2915, %v2915
    %v2918 = vpack.i.b16 %v2916, %v2916
    %v2920 = vlaneseq
    %v2921 = vshrl.u32 %v2920, 7
    %v2922 = vsub.s32 0, %v2921
    %v2923 = vrot.slane %v2918, %v2922
    %v2924 = vadd.bf16 %v2914, %v2923
    %vm2925 = vcmp.gt.bf16.partialorder %v2924, 0
    %v2926 = vmul.bf16 %v2924, 1036860877
    %v2927 = vsel %vm2925, %v2924, %v2926
    %v2928 = vld [vmem:[#allocation14] sm:$0xff]
    %v2929 = vld [vmem:[#allocation14 + $0x8] sm:$0xff]
    %v2930 = vld [vmem:[#allocation14 + $0x10] sm:$0xff]
    %v2931 = vld [vmem:[#allocation14 + $0x18] sm:$0xff]
    %v2932 = vld [vmem:[#allocation14 + $0x20] sm:$0xff]
    %v2933 = vld [vmem:[#allocation14 + $0x28] sm:$0xff]
    %v2934 = vld [vmem:[#allocation14 + $0x30] sm:$0xff]
    %v2935 = vld [vmem:[#allocation14 + $0x38] sm:$0xff]
    %v2936 = vld [vmem:[#allocation14 + $0x40] sm:$0xff]
    %v2937 = vld [vmem:[#allocation14 + $0x48] sm:$0xff]
    %v2938 = vld [vmem:[#allocation14 + $0x50] sm:$0xff]
    %v2939 = vld [vmem:[#allocation14 + $0x58] sm:$0xff]
    %v2940 = vld [vmem:[#allocation14 + $0x60] sm:$0xff]
    %v2941 = vld [vmem:[#allocation14 + $0x68] sm:$0xff]
    %v2942 = vld [vmem:[#allocation14 + $0x70] sm:$0xff]
    %v2943 = vld [vmem:[#allocation14 + $0x78] sm:$0xff]
    %v2960 = vunpack.c.l.b16 %v2928
    %v2961 = vunpack.c.h.b16 %v2928
    %v2962 = vunpack.c.l.b16 %v2929
    %v2963 = vunpack.c.h.b16 %v2929
    %v2964 = vunpack.c.l.b16 %v2930
    %v2965 = vunpack.c.h.b16 %v2930
    %v2966 = vunpack.c.l.b16 %v2931
    %v2967 = vunpack.c.h.b16 %v2931
    %v2968 = vunpack.c.l.b16 %v2932
    %v2969 = vunpack.c.h.b16 %v2932
    %v2970 = vunpack.c.l.b16 %v2933
    %v2971 = vunpack.c.h.b16 %v2933
    %v2972 = vunpack.c.l.b16 %v2934
    %v2973 = vunpack.c.h.b16 %v2934
    %v2974 = vunpack.c.l.b16 %v2935
    %v2975 = vunpack.c.h.b16 %v2935
    %v2976 = vunpack.c.l.b16 %v2936
    %v2977 = vunpack.c.h.b16 %v2936
    %v2978 = vunpack.c.l.b16 %v2937
    %v2979 = vunpack.c.h.b16 %v2937
    %v2980 = vunpack.c.l.b16 %v2938
    %v2981 = vunpack.c.h.b16 %v2938
    %v2982 = vunpack.c.l.b16 %v2939
    %v2983 = vunpack.c.h.b16 %v2939
    %v2984 = vunpack.c.l.b16 %v2940
    %v2985 = vunpack.c.h.b16 %v2940
    %v2986 = vunpack.c.l.b16 %v2941
    %v2987 = vunpack.c.h.b16 %v2941
    %v2988 = vunpack.c.l.b16 %v2942
    %v2989 = vunpack.c.h.b16 %v2942
    %v2990 = vunpack.c.l.b16 %v2943
    %v2991 = vunpack.c.h.b16 %v2943
    %v2992 = vpack.c.b16 %v2962, %v2960
    %v2993 = vpack.c.b16 %v2963, %v2961
    %v2994 = vpack.c.b16 %v2966, %v2964
    %v2995 = vpack.c.b16 %v2967, %v2965
    %v2996 = vpack.c.b16 %v2970, %v2968
    %v2997 = vpack.c.b16 %v2971, %v2969
    %v2998 = vpack.c.b16 %v2974, %v2972
    %v2999 = vpack.c.b16 %v2975, %v2973
    %v3000 = vpack.c.b16 %v2978, %v2976
    %v3001 = vpack.c.b16 %v2979, %v2977
    %v3002 = vpack.c.b16 %v2982, %v2980
    %v3003 = vpack.c.b16 %v2983, %v2981
    %v3004 = vpack.c.b16 %v2986, %v2984
    %v3005 = vpack.c.b16 %v2987, %v2985
    %v3006 = vpack.c.b16 %v2990, %v2988
    %v3007 = vpack.c.b16 %v2991, %v2989
    %3024 = vmatprep.subr.bf16.mxu0 %v2993
    %3025 = vmatpush1.bf16.msra.mxu0 %v2992
    %3026 = vmatprep.subr.bf16.mxu0 %v2995
    %3027 = vmatpush1.bf16.msra.mxu0 %v2994
    %3028 = vmatprep.subr.bf16.mxu0 %v2997
    %3029 = vmatpush1.bf16.msra.mxu0 %v2996
    %3030 = vmatprep.subr.bf16.mxu0 %v2999
    %3031 = vmatpush1.bf16.msra.mxu0 %v2998
    %3032 = vmatprep.subr.bf16.mxu0 %v3001
    %3033 = vmatpush1.bf16.msra.mxu0 %v3000
    %3034 = vmatprep.subr.bf16.mxu0 %v3003
    %3035 = vmatpush1.bf16.msra.mxu0 %v3002
    %3036 = vmatprep.subr.bf16.mxu0 %v3005
    %3037 = vmatpush1.bf16.msra.mxu0 %v3004
    %3038 = vmatprep.subr.bf16.mxu0 %v3007
    %3039 = vmatpush1.bf16.msra.mxu0 %v3006
    %3040 = vmatprep.subr.bf16.mxu0 0
    %3041 = vmatpush1.bf16.msra.mxu0 0
    %3042 = vmatprep.subr.bf16.mxu0 0
    %3043 = vmatpush1.bf16.msra.mxu0 0
    %3044 = vmatprep.subr.bf16.mxu0 0
    %3045 = vmatpush1.bf16.msra.mxu0 0
    %3046 = vmatprep.subr.bf16.mxu0 0
    %3047 = vmatpush1.bf16.msra.mxu0 0
    %3048 = vmatprep.subr.bf16.mxu0 0
    %3049 = vmatpush1.bf16.msra.mxu0 0
    %3050 = vmatprep.subr.bf16.mxu0 0
    %3051 = vmatpush1.bf16.msra.mxu0 0
    %3052 = vmatprep.subr.bf16.mxu0 0
    %3053 = vmatpush1.bf16.msra.mxu0 0
    %3054 = vmatprep.subr.bf16.mxu0 0
    %3055 = vmatpush1.bf16.msra.mxu0 0
    %3056 = vmatprep.mubr.bf16.mxu0 0
    %3057 = vmatmul.mubr.bf16.gmra.mrb[0].mxu0 %v2927
    %v3058 = vpop.f32.mrb[0].mxu0
    %v3059 = vadd.f32 0.0, %v3058
    %v3060 = vpop.f32.mrb[0].mxu0
    %v3061 = vadd.f32 0.0, %v3060
    %v3062 = vpop.f32.mrb[0].mxu0
    %v3063 = vadd.f32 0.0, %v3062
    %v3064 = vpop.f32.mrb[0].mxu0
    %v3065 = vadd.f32 0.0, %v3064
    %3066 = vdwg.mxu0
    %v3067 = vpack.c.bf16 %v3063, %v3059
    %v3068 = vpack.c.bf16 %v3065, %v3061
    %v3069 = vld [vmem:[%s12] sm:$0x3]
    %v3071 = vlaneseq
    %v3072 = vshrl.u32 %v3071, 7
    %v3073 = vsub.s32 0, %v3072
    %v3074 = vrot.slane %v3069, %v3073
    %v3075 = vlaneseq
    %v3076 = vshrl.u32 %v3075, 7
    %v3077 = vsub.s32 1, %v3076
    %v3078 = vrot.slane %v3069, %v3077
    %v3081 = vpack.c.bf16 %v3074, %v3074
    %v3082 = vpack.c.bf16 %v3078, %v3078
    %v3084 = vpack.i.b16 %v3081, %v3081
    %v3086 = vlaneseq
    %v3087 = vshrl.u32 %v3086, 7
    %v3088 = vsub.s32 0, %v3087
    %v3089 = vrot.slane %v3084, %v3088
    %v3091 = vpack.i.b16 %v3082, %v3082
    %v3093 = vlaneseq
    %v3094 = vshrl.u32 %v3093, 7
    %v3095 = vsub.s32 0, %v3094
    %v3096 = vrot.slane %v3091, %v3095
    %v3097 = vadd.bf16 %v3067, %v3089
    %v3098 = vadd.bf16 %v3068, %v3096
    %vm3099 = vcmp.gt.bf16.partialorder %v3097, 0
    %vm3100 = vcmp.gt.bf16.partialorder %v3098, 0
    %v3101 = vmul.bf16 %v3097, 1036860877
    %v3102 = vmul.bf16 %v3098, 1036860877
    %v3103 = vsel %vm3099, %v3097, %v3101
    %v3104 = vsel %vm3100, %v3098, %v3102
    %v3105 = vld [vmem:[#allocation16] sm:$0xff]
    %v3106 = vld [vmem:[#allocation16 + $0x8] sm:$0xff]
    %v3107 = vld [vmem:[#allocation16 + $0x10] sm:$0xff]
    %v3108 = vld [vmem:[#allocation16 + $0x18] sm:$0xff]
    %v3109 = vld [vmem:[#allocation16 + $0x20] sm:$0xff]
    %v3110 = vld [vmem:[#allocation16 + $0x28] sm:$0xff]
    %v3111 = vld [vmem:[#allocation16 + $0x30] sm:$0xff]
    %v3112 = vld [vmem:[#allocation16 + $0x38] sm:$0xff]
    %v3113 = vld [vmem:[#allocation16 + $0x40] sm:$0xff]
    %v3114 = vld [vmem:[#allocation16 + $0x48] sm:$0xff]
    %v3115 = vld [vmem:[#allocation16 + $0x50] sm:$0xff]
    %v3116 = vld [vmem:[#allocation16 + $0x58] sm:$0xff]
    %v3117 = vld [vmem:[#allocation16 + $0x60] sm:$0xff]
    %v3118 = vld [vmem:[#allocation16 + $0x68] sm:$0xff]
    %v3119 = vld [vmem:[#allocation16 + $0x70] sm:$0xff]
    %v3120 = vld [vmem:[#allocation16 + $0x78] sm:$0xff]
    %v3121 = vld [vmem:[#allocation16 + $0x80] sm:$0xff]
    %v3122 = vld [vmem:[#allocation16 + $0x88] sm:$0xff]
    %v3123 = vld [vmem:[#allocation16 + $0x90] sm:$0xff]
    %v3124 = vld [vmem:[#allocation16 + $0x98] sm:$0xff]
    %v3125 = vld [vmem:[#allocation16 + $0xa0] sm:$0xff]
    %v3126 = vld [vmem:[#allocation16 + $0xa8] sm:$0xff]
    %v3127 = vld [vmem:[#allocation16 + $0xb0] sm:$0xff]
    %v3128 = vld [vmem:[#allocation16 + $0xb8] sm:$0xff]
    %v3129 = vld [vmem:[#allocation16 + $0xc0] sm:$0xff]
    %v3130 = vld [vmem:[#allocation16 + $0xc8] sm:$0xff]
    %v3131 = vld [vmem:[#allocation16 + $0xd0] sm:$0xff]
    %v3132 = vld [vmem:[#allocation16 + $0xd8] sm:$0xff]
    %v3133 = vld [vmem:[#allocation16 + $0xe0] sm:$0xff]
    %v3134 = vld [vmem:[#allocation16 + $0xe8] sm:$0xff]
    %v3135 = vld [vmem:[#allocation16 + $0xf0] sm:$0xff]
    %v3136 = vld [vmem:[#allocation16 + $0xf8] sm:$0xff]
    %v3137 = vld [vmem:[#allocation16 + $0x100] sm:$0xff]
    %v3138 = vld [vmem:[#allocation16 + $0x108] sm:$0xff]
    %v3139 = vld [vmem:[#allocation16 + $0x110] sm:$0xff]
    %v3140 = vld [vmem:[#allocation16 + $0x118] sm:$0xff]
    %v3141 = vld [vmem:[#allocation16 + $0x120] sm:$0xff]
    %v3142 = vld [vmem:[#allocation16 + $0x128] sm:$0xff]
    %v3143 = vld [vmem:[#allocation16 + $0x130] sm:$0xff]
    %v3144 = vld [vmem:[#allocation16 + $0x138] sm:$0xff]
    %v3145 = vld [vmem:[#allocation16 + $0x140] sm:$0xff]
    %v3146 = vld [vmem:[#allocation16 + $0x148] sm:$0xff]
    %v3147 = vld [vmem:[#allocation16 + $0x150] sm:$0xff]
    %v3148 = vld [vmem:[#allocation16 + $0x158] sm:$0xff]
    %v3149 = vld [vmem:[#allocation16 + $0x160] sm:$0xff]
    %v3150 = vld [vmem:[#allocation16 + $0x168] sm:$0xff]
    %v3151 = vld [vmem:[#allocation16 + $0x170] sm:$0xff]
    %v3152 = vld [vmem:[#allocation16 + $0x178] sm:$0xff]
    %v3153 = vld [vmem:[#allocation16 + $0x180] sm:$0xff]
    %v3154 = vld [vmem:[#allocation16 + $0x188] sm:$0xff]
    %v3155 = vld [vmem:[#allocation16 + $0x190] sm:$0xff]
    %v3156 = vld [vmem:[#allocation16 + $0x198] sm:$0xff]
    %v3157 = vld [vmem:[#allocation16 + $0x1a0] sm:$0xff]
    %v3158 = vld [vmem:[#allocation16 + $0x1a8] sm:$0xff]
    %v3159 = vld [vmem:[#allocation16 + $0x1b0] sm:$0xff]
    %v3160 = vld [vmem:[#allocation16 + $0x1b8] sm:$0xff]
    %v3161 = vld [vmem:[#allocation16 + $0x1c0] sm:$0xff]
    %v3162 = vld [vmem:[#allocation16 + $0x1c8] sm:$0xff]
    %v3163 = vld [vmem:[#allocation16 + $0x1d0] sm:$0xff]
    %v3164 = vld [vmem:[#allocation16 + $0x1d8] sm:$0xff]
    %v3165 = vld [vmem:[#allocation16 + $0x1e0] sm:$0xff]
    %v3166 = vld [vmem:[#allocation16 + $0x1e8] sm:$0xff]
    %v3167 = vld [vmem:[#allocation16 + $0x1f0] sm:$0xff]
    %v3168 = vld [vmem:[#allocation16 + $0x1f8] sm:$0xff]
    %v3233 = vunpack.c.l.b16 %v3105
    %v3234 = vunpack.c.h.b16 %v3105
    %v3235 = vunpack.c.l.b16 %v3106
    %v3236 = vunpack.c.h.b16 %v3106
    %v3237 = vunpack.c.l.b16 %v3107
    %v3238 = vunpack.c.h.b16 %v3107
    %v3239 = vunpack.c.l.b16 %v3108
    %v3240 = vunpack.c.h.b16 %v3108
    %v3241 = vunpack.c.l.b16 %v3109
    %v3242 = vunpack.c.h.b16 %v3109
    %v3243 = vunpack.c.l.b16 %v3110
    %v3244 = vunpack.c.h.b16 %v3110
    %v3245 = vunpack.c.l.b16 %v3111
    %v3246 = vunpack.c.h.b16 %v3111
    %v3247 = vunpack.c.l.b16 %v3112
    %v3248 = vunpack.c.h.b16 %v3112
    %v3249 = vunpack.c.l.b16 %v3113
    %v3250 = vunpack.c.h.b16 %v3113
    %v3251 = vunpack.c.l.b16 %v3114
    %v3252 = vunpack.c.h.b16 %v3114
    %v3253 = vunpack.c.l.b16 %v3115
    %v3254 = vunpack.c.h.b16 %v3115
    %v3255 = vunpack.c.l.b16 %v3116
    %v3256 = vunpack.c.h.b16 %v3116
    %v3257 = vunpack.c.l.b16 %v3117
    %v3258 = vunpack.c.h.b16 %v3117
    %v3259 = vunpack.c.l.b16 %v3118
    %v3260 = vunpack.c.h.b16 %v3118
    %v3261 = vunpack.c.l.b16 %v3119
    %v3262 = vunpack.c.h.b16 %v3119
    %v3263 = vunpack.c.l.b16 %v3120
    %v3264 = vunpack.c.h.b16 %v3120
    %v3265 = vunpack.c.l.b16 %v3121
    %v3266 = vunpack.c.h.b16 %v3121
    %v3267 = vunpack.c.l.b16 %v3122
    %v3268 = vunpack.c.h.b16 %v3122
    %v3269 = vunpack.c.l.b16 %v3123
    %v3270 = vunpack.c.h.b16 %v3123
    %v3271 = vunpack.c.l.b16 %v3124
    %v3272 = vunpack.c.h.b16 %v3124
    %v3273 = vunpack.c.l.b16 %v3125
    %v3274 = vunpack.c.h.b16 %v3125
    %v3275 = vunpack.c.l.b16 %v3126
    %v3276 = vunpack.c.h.b16 %v3126
    %v3277 = vunpack.c.l.b16 %v3127
    %v3278 = vunpack.c.h.b16 %v3127
    %v3279 = vunpack.c.l.b16 %v3128
    %v3280 = vunpack.c.h.b16 %v3128
    %v3281 = vunpack.c.l.b16 %v3129
    %v3282 = vunpack.c.h.b16 %v3129
    %v3283 = vunpack.c.l.b16 %v3130
    %v3284 = vunpack.c.h.b16 %v3130
    %v3285 = vunpack.c.l.b16 %v3131
    %v3286 = vunpack.c.h.b16 %v3131
    %v3287 = vunpack.c.l.b16 %v3132
    %v3288 = vunpack.c.h.b16 %v3132
    %v3289 = vunpack.c.l.b16 %v3133
    %v3290 = vunpack.c.h.b16 %v3133
    %v3291 = vunpack.c.l.b16 %v3134
    %v3292 = vunpack.c.h.b16 %v3134
    %v3293 = vunpack.c.l.b16 %v3135
    %v3294 = vunpack.c.h.b16 %v3135
    %v3295 = vunpack.c.l.b16 %v3136
    %v3296 = vunpack.c.h.b16 %v3136
    %v3297 = vunpack.c.l.b16 %v3137
    %v3298 = vunpack.c.h.b16 %v3137
    %v3299 = vunpack.c.l.b16 %v3138
    %v3300 = vunpack.c.h.b16 %v3138
    %v3301 = vunpack.c.l.b16 %v3139
    %v3302 = vunpack.c.h.b16 %v3139
    %v3303 = vunpack.c.l.b16 %v3140
    %v3304 = vunpack.c.h.b16 %v3140
    %v3305 = vunpack.c.l.b16 %v3141
    %v3306 = vunpack.c.h.b16 %v3141
    %v3307 = vunpack.c.l.b16 %v3142
    %v3308 = vunpack.c.h.b16 %v3142
    %v3309 = vunpack.c.l.b16 %v3143
    %v3310 = vunpack.c.h.b16 %v3143
    %v3311 = vunpack.c.l.b16 %v3144
    %v3312 = vunpack.c.h.b16 %v3144
    %v3313 = vunpack.c.l.b16 %v3145
    %v3314 = vunpack.c.h.b16 %v3145
    %v3315 = vunpack.c.l.b16 %v3146
    %v3316 = vunpack.c.h.b16 %v3146
    %v3317 = vunpack.c.l.b16 %v3147
    %v3318 = vunpack.c.h.b16 %v3147
    %v3319 = vunpack.c.l.b16 %v3148
    %v3320 = vunpack.c.h.b16 %v3148
    %v3321 = vunpack.c.l.b16 %v3149
    %v3322 = vunpack.c.h.b16 %v3149
    %v3323 = vunpack.c.l.b16 %v3150
    %v3324 = vunpack.c.h.b16 %v3150
    %v3325 = vunpack.c.l.b16 %v3151
    %v3326 = vunpack.c.h.b16 %v3151
    %v3327 = vunpack.c.l.b16 %v3152
    %v3328 = vunpack.c.h.b16 %v3152
    %v3329 = vunpack.c.l.b16 %v3153
    %v3330 = vunpack.c.h.b16 %v3153
    %v3331 = vunpack.c.l.b16 %v3154
    %v3332 = vunpack.c.h.b16 %v3154
    %v3333 = vunpack.c.l.b16 %v3155
    %v3334 = vunpack.c.h.b16 %v3155
    %v3335 = vunpack.c.l.b16 %v3156
    %v3336 = vunpack.c.h.b16 %v3156
    %v3337 = vunpack.c.l.b16 %v3157
    %v3338 = vunpack.c.h.b16 %v3157
    %v3339 = vunpack.c.l.b16 %v3158
    %v3340 = vunpack.c.h.b16 %v3158
    %v3341 = vunpack.c.l.b16 %v3159
    %v3342 = vunpack.c.h.b16 %v3159
    %v3343 = vunpack.c.l.b16 %v3160
    %v3344 = vunpack.c.h.b16 %v3160
    %v3345 = vunpack.c.l.b16 %v3161
    %v3346 = vunpack.c.h.b16 %v3161
    %v3347 = vunpack.c.l.b16 %v3162
    %v3348 = vunpack.c.h.b16 %v3162
    %v3349 = vunpack.c.l.b16 %v3163
    %v3350 = vunpack.c.h.b16 %v3163
    %v3351 = vunpack.c.l.b16 %v3164
    %v3352 = vunpack.c.h.b16 %v3164
    %v3353 = vunpack.c.l.b16 %v3165
    %v3354 = vunpack.c.h.b16 %v3165
    %v3355 = vunpack.c.l.b16 %v3166
    %v3356 = vunpack.c.h.b16 %v3166
    %v3357 = vunpack.c.l.b16 %v3167
    %v3358 = vunpack.c.h.b16 %v3167
    %v3359 = vunpack.c.l.b16 %v3168
    %v3360 = vunpack.c.h.b16 %v3168
    %v3361 = vpack.c.b16 %v3237, %v3233
    %v3362 = vpack.c.b16 %v3238, %v3234
    %v3363 = vpack.c.b16 %v3239, %v3235
    %v3364 = vpack.c.b16 %v3240, %v3236
    %v3365 = vpack.c.b16 %v3245, %v3241
    %v3366 = vpack.c.b16 %v3246, %v3242
    %v3367 = vpack.c.b16 %v3247, %v3243
    %v3368 = vpack.c.b16 %v3248, %v3244
    %v3369 = vpack.c.b16 %v3253, %v3249
    %v3370 = vpack.c.b16 %v3254, %v3250
    %v3371 = vpack.c.b16 %v3255, %v3251
    %v3372 = vpack.c.b16 %v3256, %v3252
    %v3373 = vpack.c.b16 %v3261, %v3257
    %v3374 = vpack.c.b16 %v3262, %v3258
    %v3375 = vpack.c.b16 %v3263, %v3259
    %v3376 = vpack.c.b16 %v3264, %v3260
    %v3377 = vpack.c.b16 %v3269, %v3265
    %v3378 = vpack.c.b16 %v3270, %v3266
    %v3379 = vpack.c.b16 %v3271, %v3267
    %v3380 = vpack.c.b16 %v3272, %v3268
    %v3381 = vpack.c.b16 %v3277, %v3273
    %v3382 = vpack.c.b16 %v3278, %v3274
    %v3383 = vpack.c.b16 %v3279, %v3275
    %v3384 = vpack.c.b16 %v3280, %v3276
    %v3385 = vpack.c.b16 %v3285, %v3281
    %v3386 = vpack.c.b16 %v3286, %v3282
    %v3387 = vpack.c.b16 %v3287, %v3283
    %v3388 = vpack.c.b16 %v3288, %v3284
    %v3389 = vpack.c.b16 %v3293, %v3289
    %v3390 = vpack.c.b16 %v3294, %v3290
    %v3391 = vpack.c.b16 %v3295, %v3291
    %v3392 = vpack.c.b16 %v3296, %v3292
    %v3393 = vpack.c.b16 %v3301, %v3297
    %v3394 = vpack.c.b16 %v3302, %v3298
    %v3395 = vpack.c.b16 %v3303, %v3299
    %v3396 = vpack.c.b16 %v3304, %v3300
    %v3397 = vpack.c.b16 %v3309, %v3305
    %v3398 = vpack.c.b16 %v3310, %v3306
    %v3399 = vpack.c.b16 %v3311, %v3307
    %v3400 = vpack.c.b16 %v3312, %v3308
    %v3401 = vpack.c.b16 %v3317, %v3313
    %v3402 = vpack.c.b16 %v3318, %v3314
    %v3403 = vpack.c.b16 %v3319, %v3315
    %v3404 = vpack.c.b16 %v3320, %v3316
    %v3405 = vpack.c.b16 %v3325, %v3321
    %v3406 = vpack.c.b16 %v3326, %v3322
    %v3407 = vpack.c.b16 %v3327, %v3323
    %v3408 = vpack.c.b16 %v3328, %v3324
    %v3409 = vpack.c.b16 %v3333, %v3329
    %v3410 = vpack.c.b16 %v3334, %v3330
    %v3411 = vpack.c.b16 %v3335, %v3331
    %v3412 = vpack.c.b16 %v3336, %v3332
    %v3413 = vpack.c.b16 %v3341, %v3337
    %v3414 = vpack.c.b16 %v3342, %v3338
    %v3415 = vpack.c.b16 %v3343, %v3339
    %v3416 = vpack.c.b16 %v3344, %v3340
    %v3417 = vpack.c.b16 %v3349, %v3345
    %v3418 = vpack.c.b16 %v3350, %v3346
    %v3419 = vpack.c.b16 %v3351, %v3347
    %v3420 = vpack.c.b16 %v3352, %v3348
    %v3421 = vpack.c.b16 %v3357, %v3353
    %v3422 = vpack.c.b16 %v3358, %v3354
    %v3423 = vpack.c.b16 %v3359, %v3355
    %v3424 = vpack.c.b16 %v3360, %v3356
    %3489 = vmatprep.subr.bf16.mxu0 %v3362
    %3490 = vmatpush1.bf16.msra.mxu0 %v3361
    %3491 = vmatprep.subr.bf16.mxu0 %v3366
    %3492 = vmatpush1.bf16.msra.mxu0 %v3365
    %3493 = vmatprep.subr.bf16.mxu0 %v3370
    %3494 = vmatpush1.bf16.msra.mxu0 %v3369
    %3495 = vmatprep.subr.bf16.mxu0 %v3374
    %3496 = vmatpush1.bf16.msra.mxu0 %v3373
    %3497 = vmatprep.subr.bf16.mxu0 %v3378
    %3498 = vmatpush1.bf16.msra.mxu0 %v3377
    %3499 = vmatprep.subr.bf16.mxu0 %v3382
    %3500 = vmatpush1.bf16.msra.mxu0 %v3381
    %3501 = vmatprep.subr.bf16.mxu0 %v3386
    %3502 = vmatpush1.bf16.msra.mxu0 %v3385
    %3503 = vmatprep.subr.bf16.mxu0 %v3390
    %3504 = vmatpush1.bf16.msra.mxu0 %v3389
    %3505 = vmatprep.subr.bf16.mxu0 %v3394
    %3506 = vmatpush1.bf16.msra.mxu0 %v3393
    %3507 = vmatprep.subr.bf16.mxu0 %v3398
    %3508 = vmatpush1.bf16.msra.mxu0 %v3397
    %3509 = vmatprep.subr.bf16.mxu0 %v3402
    %3510 = vmatpush1.bf16.msra.mxu0 %v3401
    %3511 = vmatprep.subr.bf16.mxu0 %v3406
    %3512 = vmatpush1.bf16.msra.mxu0 %v3405
    %3513 = vmatprep.subr.bf16.mxu0 %v3410
    %3514 = vmatpush1.bf16.msra.mxu0 %v3409
    %3515 = vmatprep.subr.bf16.mxu0 %v3414
    %3516 = vmatpush1.bf16.msra.mxu0 %v3413
    %3517 = vmatprep.subr.bf16.mxu0 %v3418
    %3518 = vmatpush1.bf16.msra.mxu0 %v3417
    %3519 = vmatprep.subr.bf16.mxu0 %v3422
    %3520 = vmatpush1.bf16.msra.mxu0 %v3421
    %3521 = vmatprep.mubr.bf16.mxu0 %v3104
    %3522 = vmatmul.mubr.bf16.gmra.mrb[0].mxu0 %v3103
    %v3523 = vpop.f32.mrb[0].mxu0
    %v3524 = vadd.f32 0.0, %v3523
    %v3525 = vpop.f32.mrb[0].mxu0
    %v3526 = vadd.f32 0.0, %v3525
    %v3527 = vpop.f32.mrb[0].mxu0
    %v3528 = vadd.f32 0.0, %v3527
    %v3529 = vpop.f32.mrb[0].mxu0
    %v3530 = vadd.f32 0.0, %v3529
    %3531 = vdwg.mxu0
    %3532 = vmatprep.subr.bf16.mxu0 %v3364
    %3533 = vmatpush1.bf16.msra.mxu0 %v3363
    %3534 = vmatprep.subr.bf16.mxu0 %v3368
    %3535 = vmatpush1.bf16.msra.mxu0 %v3367
    %3536 = vmatprep.subr.bf16.mxu0 %v3372
    %3537 = vmatpush1.bf16.msra.mxu0 %v3371
    %3538 = vmatprep.subr.bf16.mxu0 %v3376
    %3539 = vmatpush1.bf16.msra.mxu0 %v3375
    %3540 = vmatprep.subr.bf16.mxu0 %v3380
    %3541 = vmatpush1.bf16.msra.mxu0 %v3379
    %3542 = vmatprep.subr.bf16.mxu0 %v3384
    %3543 = vmatpush1.bf16.msra.mxu0 %v3383
    %3544 = vmatprep.subr.bf16.mxu0 %v3388
    %3545 = vmatpush1.bf16.msra.mxu0 %v3387
    %3546 = vmatprep.subr.bf16.mxu0 %v3392
    %3547 = vmatpush1.bf16.msra.mxu0 %v3391
    %3548 = vmatprep.subr.bf16.mxu0 %v3396
    %3549 = vmatpush1.bf16.msra.mxu0 %v3395
    %3550 = vmatprep.subr.bf16.mxu0 %v3400
    %3551 = vmatpush1.bf16.msra.mxu0 %v3399
    %3552 = vmatprep.subr.bf16.mxu0 %v3404
    %3553 = vmatpush1.bf16.msra.mxu0 %v3403
    %3554 = vmatprep.subr.bf16.mxu0 %v3408
    %3555 = vmatpush1.bf16.msra.mxu0 %v3407
    %3556 = vmatprep.subr.bf16.mxu0 %v3412
    %3557 = vmatpush1.bf16.msra.mxu0 %v3411
    %3558 = vmatprep.subr.bf16.mxu0 %v3416
    %3559 = vmatpush1.bf16.msra.mxu0 %v3415
    %3560 = vmatprep.subr.bf16.mxu0 %v3420
    %3561 = vmatpush1.bf16.msra.mxu0 %v3419
    %3562 = vmatprep.subr.bf16.mxu0 %v3424
    %3563 = vmatpush1.bf16.msra.mxu0 %v3423
    %3564 = vmatprep.mubr.bf16.mxu0 %v3104
    %3565 = vmatmul.mubr.bf16.gmra.mrb[0].mxu0 %v3103
    %v3566 = vpop.f32.mrb[0].mxu0
    %v3567 = vadd.f32 0.0, %v3566
    %v3568 = vpop.f32.mrb[0].mxu0
    %v3569 = vadd.f32 0.0, %v3568
    %v3570 = vpop.f32.mrb[0].mxu0
    %v3571 = vadd.f32 0.0, %v3570
    %v3572 = vpop.f32.mrb[0].mxu0
    %v3573 = vadd.f32 0.0, %v3572
    %3574 = vdwg.mxu0
    %v3575 = vpack.c.bf16 %v3528, %v3524
    %v3576 = vpack.c.bf16 %v3530, %v3526
    %v3577 = vpack.c.bf16 %v3571, %v3567
    %v3578 = vpack.c.bf16 %v3573, %v3569
    %v3579 = vld [vmem:[%s14] sm:$0xf]
    %v3581 = vlaneseq
    %v3582 = vshrl.u32 %v3581, 7
    %v3583 = vsub.s32 0, %v3582
    %v3584 = vrot.slane %v3579, %v3583
    %v3585 = vlaneseq
    %v3586 = vshrl.u32 %v3585, 7
    %v3587 = vsub.s32 1, %v3586
    %v3588 = vrot.slane %v3579, %v3587
    %v3589 = vlaneseq
    %v3590 = vshrl.u32 %v3589, 7
    %v3591 = vsub.s32 2, %v3590
    %v3592 = vrot.slane %v3579, %v3591
    %v3593 = vlaneseq
    %v3594 = vshrl.u32 %v3593, 7
    %v3595 = vsub.s32 3, %v3594
    %v3596 = vrot.slane %v3579, %v3595
    %v3601 = vpack.c.bf16 %v3584, %v3584
    %v3602 = vpack.c.bf16 %v3588, %v3588
    %v3603 = vpack.c.bf16 %v3592, %v3592
    %v3604 = vpack.c.bf16 %v3596, %v3596
    %v3606 = vpack.i.b16 %v3601, %v3601
    %v3608 = vlaneseq
    %v3609 = vshrl.u32 %v3608, 7
    %v3610 = vsub.s32 0, %v3609
    %v3611 = vrot.slane %v3606, %v3610
    %v3613 = vpack.i.b16 %v3602, %v3602
    %v3615 = vlaneseq
    %v3616 = vshrl.u32 %v3615, 7
    %v3617 = vsub.s32 0, %v3616
    %v3618 = vrot.slane %v3613, %v3617
    %v3620 = vpack.i.b16 %v3603, %v3603
    %v3622 = vlaneseq
    %v3623 = vshrl.u32 %v3622, 7
    %v3624 = vsub.s32 0, %v3623
    %v3625 = vrot.slane %v3620, %v3624
    %v3627 = vpack.i.b16 %v3604, %v3604
    %v3629 = vlaneseq
    %v3630 = vshrl.u32 %v3629, 7
    %v3631 = vsub.s32 0, %v3630
    %v3632 = vrot.slane %v3627, %v3631
    %v3633 = vadd.bf16 %v3575, %v3611
    %v3634 = vadd.bf16 %v3576, %v3618
    %v3635 = vadd.bf16 %v3577, %v3625
    %v3636 = vadd.bf16 %v3578, %v3632
    %vm3637 = vcmp.gt.bf16.partialorder %v3633, 0
    %vm3638 = vcmp.gt.bf16.partialorder %v3634, 0
    %vm3639 = vcmp.gt.bf16.partialorder %v3635, 0
    %vm3640 = vcmp.gt.bf16.partialorder %v3636, 0
    %v3641 = vmul.bf16 %v3633, 1036860877
    %v3642 = vmul.bf16 %v3634, 1036860877
    %v3643 = vmul.bf16 %v3635, 1036860877
    %v3644 = vmul.bf16 %v3636, 1036860877
    %v3645 = vsel %vm3637, %v3633, %v3641
    %v3646 = vsel %vm3638, %v3634, %v3642
    %v3647 = vsel %vm3639, %v3635, %v3643
    %v3648 = vsel %vm3640, %v3636, %v3644
    %v3649 = vld [vmem:[#allocation17] sm:$0xff]
    %v3650 = vld [vmem:[#allocation17 + $0x8] sm:$0xff]
    %v3651 = vld [vmem:[#allocation17 + $0x10] sm:$0xff]
    %v3652 = vld [vmem:[#allocation17 + $0x18] sm:$0xf]
    %v3653 = vld [vmem:[#allocation17 + $0x1c] sm:$0xff]
    %v3654 = vld [vmem:[#allocation17 + $0x24] sm:$0xff]
    %v3655 = vld [vmem:[#allocation17 + $0x2c] sm:$0xff]
    %v3656 = vld [vmem:[#allocation17 + $0x34] sm:$0xf]
    %v3657 = vld [vmem:[#allocation17 + $0x38] sm:$0xff]
    %v3658 = vld [vmem:[#allocation17 + $0x40] sm:$0xff]
    %v3659 = vld [vmem:[#allocation17 + $0x48] sm:$0xff]
    %v3660 = vld [vmem:[#allocation17 + $0x50] sm:$0xf]
    %v3661 = vld [vmem:[#allocation17 + $0x54] sm:$0xff]
    %v3662 = vld [vmem:[#allocation17 + $0x5c] sm:$0xff]
    %v3663 = vld [vmem:[#allocation17 + $0x64] sm:$0xff]
    %v3664 = vld [vmem:[#allocation17 + $0x6c] sm:$0xf]
    %v3665 = vld [vmem:[#allocation17 + $0x70] sm:$0xff]
    %v3666 = vld [vmem:[#allocation17 + $0x78] sm:$0xff]
    %v3667 = vld [vmem:[#allocation17 + $0x80] sm:$0xff]
    %v3668 = vld [vmem:[#allocation17 + $0x88] sm:$0xf]
    %v3669 = vld [vmem:[#allocation17 + $0x8c] sm:$0xff]
    %v3670 = vld [vmem:[#allocation17 + $0x94] sm:$0xff]
    %v3671 = vld [vmem:[#allocation17 + $0x9c] sm:$0xff]
    %v3672 = vld [vmem:[#allocation17 + $0xa4] sm:$0xf]
    %v3673 = vld [vmem:[#allocation17 + $0xa8] sm:$0xff]
    %v3674 = vld [vmem:[#allocation17 + $0xb0] sm:$0xff]
    %v3675 = vld [vmem:[#allocation17 + $0xb8] sm:$0xff]
    %v3676 = vld [vmem:[#allocation17 + $0xc0] sm:$0xf]
    %v3677 = vld [vmem:[#allocation17 + $0xc4] sm:$0xff]
    %v3678 = vld [vmem:[#allocation17 + $0xcc] sm:$0xff]
    %v3679 = vld [vmem:[#allocation17 + $0xd4] sm:$0xff]
    %v3680 = vld [vmem:[#allocation17 + $0xdc] sm:$0xf]
    %v3681 = vld [vmem:[#allocation17 + $0xe0] sm:$0xff]
    %v3682 = vld [vmem:[#allocation17 + $0xe8] sm:$0xff]
    %v3683 = vld [vmem:[#allocation17 + $0xf0] sm:$0xff]
    %v3684 = vld [vmem:[#allocation17 + $0xf8] sm:$0xf]
    %v3685 = vld [vmem:[#allocation17 + $0xfc] sm:$0xff]
    %v3686 = vld [vmem:[#allocation17 + $0x104] sm:$0xff]
    %v3687 = vld [vmem:[#allocation17 + $0x10c] sm:$0xff]
    %v3688 = vld [vmem:[#allocation17 + $0x114] sm:$0xf]
    %v3689 = vld [vmem:[#allocation17 + $0x118] sm:$0xff]
    %v3690 = vld [vmem:[#allocation17 + $0x120] sm:$0xff]
    %v3691 = vld [vmem:[#allocation17 + $0x128] sm:$0xff]
    %v3692 = vld [vmem:[#allocation17 + $0x130] sm:$0xf]
    %v3693 = vld [vmem:[#allocation17 + $0x134] sm:$0xff]
    %v3694 = vld [vmem:[#allocation17 + $0x13c] sm:$0xff]
    %v3695 = vld [vmem:[#allocation17 + $0x144] sm:$0xff]
    %v3696 = vld [vmem:[#allocation17 + $0x14c] sm:$0xf]
    %v3697 = vld [vmem:[#allocation17 + $0x150] sm:$0xff]
    %v3698 = vld [vmem:[#allocation17 + $0x158] sm:$0xff]
    %v3699 = vld [vmem:[#allocation17 + $0x160] sm:$0xff]
    %v3700 = vld [vmem:[#allocation17 + $0x168] sm:$0xf]
    %v3701 = vld [vmem:[#allocation17 + $0x16c] sm:$0xff]
    %v3702 = vld [vmem:[#allocation17 + $0x174] sm:$0xff]
    %v3703 = vld [vmem:[#allocation17 + $0x17c] sm:$0xff]
    %v3704 = vld [vmem:[#allocation17 + $0x184] sm:$0xf]
    %v3705 = vld [vmem:[#allocation17 + $0x188] sm:$0xff]
    %v3706 = vld [vmem:[#allocation17 + $0x190] sm:$0xff]
    %v3707 = vld [vmem:[#allocation17 + $0x198] sm:$0xff]
    %v3708 = vld [vmem:[#allocation17 + $0x1a0] sm:$0xf]
    %v3709 = vld [vmem:[#allocation17 + $0x1a4] sm:$0xff]
    %v3710 = vld [vmem:[#allocation17 + $0x1ac] sm:$0xff]
    %v3711 = vld [vmem:[#allocation17 + $0x1b4] sm:$0xff]
    %v3712 = vld [vmem:[#allocation17 + $0x1bc] sm:$0xf]
    %v3713 = vld [vmem:[#allocation17 + $0x1c0] sm:$0xff]
    %v3714 = vld [vmem:[#allocation17 + $0x1c8] sm:$0xff]
    %v3715 = vld [vmem:[#allocation17 + $0x1d0] sm:$0xff]
    %v3716 = vld [vmem:[#allocation17 + $0x1d8] sm:$0xf]
    %v3717 = vld [vmem:[#allocation17 + $0x1dc] sm:$0xff]
    %v3718 = vld [vmem:[#allocation17 + $0x1e4] sm:$0xff]
    %v3719 = vld [vmem:[#allocation17 + $0x1ec] sm:$0xff]
    %v3720 = vld [vmem:[#allocation17 + $0x1f4] sm:$0xf]
    %v3721 = vld [vmem:[#allocation17 + $0x1f8] sm:$0xff]
    %v3722 = vld [vmem:[#allocation17 + $0x200] sm:$0xff]
    %v3723 = vld [vmem:[#allocation17 + $0x208] sm:$0xff]
    %v3724 = vld [vmem:[#allocation17 + $0x210] sm:$0xf]
    %v3725 = vld [vmem:[#allocation17 + $0x214] sm:$0xff]
    %v3726 = vld [vmem:[#allocation17 + $0x21c] sm:$0xff]
    %v3727 = vld [vmem:[#allocation17 + $0x224] sm:$0xff]
    %v3728 = vld [vmem:[#allocation17 + $0x22c] sm:$0xf]
    %v3729 = vld [vmem:[#allocation17 + $0x230] sm:$0xff]
    %v3730 = vld [vmem:[#allocation17 + $0x238] sm:$0xff]
    %v3731 = vld [vmem:[#allocation17 + $0x240] sm:$0xff]
    %v3732 = vld [vmem:[#allocation17 + $0x248] sm:$0xf]
    %v3733 = vld [vmem:[#allocation17 + $0x24c] sm:$0xff]
    %v3734 = vld [vmem:[#allocation17 + $0x254] sm:$0xff]
    %v3735 = vld [vmem:[#allocation17 + $0x25c] sm:$0xff]
    %v3736 = vld [vmem:[#allocation17 + $0x264] sm:$0xf]
    %v3737 = vld [vmem:[#allocation17 + $0x268] sm:$0xff]
    %v3738 = vld [vmem:[#allocation17 + $0x270] sm:$0xff]
    %v3739 = vld [vmem:[#allocation17 + $0x278] sm:$0xff]
    %v3740 = vld [vmem:[#allocation17 + $0x280] sm:$0xf]
    %v3741 = vld [vmem:[#allocation17 + $0x284] sm:$0xff]
    %v3742 = vld [vmem:[#allocation17 + $0x28c] sm:$0xff]
    %v3743 = vld [vmem:[#allocation17 + $0x294] sm:$0xff]
    %v3744 = vld [vmem:[#allocation17 + $0x29c] sm:$0xf]
    %v3745 = vld [vmem:[#allocation17 + $0x2a0] sm:$0xff]
    %v3746 = vld [vmem:[#allocation17 + $0x2a8] sm:$0xff]
    %v3747 = vld [vmem:[#allocation17 + $0x2b0] sm:$0xff]
    %v3748 = vld [vmem:[#allocation17 + $0x2b8] sm:$0xf]
    %v3749 = vld [vmem:[#allocation17 + $0x2bc] sm:$0xff]
    %v3750 = vld [vmem:[#allocation17 + $0x2c4] sm:$0xff]
    %v3751 = vld [vmem:[#allocation17 + $0x2cc] sm:$0xff]
    %v3752 = vld [vmem:[#allocation17 + $0x2d4] sm:$0xf]
    %v3753 = vld [vmem:[#allocation17 + $0x2d8] sm:$0xff]
    %v3754 = vld [vmem:[#allocation17 + $0x2e0] sm:$0xff]
    %v3755 = vld [vmem:[#allocation17 + $0x2e8] sm:$0xff]
    %v3756 = vld [vmem:[#allocation17 + $0x2f0] sm:$0xf]
    %v3757 = vld [vmem:[#allocation17 + $0x2f4] sm:$0xff]
    %v3758 = vld [vmem:[#allocation17 + $0x2fc] sm:$0xff]
    %v3759 = vld [vmem:[#allocation17 + $0x304] sm:$0xff]
    %v3760 = vld [vmem:[#allocation17 + $0x30c] sm:$0xf]
    %v3761 = vld [vmem:[#allocation17 + $0x310] sm:$0xff]
    %v3762 = vld [vmem:[#allocation17 + $0x318] sm:$0xff]
    %v3763 = vld [vmem:[#allocation17 + $0x320] sm:$0xff]
    %v3764 = vld [vmem:[#allocation17 + $0x328] sm:$0xf]
    %v3765 = vld [vmem:[#allocation17 + $0x32c] sm:$0xff]
    %v3766 = vld [vmem:[#allocation17 + $0x334] sm:$0xff]
    %v3767 = vld [vmem:[#allocation17 + $0x33c] sm:$0xff]
    %v3768 = vld [vmem:[#allocation17 + $0x344] sm:$0xf]
    %v3769 = vld [vmem:[#allocation17 + $0x348] sm:$0xff]
    %v3770 = vld [vmem:[#allocation17 + $0x350] sm:$0xff]
    %v3771 = vld [vmem:[#allocation17 + $0x358] sm:$0xff]
    %v3772 = vld [vmem:[#allocation17 + $0x360] sm:$0xf]
    %v3773 = vld [vmem:[#allocation17 + $0x364] sm:$0xff]
    %v3774 = vld [vmem:[#allocation17 + $0x36c] sm:$0xff]
    %v3775 = vld [vmem:[#allocation17 + $0x374] sm:$0xff]
    %v3776 = vld [vmem:[#allocation17 + $0x37c] sm:$0xf]
    %v3777 = vld [vmem:[#allocation17 + $0x380] sm:$0xff]
    %v3778 = vld [vmem:[#allocation17 + $0x388] sm:$0xff]
    %v3779 = vld [vmem:[#allocation17 + $0x390] sm:$0xff]
    %v3780 = vld [vmem:[#allocation17 + $0x398] sm:$0xf]
    %v3781 = vld [vmem:[#allocation17 + $0x39c] sm:$0xff]
    %v3782 = vld [vmem:[#allocation17 + $0x3a4] sm:$0xff]
    %v3783 = vld [vmem:[#allocation17 + $0x3ac] sm:$0xff]
    %v3784 = vld [vmem:[#allocation17 + $0x3b4] sm:$0xf]
    %v3785 = vld [vmem:[#allocation17 + $0x3b8] sm:$0xff]
    %v3786 = vld [vmem:[#allocation17 + $0x3c0] sm:$0xff]
    %v3787 = vld [vmem:[#allocation17 + $0x3c8] sm:$0xff]
    %v3788 = vld [vmem:[#allocation17 + $0x3d0] sm:$0xf]
    %v3789 = vld [vmem:[#allocation17 + $0x3d4] sm:$0xff]
    %v3790 = vld [vmem:[#allocation17 + $0x3dc] sm:$0xff]
    %v3791 = vld [vmem:[#allocation17 + $0x3e4] sm:$0xff]
    %v3792 = vld [vmem:[#allocation17 + $0x3ec] sm:$0xf]
    %v3793 = vld [vmem:[#allocation17 + $0x3f0] sm:$0xff]
    %v3794 = vld [vmem:[#allocation17 + $0x3f8] sm:$0xff]
    %v3795 = vld [vmem:[#allocation17 + $0x400] sm:$0xff]
    %v3796 = vld [vmem:[#allocation17 + $0x408] sm:$0xf]
    %v3797 = vld [vmem:[#allocation17 + $0x40c] sm:$0xff]
    %v3798 = vld [vmem:[#allocation17 + $0x414] sm:$0xff]
    %v3799 = vld [vmem:[#allocation17 + $0x41c] sm:$0xff]
    %v3800 = vld [vmem:[#allocation17 + $0x424] sm:$0xf]
    %v3801 = vld [vmem:[#allocation17 + $0x428] sm:$0xff]
    %v3802 = vld [vmem:[#allocation17 + $0x430] sm:$0xff]
    %v3803 = vld [vmem:[#allocation17 + $0x438] sm:$0xff]
    %v3804 = vld [vmem:[#allocation17 + $0x440] sm:$0xf]
    %v3805 = vld [vmem:[#allocation17 + $0x444] sm:$0xff]
    %v3806 = vld [vmem:[#allocation17 + $0x44c] sm:$0xff]
    %v3807 = vld [vmem:[#allocation17 + $0x454] sm:$0xff]
    %v3808 = vld [vmem:[#allocation17 + $0x45c] sm:$0xf]
    %v3809 = vld [vmem:[#allocation17 + $0x460] sm:$0xff]
    %v3810 = vld [vmem:[#allocation17 + $0x468] sm:$0xff]
    %v3811 = vld [vmem:[#allocation17 + $0x470] sm:$0xff]
    %v3812 = vld [vmem:[#allocation17 + $0x478] sm:$0xf]
    %v3813 = vld [vmem:[#allocation17 + $0x47c] sm:$0xff]
    %v3814 = vld [vmem:[#allocation17 + $0x484] sm:$0xff]
    %v3815 = vld [vmem:[#allocation17 + $0x48c] sm:$0xff]
    %v3816 = vld [vmem:[#allocation17 + $0x494] sm:$0xf]
    %v3817 = vld [vmem:[#allocation17 + $0x498] sm:$0xff]
    %v3818 = vld [vmem:[#allocation17 + $0x4a0] sm:$0xff]
    %v3819 = vld [vmem:[#allocation17 + $0x4a8] sm:$0xff]
    %v3820 = vld [vmem:[#allocation17 + $0x4b0] sm:$0xf]
    %v3821 = vld [vmem:[#allocation17 + $0x4b4] sm:$0xff]
    %v3822 = vld [vmem:[#allocation17 + $0x4bc] sm:$0xff]
    %v3823 = vld [vmem:[#allocation17 + $0x4c4] sm:$0xff]
    %v3824 = vld [vmem:[#allocation17 + $0x4cc] sm:$0xf]
    %v3825 = vld [vmem:[#allocation17 + $0x4d0] sm:$0xff]
    %v3826 = vld [vmem:[#allocation17 + $0x4d8] sm:$0xff]
    %v3827 = vld [vmem:[#allocation17 + $0x4e0] sm:$0xff]
    %v3828 = vld [vmem:[#allocation17 + $0x4e8] sm:$0xf]
    %v3829 = vld [vmem:[#allocation17 + $0x4ec] sm:$0xff]
    %v3830 = vld [vmem:[#allocation17 + $0x4f4] sm:$0xff]
    %v3831 = vld [vmem:[#allocation17 + $0x4fc] sm:$0xff]
    %v3832 = vld [vmem:[#allocation17 + $0x504] sm:$0xf]
    %v3833 = vld [vmem:[#allocation17 + $0x508] sm:$0xff]
    %v3834 = vld [vmem:[#allocation17 + $0x510] sm:$0xff]
    %v3835 = vld [vmem:[#allocation17 + $0x518] sm:$0xff]
    %v3836 = vld [vmem:[#allocation17 + $0x520] sm:$0xf]
    %v3837 = vld [vmem:[#allocation17 + $0x524] sm:$0xff]
    %v3838 = vld [vmem:[#allocation17 + $0x52c] sm:$0xff]
    %v3839 = vld [vmem:[#allocation17 + $0x534] sm:$0xff]
    %v3840 = vld [vmem:[#allocation17 + $0x53c] sm:$0xf]
    %v3841 = vld [vmem:[#allocation17 + $0x540] sm:$0xff]
    %v3842 = vld [vmem:[#allocation17 + $0x548] sm:$0xff]
    %v3843 = vld [vmem:[#allocation17 + $0x550] sm:$0xff]
    %v3844 = vld [vmem:[#allocation17 + $0x558] sm:$0xf]
    %v3845 = vld [vmem:[#allocation17 + $0x55c] sm:$0xff]
    %v3846 = vld [vmem:[#allocation17 + $0x564] sm:$0xff]
    %v3847 = vld [vmem:[#allocation17 + $0x56c] sm:$0xff]
    %v3848 = vld [vmem:[#allocation17 + $0x574] sm:$0xf]
    %v3849 = vld [vmem:[#allocation17 + $0x578] sm:$0xff]
    %v3850 = vld [vmem:[#allocation17 + $0x580] sm:$0xff]
    %v3851 = vld [vmem:[#allocation17 + $0x588] sm:$0xff]
    %v3852 = vld [vmem:[#allocation17 + $0x590] sm:$0xf]
    %v3853 = vld [vmem:[#allocation17 + $0x594] sm:$0xff]
    %v3854 = vld [vmem:[#allocation17 + $0x59c] sm:$0xff]
    %v3855 = vld [vmem:[#allocation17 + $0x5a4] sm:$0xff]
    %v3856 = vld [vmem:[#allocation17 + $0x5ac] sm:$0xf]
    %v3857 = vld [vmem:[#allocation17 + $0x5b0] sm:$0xff]
    %v3858 = vld [vmem:[#allocation17 + $0x5b8] sm:$0xff]
    %v3859 = vld [vmem:[#allocation17 + $0x5c0] sm:$0xff]
    %v3860 = vld [vmem:[#allocation17 + $0x5c8] sm:$0xf]
    %v3861 = vld [vmem:[#allocation17 + $0x5cc] sm:$0xff]
    %v3862 = vld [vmem:[#allocation17 + $0x5d4] sm:$0xff]
    %v3863 = vld [vmem:[#allocation17 + $0x5dc] sm:$0xff]
    %v3864 = vld [vmem:[#allocation17 + $0x5e4] sm:$0xf]
    %v3865 = vld [vmem:[#allocation17 + $0x5e8] sm:$0xff]
    %v3866 = vld [vmem:[#allocation17 + $0x5f0] sm:$0xff]
    %v3867 = vld [vmem:[#allocation17 + $0x5f8] sm:$0xff]
    %v3868 = vld [vmem:[#allocation17 + $0x600] sm:$0xf]
    %v3869 = vld [vmem:[#allocation17 + $0x604] sm:$0xff]
    %v3870 = vld [vmem:[#allocation17 + $0x60c] sm:$0xff]
    %v3871 = vld [vmem:[#allocation17 + $0x614] sm:$0xff]
    %v3872 = vld [vmem:[#allocation17 + $0x61c] sm:$0xf]
    %v3873 = vld [vmem:[#allocation17 + $0x620] sm:$0xff]
    %v3874 = vld [vmem:[#allocation17 + $0x628] sm:$0xff]
    %v3875 = vld [vmem:[#allocation17 + $0x630] sm:$0xff]
    %v3876 = vld [vmem:[#allocation17 + $0x638] sm:$0xf]
    %v3877 = vld [vmem:[#allocation17 + $0x63c] sm:$0xff]
    %v3878 = vld [vmem:[#allocation17 + $0x644] sm:$0xff]
    %v3879 = vld [vmem:[#allocation17 + $0x64c] sm:$0xff]
    %v3880 = vld [vmem:[#allocation17 + $0x654] sm:$0xf]
    %v3881 = vld [vmem:[#allocation17 + $0x658] sm:$0xff]
    %v3882 = vld [vmem:[#allocation17 + $0x660] sm:$0xff]
    %v3883 = vld [vmem:[#allocation17 + $0x668] sm:$0xff]
    %v3884 = vld [vmem:[#allocation17 + $0x670] sm:$0xf]
    %v3885 = vld [vmem:[#allocation17 + $0x674] sm:$0xff]
    %v3886 = vld [vmem:[#allocation17 + $0x67c] sm:$0xff]
    %v3887 = vld [vmem:[#allocation17 + $0x684] sm:$0xff]
    %v3888 = vld [vmem:[#allocation17 + $0x68c] sm:$0xf]
    %v3889 = vld [vmem:[#allocation17 + $0x690] sm:$0xff]
    %v3890 = vld [vmem:[#allocation17 + $0x698] sm:$0xff]
    %v3891 = vld [vmem:[#allocation17 + $0x6a0] sm:$0xff]
    %v3892 = vld [vmem:[#allocation17 + $0x6a8] sm:$0xf]
    %v3893 = vld [vmem:[#allocation17 + $0x6ac] sm:$0xff]
    %v3894 = vld [vmem:[#allocation17 + $0x6b4] sm:$0xff]
    %v3895 = vld [vmem:[#allocation17 + $0x6bc] sm:$0xff]
    %v3896 = vld [vmem:[#allocation17 + $0x6c4] sm:$0xf]
    %v3897 = vld [vmem:[#allocation17 + $0x6c8] sm:$0xff]
    %v3898 = vld [vmem:[#allocation17 + $0x6d0] sm:$0xff]
    %v3899 = vld [vmem:[#allocation17 + $0x6d8] sm:$0xff]
    %v3900 = vld [vmem:[#allocation17 + $0x6e0] sm:$0xf]
    %v3901 = vld [vmem:[#allocation17 + $0x6e4] sm:$0xff]
    %v3902 = vld [vmem:[#allocation17 + $0x6ec] sm:$0xff]
    %v3903 = vld [vmem:[#allocation17 + $0x6f4] sm:$0xff]
    %v3904 = vld [vmem:[#allocation17 + $0x6fc] sm:$0xf]
    %v3905 = vld [vmem:[%s16] sm:$0xff]
    %v3907 = vlaneseq
    %v3908 = vshrl.u32 %v3907, 7
    %v3909 = vsub.s32 0, %v3908
    %v3910 = vrot.slane %v3905, %v3909
    %v3911 = vlaneseq
    %v3912 = vshrl.u32 %v3911, 7
    %v3913 = vsub.s32 1, %v3912
    %v3914 = vrot.slane %v3905, %v3913
    %v3915 = vlaneseq
    %v3916 = vshrl.u32 %v3915, 7
    %v3917 = vsub.s32 2, %v3916
    %v3918 = vrot.slane %v3905, %v3917
    %v3919 = vlaneseq
    %v3920 = vshrl.u32 %v3919, 7
    %v3921 = vsub.s32 3, %v3920
    %v3922 = vrot.slane %v3905, %v3921
    %v3923 = vlaneseq
    %v3924 = vshrl.u32 %v3923, 7
    %v3925 = vsub.s32 4, %v3924
    %v3926 = vrot.slane %v3905, %v3925
    %v3927 = vlaneseq
    %v3928 = vshrl.u32 %v3927, 7
    %v3929 = vsub.s32 5, %v3928
    %v3930 = vrot.slane %v3905, %v3929
    %v3931 = vlaneseq
    %v3932 = vshrl.u32 %v3931, 7
    %v3933 = vsub.s32 6, %v3932
    %v3934 = vrot.slane %v3905, %v3933
    %v4198 = vunpack.c.l.b16 %v3649
    %v4199 = vunpack.c.h.b16 %v3649
    %v4200 = vunpack.c.l.b16 %v3650
    %v4201 = vunpack.c.h.b16 %v3650
    %v4202 = vunpack.c.l.b16 %v3651
    %v4203 = vunpack.c.h.b16 %v3651
    %v4204 = vunpack.c.l.b16 %v3652
    %v4205 = vunpack.c.l.b16 %v3653
    %v4206 = vunpack.c.h.b16 %v3653
    %v4207 = vunpack.c.l.b16 %v3654
    %v4208 = vunpack.c.h.b16 %v3654
    %v4209 = vunpack.c.l.b16 %v3655
    %v4210 = vunpack.c.h.b16 %v3655
    %v4211 = vunpack.c.l.b16 %v3656
    %v4212 = vunpack.c.l.b16 %v3657
    %v4213 = vunpack.c.h.b16 %v3657
    %v4214 = vunpack.c.l.b16 %v3658
    %v4215 = vunpack.c.h.b16 %v3658
    %v4216 = vunpack.c.l.b16 %v3659
    %v4217 = vunpack.c.h.b16 %v3659
    %v4218 = vunpack.c.l.b16 %v3660
    %v4219 = vunpack.c.l.b16 %v3661
    %v4220 = vunpack.c.h.b16 %v3661
    %v4221 = vunpack.c.l.b16 %v3662
    %v4222 = vunpack.c.h.b16 %v3662
    %v4223 = vunpack.c.l.b16 %v3663
    %v4224 = vunpack.c.h.b16 %v3663
    %v4225 = vunpack.c.l.b16 %v3664
    %v4226 = vunpack.c.l.b16 %v3665
    %v4227 = vunpack.c.h.b16 %v3665
    %v4228 = vunpack.c.l.b16 %v3666
    %v4229 = vunpack.c.h.b16 %v3666
    %v4230 = vunpack.c.l.b16 %v3667
    %v4231 = vunpack.c.h.b16 %v3667
    %v4232 = vunpack.c.l.b16 %v3668
    %v4233 = vunpack.c.l.b16 %v3669
    %v4234 = vunpack.c.h.b16 %v3669
    %v4235 = vunpack.c.l.b16 %v3670
    %v4236 = vunpack.c.h.b16 %v3670
    %v4237 = vunpack.c.l.b16 %v3671
    %v4238 = vunpack.c.h.b16 %v3671
    %v4239 = vunpack.c.l.b16 %v3672
    %v4240 = vunpack.c.l.b16 %v3673
    %v4241 = vunpack.c.h.b16 %v3673
    %v4242 = vunpack.c.l.b16 %v3674
    %v4243 = vunpack.c.h.b16 %v3674
    %v4244 = vunpack.c.l.b16 %v3675
    %v4245 = vunpack.c.h.b16 %v3675
    %v4246 = vunpack.c.l.b16 %v3676
    %v4247 = vunpack.c.l.b16 %v3677
    %v4248 = vunpack.c.h.b16 %v3677
    %v4249 = vunpack.c.l.b16 %v3678
    %v4250 = vunpack.c.h.b16 %v3678
    %v4251 = vunpack.c.l.b16 %v3679
    %v4252 = vunpack.c.h.b16 %v3679
    %v4253 = vunpack.c.l.b16 %v3680
    %v4254 = vunpack.c.l.b16 %v3681
    %v4255 = vunpack.c.h.b16 %v3681
    %v4256 = vunpack.c.l.b16 %v3682
    %v4257 = vunpack.c.h.b16 %v3682
    %v4258 = vunpack.c.l.b16 %v3683
    %v4259 = vunpack.c.h.b16 %v3683
    %v4260 = vunpack.c.l.b16 %v3684
    %v4261 = vunpack.c.l.b16 %v3685
    %v4262 = vunpack.c.h.b16 %v3685
    %v4263 = vunpack.c.l.b16 %v3686
    %v4264 = vunpack.c.h.b16 %v3686
    %v4265 = vunpack.c.l.b16 %v3687
    %v4266 = vunpack.c.h.b16 %v3687
    %v4267 = vunpack.c.l.b16 %v3688
    %v4268 = vunpack.c.l.b16 %v3689
    %v4269 = vunpack.c.h.b16 %v3689
    %v4270 = vunpack.c.l.b16 %v3690
    %v4271 = vunpack.c.h.b16 %v3690
    %v4272 = vunpack.c.l.b16 %v3691
    %v4273 = vunpack.c.h.b16 %v3691
    %v4274 = vunpack.c.l.b16 %v3692
    %v4275 = vunpack.c.l.b16 %v3693
    %v4276 = vunpack.c.h.b16 %v3693
    %v4277 = vunpack.c.l.b16 %v3694
    %v4278 = vunpack.c.h.b16 %v3694
    %v4279 = vunpack.c.l.b16 %v3695
    %v4280 = vunpack.c.h.b16 %v3695
    %v4281 = vunpack.c.l.b16 %v3696
    %v4282 = vunpack.c.l.b16 %v3697
    %v4283 = vunpack.c.h.b16 %v3697
    %v4284 = vunpack.c.l.b16 %v3698
    %v4285 = vunpack.c.h.b16 %v3698
    %v4286 = vunpack.c.l.b16 %v3699
    %v4287 = vunpack.c.h.b16 %v3699
    %v4288 = vunpack.c.l.b16 %v3700
    %v4289 = vunpack.c.l.b16 %v3701
    %v4290 = vunpack.c.h.b16 %v3701
    %v4291 = vunpack.c.l.b16 %v3702
    %v4292 = vunpack.c.h.b16 %v3702
    %v4293 = vunpack.c.l.b16 %v3703
    %v4294 = vunpack.c.h.b16 %v3703
    %v4295 = vunpack.c.l.b16 %v3704
    %v4296 = vunpack.c.l.b16 %v3705
    %v4297 = vunpack.c.h.b16 %v3705
    %v4298 = vunpack.c.l.b16 %v3706
    %v4299 = vunpack.c.h.b16 %v3706
    %v4300 = vunpack.c.l.b16 %v3707
    %v4301 = vunpack.c.h.b16 %v3707
    %v4302 = vunpack.c.l.b16 %v3708
    %v4303 = vunpack.c.l.b16 %v3709
    %v4304 = vunpack.c.h.b16 %v3709
    %v4305 = vunpack.c.l.b16 %v3710
    %v4306 = vunpack.c.h.b16 %v3710
    %v4307 = vunpack.c.l.b16 %v3711
    %v4308 = vunpack.c.h.b16 %v3711
    %v4309 = vunpack.c.l.b16 %v3712
    %v4310 = vunpack.c.l.b16 %v3713
    %v4311 = vunpack.c.h.b16 %v3713
    %v4312 = vunpack.c.l.b16 %v3714
    %v4313 = vunpack.c.h.b16 %v3714
    %v4314 = vunpack.c.l.b16 %v3715
    %v4315 = vunpack.c.h.b16 %v3715
    %v4316 = vunpack.c.l.b16 %v3716
    %v4317 = vunpack.c.l.b16 %v3717
    %v4318 = vunpack.c.h.b16 %v3717
    %v4319 = vunpack.c.l.b16 %v3718
    %v4320 = vunpack.c.h.b16 %v3718
    %v4321 = vunpack.c.l.b16 %v3719
    %v4322 = vunpack.c.h.b16 %v3719
    %v4323 = vunpack.c.l.b16 %v3720
    %v4324 = vunpack.c.l.b16 %v3721
    %v4325 = vunpack.c.h.b16 %v3721
    %v4326 = vunpack.c.l.b16 %v3722
    %v4327 = vunpack.c.h.b16 %v3722
    %v4328 = vunpack.c.l.b16 %v3723
    %v4329 = vunpack.c.h.b16 %v3723
    %v4330 = vunpack.c.l.b16 %v3724
    %v4331 = vunpack.c.l.b16 %v3725
    %v4332 = vunpack.c.h.b16 %v3725
    %v4333 = vunpack.c.l.b16 %v3726
    %v4334 = vunpack.c.h.b16 %v3726
    %v4335 = vunpack.c.l.b16 %v3727
    %v4336 = vunpack.c.h.b16 %v3727
    %v4337 = vunpack.c.l.b16 %v3728
    %v4338 = vunpack.c.l.b16 %v3729
    %v4339 = vunpack.c.h.b16 %v3729
    %v4340 = vunpack.c.l.b16 %v3730
    %v4341 = vunpack.c.h.b16 %v3730
    %v4342 = vunpack.c.l.b16 %v3731
    %v4343 = vunpack.c.h.b16 %v3731
    %v4344 = vunpack.c.l.b16 %v3732
    %v4345 = vunpack.c.l.b16 %v3733
    %v4346 = vunpack.c.h.b16 %v3733
    %v4347 = vunpack.c.l.b16 %v3734
    %v4348 = vunpack.c.h.b16 %v3734
    %v4349 = vunpack.c.l.b16 %v3735
    %v4350 = vunpack.c.h.b16 %v3735
    %v4351 = vunpack.c.l.b16 %v3736
    %v4352 = vunpack.c.l.b16 %v3737
    %v4353 = vunpack.c.h.b16 %v3737
    %v4354 = vunpack.c.l.b16 %v3738
    %v4355 = vunpack.c.h.b16 %v3738
    %v4356 = vunpack.c.l.b16 %v3739
    %v4357 = vunpack.c.h.b16 %v3739
    %v4358 = vunpack.c.l.b16 %v3740
    %v4359 = vunpack.c.l.b16 %v3741
    %v4360 = vunpack.c.h.b16 %v3741
    %v4361 = vunpack.c.l.b16 %v3742
    %v4362 = vunpack.c.h.b16 %v3742
    %v4363 = vunpack.c.l.b16 %v3743
    %v4364 = vunpack.c.h.b16 %v3743
    %v4365 = vunpack.c.l.b16 %v3744
    %v4366 = vunpack.c.l.b16 %v3745
    %v4367 = vunpack.c.h.b16 %v3745
    %v4368 = vunpack.c.l.b16 %v3746
    %v4369 = vunpack.c.h.b16 %v3746
    %v4370 = vunpack.c.l.b16 %v3747
    %v4371 = vunpack.c.h.b16 %v3747
    %v4372 = vunpack.c.l.b16 %v3748
    %v4373 = vunpack.c.l.b16 %v3749
    %v4374 = vunpack.c.h.b16 %v3749
    %v4375 = vunpack.c.l.b16 %v3750
    %v4376 = vunpack.c.h.b16 %v3750
    %v4377 = vunpack.c.l.b16 %v3751
    %v4378 = vunpack.c.h.b16 %v3751
    %v4379 = vunpack.c.l.b16 %v3752
    %v4380 = vunpack.c.l.b16 %v3753
    %v4381 = vunpack.c.h.b16 %v3753
    %v4382 = vunpack.c.l.b16 %v3754
    %v4383 = vunpack.c.h.b16 %v3754
    %v4384 = vunpack.c.l.b16 %v3755
    %v4385 = vunpack.c.h.b16 %v3755
    %v4386 = vunpack.c.l.b16 %v3756
    %v4387 = vunpack.c.l.b16 %v3757
    %v4388 = vunpack.c.h.b16 %v3757
    %v4389 = vunpack.c.l.b16 %v3758
    %v4390 = vunpack.c.h.b16 %v3758
    %v4391 = vunpack.c.l.b16 %v3759
    %v4392 = vunpack.c.h.b16 %v3759
    %v4393 = vunpack.c.l.b16 %v3760
    %v4394 = vunpack.c.l.b16 %v3761
    %v4395 = vunpack.c.h.b16 %v3761
    %v4396 = vunpack.c.l.b16 %v3762
    %v4397 = vunpack.c.h.b16 %v3762
    %v4398 = vunpack.c.l.b16 %v3763
    %v4399 = vunpack.c.h.b16 %v3763
    %v4400 = vunpack.c.l.b16 %v3764
    %v4401 = vunpack.c.l.b16 %v3765
    %v4402 = vunpack.c.h.b16 %v3765
    %v4403 = vunpack.c.l.b16 %v3766
    %v4404 = vunpack.c.h.b16 %v3766
    %v4405 = vunpack.c.l.b16 %v3767
    %v4406 = vunpack.c.h.b16 %v3767
    %v4407 = vunpack.c.l.b16 %v3768
    %v4408 = vunpack.c.l.b16 %v3769
    %v4409 = vunpack.c.h.b16 %v3769
    %v4410 = vunpack.c.l.b16 %v3770
    %v4411 = vunpack.c.h.b16 %v3770
    %v4412 = vunpack.c.l.b16 %v3771
    %v4413 = vunpack.c.h.b16 %v3771
    %v4414 = vunpack.c.l.b16 %v3772
    %v4415 = vunpack.c.l.b16 %v3773
    %v4416 = vunpack.c.h.b16 %v3773
    %v4417 = vunpack.c.l.b16 %v3774
    %v4418 = vunpack.c.h.b16 %v3774
    %v4419 = vunpack.c.l.b16 %v3775
    %v4420 = vunpack.c.h.b16 %v3775
    %v4421 = vunpack.c.l.b16 %v3776
    %v4422 = vunpack.c.l.b16 %v3777
    %v4423 = vunpack.c.h.b16 %v3777
    %v4424 = vunpack.c.l.b16 %v3778
    %v4425 = vunpack.c.h.b16 %v3778
    %v4426 = vunpack.c.l.b16 %v3779
    %v4427 = vunpack.c.h.b16 %v3779
    %v4428 = vunpack.c.l.b16 %v3780
    %v4429 = vunpack.c.l.b16 %v3781
    %v4430 = vunpack.c.h.b16 %v3781
    %v4431 = vunpack.c.l.b16 %v3782
    %v4432 = vunpack.c.h.b16 %v3782
    %v4433 = vunpack.c.l.b16 %v3783
    %v4434 = vunpack.c.h.b16 %v3783
    %v4435 = vunpack.c.l.b16 %v3784
    %v4436 = vunpack.c.l.b16 %v3785
    %v4437 = vunpack.c.h.b16 %v3785
    %v4438 = vunpack.c.l.b16 %v3786
    %v4439 = vunpack.c.h.b16 %v3786
    %v4440 = vunpack.c.l.b16 %v3787
    %v4441 = vunpack.c.h.b16 %v3787
    %v4442 = vunpack.c.l.b16 %v3788
    %v4443 = vunpack.c.l.b16 %v3789
    %v4444 = vunpack.c.h.b16 %v3789
    %v4445 = vunpack.c.l.b16 %v3790
    %v4446 = vunpack.c.h.b16 %v3790
    %v4447 = vunpack.c.l.b16 %v3791
    %v4448 = vunpack.c.h.b16 %v3791
    %v4449 = vunpack.c.l.b16 %v3792
    %v4450 = vunpack.c.l.b16 %v3793
    %v4451 = vunpack.c.h.b16 %v3793
    %v4452 = vunpack.c.l.b16 %v3794
    %v4453 = vunpack.c.h.b16 %v3794
    %v4454 = vunpack.c.l.b16 %v3795
    %v4455 = vunpack.c.h.b16 %v3795
    %v4456 = vunpack.c.l.b16 %v3796
    %v4457 = vunpack.c.l.b16 %v3797
    %v4458 = vunpack.c.h.b16 %v3797
    %v4459 = vunpack.c.l.b16 %v3798
    %v4460 = vunpack.c.h.b16 %v3798
    %v4461 = vunpack.c.l.b16 %v3799
    %v4462 = vunpack.c.h.b16 %v3799
    %v4463 = vunpack.c.l.b16 %v3800
    %v4464 = vunpack.c.l.b16 %v3801
    %v4465 = vunpack.c.h.b16 %v3801
    %v4466 = vunpack.c.l.b16 %v3802
    %v4467 = vunpack.c.h.b16 %v3802
    %v4468 = vunpack.c.l.b16 %v3803
    %v4469 = vunpack.c.h.b16 %v3803
    %v4470 = vunpack.c.l.b16 %v3804
    %v4471 = vunpack.c.l.b16 %v3805
    %v4472 = vunpack.c.h.b16 %v3805
    %v4473 = vunpack.c.l.b16 %v3806
    %v4474 = vunpack.c.h.b16 %v3806
    %v4475 = vunpack.c.l.b16 %v3807
    %v4476 = vunpack.c.h.b16 %v3807
    %v4477 = vunpack.c.l.b16 %v3808
    %v4478 = vunpack.c.l.b16 %v3809
    %v4479 = vunpack.c.h.b16 %v3809
    %v4480 = vunpack.c.l.b16 %v3810
    %v4481 = vunpack.c.h.b16 %v3810
    %v4482 = vunpack.c.l.b16 %v3811
    %v4483 = vunpack.c.h.b16 %v3811
    %v4484 = vunpack.c.l.b16 %v3812
    %v4485 = vunpack.c.l.b16 %v3813
    %v4486 = vunpack.c.h.b16 %v3813
    %v4487 = vunpack.c.l.b16 %v3814
    %v4488 = vunpack.c.h.b16 %v3814
    %v4489 = vunpack.c.l.b16 %v3815
    %v4490 = vunpack.c.h.b16 %v3815
    %v4491 = vunpack.c.l.b16 %v3816
    %v4492 = vunpack.c.l.b16 %v3817
    %v4493 = vunpack.c.h.b16 %v3817
    %v4494 = vunpack.c.l.b16 %v3818
    %v4495 = vunpack.c.h.b16 %v3818
    %v4496 = vunpack.c.l.b16 %v3819
    %v4497 = vunpack.c.h.b16 %v3819
    %v4498 = vunpack.c.l.b16 %v3820
    %v4499 = vunpack.c.l.b16 %v3821
    %v4500 = vunpack.c.h.b16 %v3821
    %v4501 = vunpack.c.l.b16 %v3822
    %v4502 = vunpack.c.h.b16 %v3822
    %v4503 = vunpack.c.l.b16 %v3823
    %v4504 = vunpack.c.h.b16 %v3823
    %v4505 = vunpack.c.l.b16 %v3824
    %v4506 = vunpack.c.l.b16 %v3825
    %v4507 = vunpack.c.h.b16 %v3825
    %v4508 = vunpack.c.l.b16 %v3826
    %v4509 = vunpack.c.h.b16 %v3826
    %v4510 = vunpack.c.l.b16 %v3827
    %v4511 = vunpack.c.h.b16 %v3827
    %v4512 = vunpack.c.l.b16 %v3828
    %v4513 = vunpack.c.l.b16 %v3829
    %v4514 = vunpack.c.h.b16 %v3829
    %v4515 = vunpack.c.l.b16 %v3830
    %v4516 = vunpack.c.h.b16 %v3830
    %v4517 = vunpack.c.l.b16 %v3831
    %v4518 = vunpack.c.h.b16 %v3831
    %v4519 = vunpack.c.l.b16 %v3832
    %v4520 = vunpack.c.l.b16 %v3833
    %v4521 = vunpack.c.h.b16 %v3833
    %v4522 = vunpack.c.l.b16 %v3834
    %v4523 = vunpack.c.h.b16 %v3834
    %v4524 = vunpack.c.l.b16 %v3835
    %v4525 = vunpack.c.h.b16 %v3835
    %v4526 = vunpack.c.l.b16 %v3836
    %v4527 = vunpack.c.l.b16 %v3837
    %v4528 = vunpack.c.h.b16 %v3837
    %v4529 = vunpack.c.l.b16 %v3838
    %v4530 = vunpack.c.h.b16 %v3838
    %v4531 = vunpack.c.l.b16 %v3839
    %v4532 = vunpack.c.h.b16 %v3839
    %v4533 = vunpack.c.l.b16 %v3840
    %v4534 = vunpack.c.l.b16 %v3841
    %v4535 = vunpack.c.h.b16 %v3841
    %v4536 = vunpack.c.l.b16 %v3842
    %v4537 = vunpack.c.h.b16 %v3842
    %v4538 = vunpack.c.l.b16 %v3843
    %v4539 = vunpack.c.h.b16 %v3843
    %v4540 = vunpack.c.l.b16 %v3844
    %v4541 = vunpack.c.l.b16 %v3845
    %v4542 = vunpack.c.h.b16 %v3845
    %v4543 = vunpack.c.l.b16 %v3846
    %v4544 = vunpack.c.h.b16 %v3846
    %v4545 = vunpack.c.l.b16 %v3847
    %v4546 = vunpack.c.h.b16 %v3847
    %v4547 = vunpack.c.l.b16 %v3848
    %v4548 = vunpack.c.l.b16 %v3849
    %v4549 = vunpack.c.h.b16 %v3849
    %v4550 = vunpack.c.l.b16 %v3850
    %v4551 = vunpack.c.h.b16 %v3850
    %v4552 = vunpack.c.l.b16 %v3851
    %v4553 = vunpack.c.h.b16 %v3851
    %v4554 = vunpack.c.l.b16 %v3852
    %v4555 = vunpack.c.l.b16 %v3853
    %v4556 = vunpack.c.h.b16 %v3853
    %v4557 = vunpack.c.l.b16 %v3854
    %v4558 = vunpack.c.h.b16 %v3854
    %v4559 = vunpack.c.l.b16 %v3855
    %v4560 = vunpack.c.h.b16 %v3855
    %v4561 = vunpack.c.l.b16 %v3856
    %v4562 = vunpack.c.l.b16 %v3857
    %v4563 = vunpack.c.h.b16 %v3857
    %v4564 = vunpack.c.l.b16 %v3858
    %v4565 = vunpack.c.h.b16 %v3858
    %v4566 = vunpack.c.l.b16 %v3859
    %v4567 = vunpack.c.h.b16 %v3859
    %v4568 = vunpack.c.l.b16 %v3860
    %v4569 = vunpack.c.l.b16 %v3861
    %v4570 = vunpack.c.h.b16 %v3861
    %v4571 = vunpack.c.l.b16 %v3862
    %v4572 = vunpack.c.h.b16 %v3862
    %v4573 = vunpack.c.l.b16 %v3863
    %v4574 = vunpack.c.h.b16 %v3863
    %v4575 = vunpack.c.l.b16 %v3864
    %v4576 = vunpack.c.l.b16 %v3865
    %v4577 = vunpack.c.h.b16 %v3865
    %v4578 = vunpack.c.l.b16 %v3866
    %v4579 = vunpack.c.h.b16 %v3866
    %v4580 = vunpack.c.l.b16 %v3867
    %v4581 = vunpack.c.h.b16 %v3867
    %v4582 = vunpack.c.l.b16 %v3868
    %v4583 = vunpack.c.l.b16 %v3869
    %v4584 = vunpack.c.h.b16 %v3869
    %v4585 = vunpack.c.l.b16 %v3870
    %v4586 = vunpack.c.h.b16 %v3870
    %v4587 = vunpack.c.l.b16 %v3871
    %v4588 = vunpack.c.h.b16 %v3871
    %v4589 = vunpack.c.l.b16 %v3872
    %v4590 = vunpack.c.l.b16 %v3873
    %v4591 = vunpack.c.h.b16 %v3873
    %v4592 = vunpack.c.l.b16 %v3874
    %v4593 = vunpack.c.h.b16 %v3874
    %v4594 = vunpack.c.l.b16 %v3875
    %v4595 = vunpack.c.h.b16 %v3875
    %v4596 = vunpack.c.l.b16 %v3876
    %v4597 = vunpack.c.l.b16 %v3877
    %v4598 = vunpack.c.h.b16 %v3877
    %v4599 = vunpack.c.l.b16 %v3878
    %v4600 = vunpack.c.h.b16 %v3878
    %v4601 = vunpack.c.l.b16 %v3879
    %v4602 = vunpack.c.h.b16 %v3879
    %v4603 = vunpack.c.l.b16 %v3880
    %v4604 = vunpack.c.l.b16 %v3881
    %v4605 = vunpack.c.h.b16 %v3881
    %v4606 = vunpack.c.l.b16 %v3882
    %v4607 = vunpack.c.h.b16 %v3882
    %v4608 = vunpack.c.l.b16 %v3883
    %v4609 = vunpack.c.h.b16 %v3883
    %v4610 = vunpack.c.l.b16 %v3884
    %v4611 = vunpack.c.l.b16 %v3885
    %v4612 = vunpack.c.h.b16 %v3885
    %v4613 = vunpack.c.l.b16 %v3886
    %v4614 = vunpack.c.h.b16 %v3886
    %v4615 = vunpack.c.l.b16 %v3887
    %v4616 = vunpack.c.h.b16 %v3887
    %v4617 = vunpack.c.l.b16 %v3888
    %v4618 = vunpack.c.l.b16 %v3889
    %v4619 = vunpack.c.h.b16 %v3889
    %v4620 = vunpack.c.l.b16 %v3890
    %v4621 = vunpack.c.h.b16 %v3890
    %v4622 = vunpack.c.l.b16 %v3891
    %v4623 = vunpack.c.h.b16 %v3891
    %v4624 = vunpack.c.l.b16 %v3892
    %v4625 = vunpack.c.l.b16 %v3893
    %v4626 = vunpack.c.h.b16 %v3893
    %v4627 = vunpack.c.l.b16 %v3894
    %v4628 = vunpack.c.h.b16 %v3894
    %v4629 = vunpack.c.l.b16 %v3895
    %v4630 = vunpack.c.h.b16 %v3895
    %v4631 = vunpack.c.l.b16 %v3896
    %v4632 = vunpack.c.l.b16 %v3897
    %v4633 = vunpack.c.h.b16 %v3897
    %v4634 = vunpack.c.l.b16 %v3898
    %v4635 = vunpack.c.h.b16 %v3898
    %v4636 = vunpack.c.l.b16 %v3899
    %v4637 = vunpack.c.h.b16 %v3899
    %v4638 = vunpack.c.l.b16 %v3900
    %v4639 = vunpack.c.l.b16 %v3901
    %v4640 = vunpack.c.h.b16 %v3901
    %v4641 = vunpack.c.l.b16 %v3902
    %v4642 = vunpack.c.h.b16 %v3902
    %v4643 = vunpack.c.l.b16 %v3903
    %v4644 = vunpack.c.h.b16 %v3903
    %v4645 = vunpack.c.l.b16 %v3904
    %v4646 = vpack.c.b16 %v4205, %v4198
    %v4647 = vpack.c.b16 %v4206, %v4199
    %v4648 = vpack.c.b16 %v4207, %v4200
    %v4649 = vpack.c.b16 %v4208, %v4201
    %v4650 = vpack.c.b16 %v4209, %v4202
    %v4651 = vpack.c.b16 %v4210, %v4203
    %v4652 = vpack.c.b16 %v4211, %v4204
    %v4653 = vpack.c.b16 %v4219, %v4212
    %v4654 = vpack.c.b16 %v4220, %v4213
    %v4655 = vpack.c.b16 %v4221, %v4214
    %v4656 = vpack.c.b16 %v4222, %v4215
    %v4657 = vpack.c.b16 %v4223, %v4216
    %v4658 = vpack.c.b16 %v4224, %v4217
    %v4659 = vpack.c.b16 %v4225, %v4218
    %v4660 = vpack.c.b16 %v4233, %v4226
    %v4661 = vpack.c.b16 %v4234, %v4227
    %v4662 = vpack.c.b16 %v4235, %v4228
    %v4663 = vpack.c.b16 %v4236, %v4229
    %v4664 = vpack.c.b16 %v4237, %v4230
    %v4665 = vpack.c.b16 %v4238, %v4231
    %v4666 = vpack.c.b16 %v4239, %v4232
    %v4667 = vpack.c.b16 %v4247, %v4240
    %v4668 = vpack.c.b16 %v4248, %v4241
    %v4669 = vpack.c.b16 %v4249, %v4242
    %v4670 = vpack.c.b16 %v4250, %v4243
    %v4671 = vpack.c.b16 %v4251, %v4244
    %v4672 = vpack.c.b16 %v4252, %v4245
    %v4673 = vpack.c.b16 %v4253, %v4246
    %v4674 = vpack.c.b16 %v4261, %v4254
    %v4675 = vpack.c.b16 %v4262, %v4255
    %v4676 = vpack.c.b16 %v4263, %v4256
    %v4677 = vpack.c.b16 %v4264, %v4257
    %v4678 = vpack.c.b16 %v4265, %v4258
    %v4679 = vpack.c.b16 %v4266, %v4259
    %v4680 = vpack.c.b16 %v4267, %v4260
    %v4681 = vpack.c.b16 %v4275, %v4268
    %v4682 = vpack.c.b16 %v4276, %v4269
    %v4683 = vpack.c.b16 %v4277, %v4270
    %v4684 = vpack.c.b16 %v4278, %v4271
    %v4685 = vpack.c.b16 %v4279, %v4272
    %v4686 = vpack.c.b16 %v4280, %v4273
    %v4687 = vpack.c.b16 %v4281, %v4274
    %v4688 = vpack.c.b16 %v4289, %v4282
    %v4689 = vpack.c.b16 %v4290, %v4283
    %v4690 = vpack.c.b16 %v4291, %v4284
    %v4691 = vpack.c.b16 %v4292, %v4285
    %v4692 = vpack.c.b16 %v4293, %v4286
    %v4693 = vpack.c.b16 %v4294, %v4287
    %v4694 = vpack.c.b16 %v4295, %v4288
    %v4695 = vpack.c.b16 %v4303, %v4296
    %v4696 = vpack.c.b16 %v4304, %v4297
    %v4697 = vpack.c.b16 %v4305, %v4298
    %v4698 = vpack.c.b16 %v4306, %v4299
    %v4699 = vpack.c.b16 %v4307, %v4300
    %v4700 = vpack.c.b16 %v4308, %v4301
    %v4701 = vpack.c.b16 %v4309, %v4302
    %v4702 = vpack.c.b16 %v4317, %v4310
    %v4703 = vpack.c.b16 %v4318, %v4311
    %v4704 = vpack.c.b16 %v4319, %v4312
    %v4705 = vpack.c.b16 %v4320, %v4313
    %v4706 = vpack.c.b16 %v4321, %v4314
    %v4707 = vpack.c.b16 %v4322, %v4315
    %v4708 = vpack.c.b16 %v4323, %v4316
    %v4709 = vpack.c.b16 %v4331, %v4324
    %v4710 = vpack.c.b16 %v4332, %v4325
    %v4711 = vpack.c.b16 %v4333, %v4326
    %v4712 = vpack.c.b16 %v4334, %v4327
    %v4713 = vpack.c.b16 %v4335, %v4328
    %v4714 = vpack.c.b16 %v4336, %v4329
    %v4715 = vpack.c.b16 %v4337, %v4330
    %v4716 = vpack.c.b16 %v4345, %v4338
    %v4717 = vpack.c.b16 %v4346, %v4339
    %v4718 = vpack.c.b16 %v4347, %v4340
    %v4719 = vpack.c.b16 %v4348, %v4341
    %v4720 = vpack.c.b16 %v4349, %v4342
    %v4721 = vpack.c.b16 %v4350, %v4343
    %v4722 = vpack.c.b16 %v4351, %v4344
    %v4723 = vpack.c.b16 %v4359, %v4352
    %v4724 = vpack.c.b16 %v4360, %v4353
    %v4725 = vpack.c.b16 %v4361, %v4354
    %v4726 = vpack.c.b16 %v4362, %v4355
    %v4727 = vpack.c.b16 %v4363, %v4356
    %v4728 = vpack.c.b16 %v4364, %v4357
    %v4729 = vpack.c.b16 %v4365, %v4358
    %v4730 = vpack.c.b16 %v4373, %v4366
    %v4731 = vpack.c.b16 %v4374, %v4367
    %v4732 = vpack.c.b16 %v4375, %v4368
    %v4733 = vpack.c.b16 %v4376, %v4369
    %v4734 = vpack.c.b16 %v4377, %v4370
    %v4735 = vpack.c.b16 %v4378, %v4371
    %v4736 = vpack.c.b16 %v4379, %v4372
    %v4737 = vpack.c.b16 %v4387, %v4380
    %v4738 = vpack.c.b16 %v4388, %v4381
    %v4739 = vpack.c.b16 %v4389, %v4382
    %v4740 = vpack.c.b16 %v4390, %v4383
    %v4741 = vpack.c.b16 %v4391, %v4384
    %v4742 = vpack.c.b16 %v4392, %v4385
    %v4743 = vpack.c.b16 %v4393, %v4386
    %v4744 = vpack.c.b16 %v4401, %v4394
    %v4745 = vpack.c.b16 %v4402, %v4395
    %v4746 = vpack.c.b16 %v4403, %v4396
    %v4747 = vpack.c.b16 %v4404, %v4397
    %v4748 = vpack.c.b16 %v4405, %v4398
    %v4749 = vpack.c.b16 %v4406, %v4399
    %v4750 = vpack.c.b16 %v4407, %v4400
    %v4751 = vpack.c.b16 %v4415, %v4408
    %v4752 = vpack.c.b16 %v4416, %v4409
    %v4753 = vpack.c.b16 %v4417, %v4410
    %v4754 = vpack.c.b16 %v4418, %v4411
    %v4755 = vpack.c.b16 %v4419, %v4412
    %v4756 = vpack.c.b16 %v4420, %v4413
    %v4757 = vpack.c.b16 %v4421, %v4414
    %v4758 = vpack.c.b16 %v4429, %v4422
    %v4759 = vpack.c.b16 %v4430, %v4423
    %v4760 = vpack.c.b16 %v4431, %v4424
    %v4761 = vpack.c.b16 %v4432, %v4425
    %v4762 = vpack.c.b16 %v4433, %v4426
    %v4763 = vpack.c.b16 %v4434, %v4427
    %v4764 = vpack.c.b16 %v4435, %v4428
    %v4765 = vpack.c.b16 %v4443, %v4436
    %v4766 = vpack.c.b16 %v4444, %v4437
    %v4767 = vpack.c.b16 %v4445, %v4438
    %v4768 = vpack.c.b16 %v4446, %v4439
    %v4769 = vpack.c.b16 %v4447, %v4440
    %v4770 = vpack.c.b16 %v4448, %v4441
    %v4771 = vpack.c.b16 %v4449, %v4442
    %v4772 = vpack.c.b16 %v4457, %v4450
    %v4773 = vpack.c.b16 %v4458, %v4451
    %v4774 = vpack.c.b16 %v4459, %v4452
    %v4775 = vpack.c.b16 %v4460, %v4453
    %v4776 = vpack.c.b16 %v4461, %v4454
    %v4777 = vpack.c.b16 %v4462, %v4455
    %v4778 = vpack.c.b16 %v4463, %v4456
    %v4779 = vpack.c.b16 %v4471, %v4464
    %v4780 = vpack.c.b16 %v4472, %v4465
    %v4781 = vpack.c.b16 %v4473, %v4466
    %v4782 = vpack.c.b16 %v4474, %v4467
    %v4783 = vpack.c.b16 %v4475, %v4468
    %v4784 = vpack.c.b16 %v4476, %v4469
    %v4785 = vpack.c.b16 %v4477, %v4470
    %v4786 = vpack.c.b16 %v4485, %v4478
    %v4787 = vpack.c.b16 %v4486, %v4479
    %v4788 = vpack.c.b16 %v4487, %v4480
    %v4789 = vpack.c.b16 %v4488, %v4481
    %v4790 = vpack.c.b16 %v4489, %v4482
    %v4791 = vpack.c.b16 %v4490, %v4483
    %v4792 = vpack.c.b16 %v4491, %v4484
    %v4793 = vpack.c.b16 %v4499, %v4492
    %v4794 = vpack.c.b16 %v4500, %v4493
    %v4795 = vpack.c.b16 %v4501, %v4494
    %v4796 = vpack.c.b16 %v4502, %v4495
    %v4797 = vpack.c.b16 %v4503, %v4496
    %v4798 = vpack.c.b16 %v4504, %v4497
    %v4799 = vpack.c.b16 %v4505, %v4498
    %v4800 = vpack.c.b16 %v4513, %v4506
    %v4801 = vpack.c.b16 %v4514, %v4507
    %v4802 = vpack.c.b16 %v4515, %v4508
    %v4803 = vpack.c.b16 %v4516, %v4509
    %v4804 = vpack.c.b16 %v4517, %v4510
    %v4805 = vpack.c.b16 %v4518, %v4511
    %v4806 = vpack.c.b16 %v4519, %v4512
    %v4807 = vpack.c.b16 %v4527, %v4520
    %v4808 = vpack.c.b16 %v4528, %v4521
    %v4809 = vpack.c.b16 %v4529, %v4522
    %v4810 = vpack.c.b16 %v4530, %v4523
    %v4811 = vpack.c.b16 %v4531, %v4524
    %v4812 = vpack.c.b16 %v4532, %v4525
    %v4813 = vpack.c.b16 %v4533, %v4526
    %v4814 = vpack.c.b16 %v4541, %v4534
    %v4815 = vpack.c.b16 %v4542, %v4535
    %v4816 = vpack.c.b16 %v4543, %v4536
    %v4817 = vpack.c.b16 %v4544, %v4537
    %v4818 = vpack.c.b16 %v4545, %v4538
    %v4819 = vpack.c.b16 %v4546, %v4539
    %v4820 = vpack.c.b16 %v4547, %v4540
    %v4821 = vpack.c.b16 %v4555, %v4548
    %v4822 = vpack.c.b16 %v4556, %v4549
    %v4823 = vpack.c.b16 %v4557, %v4550
    %v4824 = vpack.c.b16 %v4558, %v4551
    %v4825 = vpack.c.b16 %v4559, %v4552
    %v4826 = vpack.c.b16 %v4560, %v4553
    %v4827 = vpack.c.b16 %v4561, %v4554
    %v4828 = vpack.c.b16 %v4569, %v4562
    %v4829 = vpack.c.b16 %v4570, %v4563
    %v4830 = vpack.c.b16 %v4571, %v4564
    %v4831 = vpack.c.b16 %v4572, %v4565
    %v4832 = vpack.c.b16 %v4573, %v4566
    %v4833 = vpack.c.b16 %v4574, %v4567
    %v4834 = vpack.c.b16 %v4575, %v4568
    %v4835 = vpack.c.b16 %v4583, %v4576
    %v4836 = vpack.c.b16 %v4584, %v4577
    %v4837 = vpack.c.b16 %v4585, %v4578
    %v4838 = vpack.c.b16 %v4586, %v4579
    %v4839 = vpack.c.b16 %v4587, %v4580
    %v4840 = vpack.c.b16 %v4588, %v4581
    %v4841 = vpack.c.b16 %v4589, %v4582
    %v4842 = vpack.c.b16 %v4597, %v4590
    %v4843 = vpack.c.b16 %v4598, %v4591
    %v4844 = vpack.c.b16 %v4599, %v4592
    %v4845 = vpack.c.b16 %v4600, %v4593
    %v4846 = vpack.c.b16 %v4601, %v4594
    %v4847 = vpack.c.b16 %v4602, %v4595
    %v4848 = vpack.c.b16 %v4603, %v4596
    %v4849 = vpack.c.b16 %v4611, %v4604
    %v4850 = vpack.c.b16 %v4612, %v4605
    %v4851 = vpack.c.b16 %v4613, %v4606
    %v4852 = vpack.c.b16 %v4614, %v4607
    %v4853 = vpack.c.b16 %v4615, %v4608
    %v4854 = vpack.c.b16 %v4616, %v4609
    %v4855 = vpack.c.b16 %v4617, %v4610
    %v4856 = vpack.c.b16 %v4625, %v4618
    %v4857 = vpack.c.b16 %v4626, %v4619
    %v4858 = vpack.c.b16 %v4627, %v4620
    %v4859 = vpack.c.b16 %v4628, %v4621
    %v4860 = vpack.c.b16 %v4629, %v4622
    %v4861 = vpack.c.b16 %v4630, %v4623
    %v4862 = vpack.c.b16 %v4631, %v4624
    %v4863 = vpack.c.b16 %v4639, %v4632
    %v4864 = vpack.c.b16 %v4640, %v4633
    %v4865 = vpack.c.b16 %v4641, %v4634
    %v4866 = vpack.c.b16 %v4642, %v4635
    %v4867 = vpack.c.b16 %v4643, %v4636
    %v4868 = vpack.c.b16 %v4644, %v4637
    %v4869 = vpack.c.b16 %v4645, %v4638
    %5094 = vmatprep.subr.bf16.mxu0 %v4647
    %5095 = vmatpush1.bf16.msra.mxu0 %v4646
    %5096 = vmatprep.subr.bf16.mxu0 %v4654
    %5097 = vmatpush1.bf16.msra.mxu0 %v4653
    %5098 = vmatprep.subr.bf16.mxu0 %v4661
    %5099 = vmatpush1.bf16.msra.mxu0 %v4660
    %5100 = vmatprep.subr.bf16.mxu0 %v4668
    %5101 = vmatpush1.bf16.msra.mxu0 %v4667
    %5102 = vmatprep.subr.bf16.mxu0 %v4675
    %5103 = vmatpush1.bf16.msra.mxu0 %v4674
    %5104 = vmatprep.subr.bf16.mxu0 %v4682
    %5105 = vmatpush1.bf16.msra.mxu0 %v4681
    %5106 = vmatprep.subr.bf16.mxu0 %v4689
    %5107 = vmatpush1.bf16.msra.mxu0 %v4688
    %5108 = vmatprep.subr.bf16.mxu0 %v4696
    %5109 = vmatpush1.bf16.msra.mxu0 %v4695
    %5110 = vmatprep.subr.bf16.mxu0 %v4703
    %5111 = vmatpush1.bf16.msra.mxu0 %v4702
    %5112 = vmatprep.subr.bf16.mxu0 %v4710
    %5113 = vmatpush1.bf16.msra.mxu0 %v4709
    %5114 = vmatprep.subr.bf16.mxu0 %v4717
    %5115 = vmatpush1.bf16.msra.mxu0 %v4716
    %5116 = vmatprep.subr.bf16.mxu0 %v4724
    %5117 = vmatpush1.bf16.msra.mxu0 %v4723
    %5118 = vmatprep.subr.bf16.mxu0 %v4731
    %5119 = vmatpush1.bf16.msra.mxu0 %v4730
    %5120 = vmatprep.subr.bf16.mxu0 %v4738
    %5121 = vmatpush1.bf16.msra.mxu0 %v4737
    %5122 = vmatprep.subr.bf16.mxu0 %v4745
    %5123 = vmatpush1.bf16.msra.mxu0 %v4744
    %5124 = vmatprep.subr.bf16.mxu0 %v4752
    %5125 = vmatpush1.bf16.msra.mxu0 %v4751
    %5126 = vmatprep.mubr.bf16.mxu0 %v3646
    %5127 = vmatmul.mubr.bf16.gmra.mrb[0].mxu0 %v3645
    %v5128 = vpop.f32.mrb[0].mxu0
    %v5129 = vadd.f32 %v3910, %v5128
    %v5130 = vpop.f32.mrb[0].mxu0
    %v5131 = vadd.f32 %v3914, %v5130
    %v5132 = vpop.f32.mrb[0].mxu0
    %v5133 = vadd.f32 %v3910, %v5132
    %v5134 = vpop.f32.mrb[0].mxu0
    %v5135 = vadd.f32 %v3914, %v5134
    %5136 = vdwg.mxu0
    %5137 = vmatprep.subr.bf16.mxu0 %v4759
    %5138 = vmatpush1.bf16.msra.mxu0 %v4758
    %5139 = vmatprep.subr.bf16.mxu0 %v4766
    %5140 = vmatpush1.bf16.msra.mxu0 %v4765
    %5141 = vmatprep.subr.bf16.mxu0 %v4773
    %5142 = vmatpush1.bf16.msra.mxu0 %v4772
    %5143 = vmatprep.subr.bf16.mxu0 %v4780
    %5144 = vmatpush1.bf16.msra.mxu0 %v4779
    %5145 = vmatprep.subr.bf16.mxu0 %v4787
    %5146 = vmatpush1.bf16.msra.mxu0 %v4786
    %5147 = vmatprep.subr.bf16.mxu0 %v4794
    %5148 = vmatpush1.bf16.msra.mxu0 %v4793
    %5149 = vmatprep.subr.bf16.mxu0 %v4801
    %5150 = vmatpush1.bf16.msra.mxu0 %v4800
    %5151 = vmatprep.subr.bf16.mxu0 %v4808
    %5152 = vmatpush1.bf16.msra.mxu0 %v4807
    %5153 = vmatprep.subr.bf16.mxu0 %v4815
    %5154 = vmatpush1.bf16.msra.mxu0 %v4814
    %5155 = vmatprep.subr.bf16.mxu0 %v4822
    %5156 = vmatpush1.bf16.msra.mxu0 %v4821
    %5157 = vmatprep.subr.bf16.mxu0 %v4829
    %5158 = vmatpush1.bf16.msra.mxu0 %v4828
    %5159 = vmatprep.subr.bf16.mxu0 %v4836
    %5160 = vmatpush1.bf16.msra.mxu0 %v4835
    %5161 = vmatprep.subr.bf16.mxu0 %v4843
    %5162 = vmatpush1.bf16.msra.mxu0 %v4842
    %5163 = vmatprep.subr.bf16.mxu0 %v4850
    %5164 = vmatpush1.bf16.msra.mxu0 %v4849
    %5165 = vmatprep.subr.bf16.mxu0 %v4857
    %5166 = vmatpush1.bf16.msra.mxu0 %v4856
    %5167 = vmatprep.subr.bf16.mxu0 %v4864
    %5168 = vmatpush1.bf16.msra.mxu0 %v4863
    %5169 = vmatprep.mubr.bf16.mxu0 %v3648
    %5170 = vmatmul.mubr.bf16.gmra.mrb[0].mxu0 %v3647
    %v5171 = vpop.f32.mrb[0].mxu0
    %v5172 = vadd.f32 %v5129, %v5171
    %v5173 = vpop.f32.mrb[0].mxu0
    %v5174 = vadd.f32 %v5131, %v5173
    %v5175 = vpop.f32.mrb[0].mxu0
    %v5176 = vadd.f32 %v5133, %v5175
    %v5177 = vpop.f32.mrb[0].mxu0
    %v5178 = vadd.f32 %v5135, %v5177
    %5179 = vdwg.mxu0
    %5180 = vmatprep.subr.bf16.mxu0 %v4649
    %5181 = vmatpush1.bf16.msra.mxu0 %v4648
    %5182 = vmatprep.subr.bf16.mxu0 %v4656
    %5183 = vmatpush1.bf16.msra.mxu0 %v4655
    %5184 = vmatprep.subr.bf16.mxu0 %v4663
    %5185 = vmatpush1.bf16.msra.mxu0 %v4662
    %5186 = vmatprep.subr.bf16.mxu0 %v4670
    %5187 = vmatpush1.bf16.msra.mxu0 %v4669
    %5188 = vmatprep.subr.bf16.mxu0 %v4677
    %5189 = vmatpush1.bf16.msra.mxu0 %v4676
    %5190 = vmatprep.subr.bf16.mxu0 %v4684
    %5191 = vmatpush1.bf16.msra.mxu0 %v4683
    %5192 = vmatprep.subr.bf16.mxu0 %v4691
    %5193 = vmatpush1.bf16.msra.mxu0 %v4690
    %5194 = vmatprep.subr.bf16.mxu0 %v4698
    %5195 = vmatpush1.bf16.msra.mxu0 %v4697
    %5196 = vmatprep.subr.bf16.mxu0 %v4705
    %5197 = vmatpush1.bf16.msra.mxu0 %v4704
    %5198 = vmatprep.subr.bf16.mxu0 %v4712
    %5199 = vmatpush1.bf16.msra.mxu0 %v4711
    %5200 = vmatprep.subr.bf16.mxu0 %v4719
    %5201 = vmatpush1.bf16.msra.mxu0 %v4718
    %5202 = vmatprep.subr.bf16.mxu0 %v4726
    %5203 = vmatpush1.bf16.msra.mxu0 %v4725
    %5204 = vmatprep.subr.bf16.mxu0 %v4733
    %5205 = vmatpush1.bf16.msra.mxu0 %v4732
    %5206 = vmatprep.subr.bf16.mxu0 %v4740
    %5207 = vmatpush1.bf16.msra.mxu0 %v4739
    %5208 = vmatprep.subr.bf16.mxu0 %v4747
    %5209 = vmatpush1.bf16.msra.mxu0 %v4746
    %5210 = vmatprep.subr.bf16.mxu0 %v4754
    %5211 = vmatpush1.bf16.msra.mxu0 %v4753
    %5212 = vmatprep.mubr.bf16.mxu0 %v3646
    %5213 = vmatmul.mubr.bf16.gmra.mrb[0].mxu0 %v3645
    %v5214 = vpop.f32.mrb[0].mxu0
    %v5215 = vadd.f32 %v3918, %v5214
    %v5216 = vpop.f32.mrb[0].mxu0
    %v5217 = vadd.f32 %v3922, %v5216
    %v5218 = vpop.f32.mrb[0].mxu0
    %v5219 = vadd.f32 %v3918, %v5218
    %v5220 = vpop.f32.mrb[0].mxu0
    %v5221 = vadd.f32 %v3922, %v5220
    %5222 = vdwg.mxu0
    %5223 = vmatprep.subr.bf16.mxu0 %v4761
    %5224 = vmatpush1.bf16.msra.mxu0 %v4760
    %5225 = vmatprep.subr.bf16.mxu0 %v4768
    %5226 = vmatpush1.bf16.msra.mxu0 %v4767
    %5227 = vmatprep.subr.bf16.mxu0 %v4775
    %5228 = vmatpush1.bf16.msra.mxu0 %v4774
    %5229 = vmatprep.subr.bf16.mxu0 %v4782
    %5230 = vmatpush1.bf16.msra.mxu0 %v4781
    %5231 = vmatprep.subr.bf16.mxu0 %v4789
    %5232 = vmatpush1.bf16.msra.mxu0 %v4788
    %5233 = vmatprep.subr.bf16.mxu0 %v4796
    %5234 = vmatpush1.bf16.msra.mxu0 %v4795
    %5235 = vmatprep.subr.bf16.mxu0 %v4803
    %5236 = vmatpush1.bf16.msra.mxu0 %v4802
    %5237 = vmatprep.subr.bf16.mxu0 %v4810
    %5238 = vmatpush1.bf16.msra.mxu0 %v4809
    %5239 = vmatprep.subr.bf16.mxu0 %v4817
    %5240 = vmatpush1.bf16.msra.mxu0 %v4816
    %5241 = vmatprep.subr.bf16.mxu0 %v4824
    %5242 = vmatpush1.bf16.msra.mxu0 %v4823
    %5243 = vmatprep.subr.bf16.mxu0 %v4831
    %5244 = vmatpush1.bf16.msra.mxu0 %v4830
    %5245 = vmatprep.subr.bf16.mxu0 %v4838
    %5246 = vmatpush1.bf16.msra.mxu0 %v4837
    %5247 = vmatprep.subr.bf16.mxu0 %v4845
    %5248 = vmatpush1.bf16.msra.mxu0 %v4844
    %5249 = vmatprep.subr.bf16.mxu0 %v4852
    %5250 = vmatpush1.bf16.msra.mxu0 %v4851
    %5251 = vmatprep.subr.bf16.mxu0 %v4859
    %5252 = vmatpush1.bf16.msra.mxu0 %v4858
    %5253 = vmatprep.subr.bf16.mxu0 %v4866
    %5254 = vmatpush1.bf16.msra.mxu0 %v4865
    %5255 = vmatprep.mubr.bf16.mxu0 %v3648
    %5256 = vmatmul.mubr.bf16.gmra.mrb[0].mxu0 %v3647
    %v5257 = vpop.f32.mrb[0].mxu0
    %v5258 = vadd.f32 %v5215, %v5257
    %v5259 = vpop.f32.mrb[0].mxu0
    %v5260 = vadd.f32 %v5217, %v5259
    %v5261 = vpop.f32.mrb[0].mxu0
    %v5262 = vadd.f32 %v5219, %v5261
    %v5263 = vpop.f32.mrb[0].mxu0
    %v5264 = vadd.f32 %v5221, %v5263
    %5265 = vdwg.mxu0
    %5266 = vmatprep.subr.bf16.mxu0 %v4651
    %5267 = vmatpush1.bf16.msra.mxu0 %v4650
    %5268 = vmatprep.subr.bf16.mxu0 %v4658
    %5269 = vmatpush1.bf16.msra.mxu0 %v4657
    %5270 = vmatprep.subr.bf16.mxu0 %v4665
    %5271 = vmatpush1.bf16.msra.mxu0 %v4664
    %5272 = vmatprep.subr.bf16.mxu0 %v4672
    %5273 = vmatpush1.bf16.msra.mxu0 %v4671
    %5274 = vmatprep.subr.bf16.mxu0 %v4679
    %5275 = vmatpush1.bf16.msra.mxu0 %v4678
    %5276 = vmatprep.subr.bf16.mxu0 %v4686
    %5277 = vmatpush1.bf16.msra.mxu0 %v4685
    %5278 = vmatprep.subr.bf16.mxu0 %v4693
    %5279 = vmatpush1.bf16.msra.mxu0 %v4692
    %5280 = vmatprep.subr.bf16.mxu0 %v4700
    %5281 = vmatpush1.bf16.msra.mxu0 %v4699
    %5282 = vmatprep.subr.bf16.mxu0 %v4707
    %5283 = vmatpush1.bf16.msra.mxu0 %v4706
    %5284 = vmatprep.subr.bf16.mxu0 %v4714
    %5285 = vmatpush1.bf16.msra.mxu0 %v4713
    %5286 = vmatprep.subr.bf16.mxu0 %v4721
    %5287 = vmatpush1.bf16.msra.mxu0 %v4720
    %5288 = vmatprep.subr.bf16.mxu0 %v4728
    %5289 = vmatpush1.bf16.msra.mxu0 %v4727
    %5290 = vmatprep.subr.bf16.mxu0 %v4735
    %5291 = vmatpush1.bf16.msra.mxu0 %v4734
    %5292 = vmatprep.subr.bf16.mxu0 %v4742
    %5293 = vmatpush1.bf16.msra.mxu0 %v4741
    %5294 = vmatprep.subr.bf16.mxu0 %v4749
    %5295 = vmatpush1.bf16.msra.mxu0 %v4748
    %5296 = vmatprep.subr.bf16.mxu0 %v4756
    %5297 = vmatpush1.bf16.msra.mxu0 %v4755
    %5298 = vmatprep.mubr.bf16.mxu0 %v3646
    %5299 = vmatmul.mubr.bf16.gmra.mrb[0].mxu0 %v3645
    %v5300 = vpop.f32.mrb[0].mxu0
    %v5301 = vadd.f32 %v3926, %v5300
    %v5302 = vpop.f32.mrb[0].mxu0
    %v5303 = vadd.f32 %v3930, %v5302
    %v5304 = vpop.f32.mrb[0].mxu0
    %v5305 = vadd.f32 %v3926, %v5304
    %v5306 = vpop.f32.mrb[0].mxu0
    %v5307 = vadd.f32 %v3930, %v5306
    %5308 = vdwg.mxu0
    %5309 = vmatprep.subr.bf16.mxu0 %v4763
    %5310 = vmatpush1.bf16.msra.mxu0 %v4762
    %5311 = vmatprep.subr.bf16.mxu0 %v4770
    %5312 = vmatpush1.bf16.msra.mxu0 %v4769
    %5313 = vmatprep.subr.bf16.mxu0 %v4777
    %5314 = vmatpush1.bf16.msra.mxu0 %v4776
    %5315 = vmatprep.subr.bf16.mxu0 %v4784
    %5316 = vmatpush1.bf16.msra.mxu0 %v4783
    %5317 = vmatprep.subr.bf16.mxu0 %v4791
    %5318 = vmatpush1.bf16.msra.mxu0 %v4790
    %5319 = vmatprep.subr.bf16.mxu0 %v4798
    %5320 = vmatpush1.bf16.msra.mxu0 %v4797
    %5321 = vmatprep.subr.bf16.mxu0 %v4805
    %5322 = vmatpush1.bf16.msra.mxu0 %v4804
    %5323 = vmatprep.subr.bf16.mxu0 %v4812
    %5324 = vmatpush1.bf16.msra.mxu0 %v4811
    %5325 = vmatprep.subr.bf16.mxu0 %v4819
    %5326 = vmatpush1.bf16.msra.mxu0 %v4818
    %5327 = vmatprep.subr.bf16.mxu0 %v4826
    %5328 = vmatpush1.bf16.msra.mxu0 %v4825
    %5329 = vmatprep.subr.bf16.mxu0 %v4833
    %5330 = vmatpush1.bf16.msra.mxu0 %v4832
    %5331 = vmatprep.subr.bf16.mxu0 %v4840
    %5332 = vmatpush1.bf16.msra.mxu0 %v4839
    %5333 = vmatprep.subr.bf16.mxu0 %v4847
    %5334 = vmatpush1.bf16.msra.mxu0 %v4846
    %5335 = vmatprep.subr.bf16.mxu0 %v4854
    %5336 = vmatpush1.bf16.msra.mxu0 %v4853
    %5337 = vmatprep.subr.bf16.mxu0 %v4861
    %5338 = vmatpush1.bf16.msra.mxu0 %v4860
    %5339 = vmatprep.subr.bf16.mxu0 %v4868
    %5340 = vmatpush1.bf16.msra.mxu0 %v4867
    %5341 = vmatprep.mubr.bf16.mxu0 %v3648
    %5342 = vmatmul.mubr.bf16.gmra.mrb[0].mxu0 %v3647
    %v5343 = vpop.f32.mrb[0].mxu0
    %v5344 = vadd.f32 %v5301, %v5343
    %v5345 = vpop.f32.mrb[0].mxu0
    %v5346 = vadd.f32 %v5303, %v5345
    %v5347 = vpop.f32.mrb[0].mxu0
    %v5348 = vadd.f32 %v5305, %v5347
    %v5349 = vpop.f32.mrb[0].mxu0
    %v5350 = vadd.f32 %v5307, %v5349
    %5351 = vdwg.mxu0
    %5352 = vmatprep.subr.bf16.mxu0 0
    %5353 = vmatpush1.bf16.msra.mxu0 %v4652
    %5354 = vmatprep.subr.bf16.mxu0 0
    %5355 = vmatpush1.bf16.msra.mxu0 %v4659
    %5356 = vmatprep.subr.bf16.mxu0 0
    %5357 = vmatpush1.bf16.msra.mxu0 %v4666
    %5358 = vmatprep.subr.bf16.mxu0 0
    %5359 = vmatpush1.bf16.msra.mxu0 %v4673
    %5360 = vmatprep.subr.bf16.mxu0 0
    %5361 = vmatpush1.bf16.msra.mxu0 %v4680
    %5362 = vmatprep.subr.bf16.mxu0 0
    %5363 = vmatpush1.bf16.msra.mxu0 %v4687
    %5364 = vmatprep.subr.bf16.mxu0 0
    %5365 = vmatpush1.bf16.msra.mxu0 %v4694
    %5366 = vmatprep.subr.bf16.mxu0 0
    %5367 = vmatpush1.bf16.msra.mxu0 %v4701
    %5368 = vmatprep.subr.bf16.mxu0 0
    %5369 = vmatpush1.bf16.msra.mxu0 %v4708
    %5370 = vmatprep.subr.bf16.mxu0 0
    %5371 = vmatpush1.bf16.msra.mxu0 %v4715
    %5372 = vmatprep.subr.bf16.mxu0 0
    %5373 = vmatpush1.bf16.msra.mxu0 %v4722
    %5374 = vmatprep.subr.bf16.mxu0 0
    %5375 = vmatpush1.bf16.msra.mxu0 %v4729
    %5376 = vmatprep.subr.bf16.mxu0 0
    %5377 = vmatpush1.bf16.msra.mxu0 %v4736
    %5378 = vmatprep.subr.bf16.mxu0 0
    %5379 = vmatpush1.bf16.msra.mxu0 %v4743
    %5380 = vmatprep.subr.bf16.mxu0 0
    %5381 = vmatpush1.bf16.msra.mxu0 %v4750
    %5382 = vmatprep.subr.bf16.mxu0 0
    %5383 = vmatpush1.bf16.msra.mxu0 %v4757
    %5384 = vmatprep.mubr.bf16.mxu0 %v3646
    %5385 = vmatmul.mubr.bf16.gmra.mrb[0].mxu0 %v3645
    %v5386 = vpop.f32.mrb[0].mxu0
    %v5387 = vadd.f32 %v3934, %v5386
    %v5388 = vpop.f32.mrb[0].mxu0
    %v5389 = vpop.f32.mrb[0].mxu0
    %v5390 = vadd.f32 %v3934, %v5389
    %v5391 = vpop.f32.mrb[0].mxu0
    %5392 = vdwg.mxu0
    %5393 = vmatprep.subr.bf16.mxu0 0
    %5394 = vmatpush1.bf16.msra.mxu0 %v4764
    %5395 = vmatprep.subr.bf16.mxu0 0
    %5396 = vmatpush1.bf16.msra.mxu0 %v4771
    %5397 = vmatprep.subr.bf16.mxu0 0
    %5398 = vmatpush1.bf16.msra.mxu0 %v4778
    %5399 = vmatprep.subr.bf16.mxu0 0
    %5400 = vmatpush1.bf16.msra.mxu0 %v4785
    %5401 = vmatprep.subr.bf16.mxu0 0
    %5402 = vmatpush1.bf16.msra.mxu0 %v4792
    %5403 = vmatprep.subr.bf16.mxu0 0
    %5404 = vmatpush1.bf16.msra.mxu0 %v4799
    %5405 = vmatprep.subr.bf16.mxu0 0
    %5406 = vmatpush1.bf16.msra.mxu0 %v4806
    %5407 = vmatprep.subr.bf16.mxu0 0
    %5408 = vmatpush1.bf16.msra.mxu0 %v4813
    %5409 = vmatprep.subr.bf16.mxu0 0
    %5410 = vmatpush1.bf16.msra.mxu0 %v4820
    %5411 = vmatprep.subr.bf16.mxu0 0
    %5412 = vmatpush1.bf16.msra.mxu0 %v4827
    %5413 = vmatprep.subr.bf16.mxu0 0
    %5414 = vmatpush1.bf16.msra.mxu0 %v4834
    %5415 = vmatprep.subr.bf16.mxu0 0
    %5416 = vmatpush1.bf16.msra.mxu0 %v4841
    %5417 = vmatprep.subr.bf16.mxu0 0
    %5418 = vmatpush1.bf16.msra.mxu0 %v4848
    %5419 = vmatprep.subr.bf16.mxu0 0
    %5420 = vmatpush1.bf16.msra.mxu0 %v4855
    %5421 = vmatprep.subr.bf16.mxu0 0
    %5422 = vmatpush1.bf16.msra.mxu0 %v4862
    %5423 = vmatprep.subr.bf16.mxu0 0
    %5424 = vmatpush1.bf16.msra.mxu0 %v4869
    %5425 = vmatprep.mubr.bf16.mxu0 %v3648
    %5426 = vmatmul.mubr.bf16.gmra.mrb[0].mxu0 %v3647
    %v5427 = vpop.f32.mrb[0].mxu0
    %v5428 = vadd.f32 %v5387, %v5427
    %v5429 = vpop.f32.mrb[0].mxu0
    %v5430 = vpop.f32.mrb[0].mxu0
    %v5431 = vadd.f32 %v5390, %v5430
    %v5432 = vpop.f32.mrb[0].mxu0
    %5433 = vdwg.mxu0
    %v5434 = vxor.u32 %v5172, 2147483648
    %v5435 = vxor.u32 %v5174, 2147483648
    %v5436 = vxor.u32 %v5258, 2147483648
    %v5437 = vxor.u32 %v5260, 2147483648
    %v5438 = vxor.u32 %v5344, 2147483648
    %v5439 = vxor.u32 %v5346, 2147483648
    %v5440 = vxor.u32 %v5428, 2147483648
    %v5441 = vxor.u32 %v5176, 2147483648
    %v5442 = vxor.u32 %v5178, 2147483648
    %v5443 = vxor.u32 %v5262, 2147483648
    %v5444 = vxor.u32 %v5264, 2147483648
    %v5445 = vxor.u32 %v5348, 2147483648
    %v5446 = vxor.u32 %v5350, 2147483648
    %v5447 = vxor.u32 %v5431, 2147483648
    %v5448 = vmul.f32 %v5434, 1.442695
    %v5449 = vpow.pop %v5448
    %v5450 = vmul.f32 %v5435, 1.442695
    %v5451 = vpow.pop %v5450
    %v5452 = vmul.f32 %v5436, 1.442695
    %v5453 = vpow.pop %v5452
    %v5454 = vmul.f32 %v5437, 1.442695
    %v5455 = vpow.pop %v5454
    %v5456 = vmul.f32 %v5438, 1.442695
    %v5457 = vpow.pop %v5456
    %v5458 = vmul.f32 %v5439, 1.442695
    %v5459 = vpow.pop %v5458
    %v5460 = vmul.f32 %v5440, 1.442695
    %v5461 = vpow.pop %v5460
    %v5462 = vmul.f32 %v5441, 1.442695
    %v5463 = vpow.pop %v5462
    %v5464 = vmul.f32 %v5442, 1.442695
    %v5465 = vpow.pop %v5464
    %v5466 = vmul.f32 %v5443, 1.442695
    %v5467 = vpow.pop %v5466
    %v5468 = vmul.f32 %v5444, 1.442695
    %v5469 = vpow.pop %v5468
    %v5470 = vmul.f32 %v5445, 1.442695
    %v5471 = vpow.pop %v5470
    %v5472 = vmul.f32 %v5446, 1.442695
    %v5473 = vpow.pop %v5472
    %v5474 = vmul.f32 %v5447, 1.442695
    %v5475 = vpow.pop %v5474
    %v5476 = vadd.f32 %v5449, 1.0
    %v5477 = vadd.f32 %v5451, 1.0
    %v5478 = vadd.f32 %v5453, 1.0
    %v5479 = vadd.f32 %v5455, 1.0
    %v5480 = vadd.f32 %v5457, 1.0
    %v5481 = vadd.f32 %v5459, 1.0
    %v5482 = vadd.f32 %v5461, 1.0
    %v5483 = vadd.f32 %v5463, 1.0
    %v5484 = vadd.f32 %v5465, 1.0
    %v5485 = vadd.f32 %v5467, 1.0
    %v5486 = vadd.f32 %v5469, 1.0
    %v5487 = vadd.f32 %v5471, 1.0
    %v5488 = vadd.f32 %v5473, 1.0
    %v5489 = vadd.f32 %v5475, 1.0
    %v5490 = vrcp.pop %v5476
    %v5491 = vmul.f32 1.0, %v5490
    %v5492 = vrcp.pop %v5477
    %v5493 = vmul.f32 1.0, %v5492
    %v5494 = vrcp.pop %v5478
    %v5495 = vmul.f32 1.0, %v5494
    %v5496 = vrcp.pop %v5479
    %v5497 = vmul.f32 1.0, %v5496
    %v5498 = vrcp.pop %v5480
    %v5499 = vmul.f32 1.0, %v5498
    %v5500 = vrcp.pop %v5481
    %v5501 = vmul.f32 1.0, %v5500
    %v5502 = vrcp.pop %v5482
    %v5503 = vmul.f32 1.0, %v5502
    %v5504 = vrcp.pop %v5483
    %v5505 = vmul.f32 1.0, %v5504
    %v5506 = vrcp.pop %v5484
    %v5507 = vmul.f32 1.0, %v5506
    %v5508 = vrcp.pop %v5485
    %v5509 = vmul.f32 1.0, %v5508
    %v5510 = vrcp.pop %v5486
    %v5511 = vmul.f32 1.0, %v5510
    %v5512 = vrcp.pop %v5487
    %v5513 = vmul.f32 1.0, %v5512
    %v5514 = vrcp.pop %v5488
    %v5515 = vmul.f32 1.0, %v5514
    %v5516 = vrcp.pop %v5489
    %v5517 = vmul.f32 1.0, %v5516
    %5518 = vst [vmem:[#allocation19] sm:$0xff] %v5491
    %5519 = vst [vmem:[#allocation19 + $0x8] sm:$0xff] %v5493
    %5520 = vst [vmem:[#allocation19 + $0x10] sm:$0xff] %v5495
    %5521 = vst [vmem:[#allocation19 + $0x18] sm:$0xff] %v5497
    %5522 = vst [vmem:[#allocation19 + $0x20] sm:$0xff] %v5499
    %5523 = vst [vmem:[#allocation19 + $0x28] sm:$0xff] %v5501
    %5524 = vst [vmem:[#allocation19 + $0x30] sm:$0xff] %v5503
    %5525 = vst [vmem:[#allocation19 + $0x38] sm:$0xff] %v5505
    %5526 = vst [vmem:[#allocation19 + $0x40] sm:$0xff] %v5507
    %5527 = vst [vmem:[#allocation19 + $0x48] sm:$0xff] %v5509
    %5528 = vst [vmem:[#allocation19 + $0x50] sm:$0xff] %v5511
    %5529 = vst [vmem:[#allocation19 + $0x58] sm:$0xff] %v5513
    %5530 = vst [vmem:[#allocation19 + $0x60] sm:$0xff] %v5515
    %5531 = vst [vmem:[#allocation19 + $0x68] sm:$0xff] %v5517
    // Predicated region
    $region110: #{tpu_custom_call.1} parent=1 // pred_check
      _
    $region111: #{tpu_custom_call.1} parent=1 // pred_check_branch
      %5533 = sbr.rel (0) target = $region113
    $region112: #{tpu_custom_call.1} parent=1 // pred_region
      %s5535 = ssub.s32 1792, 1792
      %5536 = vsyncadd [#allocation4], %s5535
      %s5537 = sshll.u32 [#allocation19], 4
      %s5538 = int_to_ptr.vmem [resolvable:$true] %s5537
      %5543 = dma.vmem_to_hbm [thread:$0]  %s5538, 1792, %s17, [#allocation4], 896, 896, 56
    $region113: #{tpu_custom_call.1} parent=1 // pred_fallthru
      _
    // Predicated region
    $region114: #{tpu_custom_call.1} parent=1 // pred_check
      _
    $region115: #{tpu_custom_call.1} parent=1 // pred_check_branch
      %5545 = sbr.rel (0) target = $region117
    $region116: #{tpu_custom_call.1} parent=1 // pred_region
      %5546 = dma.done [#allocation4], 1792
    $region117: #{tpu_custom_call.1} parent=1 // pred_fallthru
      _
    %5547 = vsyncpa [#allocation3], 1
    %5548 = vsyncpa [#allocation6], 1
    %5549 = vsyncpa [#allocation9], 1
    %5550 = vsyncpa [#allocation12], 1
    %5551 = vsyncpa [#allocation15], 1
    %5552 = vsyncpa [#allocation18], 1
    %5553 = vsyncpa [#allocation4], 1

// kernel: tpu_custom_call.1
$region0: #{tpu_custom_call.1}
  #allocation0 [shape = 'u32[]', space=smem, size = 0x4, offset = 0x4, fixed_abs, tag = 'smem constant byte address 0x4 - core index']
  #allocation1 [shape = 'u32[144,128]{1,0:T(1,128)}', space=vmem, size = 0x12000, scoped, tag = 'internal scratch']
  %s0 = inlined_call_operand.hbm [shape: bf16[16,896], index: 0, kind: input, shape index: {}]
  %s1 = inlined_call_operand.hbm [shape: bf16[896,512], index: 1, kind: input, shape index: {}]
  %s2 = inlined_call_operand.vmem [shape: f32[1,512], index: 2, kind: input, shape index: {}]
  %s3 = inlined_call_operand.hbm [shape: bf16[512,256], index: 3, kind: input, shape index: {}]
  %s4 = inlined_call_operand.hbm [shape: f32[1,256], index: 4, kind: input, shape index: {}]
  %s5 = inlined_call_operand.hbm [shape: bf16[256,128], index: 5, kind: input, shape index: {}]
  %s6 = inlined_call_operand.vmem [shape: f32[1,128], index: 6, kind: input, shape index: {}]
  %s7 = inlined_call_operand.hbm [shape: bf16[128,128], index: 7, kind: input, shape index: {}]
  %s8 = inlined_call_operand.vmem [shape: f32[1,128], index: 8, kind: input, shape index: {}]
  %s9 = inlined_call_operand.hbm [shape: bf16[128,128], index: 9, kind: input, shape index: {}]
  %s10 = inlined_call_operand.vmem [shape: f32[1,128], index: 10, kind: input, shape index: {}]
  %s11 = inlined_call_operand.hbm [shape: bf16[128,256], index: 11, kind: input, shape index: {}]
  %s12 = inlined_call_operand.vmem [shape: f32[1,256], index: 12, kind: input, shape index: {}]
  %s13 = inlined_call_operand.hbm [shape: bf16[256,512], index: 13, kind: input, shape index: {}]
  %s14 = inlined_call_operand.vmem [shape: f32[1,512], index: 14, kind: input, shape index: {}]
  %s15 = inlined_call_operand.hbm [shape: bf16[512,896], index: 15, kind: input, shape index: {}]
  %s16 = inlined_call_operand.vmem [shape: f32[1,896], index: 16, kind: input, shape index: {}]
  %s17 = inlined_call_operand.hbm [shape: f32[16,896], index: 17, kind: output, shape index: {}]
  %s18 = sld [smem:[#allocation0]]
  $region118: #{tpu_custom_call.1} parent=0
    _
  %s20 = ssub.s32 1, %s18
  %s21 = scalar_select 0, %s20, %s18
  $region1: #{tpu_custom_call.1} parent=0
    #allocation2 [shape = 'u8[28672]{0}', space=vmem, size = 0x7000, scoped, tag = 'input window, operand 0, single buffered']
    #allocation3 [shape = 's32[1]{0}', space=sflag, size = 0x4, scoped, tag = 'scoped memory for tpu_custom_call.1']
    #allocation4 [shape = 's32[1]{0}', space=sflag, size = 0x4, scoped, tag = 'scoped memory for tpu_custom_call.1']
    #allocation5 [shape = 'u8[917504]{0}', space=vmem, size = 0xe0000, scoped, tag = 'input window, operand 1, single buffered']
    #allocation6 [shape = 's32[1]{0}', space=sflag, size = 0x4, scoped, tag = 'scoped memory for tpu_custom_call.1']
    #allocation7 [shape = 'u8[262144]{0}', space=vmem, size = 0x40000, scoped, tag = 'input window, operand 3, single buffered']
    #allocation8 [shape = 'u8[1024]{0}', space=vmem, size = 0x400, scoped, tag = 'input window, operand 4, single buffered']
    #allocation9 [shape = 's32[1]{0}', space=sflag, size = 0x4, scoped, tag = 'scoped memory for tpu_custom_call.1']
    #allocation10 [shape = 'u8[65536]{0}', space=vmem, size = 0x10000, scoped, tag = 'input window, operand 5, single buffered']
    #allocation11 [shape = 'u8[32768]{0}', space=vmem, size = 0x8000, scoped, tag = 'input window, operand 7, single buffered']
    #allocation12 [shape = 's32[1]{0}', space=sflag, size = 0x4, scoped, tag = 'scoped memory for tpu_custom_call.1']
    #allocation13 [shape = 'u8[32768]{0}', space=vmem, size = 0x8000, scoped, tag = 'input window, operand 9, single buffered']
    #allocation14 [shape = 'u8[65536]{0}', space=vmem, size = 0x10000, scoped, tag = 'input window, operand 11, single buffered']
    #allocation15 [shape = 's32[1]{0}', space=sflag, size = 0x4, scoped, tag = 'scoped memory for tpu_custom_call.1']
    #allocation16 [shape = 'u8[262144]{0}', space=vmem, size = 0x40000, scoped, tag = 'input window, operand 13, single buffered']
    #allocation17 [shape = 'u8[917504]{0}', space=vmem, size = 0xe0000, scoped, tag = 'input window, operand 15, single buffered']
    #allocation18 [shape = 's32[1]{0}', space=sflag, size = 0x4, scoped, tag = 'scoped memory for tpu_custom_call.1']
    #allocation19 [shape = 'u8[57344]{0}', space=vmem, size = 0xe000, scoped, tag = 'output window, operand 0, single buffered']
    %22 = vsyncpa [#allocation3], 0
    %23 = vsyncpa [#allocation6], 0
    %24 = vsyncpa [#allocation9], 0
    %25 = vsyncpa [#allocation12], 0
    %26 = vsyncpa [#allocation15], 0
    %27 = vsyncpa [#allocation18], 0
    %28 = vsyncpa [#allocation4], 0
    // Predicated region
    $region2: #{tpu_custom_call.1} parent=1 // pred_check
      _
    $region3: #{tpu_custom_call.1} parent=1 // pred_check_branch
      %30 = sbr.rel (0) target = $region5
    $region4: #{tpu_custom_call.1} parent=1 // pred_region
      %s32 = ssub.s32 896, 896
      %33 = vsyncadd [#allocation3], %s32
      %s34 = sshll.u32 [#allocation2], 4
      %s35 = int_to_ptr.vmem [resolvable:$true] %s34
      %40 = dma.hbm_to_vmem [thread:$0]  %s0, 896, %s35, [#allocation3], 448, 448, 28
    $region5: #{tpu_custom_call.1} parent=1 // pred_fallthru
      _
    // Predicated region
    $region6: #{tpu_custom_call.1} parent=1 // pred_check
      _
    $region7: #{tpu_custom_call.1} parent=1 // pred_check_branch
      %42 = sbr.rel (0) target = $region9
    $region8: #{tpu_custom_call.1} parent=1 // pred_region
      %s44 = ssub.s32 28672, 28672
      %45 = vsyncadd [#allocation6], %s44
      %s46 = sshll.u32 [#allocation5], 4
      %s47 = int_to_ptr.vmem [resolvable:$true] %s46
      %52 = dma.hbm_to_vmem [thread:$0]  %s1, 28672, %s47, [#allocation6], 256, 256, 16
    $region9: #{tpu_custom_call.1} parent=1 // pred_fallthru
      _
    // Predicated region
    $region10: #{tpu_custom_call.1} parent=1 // pred_check
      _
    $region11: #{tpu_custom_call.1} parent=1 // pred_check_branch
      %54 = sbr.rel (0) target = $region13
    $region12: #{tpu_custom_call.1} parent=1 // pred_region
      _
    $region13: #{tpu_custom_call.1} parent=1 // pred_fallthru
      _
    // Predicated region
    $region14: #{tpu_custom_call.1} parent=1 // pred_check
      _
    $region15: #{tpu_custom_call.1} parent=1 // pred_check_branch
      %56 = sbr.rel (0) target = $region17
    $region16: #{tpu_custom_call.1} parent=1 // pred_region
      %s58 = ssub.s32 8192, 8192
      %59 = vsyncadd [#allocation6], %s58
      %s60 = sshll.u32 [#allocation7], 4
      %s61 = int_to_ptr.vmem [resolvable:$true] %s60
      %66 = dma.hbm_to_vmem [thread:$0]  %s3, 8192, %s61, [#allocation6], 128, 128, 8
    $region17: #{tpu_custom_call.1} parent=1 // pred_fallthru
      _
    // Predicated region
    $region18: #{tpu_custom_call.1} parent=1 // pred_check
      _
    $region19: #{tpu_custom_call.1} parent=1 // pred_check_branch
      %68 = sbr.rel (0) target = $region21
    $region20: #{tpu_custom_call.1} parent=1 // pred_region
      %s70 = ssub.s32 32, 32
      %71 = vsyncadd [#allocation9], %s70
      %s73 = sshll.u32 [#allocation8], 4
      %s74 = int_to_ptr.vmem [resolvable:$true] %s73
      %76 = dma.hbm_to_vmem [thread:$0]  %s4, 32, %s74, [#allocation9]
    $region21: #{tpu_custom_call.1} parent=1 // pred_fallthru
      _
    // Predicated region
    $region22: #{tpu_custom_call.1} parent=1 // pred_check
      _
    $region23: #{tpu_custom_call.1} parent=1 // pred_check_branch
      %78 = sbr.rel (0) target = $region25
    $region24: #{tpu_custom_call.1} parent=1 // pred_region
      %s80 = ssub.s32 2048, 2048
      %81 = vsyncadd [#allocation9], %s80
      %s82 = sshll.u32 [#allocation10], 4
      %s83 = int_to_ptr.vmem [resolvable:$true] %s82
      %88 = dma.hbm_to_vmem [thread:$0]  %s5, 2048, %s83, [#allocation9], 64, 64, 4
    $region25: #{tpu_custom_call.1} parent=1 // pred_fallthru
      _
    // Predicated region
    $region26: #{tpu_custom_call.1} parent=1 // pred_check
      _
    $region27: #{tpu_custom_call.1} parent=1 // pred_check_branch
      %90 = sbr.rel (0) target = $region29
    $region28: #{tpu_custom_call.1} parent=1 // pred_region
      _
    $region29: #{tpu_custom_call.1} parent=1 // pred_fallthru
      _
    // Predicated region
    $region30: #{tpu_custom_call.1} parent=1 // pred_check
      _
    $region31: #{tpu_custom_call.1} parent=1 // pred_check_branch
      %92 = sbr.rel (0) target = $region33
    $region32: #{tpu_custom_call.1} parent=1 // pred_region
      %s94 = ssub.s32 1024, 1024
      %95 = vsyncadd [#allocation12], %s94
      %s96 = sshll.u32 [#allocation11], 4
      %s97 = int_to_ptr.vmem [resolvable:$true] %s96
      %102 = dma.hbm_to_vmem [thread:$0]  %s7, 1024, %s97, [#allocation12], 64, 64, 4
    $region33: #{tpu_custom_call.1} parent=1 // pred_fallthru
      _
    // Predicated region
    $region34: #{tpu_custom_call.1} parent=1 // pred_check
      _
    $region35: #{tpu_custom_call.1} parent=1 // pred_check_branch
      %104 = sbr.rel (0) target = $region37
    $region36: #{tpu_custom_call.1} parent=1 // pred_region
      _
    $region37: #{tpu_custom_call.1} parent=1 // pred_fallthru
      _
    // Predicated region
    $region38: #{tpu_custom_call.1} parent=1 // pred_check
      _
    $region39: #{tpu_custom_call.1} parent=1 // pred_check_branch
      %106 = sbr.rel (0) target = $region41
    $region40: #{tpu_custom_call.1} parent=1 // pred_region
      %s108 = ssub.s32 1024, 1024
      %109 = vsyncadd [#allocation12], %s108
      %s110 = sshll.u32 [#allocation13], 4
      %s111 = int_to_ptr.vmem [resolvable:$true] %s110
      %116 = dma.hbm_to_vmem [thread:$0]  %s9, 1024, %s111, [#allocation12], 64, 64, 4
    $region41: #{tpu_custom_call.1} parent=1 // pred_fallthru
      _
    // Predicated region
    $region42: #{tpu_custom_call.1} parent=1 // pred_check
      _
    $region43: #{tpu_custom_call.1} parent=1 // pred_check_branch
      %118 = sbr.rel (0) target = $region45
    $region44: #{tpu_custom_call.1} parent=1 // pred_region
      _
    $region45: #{tpu_custom_call.1} parent=1 // pred_fallthru
      _
    // Predicated region
    $region46: #{tpu_custom_call.1} parent=1 // pred_check
      _
    $region47: #{tpu_custom_call.1} parent=1 // pred_check_branch
      %120 = sbr.rel (0) target = $region49
    $region48: #{tpu_custom_call.1} parent=1 // pred_region
      %s122 = ssub.s32 2048, 2048
      %123 = vsyncadd [#allocation15], %s122
      %s124 = sshll.u32 [#allocation14], 4
      %s125 = int_to_ptr.vmem [resolvable:$true] %s124
      %130 = dma.hbm_to_vmem [thread:$0]  %s11, 2048, %s125, [#allocation15], 128, 128, 8
    $region49: #{tpu_custom_call.1} parent=1 // pred_fallthru
      _
    // Predicated region
    $region50: #{tpu_custom_call.1} parent=1 // pred_check
      _
    $region51: #{tpu_custom_call.1} parent=1 // pred_check_branch
      %132 = sbr.rel (0) target = $region53
    $region52: #{tpu_custom_call.1} parent=1 // pred_region
      _
    $region53: #{tpu_custom_call.1} parent=1 // pred_fallthru
      _
    // Predicated region
    $region54: #{tpu_custom_call.1} parent=1 // pred_check
      _
    $region55: #{tpu_custom_call.1} parent=1 // pred_check_branch
      %134 = sbr.rel (0) target = $region57
    $region56: #{tpu_custom_call.1} parent=1 // pred_region
      %s136 = ssub.s32 8192, 8192
      %137 = vsyncadd [#allocation15], %s136
      %s138 = sshll.u32 [#allocation16], 4
      %s139 = int_to_ptr.vmem [resolvable:$true] %s138
      %144 = dma.hbm_to_vmem [thread:$0]  %s13, 8192, %s139, [#allocation15], 256, 256, 16
    $region57: #{tpu_custom_call.1} parent=1 // pred_fallthru
      _
    // Predicated region
    $region58: #{tpu_custom_call.1} parent=1 // pred_check
      _
    $region59: #{tpu_custom_call.1} parent=1 // pred_check_branch
      %146 = sbr.rel (0) target = $region61
    $region60: #{tpu_custom_call.1} parent=1 // pred_region
      _
    $region61: #{tpu_custom_call.1} parent=1 // pred_fallthru
      _
    // Predicated region
    $region62: #{tpu_custom_call.1} parent=1 // pred_check
      _
    $region63: #{tpu_custom_call.1} parent=1 // pred_check_branch
      %148 = sbr.rel (0) target = $region65
    $region64: #{tpu_custom_call.1} parent=1 // pred_region
      %s150 = ssub.s32 28672, 28672
      %151 = vsyncadd [#allocation18], %s150
      %s152 = sshll.u32 [#allocation17], 4
      %s153 = int_to_ptr.vmem [resolvable:$true] %s152
      %158 = dma.hbm_to_vmem [thread:$0]  %s15, 28672, %s153, [#allocation18], 448, 448, 28
    $region65: #{tpu_custom_call.1} parent=1 // pred_fallthru
      _
    // Predicated region
    $region66: #{tpu_custom_call.1} parent=1 // pred_check
      _
    $region67: #{tpu_custom_call.1} parent=1 // pred_check_branch
      %160 = sbr.rel (0) target = $region69
    $region68: #{tpu_custom_call.1} parent=1 // pred_region
      _
    $region69: #{tpu_custom_call.1} parent=1 // pred_fallthru
      _
    // Predicated region
    $region70: #{tpu_custom_call.1} parent=1 // pred_check
      _
    $region71: #{tpu_custom_call.1} parent=1 // pred_check_branch
      %162 = sbr.rel (0) target = $region73
    $region72: #{tpu_custom_call.1} parent=1 // pred_region
      %163 = dma.done [#allocation3], 896
    $region73: #{tpu_custom_call.1} parent=1 // pred_fallthru
      _
    // Predicated region
    $region74: #{tpu_custom_call.1} parent=1 // pred_check
      _
    $region75: #{tpu_custom_call.1} parent=1 // pred_check_branch
      %165 = sbr.rel (0) target = $region77
    $region76: #{tpu_custom_call.1} parent=1 // pred_region
      %166 = dma.done [#allocation6], 28672
    $region77: #{tpu_custom_call.1} parent=1 // pred_fallthru
      _
    // Predicated region
    $region78: #{tpu_custom_call.1} parent=1 // pred_check
      _
    $region79: #{tpu_custom_call.1} parent=1 // pred_check_branch
      %168 = sbr.rel (0) target = $region81
    $region80: #{tpu_custom_call.1} parent=1 // pred_region
      %169 = dma.done [#allocation6], 8192
    $region81: #{tpu_custom_call.1} parent=1 // pred_fallthru
      _
    // Predicated region
    $region82: #{tpu_custom_call.1} parent=1 // pred_check
      _
    $region83: #{tpu_custom_call.1} parent=1 // pred_check_branch
      %171 = sbr.rel (0) target = $region85
    $region84: #{tpu_custom_call.1} parent=1 // pred_region
      %172 = dma.done [#allocation9], 32
    $region85: #{tpu_custom_call.1} parent=1 // pred_fallthru
      _
    // Predicated region
    $region86: #{tpu_custom_call.1} parent=1 // pred_check
      _
    $region87: #{tpu_custom_call.1} parent=1 // pred_check_branch
      %174 = sbr.rel (0) target = $region89
    $region88: #{tpu_custom_call.1} parent=1 // pred_region
      %175 = dma.done [#allocation9], 2048
    $region89: #{tpu_custom_call.1} parent=1 // pred_fallthru
      _
    // Predicated region
    $region90: #{tpu_custom_call.1} parent=1 // pred_check
      _
    $region91: #{tpu_custom_call.1} parent=1 // pred_check_branch
      %177 = sbr.rel (0) target = $region93
    $region92: #{tpu_custom_call.1} parent=1 // pred_region
      %178 = dma.done [#allocation12], 1024
    $region93: #{tpu_custom_call.1} parent=1 // pred_fallthru
      _
    // Predicated region
    $region94: #{tpu_custom_call.1} parent=1 // pred_check
      _
    $region95: #{tpu_custom_call.1} parent=1 // pred_check_branch
      %180 = sbr.rel (0) target = $region97
    $region96: #{tpu_custom_call.1} parent=1 // pred_region
      %181 = dma.done [#allocation12], 1024
    $region97: #{tpu_custom_call.1} parent=1 // pred_fallthru
      _
    // Predicated region
    $region98: #{tpu_custom_call.1} parent=1 // pred_check
      _
    $region99: #{tpu_custom_call.1} parent=1 // pred_check_branch
      %183 = sbr.rel (0) target = $region101
    $region100: #{tpu_custom_call.1} parent=1 // pred_region
      %184 = dma.done [#allocation15], 2048
    $region101: #{tpu_custom_call.1} parent=1 // pred_fallthru
      _
    // Predicated region
    $region102: #{tpu_custom_call.1} parent=1 // pred_check
      _
    $region103: #{tpu_custom_call.1} parent=1 // pred_check_branch
      %186 = sbr.rel (0) target = $region105
    $region104: #{tpu_custom_call.1} parent=1 // pred_region
      %187 = dma.done [#allocation15], 8192
    $region105: #{tpu_custom_call.1} parent=1 // pred_fallthru
      _
    // Predicated region
    $region106: #{tpu_custom_call.1} parent=1 // pred_check
      _
    $region107: #{tpu_custom_call.1} parent=1 // pred_check_branch
      %189 = sbr.rel (0) target = $region109
    $region108: #{tpu_custom_call.1} parent=1 // pred_region
      %190 = dma.done [#allocation18], 28672
    $region109: #{tpu_custom_call.1} parent=1 // pred_fallthru
      _
    %v193 = vld [vmem:[#allocation2] sm:$0xff]
    %v194 = vld [vmem:[#allocation2 + $0x8] sm:$0xff]
    %v195 = vld [vmem:[#allocation2 + $0x10] sm:$0xff]
    %v196 = vld [vmem:[#allocation2 + $0x18] sm:$0xf]
    %v197 = vld [vmem:[#allocation2 + $0x1c] sm:$0xff]
    %v198 = vld [vmem:[#allocation2 + $0x24] sm:$0xff]
    %v199 = vld [vmem:[#allocation2 + $0x2c] sm:$0xff]
    %v200 = vld [vmem:[#allocation2 + $0x34] sm:$0xf]
    %v201 = vld [vmem:[#allocation5] sm:$0xff]
    %v202 = vld [vmem:[#allocation5 + $0x8] sm:$0xff]
    %v203 = vld [vmem:[#allocation5 + $0x10] sm:$0xff]
    %v204 = vld [vmem:[#allocation5 + $0x18] sm:$0xff]
    %v205 = vld [vmem:[#allocation5 + $0x20] sm:$0xff]
    %v206 = vld [vmem:[#allocation5 + $0x28] sm:$0xff]
    %v207 = vld [vmem:[#allocation5 + $0x30] sm:$0xff]
    %v208 = vld [vmem:[#allocation5 + $0x38] sm:$0xff]
    %v209 = vld [vmem:[#allocation5 + $0x40] sm:$0xff]
    %v210 = vld [vmem:[#allocation5 + $0x48] sm:$0xff]
    %v211 = vld [vmem:[#allocation5 + $0x50] sm:$0xff]
    %v212 = vld [vmem:[#allocation5 + $0x58] sm:$0xff]
    %v213 = vld [vmem:[#allocation5 + $0x60] sm:$0xff]
    %v214 = vld [vmem:[#allocation5 + $0x68] sm:$0xff]
    %v215 = vld [vmem:[#allocation5 + $0x70] sm:$0xff]
    %v216 = vld [vmem:[#allocation5 + $0x78] sm:$0xff]
    %v217 = vld [vmem:[#allocation5 + $0x80] sm:$0xff]
    %v218 = vld [vmem:[#allocation5 + $0x88] sm:$0xff]
    %v219 = vld [vmem:[#allocation5 + $0x90] sm:$0xff]
    %v220 = vld [vmem:[#allocation5 + $0x98] sm:$0xff]
    %v221 = vld [vmem:[#allocation5 + $0xa0] sm:$0xff]
    %v222 = vld [vmem:[#allocation5 + $0xa8] sm:$0xff]
    %v223 = vld [vmem:[#allocation5 + $0xb0] sm:$0xff]
    %v224 = vld [vmem:[#allocation5 + $0xb8] sm:$0xff]
    %v225 = vld [vmem:[#allocation5 + $0xc0] sm:$0xff]
    %v226 = vld [vmem:[#allocation5 + $0xc8] sm:$0xff]
    %v227 = vld [vmem:[#allocation5 + $0xd0] sm:$0xff]
    %v228 = vld [vmem:[#allocation5 + $0xd8] sm:$0xff]
    %v229 = vld [vmem:[#allocation5 + $0xe0] sm:$0xff]
    %v230 = vld [vmem:[#allocation5 + $0xe8] sm:$0xff]
    %v231 = vld [vmem:[#allocation5 + $0xf0] sm:$0xff]
    %v232 = vld [vmem:[#allocation5 + $0xf8] sm:$0xff]
    %v233 = vld [vmem:[#allocation5 + $0x100] sm:$0xff]
    %v234 = vld [vmem:[#allocation5 + $0x108] sm:$0xff]
    %v235 = vld [vmem:[#allocation5 + $0x110] sm:$0xff]
    %v236 = vld [vmem:[#allocation5 + $0x118] sm:$0xff]
    %v237 = vld [vmem:[#allocation5 + $0x120] sm:$0xff]
    %v238 = vld [vmem:[#allocation5 + $0x128] sm:$0xff]
    %v239 = vld [vmem:[#allocation5 + $0x130] sm:$0xff]
    %v240 = vld [vmem:[#allocation5 + $0x138] sm:$0xff]
    %v241 = vld [vmem:[#allocation5 + $0x140] sm:$0xff]
    %v242 = vld [vmem:[#allocation5 + $0x148] sm:$0xff]
    %v243 = vld [vmem:[#allocation5 + $0x150] sm:$0xff]
    %v244 = vld [vmem:[#allocation5 + $0x158] sm:$0xff]
    %v245 = vld [vmem:[#allocation5 + $0x160] sm:$0xff]
    %v246 = vld [vmem:[#allocation5 + $0x168] sm:$0xff]
    %v247 = vld [vmem:[#allocation5 + $0x170] sm:$0xff]
    %v248 = vld [vmem:[#allocation5 + $0x178] sm:$0xff]
    %v249 = vld [vmem:[#allocation5 + $0x180] sm:$0xff]
    %v250 = vld [vmem:[#allocation5 + $0x188] sm:$0xff]
    %v251 = vld [vmem:[#allocation5 + $0x190] sm:$0xff]
    %v252 = vld [vmem:[#allocation5 + $0x198] sm:$0xff]
    %v253 = vld [vmem:[#allocation5 + $0x1a0] sm:$0xff]
    %v254 = vld [vmem:[#allocation5 + $0x1a8] sm:$0xff]
    %v255 = vld [vmem:[#allocation5 + $0x1b0] sm:$0xff]
    %v256 = vld [vmem:[#allocation5 + $0x1b8] sm:$0xff]
    %v257 = vld [vmem:[#allocation5 + $0x1c0] sm:$0xff]
    %v258 = vld [vmem:[#allocation5 + $0x1c8] sm:$0xff]
    %v259 = vld [vmem:[#allocation5 + $0x1d0] sm:$0xff]
    %v260 = vld [vmem:[#allocation5 + $0x1d8] sm:$0xff]
    %v261 = vld [vmem:[#allocation5 + $0x1e0] sm:$0xff]
    %v262 = vld [vmem:[#allocation5 + $0x1e8] sm:$0xff]
    %v263 = vld [vmem:[#allocation5 + $0x1f0] sm:$0xff]
    %v264 = vld [vmem:[#allocation5 + $0x1f8] sm:$0xff]
    %v265 = vld [vmem:[#allocation5 + $0x200] sm:$0xff]
    %v266 = vld [vmem:[#allocation5 + $0x208] sm:$0xff]
    %v267 = vld [vmem:[#allocation5 + $0x210] sm:$0xff]
    %v268 = vld [vmem:[#allocation5 + $0x218] sm:$0xff]
    %v269 = vld [vmem:[#allocation5 + $0x220] sm:$0xff]
    %v270 = vld [vmem:[#allocation5 + $0x228] sm:$0xff]
    %v271 = vld [vmem:[#allocation5 + $0x230] sm:$0xff]
    %v272 = vld [vmem:[#allocation5 + $0x238] sm:$0xff]
    %v273 = vld [vmem:[#allocation5 + $0x240] sm:$0xff]
    %v274 = vld [vmem:[#allocation5 + $0x248] sm:$0xff]
    %v275 = vld [vmem:[#allocation5 + $0x250] sm:$0xff]
    %v276 = vld [vmem:[#allocation5 + $0x258] sm:$0xff]
    %v277 = vld [vmem:[#allocation5 + $0x260] sm:$0xff]
    %v278 = vld [vmem:[#allocation5 + $0x268] sm:$0xff]
    %v279 = vld [vmem:[#allocation5 + $0x270] sm:$0xff]
    %v280 = vld [vmem:[#allocation5 + $0x278] sm:$0xff]
    %v281 = vld [vmem:[#allocation5 + $0x280] sm:$0xff]
    %v282 = vld [vmem:[#allocation5 + $0x288] sm:$0xff]
    %v283 = vld [vmem:[#allocation5 + $0x290] sm:$0xff]
    %v284 = vld [vmem:[#allocation5 + $0x298] sm:$0xff]
    %v285 = vld [vmem:[#allocation5 + $0x2a0] sm:$0xff]
    %v286 = vld [vmem:[#allocation5 + $0x2a8] sm:$0xff]
    %v287 = vld [vmem:[#allocation5 + $0x2b0] sm:$0xff]
    %v288 = vld [vmem:[#allocation5 + $0x2b8] sm:$0xff]
    %v289 = vld [vmem:[#allocation5 + $0x2c0] sm:$0xff]
    %v290 = vld [vmem:[#allocation5 + $0x2c8] sm:$0xff]
    %v291 = vld [vmem:[#allocation5 + $0x2d0] sm:$0xff]
    %v292 = vld [vmem:[#allocation5 + $0x2d8] sm:$0xff]
    %v293 = vld [vmem:[#allocation5 + $0x2e0] sm:$0xff]
    %v294 = vld [vmem:[#allocation5 + $0x2e8] sm:$0xff]
    %v295 = vld [vmem:[#allocation5 + $0x2f0] sm:$0xff]
    %v296 = vld [vmem:[#allocation5 + $0x2f8] sm:$0xff]
    %v297 = vld [vmem:[#allocation5 + $0x300] sm:$0xff]
    %v298 = vld [vmem:[#allocation5 + $0x308] sm:$0xff]
    %v299 = vld [vmem:[#allocation5 + $0x310] sm:$0xff]
    %v300 = vld [vmem:[#allocation5 + $0x318] sm:$0xff]
    %v301 = vld [vmem:[#allocation5 + $0x320] sm:$0xff]
    %v302 = vld [vmem:[#allocation5 + $0x328] sm:$0xff]
    %v303 = vld [vmem:[#allocation5 + $0x330] sm:$0xff]
    %v304 = vld [vmem:[#allocation5 + $0x338] sm:$0xff]
    %v305 = vld [vmem:[#allocation5 + $0x340] sm:$0xff]
    %v306 = vld [vmem:[#allocation5 + $0x348] sm:$0xff]
    %v307 = vld [vmem:[#allocation5 + $0x350] sm:$0xff]
    %v308 = vld [vmem:[#allocation5 + $0x358] sm:$0xff]
    %v309 = vld [vmem:[#allocation5 + $0x360] sm:$0xff]
    %v310 = vld [vmem:[#allocation5 + $0x368] sm:$0xff]
    %v311 = vld [vmem:[#allocation5 + $0x370] sm:$0xff]
    %v312 = vld [vmem:[#allocation5 + $0x378] sm:$0xff]
    %v313 = vld [vmem:[#allocation5 + $0x380] sm:$0xff]
    %v314 = vld [vmem:[#allocation5 + $0x388] sm:$0xff]
    %v315 = vld [vmem:[#allocation5 + $0x390] sm:$0xff]
    %v316 = vld [vmem:[#allocation5 + $0x398] sm:$0xff]
    %v317 = vld [vmem:[#allocation5 + $0x3a0] sm:$0xff]
    %v318 = vld [vmem:[#allocation5 + $0x3a8] sm:$0xff]
    %v319 = vld [vmem:[#allocation5 + $0x3b0] sm:$0xff]
    %v320 = vld [vmem:[#allocation5 + $0x3b8] sm:$0xff]
    %v321 = vld [vmem:[#allocation5 + $0x3c0] sm:$0xff]
    %v322 = vld [vmem:[#allocation5 + $0x3c8] sm:$0xff]
    %v323 = vld [vmem:[#allocation5 + $0x3d0] sm:$0xff]
    %v324 = vld [vmem:[#allocation5 + $0x3d8] sm:$0xff]
    %v325 = vld [vmem:[#allocation5 + $0x3e0] sm:$0xff]
    %v326 = vld [vmem:[#allocation5 + $0x3e8] sm:$0xff]
    %v327 = vld [vmem:[#allocation5 + $0x3f0] sm:$0xff]
    %v328 = vld [vmem:[#allocation5 + $0x3f8] sm:$0xff]
    %v329 = vld [vmem:[#allocation5 + $0x400] sm:$0xff]
    %v330 = vld [vmem:[#allocation5 + $0x408] sm:$0xff]
    %v331 = vld [vmem:[#allocation5 + $0x410] sm:$0xff]
    %v332 = vld [vmem:[#allocation5 + $0x418] sm:$0xff]
    %v333 = vld [vmem:[#allocation5 + $0x420] sm:$0xff]
    %v334 = vld [vmem:[#allocation5 + $0x428] sm:$0xff]
    %v335 = vld [vmem:[#allocation5 + $0x430] sm:$0xff]
    %v336 = vld [vmem:[#allocation5 + $0x438] sm:$0xff]
    %v337 = vld [vmem:[#allocation5 + $0x440] sm:$0xff]
    %v338 = vld [vmem:[#allocation5 + $0x448] sm:$0xff]
    %v339 = vld [vmem:[#allocation5 + $0x450] sm:$0xff]
    %v340 = vld [vmem:[#allocation5 + $0x458] sm:$0xff]
    %v341 = vld [vmem:[#allocation5 + $0x460] sm:$0xff]
    %v342 = vld [vmem:[#allocation5 + $0x468] sm:$0xff]
    %v343 = vld [vmem:[#allocation5 + $0x470] sm:$0xff]
    %v344 = vld [vmem:[#allocation5 + $0x478] sm:$0xff]
    %v345 = vld [vmem:[#allocation5 + $0x480] sm:$0xff]
    %v346 = vld [vmem:[#allocation5 + $0x488] sm:$0xff]
    %v347 = vld [vmem:[#allocation5 + $0x490] sm:$0xff]
    %v348 = vld [vmem:[#allocation5 + $0x498] sm:$0xff]
    %v349 = vld [vmem:[#allocation5 + $0x4a0] sm:$0xff]
    %v350 = vld [vmem:[#allocation5 + $0x4a8] sm:$0xff]
    %v351 = vld [vmem:[#allocation5 + $0x4b0] sm:$0xff]
    %v352 = vld [vmem:[#allocation5 + $0x4b8] sm:$0xff]
    %v353 = vld [vmem:[#allocation5 + $0x4c0] sm:$0xff]
    %v354 = vld [vmem:[#allocation5 + $0x4c8] sm:$0xff]
    %v355 = vld [vmem:[#allocation5 + $0x4d0] sm:$0xff]
    %v356 = vld [vmem:[#allocation5 + $0x4d8] sm:$0xff]
    %v357 = vld [vmem:[#allocation5 + $0x4e0] sm:$0xff]
    %v358 = vld [vmem:[#allocation5 + $0x4e8] sm:$0xff]
    %v359 = vld [vmem:[#allocation5 + $0x4f0] sm:$0xff]
    %v360 = vld [vmem:[#allocation5 + $0x4f8] sm:$0xff]
    %v361 = vld [vmem:[#allocation5 + $0x500] sm:$0xff]
    %v362 = vld [vmem:[#allocation5 + $0x508] sm:$0xff]
    %v363 = vld [vmem:[#allocation5 + $0x510] sm:$0xff]
    %v364 = vld [vmem:[#allocation5 + $0x518] sm:$0xff]
    %v365 = vld [vmem:[#allocation5 + $0x520] sm:$0xff]
    %v366 = vld [vmem:[#allocation5 + $0x528] sm:$0xff]
    %v367 = vld [vmem:[#allocation5 + $0x530] sm:$0xff]
    %v368 = vld [vmem:[#allocation5 + $0x538] sm:$0xff]
    %v369 = vld [vmem:[#allocation5 + $0x540] sm:$0xff]
    %v370 = vld [vmem:[#allocation5 + $0x548] sm:$0xff]
    %v371 = vld [vmem:[#allocation5 + $0x550] sm:$0xff]
    %v372 = vld [vmem:[#allocation5 + $0x558] sm:$0xff]
    %v373 = vld [vmem:[#allocation5 + $0x560] sm:$0xff]
    %v374 = vld [vmem:[#allocation5 + $0x568] sm:$0xff]
    %v375 = vld [vmem:[#allocation5 + $0x570] sm:$0xff]
    %v376 = vld [vmem:[#allocation5 + $0x578] sm:$0xff]
    %v377 = vld [vmem:[#allocation5 + $0x580] sm:$0xff]
    %v378 = vld [vmem:[#allocation5 + $0x588] sm:$0xff]
    %v379 = vld [vmem:[#allocation5 + $0x590] sm:$0xff]
    %v380 = vld [vmem:[#allocation5 + $0x598] sm:$0xff]
    %v381 = vld [vmem:[#allocation5 + $0x5a0] sm:$0xff]
    %v382 = vld [vmem:[#allocation5 + $0x5a8] sm:$0xff]
    %v383 = vld [vmem:[#allocation5 + $0x5b0] sm:$0xff]
    %v384 = vld [vmem:[#allocation5 + $0x5b8] sm:$0xff]
    %v385 = vld [vmem:[#allocation5 + $0x5c0] sm:$0xff]
    %v386 = vld [vmem:[#allocation5 + $0x5c8] sm:$0xff]
    %v387 = vld [vmem:[#allocation5 + $0x5d0] sm:$0xff]
    %v388 = vld [vmem:[#allocation5 + $0x5d8] sm:$0xff]
    %v389 = vld [vmem:[#allocation5 + $0x5e0] sm:$0xff]
    %v390 = vld [vmem:[#allocation5 + $0x5e8] sm:$0xff]
    %v391 = vld [vmem:[#allocation5 + $0x5f0] sm:$0xff]
    %v392 = vld [vmem:[#allocation5 + $0x5f8] sm:$0xff]
    %v393 = vld [vmem:[#allocation5 + $0x600] sm:$0xff]
    %v394 = vld [vmem:[#allocation5 + $0x608] sm:$0xff]
    %v395 = vld [vmem:[#allocation5 + $0x610] sm:$0xff]
    %v396 = vld [vmem:[#allocation5 + $0x618] sm:$0xff]
    %v397 = vld [vmem:[#allocation5 + $0x620] sm:$0xff]
    %v398 = vld [vmem:[#allocation5 + $0x628] sm:$0xff]
    %v399 = vld [vmem:[#allocation5 + $0x630] sm:$0xff]
    %v400 = vld [vmem:[#allocation5 + $0x638] sm:$0xff]
    %v401 = vld [vmem:[#allocation5 + $0x640] sm:$0xff]
    %v402 = vld [vmem:[#allocation5 + $0x648] sm:$0xff]
    %v403 = vld [vmem:[#allocation5 + $0x650] sm:$0xff]
    %v404 = vld [vmem:[#allocation5 + $0x658] sm:$0xff]
    %v405 = vld [vmem:[#allocation5 + $0x660] sm:$0xff]
    %v406 = vld [vmem:[#allocation5 + $0x668] sm:$0xff]
    %v407 = vld [vmem:[#allocation5 + $0x670] sm:$0xff]
    %v408 = vld [vmem:[#allocation5 + $0x678] sm:$0xff]
    %v409 = vld [vmem:[#allocation5 + $0x680] sm:$0xff]
    %v410 = vld [vmem:[#allocation5 + $0x688] sm:$0xff]
    %v411 = vld [vmem:[#allocation5 + $0x690] sm:$0xff]
    %v412 = vld [vmem:[#allocation5 + $0x698] sm:$0xff]
    %v413 = vld [vmem:[#allocation5 + $0x6a0] sm:$0xff]
    %v414 = vld [vmem:[#allocation5 + $0x6a8] sm:$0xff]
    %v415 = vld [vmem:[#allocation5 + $0x6b0] sm:$0xff]
    %v416 = vld [vmem:[#allocation5 + $0x6b8] sm:$0xff]
    %v417 = vld [vmem:[#allocation5 + $0x6c0] sm:$0xff]
    %v418 = vld [vmem:[#allocation5 + $0x6c8] sm:$0xff]
    %v419 = vld [vmem:[#allocation5 + $0x6d0] sm:$0xff]
    %v420 = vld [vmem:[#allocation5 + $0x6d8] sm:$0xff]
    %v421 = vld [vmem:[#allocation5 + $0x6e0] sm:$0xff]
    %v422 = vld [vmem:[#allocation5 + $0x6e8] sm:$0xff]
    %v423 = vld [vmem:[#allocation5 + $0x6f0] sm:$0xff]
    %v424 = vld [vmem:[#allocation5 + $0x6f8] sm:$0xff]
    %v433 = vunpack.c.l.b16 %v193
    %v434 = vunpack.c.h.b16 %v193
    %v435 = vunpack.c.l.b16 %v194
    %v436 = vunpack.c.h.b16 %v194
    %v437 = vunpack.c.l.b16 %v195
    %v438 = vunpack.c.h.b16 %v195
    %v439 = vunpack.c.l.b16 %v196
    %v440 = vunpack.c.l.b16 %v197
    %v441 = vunpack.c.h.b16 %v197
    %v442 = vunpack.c.l.b16 %v198
    %v443 = vunpack.c.h.b16 %v198
    %v444 = vunpack.c.l.b16 %v199
    %v445 = vunpack.c.h.b16 %v199
    %v446 = vunpack.c.l.b16 %v200
    %v447 = vpack.c.b16 %v440, %v433
    %v448 = vpack.c.b16 %v441, %v434
    %v449 = vpack.c.b16 %v442, %v435
    %v450 = vpack.c.b16 %v443, %v436
    %v451 = vpack.c.b16 %v444, %v437
    %v452 = vpack.c.b16 %v445, %v438
    %v453 = vpack.c.b16 %v446, %v439
    %v685 = vunpack.c.l.b16 %v201
    %v686 = vunpack.c.h.b16 %v201
    %v687 = vunpack.c.l.b16 %v202
    %v688 = vunpack.c.h.b16 %v202
    %v689 = vunpack.c.l.b16 %v203
    %v690 = vunpack.c.h.b16 %v203
    %v691 = vunpack.c.l.b16 %v204
    %v692 = vunpack.c.h.b16 %v204
    %v693 = vunpack.c.l.b16 %v205
    %v694 = vunpack.c.h.b16 %v205
    %v695 = vunpack.c.l.b16 %v206
    %v696 = vunpack.c.h.b16 %v206
    %v697 = vunpack.c.l.b16 %v207
    %v698 = vunpack.c.h.b16 %v207
    %v699 = vunpack.c.l.b16 %v208
    %v700 = vunpack.c.h.b16 %v208
    %v701 = vunpack.c.l.b16 %v209
    %v702 = vunpack.c.h.b16 %v209
    %v703 = vunpack.c.l.b16 %v210
    %v704 = vunpack.c.h.b16 %v210
    %v705 = vunpack.c.l.b16 %v211
    %v706 = vunpack.c.h.b16 %v211
    %v707 = vunpack.c.l.b16 %v212
    %v708 = vunpack.c.h.b16 %v212
    %v709 = vunpack.c.l.b16 %v213
    %v710 = vunpack.c.h.b16 %v213
    %v711 = vunpack.c.l.b16 %v214
    %v712 = vunpack.c.h.b16 %v214
    %v713 = vunpack.c.l.b16 %v215
    %v714 = vunpack.c.h.b16 %v215
    %v715 = vunpack.c.l.b16 %v216
    %v716 = vunpack.c.h.b16 %v216
    %v717 = vunpack.c.l.b16 %v217
    %v718 = vunpack.c.h.b16 %v217
    %v719 = vunpack.c.l.b16 %v218
    %v720 = vunpack.c.h.b16 %v218
    %v721 = vunpack.c.l.b16 %v219
    %v722 = vunpack.c.h.b16 %v219
    %v723 = vunpack.c.l.b16 %v220
    %v724 = vunpack.c.h.b16 %v220
    %v725 = vunpack.c.l.b16 %v221
    %v726 = vunpack.c.h.b16 %v221
    %v727 = vunpack.c.l.b16 %v222
    %v728 = vunpack.c.h.b16 %v222
    %v729 = vunpack.c.l.b16 %v223
    %v730 = vunpack.c.h.b16 %v223
    %v731 = vunpack.c.l.b16 %v224
    %v732 = vunpack.c.h.b16 %v224
    %v733 = vunpack.c.l.b16 %v225
    %v734 = vunpack.c.h.b16 %v225
    %v735 = vunpack.c.l.b16 %v226
    %v736 = vunpack.c.h.b16 %v226
    %v737 = vunpack.c.l.b16 %v227
    %v738 = vunpack.c.h.b16 %v227
    %v739 = vunpack.c.l.b16 %v228
    %v740 = vunpack.c.h.b16 %v228
    %v741 = vunpack.c.l.b16 %v229
    %v742 = vunpack.c.h.b16 %v229
    %v743 = vunpack.c.l.b16 %v230
    %v744 = vunpack.c.h.b16 %v230
    %v745 = vunpack.c.l.b16 %v231
    %v746 = vunpack.c.h.b16 %v231
    %v747 = vunpack.c.l.b16 %v232
    %v748 = vunpack.c.h.b16 %v232
    %v749 = vunpack.c.l.b16 %v233
    %v750 = vunpack.c.h.b16 %v233
    %v751 = vunpack.c.l.b16 %v234
    %v752 = vunpack.c.h.b16 %v234
    %v753 = vunpack.c.l.b16 %v235
    %v754 = vunpack.c.h.b16 %v235
    %v755 = vunpack.c.l.b16 %v236
    %v756 = vunpack.c.h.b16 %v236
    %v757 = vunpack.c.l.b16 %v237
    %v758 = vunpack.c.h.b16 %v237
    %v759 = vunpack.c.l.b16 %v238
    %v760 = vunpack.c.h.b16 %v238
    %v761 = vunpack.c.l.b16 %v239
    %v762 = vunpack.c.h.b16 %v239
    %v763 = vunpack.c.l.b16 %v240
    %v764 = vunpack.c.h.b16 %v240
    %v765 = vunpack.c.l.b16 %v241
    %v766 = vunpack.c.h.b16 %v241
    %v767 = vunpack.c.l.b16 %v242
    %v768 = vunpack.c.h.b16 %v242
    %v769 = vunpack.c.l.b16 %v243
    %v770 = vunpack.c.h.b16 %v243
    %v771 = vunpack.c.l.b16 %v244
    %v772 = vunpack.c.h.b16 %v244
    %v773 = vunpack.c.l.b16 %v245
    %v774 = vunpack.c.h.b16 %v245
    %v775 = vunpack.c.l.b16 %v246
    %v776 = vunpack.c.h.b16 %v246
    %v777 = vunpack.c.l.b16 %v247
    %v778 = vunpack.c.h.b16 %v247
    %v779 = vunpack.c.l.b16 %v248
    %v780 = vunpack.c.h.b16 %v248
    %v781 = vunpack.c.l.b16 %v249
    %v782 = vunpack.c.h.b16 %v249
    %v783 = vunpack.c.l.b16 %v250
    %v784 = vunpack.c.h.b16 %v250
    %v785 = vunpack.c.l.b16 %v251
    %v786 = vunpack.c.h.b16 %v251
    %v787 = vunpack.c.l.b16 %v252
    %v788 = vunpack.c.h.b16 %v252
    %v789 = vunpack.c.l.b16 %v253
    %v790 = vunpack.c.h.b16 %v253
    %v791 = vunpack.c.l.b16 %v254
    %v792 = vunpack.c.h.b16 %v254
    %v793 = vunpack.c.l.b16 %v255
    %v794 = vunpack.c.h.b16 %v255
    %v795 = vunpack.c.l.b16 %v256
    %v796 = vunpack.c.h.b16 %v256
    %v797 = vunpack.c.l.b16 %v257
    %v798 = vunpack.c.h.b16 %v257
    %v799 = vunpack.c.l.b16 %v258
    %v800 = vunpack.c.h.b16 %v258
    %v801 = vunpack.c.l.b16 %v259
    %v802 = vunpack.c.h.b16 %v259
    %v803 = vunpack.c.l.b16 %v260
    %v804 = vunpack.c.h.b16 %v260
    %v805 = vunpack.c.l.b16 %v261
    %v806 = vunpack.c.h.b16 %v261
    %v807 = vunpack.c.l.b16 %v262
    %v808 = vunpack.c.h.b16 %v262
    %v809 = vunpack.c.l.b16 %v263
    %v810 = vunpack.c.h.b16 %v263
    %v811 = vunpack.c.l.b16 %v264
    %v812 = vunpack.c.h.b16 %v264
    %v813 = vunpack.c.l.b16 %v265
    %v814 = vunpack.c.h.b16 %v265
    %v815 = vunpack.c.l.b16 %v266
    %v816 = vunpack.c.h.b16 %v266
    %v817 = vunpack.c.l.b16 %v267
    %v818 = vunpack.c.h.b16 %v267
    %v819 = vunpack.c.l.b16 %v268
    %v820 = vunpack.c.h.b16 %v268
    %v821 = vunpack.c.l.b16 %v269
    %v822 = vunpack.c.h.b16 %v269
    %v823 = vunpack.c.l.b16 %v270
    %v824 = vunpack.c.h.b16 %v270
    %v825 = vunpack.c.l.b16 %v271
    %v826 = vunpack.c.h.b16 %v271
    %v827 = vunpack.c.l.b16 %v272
    %v828 = vunpack.c.h.b16 %v272
    %v829 = vunpack.c.l.b16 %v273
    %v830 = vunpack.c.h.b16 %v273
    %v831 = vunpack.c.l.b16 %v274
    %v832 = vunpack.c.h.b16 %v274
    %v833 = vunpack.c.l.b16 %v275
    %v834 = vunpack.c.h.b16 %v275
    %v835 = vunpack.c.l.b16 %v276
    %v836 = vunpack.c.h.b16 %v276
    %v837 = vunpack.c.l.b16 %v277
    %v838 = vunpack.c.h.b16 %v277
    %v839 = vunpack.c.l.b16 %v278
    %v840 = vunpack.c.h.b16 %v278
    %v841 = vunpack.c.l.b16 %v279
    %v842 = vunpack.c.h.b16 %v279
    %v843 = vunpack.c.l.b16 %v280
    %v844 = vunpack.c.h.b16 %v280
    %v845 = vunpack.c.l.b16 %v281
    %v846 = vunpack.c.h.b16 %v281
    %v847 = vunpack.c.l.b16 %v282
    %v848 = vunpack.c.h.b16 %v282
    %v849 = vunpack.c.l.b16 %v283
    %v850 = vunpack.c.h.b16 %v283
    %v851 = vunpack.c.l.b16 %v284
    %v852 = vunpack.c.h.b16 %v284
    %v853 = vunpack.c.l.b16 %v285
    %v854 = vunpack.c.h.b16 %v285
    %v855 = vunpack.c.l.b16 %v286
    %v856 = vunpack.c.h.b16 %v286
    %v857 = vunpack.c.l.b16 %v287
    %v858 = vunpack.c.h.b16 %v287
    %v859 = vunpack.c.l.b16 %v288
    %v860 = vunpack.c.h.b16 %v288
    %v861 = vunpack.c.l.b16 %v289
    %v862 = vunpack.c.h.b16 %v289
    %v863 = vunpack.c.l.b16 %v290
    %v864 = vunpack.c.h.b16 %v290
    %v865 = vunpack.c.l.b16 %v291
    %v866 = vunpack.c.h.b16 %v291
    %v867 = vunpack.c.l.b16 %v292
    %v868 = vunpack.c.h.b16 %v292
    %v869 = vunpack.c.l.b16 %v293
    %v870 = vunpack.c.h.b16 %v293
    %v871 = vunpack.c.l.b16 %v294
    %v872 = vunpack.c.h.b16 %v294
    %v873 = vunpack.c.l.b16 %v295
    %v874 = vunpack.c.h.b16 %v295
    %v875 = vunpack.c.l.b16 %v296
    %v876 = vunpack.c.h.b16 %v296
    %v877 = vunpack.c.l.b16 %v297
    %v878 = vunpack.c.h.b16 %v297
    %v879 = vunpack.c.l.b16 %v298
    %v880 = vunpack.c.h.b16 %v298
    %v881 = vunpack.c.l.b16 %v299
    %v882 = vunpack.c.h.b16 %v299
    %v883 = vunpack.c.l.b16 %v300
    %v884 = vunpack.c.h.b16 %v300
    %v885 = vunpack.c.l.b16 %v301
    %v886 = vunpack.c.h.b16 %v301
    %v887 = vunpack.c.l.b16 %v302
    %v888 = vunpack.c.h.b16 %v302
    %v889 = vunpack.c.l.b16 %v303
    %v890 = vunpack.c.h.b16 %v303
    %v891 = vunpack.c.l.b16 %v304
    %v892 = vunpack.c.h.b16 %v304
    %v893 = vunpack.c.l.b16 %v305
    %v894 = vunpack.c.h.b16 %v305
    %v895 = vunpack.c.l.b16 %v306
    %v896 = vunpack.c.h.b16 %v306
    %v897 = vunpack.c.l.b16 %v307
    %v898 = vunpack.c.h.b16 %v307
    %v899 = vunpack.c.l.b16 %v308
    %v900 = vunpack.c.h.b16 %v308
    %v901 = vunpack.c.l.b16 %v309
    %v902 = vunpack.c.h.b16 %v309
    %v903 = vunpack.c.l.b16 %v310
    %v904 = vunpack.c.h.b16 %v310
    %v905 = vunpack.c.l.b16 %v311
    %v906 = vunpack.c.h.b16 %v311
    %v907 = vunpack.c.l.b16 %v312
    %v908 = vunpack.c.h.b16 %v312
    %v909 = vunpack.c.l.b16 %v313
    %v910 = vunpack.c.h.b16 %v313
    %v911 = vunpack.c.l.b16 %v314
    %v912 = vunpack.c.h.b16 %v314
    %v913 = vunpack.c.l.b16 %v315
    %v914 = vunpack.c.h.b16 %v315
    %v915 = vunpack.c.l.b16 %v316
    %v916 = vunpack.c.h.b16 %v316
    %v917 = vunpack.c.l.b16 %v317
    %v918 = vunpack.c.h.b16 %v317
    %v919 = vunpack.c.l.b16 %v318
    %v920 = vunpack.c.h.b16 %v318
    %v921 = vunpack.c.l.b16 %v319
    %v922 = vunpack.c.h.b16 %v319
    %v923 = vunpack.c.l.b16 %v320
    %v924 = vunpack.c.h.b16 %v320
    %v925 = vunpack.c.l.b16 %v321
    %v926 = vunpack.c.h.b16 %v321
    %v927 = vunpack.c.l.b16 %v322
    %v928 = vunpack.c.h.b16 %v322
    %v929 = vunpack.c.l.b16 %v323
    %v930 = vunpack.c.h.b16 %v323
    %v931 = vunpack.c.l.b16 %v324
    %v932 = vunpack.c.h.b16 %v324
    %v933 = vunpack.c.l.b16 %v325
    %v934 = vunpack.c.h.b16 %v325
    %v935 = vunpack.c.l.b16 %v326
    %v936 = vunpack.c.h.b16 %v326
    %v937 = vunpack.c.l.b16 %v327
    %v938 = vunpack.c.h.b16 %v327
    %v939 = vunpack.c.l.b16 %v328
    %v940 = vunpack.c.h.b16 %v328
    %v941 = vunpack.c.l.b16 %v329
    %v942 = vunpack.c.h.b16 %v329
    %v943 = vunpack.c.l.b16 %v330
    %v944 = vunpack.c.h.b16 %v330
    %v945 = vunpack.c.l.b16 %v331
    %v946 = vunpack.c.h.b16 %v331
    %v947 = vunpack.c.l.b16 %v332
    %v948 = vunpack.c.h.b16 %v332
    %v949 = vunpack.c.l.b16 %v333
    %v950 = vunpack.c.h.b16 %v333
    %v951 = vunpack.c.l.b16 %v334
    %v952 = vunpack.c.h.b16 %v334
    %v953 = vunpack.c.l.b16 %v335
    %v954 = vunpack.c.h.b16 %v335
    %v955 = vunpack.c.l.b16 %v336
    %v956 = vunpack.c.h.b16 %v336
    %v957 = vunpack.c.l.b16 %v337
    %v958 = vunpack.c.h.b16 %v337
    %v959 = vunpack.c.l.b16 %v338
    %v960 = vunpack.c.h.b16 %v338
    %v961 = vunpack.c.l.b16 %v339
    %v962 = vunpack.c.h.b16 %v339
    %v963 = vunpack.c.l.b16 %v340
    %v964 = vunpack.c.h.b16 %v340
    %v965 = vunpack.c.l.b16 %v341
    %v966 = vunpack.c.h.b16 %v341
    %v967 = vunpack.c.l.b16 %v342
    %v968 = vunpack.c.h.b16 %v342
    %v969 = vunpack.c.l.b16 %v343
    %v970 = vunpack.c.h.b16 %v343
    %v971 = vunpack.c.l.b16 %v344
    %v972 = vunpack.c.h.b16 %v344
    %v973 = vunpack.c.l.b16 %v345
    %v974 = vunpack.c.h.b16 %v345
    %v975 = vunpack.c.l.b16 %v346
    %v976 = vunpack.c.h.b16 %v346
    %v977 = vunpack.c.l.b16 %v347
    %v978 = vunpack.c.h.b16 %v347
    %v979 = vunpack.c.l.b16 %v348
    %v980 = vunpack.c.h.b16 %v348
    %v981 = vunpack.c.l.b16 %v349
    %v982 = vunpack.c.h.b16 %v349
    %v983 = vunpack.c.l.b16 %v350
    %v984 = vunpack.c.h.b16 %v350
    %v985 = vunpack.c.l.b16 %v351
    %v986 = vunpack.c.h.b16 %v351
    %v987 = vunpack.c.l.b16 %v352
    %v988 = vunpack.c.h.b16 %v352
    %v989 = vunpack.c.l.b16 %v353
    %v990 = vunpack.c.h.b16 %v353
    %v991 = vunpack.c.l.b16 %v354
    %v992 = vunpack.c.h.b16 %v354
    %v993 = vunpack.c.l.b16 %v355
    %v994 = vunpack.c.h.b16 %v355
    %v995 = vunpack.c.l.b16 %v356
    %v996 = vunpack.c.h.b16 %v356
    %v997 = vunpack.c.l.b16 %v357
    %v998 = vunpack.c.h.b16 %v357
    %v999 = vunpack.c.l.b16 %v358
    %v1000 = vunpack.c.h.b16 %v358
    %v1001 = vunpack.c.l.b16 %v359
    %v1002 = vunpack.c.h.b16 %v359
    %v1003 = vunpack.c.l.b16 %v360
    %v1004 = vunpack.c.h.b16 %v360
    %v1005 = vunpack.c.l.b16 %v361
    %v1006 = vunpack.c.h.b16 %v361
    %v1007 = vunpack.c.l.b16 %v362
    %v1008 = vunpack.c.h.b16 %v362
    %v1009 = vunpack.c.l.b16 %v363
    %v1010 = vunpack.c.h.b16 %v363
    %v1011 = vunpack.c.l.b16 %v364
    %v1012 = vunpack.c.h.b16 %v364
    %v1013 = vunpack.c.l.b16 %v365
    %v1014 = vunpack.c.h.b16 %v365
    %v1015 = vunpack.c.l.b16 %v366
    %v1016 = vunpack.c.h.b16 %v366
    %v1017 = vunpack.c.l.b16 %v367
    %v1018 = vunpack.c.h.b16 %v367
    %v1019 = vunpack.c.l.b16 %v368
    %v1020 = vunpack.c.h.b16 %v368
    %v1021 = vunpack.c.l.b16 %v369
    %v1022 = vunpack.c.h.b16 %v369
    %v1023 = vunpack.c.l.b16 %v370
    %v1024 = vunpack.c.h.b16 %v370
    %v1025 = vunpack.c.l.b16 %v371
    %v1026 = vunpack.c.h.b16 %v371
    %v1027 = vunpack.c.l.b16 %v372
    %v1028 = vunpack.c.h.b16 %v372
    %v1029 = vunpack.c.l.b16 %v373
    %v1030 = vunpack.c.h.b16 %v373
    %v1031 = vunpack.c.l.b16 %v374
    %v1032 = vunpack.c.h.b16 %v374
    %v1033 = vunpack.c.l.b16 %v375
    %v1034 = vunpack.c.h.b16 %v375
    %v1035 = vunpack.c.l.b16 %v376
    %v1036 = vunpack.c.h.b16 %v376
    %v1037 = vunpack.c.l.b16 %v377
    %v1038 = vunpack.c.h.b16 %v377
    %v1039 = vunpack.c.l.b16 %v378
    %v1040 = vunpack.c.h.b16 %v378
    %v1041 = vunpack.c.l.b16 %v379
    %v1042 = vunpack.c.h.b16 %v379
    %v1043 = vunpack.c.l.b16 %v380
    %v1044 = vunpack.c.h.b16 %v380
    %v1045 = vunpack.c.l.b16 %v381
    %v1046 = vunpack.c.h.b16 %v381
    %v1047 = vunpack.c.l.b16 %v382
    %v1048 = vunpack.c.h.b16 %v382
    %v1049 = vunpack.c.l.b16 %v383
    %v1050 = vunpack.c.h.b16 %v383
    %v1051 = vunpack.c.l.b16 %v384
    %v1052 = vunpack.c.h.b16 %v384
    %v1053 = vunpack.c.l.b16 %v385
    %v1054 = vunpack.c.h.b16 %v385
    %v1055 = vunpack.c.l.b16 %v386
    %v1056 = vunpack.c.h.b16 %v386
    %v1057 = vunpack.c.l.b16 %v387
    %v1058 = vunpack.c.h.b16 %v387
    %v1059 = vunpack.c.l.b16 %v388
    %v1060 = vunpack.c.h.b16 %v388
    %v1061 = vunpack.c.l.b16 %v389
    %v1062 = vunpack.c.h.b16 %v389
    %v1063 = vunpack.c.l.b16 %v390
    %v1064 = vunpack.c.h.b16 %v390
    %v1065 = vunpack.c.l.b16 %v391
    %v1066 = vunpack.c.h.b16 %v391
    %v1067 = vunpack.c.l.b16 %v392
    %v1068 = vunpack.c.h.b16 %v392
    %v1069 = vunpack.c.l.b16 %v393
    %v1070 = vunpack.c.h.b16 %v393
    %v1071 = vunpack.c.l.b16 %v394
    %v1072 = vunpack.c.h.b16 %v394
    %v1073 = vunpack.c.l.b16 %v395
    %v1074 = vunpack.c.h.b16 %v395
    %v1075 = vunpack.c.l.b16 %v396
    %v1076 = vunpack.c.h.b16 %v396
    %v1077 = vunpack.c.l.b16 %v397
    %v1078 = vunpack.c.h.b16 %v397
    %v1079 = vunpack.c.l.b16 %v398
    %v1080 = vunpack.c.h.b16 %v398
    %v1081 = vunpack.c.l.b16 %v399
    %v1082 = vunpack.c.h.b16 %v399
    %v1083 = vunpack.c.l.b16 %v400
    %v1084 = vunpack.c.h.b16 %v400
    %v1085 = vunpack.c.l.b16 %v401
    %v1086 = vunpack.c.h.b16 %v401
    %v1087 = vunpack.c.l.b16 %v402
    %v1088 = vunpack.c.h.b16 %v402
    %v1089 = vunpack.c.l.b16 %v403
    %v1090 = vunpack.c.h.b16 %v403
    %v1091 = vunpack.c.l.b16 %v404
    %v1092 = vunpack.c.h.b16 %v404
    %v1093 = vunpack.c.l.b16 %v405
    %v1094 = vunpack.c.h.b16 %v405
    %v1095 = vunpack.c.l.b16 %v406
    %v1096 = vunpack.c.h.b16 %v406
    %v1097 = vunpack.c.l.b16 %v407
    %v1098 = vunpack.c.h.b16 %v407
    %v1099 = vunpack.c.l.b16 %v408
    %v1100 = vunpack.c.h.b16 %v408
    %v1101 = vunpack.c.l.b16 %v409
    %v1102 = vunpack.c.h.b16 %v409
    %v1103 = vunpack.c.l.b16 %v410
    %v1104 = vunpack.c.h.b16 %v410
    %v1105 = vunpack.c.l.b16 %v411
    %v1106 = vunpack.c.h.b16 %v411
    %v1107 = vunpack.c.l.b16 %v412
    %v1108 = vunpack.c.h.b16 %v412
    %v1109 = vunpack.c.l.b16 %v413
    %v1110 = vunpack.c.h.b16 %v413
    %v1111 = vunpack.c.l.b16 %v414
    %v1112 = vunpack.c.h.b16 %v414
    %v1113 = vunpack.c.l.b16 %v415
    %v1114 = vunpack.c.h.b16 %v415
    %v1115 = vunpack.c.l.b16 %v416
    %v1116 = vunpack.c.h.b16 %v416
    %v1117 = vunpack.c.l.b16 %v417
    %v1118 = vunpack.c.h.b16 %v417
    %v1119 = vunpack.c.l.b16 %v418
    %v1120 = vunpack.c.h.b16 %v418
    %v1121 = vunpack.c.l.b16 %v419
    %v1122 = vunpack.c.h.b16 %v419
    %v1123 = vunpack.c.l.b16 %v420
    %v1124 = vunpack.c.h.b16 %v420
    %v1125 = vunpack.c.l.b16 %v421
    %v1126 = vunpack.c.h.b16 %v421
    %v1127 = vunpack.c.l.b16 %v422
    %v1128 = vunpack.c.h.b16 %v422
    %v1129 = vunpack.c.l.b16 %v423
    %v1130 = vunpack.c.h.b16 %v423
    %v1131 = vunpack.c.l.b16 %v424
    %v1132 = vunpack.c.h.b16 %v424
    %v1133 = vpack.c.b16 %v689, %v685
    %v1134 = vpack.c.b16 %v690, %v686
    %v1135 = vpack.c.b16 %v691, %v687
    %v1136 = vpack.c.b16 %v692, %v688
    %v1137 = vpack.c.b16 %v697, %v693
    %v1138 = vpack.c.b16 %v698, %v694
    %v1139 = vpack.c.b16 %v699, %v695
    %v1140 = vpack.c.b16 %v700, %v696
    %v1141 = vpack.c.b16 %v705, %v701
    %v1142 = vpack.c.b16 %v706, %v702
    %v1143 = vpack.c.b16 %v707, %v703
    %v1144 = vpack.c.b16 %v708, %v704
    %v1145 = vpack.c.b16 %v713, %v709
    %v1146 = vpack.c.b16 %v714, %v710
    %v1147 = vpack.c.b16 %v715, %v711
    %v1148 = vpack.c.b16 %v716, %v712
    %v1149 = vpack.c.b16 %v721, %v717
    %v1150 = vpack.c.b16 %v722, %v718
    %v1151 = vpack.c.b16 %v723, %v719
    %v1152 = vpack.c.b16 %v724, %v720
    %v1153 = vpack.c.b16 %v729, %v725
    %v1154 = vpack.c.b16 %v730, %v726
    %v1155 = vpack.c.b16 %v731, %v727
    %v1156 = vpack.c.b16 %v732, %v728
    %v1157 = vpack.c.b16 %v737, %v733
    %v1158 = vpack.c.b16 %v738, %v734
    %v1159 = vpack.c.b16 %v739, %v735
    %v1160 = vpack.c.b16 %v740, %v736
    %v1161 = vpack.c.b16 %v745, %v741
    %v1162 = vpack.c.b16 %v746, %v742
    %v1163 = vpack.c.b16 %v747, %v743
    %v1164 = vpack.c.b16 %v748, %v744
    %v1165 = vpack.c.b16 %v753, %v749
    %v1166 = vpack.c.b16 %v754, %v750
    %v1167 = vpack.c.b16 %v755, %v751
    %v1168 = vpack.c.b16 %v756, %v752
    %v1169 = vpack.c.b16 %v761, %v757
    %v1170 = vpack.c.b16 %v762, %v758
    %v1171 = vpack.c.b16 %v763, %v759
    %v1172 = vpack.c.b16 %v764, %v760
    %v1173 = vpack.c.b16 %v769, %v765
    %v1174 = vpack.c.b16 %v770, %v766
    %v1175 = vpack.c.b16 %v771, %v767
    %v1176 = vpack.c.b16 %v772, %v768
    %v1177 = vpack.c.b16 %v777, %v773
    %v1178 = vpack.c.b16 %v778, %v774
    %v1179 = vpack.c.b16 %v779, %v775
    %v1180 = vpack.c.b16 %v780, %v776
    %v1181 = vpack.c.b16 %v785, %v781
    %v1182 = vpack.c.b16 %v786, %v782
    %v1183 = vpack.c.b16 %v787, %v783
    %v1184 = vpack.c.b16 %v788, %v784
    %v1185 = vpack.c.b16 %v793, %v789
    %v1186 = vpack.c.b16 %v794, %v790
    %v1187 = vpack.c.b16 %v795, %v791
    %v1188 = vpack.c.b16 %v796, %v792
    %v1189 = vpack.c.b16 %v801, %v797
    %v1190 = vpack.c.b16 %v802, %v798
    %v1191 = vpack.c.b16 %v803, %v799
    %v1192 = vpack.c.b16 %v804, %v800
    %v1193 = vpack.c.b16 %v809, %v805
    %v1194 = vpack.c.b16 %v810, %v806
    %v1195 = vpack.c.b16 %v811, %v807
    %v1196 = vpack.c.b16 %v812, %v808
    %v1197 = vpack.c.b16 %v817, %v813
    %v1198 = vpack.c.b16 %v818, %v814
    %v1199 = vpack.c.b16 %v819, %v815
    %v1200 = vpack.c.b16 %v820, %v816
    %v1201 = vpack.c.b16 %v825, %v821
    %v1202 = vpack.c.b16 %v826, %v822
    %v1203 = vpack.c.b16 %v827, %v823
    %v1204 = vpack.c.b16 %v828, %v824
    %v1205 = vpack.c.b16 %v833, %v829
    %v1206 = vpack.c.b16 %v834, %v830
    %v1207 = vpack.c.b16 %v835, %v831
    %v1208 = vpack.c.b16 %v836, %v832
    %v1209 = vpack.c.b16 %v841, %v837
    %v1210 = vpack.c.b16 %v842, %v838
    %v1211 = vpack.c.b16 %v843, %v839
    %v1212 = vpack.c.b16 %v844, %v840
    %v1213 = vpack.c.b16 %v849, %v845
    %v1214 = vpack.c.b16 %v850, %v846
    %v1215 = vpack.c.b16 %v851, %v847
    %v1216 = vpack.c.b16 %v852, %v848
    %v1217 = vpack.c.b16 %v857, %v853
    %v1218 = vpack.c.b16 %v858, %v854
    %v1219 = vpack.c.b16 %v859, %v855
    %v1220 = vpack.c.b16 %v860, %v856
    %v1221 = vpack.c.b16 %v865, %v861
    %v1222 = vpack.c.b16 %v866, %v862
    %v1223 = vpack.c.b16 %v867, %v863
    %v1224 = vpack.c.b16 %v868, %v864
    %v1225 = vpack.c.b16 %v873, %v869
    %v1226 = vpack.c.b16 %v874, %v870
    %v1227 = vpack.c.b16 %v875, %v871
    %v1228 = vpack.c.b16 %v876, %v872
    %v1229 = vpack.c.b16 %v881, %v877
    %v1230 = vpack.c.b16 %v882, %v878
    %v1231 = vpack.c.b16 %v883, %v879
    %v1232 = vpack.c.b16 %v884, %v880
    %v1233 = vpack.c.b16 %v889, %v885
    %v1234 = vpack.c.b16 %v890, %v886
    %v1235 = vpack.c.b16 %v891, %v887
    %v1236 = vpack.c.b16 %v892, %v888
    %v1237 = vpack.c.b16 %v897, %v893
    %v1238 = vpack.c.b16 %v898, %v894
    %v1239 = vpack.c.b16 %v899, %v895
    %v1240 = vpack.c.b16 %v900, %v896
    %v1241 = vpack.c.b16 %v905, %v901
    %v1242 = vpack.c.b16 %v906, %v902
    %v1243 = vpack.c.b16 %v907, %v903
    %v1244 = vpack.c.b16 %v908, %v904
    %v1245 = vpack.c.b16 %v913, %v909
    %v1246 = vpack.c.b16 %v914, %v910
    %v1247 = vpack.c.b16 %v915, %v911
    %v1248 = vpack.c.b16 %v916, %v912
    %v1249 = vpack.c.b16 %v921, %v917
    %v1250 = vpack.c.b16 %v922, %v918
    %v1251 = vpack.c.b16 %v923, %v919
    %v1252 = vpack.c.b16 %v924, %v920
    %v1253 = vpack.c.b16 %v929, %v925
    %v1254 = vpack.c.b16 %v930, %v926
    %v1255 = vpack.c.b16 %v931, %v927
    %v1256 = vpack.c.b16 %v932, %v928
    %v1257 = vpack.c.b16 %v937, %v933
    %v1258 = vpack.c.b16 %v938, %v934
    %v1259 = vpack.c.b16 %v939, %v935
    %v1260 = vpack.c.b16 %v940, %v936
    %v1261 = vpack.c.b16 %v945, %v941
    %v1262 = vpack.c.b16 %v946, %v942
    %v1263 = vpack.c.b16 %v947, %v943
    %v1264 = vpack.c.b16 %v948, %v944
    %v1265 = vpack.c.b16 %v953, %v949
    %v1266 = vpack.c.b16 %v954, %v950
    %v1267 = vpack.c.b16 %v955, %v951
    %v1268 = vpack.c.b16 %v956, %v952
    %v1269 = vpack.c.b16 %v961, %v957
    %v1270 = vpack.c.b16 %v962, %v958
    %v1271 = vpack.c.b16 %v963, %v959
    %v1272 = vpack.c.b16 %v964, %v960
    %v1273 = vpack.c.b16 %v969, %v965
    %v1274 = vpack.c.b16 %v970, %v966
    %v1275 = vpack.c.b16 %v971, %v967
    %v1276 = vpack.c.b16 %v972, %v968
    %v1277 = vpack.c.b16 %v977, %v973
    %v1278 = vpack.c.b16 %v978, %v974
    %v1279 = vpack.c.b16 %v979, %v975
    %v1280 = vpack.c.b16 %v980, %v976
    %v1281 = vpack.c.b16 %v985, %v981
    %v1282 = vpack.c.b16 %v986, %v982
    %v1283 = vpack.c.b16 %v987, %v983
    %v1284 = vpack.c.b16 %v988, %v984
    %v1285 = vpack.c.b16 %v993, %v989
    %v1286 = vpack.c.b16 %v994, %v990
    %v1287 = vpack.c.b16 %v995, %v991
    %v1288 = vpack.c.b16 %v996, %v992
    %v1289 = vpack.c.b16 %v1001, %v997
    %v1290 = vpack.c.b16 %v1002, %v998
    %v1291 = vpack.c.b16 %v1003, %v999
    %v1292 = vpack.c.b16 %v1004, %v1000
    %v1293 = vpack.c.b16 %v1009, %v1005
    %v1294 = vpack.c.b16 %v1010, %v1006
    %v1295 = vpack.c.b16 %v1011, %v1007
    %v1296 = vpack.c.b16 %v1012, %v1008
    %v1297 = vpack.c.b16 %v1017, %v1013
    %v1298 = vpack.c.b16 %v1018, %v1014
    %v1299 = vpack.c.b16 %v1019, %v1015
    %v1300 = vpack.c.b16 %v1020, %v1016
    %v1301 = vpack.c.b16 %v1025, %v1021
    %v1302 = vpack.c.b16 %v1026, %v1022
    %v1303 = vpack.c.b16 %v1027, %v1023
    %v1304 = vpack.c.b16 %v1028, %v1024
    %v1305 = vpack.c.b16 %v1033, %v1029
    %v1306 = vpack.c.b16 %v1034, %v1030
    %v1307 = vpack.c.b16 %v1035, %v1031
    %v1308 = vpack.c.b16 %v1036, %v1032
    %v1309 = vpack.c.b16 %v1041, %v1037
    %v1310 = vpack.c.b16 %v1042, %v1038
    %v1311 = vpack.c.b16 %v1043, %v1039
    %v1312 = vpack.c.b16 %v1044, %v1040
    %v1313 = vpack.c.b16 %v1049, %v1045
    %v1314 = vpack.c.b16 %v1050, %v1046
    %v1315 = vpack.c.b16 %v1051, %v1047
    %v1316 = vpack.c.b16 %v1052, %v1048
    %v1317 = vpack.c.b16 %v1057, %v1053
    %v1318 = vpack.c.b16 %v1058, %v1054
    %v1319 = vpack.c.b16 %v1059, %v1055
    %v1320 = vpack.c.b16 %v1060, %v1056
    %v1321 = vpack.c.b16 %v1065, %v1061
    %v1322 = vpack.c.b16 %v1066, %v1062
    %v1323 = vpack.c.b16 %v1067, %v1063
    %v1324 = vpack.c.b16 %v1068, %v1064
    %v1325 = vpack.c.b16 %v1073, %v1069
    %v1326 = vpack.c.b16 %v1074, %v1070
    %v1327 = vpack.c.b16 %v1075, %v1071
    %v1328 = vpack.c.b16 %v1076, %v1072
    %v1329 = vpack.c.b16 %v1081, %v1077
    %v1330 = vpack.c.b16 %v1082, %v1078
    %v1331 = vpack.c.b16 %v1083, %v1079
    %v1332 = vpack.c.b16 %v1084, %v1080
    %v1333 = vpack.c.b16 %v1089, %v1085
    %v1334 = vpack.c.b16 %v1090, %v1086
    %v1335 = vpack.c.b16 %v1091, %v1087
    %v1336 = vpack.c.b16 %v1092, %v1088
    %v1337 = vpack.c.b16 %v1097, %v1093
    %v1338 = vpack.c.b16 %v1098, %v1094
    %v1339 = vpack.c.b16 %v1099, %v1095
    %v1340 = vpack.c.b16 %v1100, %v1096
    %v1341 = vpack.c.b16 %v1105, %v1101
    %v1342 = vpack.c.b16 %v1106, %v1102
    %v1343 = vpack.c.b16 %v1107, %v1103
    %v1344 = vpack.c.b16 %v1108, %v1104
    %v1345 = vpack.c.b16 %v1113, %v1109
    %v1346 = vpack.c.b16 %v1114, %v1110
    %v1347 = vpack.c.b16 %v1115, %v1111
    %v1348 = vpack.c.b16 %v1116, %v1112
    %v1349 = vpack.c.b16 %v1121, %v1117
    %v1350 = vpack.c.b16 %v1122, %v1118
    %v1351 = vpack.c.b16 %v1123, %v1119
    %v1352 = vpack.c.b16 %v1124, %v1120
    %v1353 = vpack.c.b16 %v1129, %v1125
    %v1354 = vpack.c.b16 %v1130, %v1126
    %v1355 = vpack.c.b16 %v1131, %v1127
    %v1356 = vpack.c.b16 %v1132, %v1128
    %1581 = vmatprep.subr.bf16.mxu0 %v1134
    %1582 = vmatpush1.bf16.msra.mxu0 %v1133
    %1583 = vmatprep.subr.bf16.mxu0 %v1138
    %1584 = vmatpush1.bf16.msra.mxu0 %v1137
    %1585 = vmatprep.subr.bf16.mxu0 %v1142
    %1586 = vmatpush1.bf16.msra.mxu0 %v1141
    %1587 = vmatprep.subr.bf16.mxu0 %v1146
    %1588 = vmatpush1.bf16.msra.mxu0 %v1145
    %1589 = vmatprep.subr.bf16.mxu0 %v1150
    %1590 = vmatpush1.bf16.msra.mxu0 %v1149
    %1591 = vmatprep.subr.bf16.mxu0 %v1154
    %1592 = vmatpush1.bf16.msra.mxu0 %v1153
    %1593 = vmatprep.subr.bf16.mxu0 %v1158
    %1594 = vmatpush1.bf16.msra.mxu0 %v1157
    %1595 = vmatprep.subr.bf16.mxu0 %v1162
    %1596 = vmatpush1.bf16.msra.mxu0 %v1161
    %1597 = vmatprep.subr.bf16.mxu0 %v1166
    %1598 = vmatpush1.bf16.msra.mxu0 %v1165
    %1599 = vmatprep.subr.bf16.mxu0 %v1170
    %1600 = vmatpush1.bf16.msra.mxu0 %v1169
    %1601 = vmatprep.subr.bf16.mxu0 %v1174
    %1602 = vmatpush1.bf16.msra.mxu0 %v1173
    %1603 = vmatprep.subr.bf16.mxu0 %v1178
    %1604 = vmatpush1.bf16.msra.mxu0 %v1177
    %1605 = vmatprep.subr.bf16.mxu0 %v1182
    %1606 = vmatpush1.bf16.msra.mxu0 %v1181
    %1607 = vmatprep.subr.bf16.mxu0 %v1186
    %1608 = vmatpush1.bf16.msra.mxu0 %v1185
    %1609 = vmatprep.subr.bf16.mxu0 %v1190
    %1610 = vmatpush1.bf16.msra.mxu0 %v1189
    %1611 = vmatprep.subr.bf16.mxu0 %v1194
    %1612 = vmatpush1.bf16.msra.mxu0 %v1193
    %1613 = vmatprep.mubr.bf16.mxu0 %v448
    %1614 = vmatmul.mubr.bf16.gmra.mrb[0].mxu0 %v447
    %v1615 = vpop.f32.mrb[0].mxu0
    %v1616 = vadd.f32 0.0, %v1615
    %v1617 = vpop.f32.mrb[0].mxu0
    %v1618 = vadd.f32 0.0, %v1617
    %v1619 = vpop.f32.mrb[0].mxu0
    %v1620 = vadd.f32 0.0, %v1619
    %v1621 = vpop.f32.mrb[0].mxu0
    %v1622 = vadd.f32 0.0, %v1621
    %1623 = vdwg.mxu0
    %1624 = vmatprep.subr.bf16.mxu0 %v1198
    %1625 = vmatpush1.bf16.msra.mxu0 %v1197
    %1626 = vmatprep.subr.bf16.mxu0 %v1202
    %1627 = vmatpush1.bf16.msra.mxu0 %v1201
    %1628 = vmatprep.subr.bf16.mxu0 %v1206
    %1629 = vmatpush1.bf16.msra.mxu0 %v1205
    %1630 = vmatprep.subr.bf16.mxu0 %v1210
    %1631 = vmatpush1.bf16.msra.mxu0 %v1209
    %1632 = vmatprep.subr.bf16.mxu0 %v1214
    %1633 = vmatpush1.bf16.msra.mxu0 %v1213
    %1634 = vmatprep.subr.bf16.mxu0 %v1218
    %1635 = vmatpush1.bf16.msra.mxu0 %v1217
    %1636 = vmatprep.subr.bf16.mxu0 %v1222
    %1637 = vmatpush1.bf16.msra.mxu0 %v1221
    %1638 = vmatprep.subr.bf16.mxu0 %v1226
    %1639 = vmatpush1.bf16.msra.mxu0 %v1225
    %1640 = vmatprep.subr.bf16.mxu0 %v1230
    %1641 = vmatpush1.bf16.msra.mxu0 %v1229
    %1642 = vmatprep.subr.bf16.mxu0 %v1234
    %1643 = vmatpush1.bf16.msra.mxu0 %v1233
    %1644 = vmatprep.subr.bf16.mxu0 %v1238
    %1645 = vmatpush1.bf16.msra.mxu0 %v1237
    %1646 = vmatprep.subr.bf16.mxu0 %v1242
    %1647 = vmatpush1.bf16.msra.mxu0 %v1241
    %1648 = vmatprep.subr.bf16.mxu0 %v1246
    %1649 = vmatpush1.bf16.msra.mxu0 %v1245
    %1650 = vmatprep.subr.bf16.mxu0 %v1250
    %1651 = vmatpush1.bf16.msra.mxu0 %v1249
    %1652 = vmatprep.subr.bf16.mxu0 %v1254
    %1653 = vmatpush1.bf16.msra.mxu0 %v1253
    %1654 = vmatprep.subr.bf16.mxu0 %v1258
    %1655 = vmatpush1.bf16.msra.mxu0 %v1257
    %1656 = vmatprep.mubr.bf16.mxu0 %v450
    %1657 = vmatmul.mubr.bf16.gmra.mrb[0].mxu0 %v449
    %v1658 = vpop.f32.mrb[0].mxu0
    %v1659 = vadd.f32 %v1616, %v1658
    %v1660 = vpop.f32.mrb[0].mxu0
    %v1661 = vadd.f32 %v1618, %v1660
    %v1662 = vpop.f32.mrb[0].mxu0
    %v1663 = vadd.f32 %v1620, %v1662
    %v1664 = vpop.f32.mrb[0].mxu0
    %v1665 = vadd.f32 %v1622, %v1664
    %1666 = vdwg.mxu0
    %1667 = vmatprep.subr.bf16.mxu0 %v1262
    %1668 = vmatpush1.bf16.msra.mxu0 %v1261
    %1669 = vmatprep.subr.bf16.mxu0 %v1266
    %1670 = vmatpush1.bf16.msra.mxu0 %v1265
    %1671 = vmatprep.subr.bf16.mxu0 %v1270
    %1672 = vmatpush1.bf16.msra.mxu0 %v1269
    %1673 = vmatprep.subr.bf16.mxu0 %v1274
    %1674 = vmatpush1.bf16.msra.mxu0 %v1273
    %1675 = vmatprep.subr.bf16.mxu0 %v1278
    %1676 = vmatpush1.bf16.msra.mxu0 %v1277
    %1677 = vmatprep.subr.bf16.mxu0 %v1282
    %1678 = vmatpush1.bf16.msra.mxu0 %v1281
    %1679 = vmatprep.subr.bf16.mxu0 %v1286
    %1680 = vmatpush1.bf16.msra.mxu0 %v1285
    %1681 = vmatprep.subr.bf16.mxu0 %v1290
    %1682 = vmatpush1.bf16.msra.mxu0 %v1289
    %1683 = vmatprep.subr.bf16.mxu0 %v1294
    %1684 = vmatpush1.bf16.msra.mxu0 %v1293
    %1685 = vmatprep.subr.bf16.mxu0 %v1298
    %1686 = vmatpush1.bf16.msra.mxu0 %v1297
    %1687 = vmatprep.subr.bf16.mxu0 %v1302
    %1688 = vmatpush1.bf16.msra.mxu0 %v1301
    %1689 = vmatprep.subr.bf16.mxu0 %v1306
    %1690 = vmatpush1.bf16.msra.mxu0 %v1305
    %1691 = vmatprep.subr.bf16.mxu0 %v1310
    %1692 = vmatpush1.bf16.msra.mxu0 %v1309
    %1693 = vmatprep.subr.bf16.mxu0 %v1314
    %1694 = vmatpush1.bf16.msra.mxu0 %v1313
    %1695 = vmatprep.subr.bf16.mxu0 %v1318
    %1696 = vmatpush1.bf16.msra.mxu0 %v1317
    %1697 = vmatprep.subr.bf16.mxu0 %v1322
    %1698 = vmatpush1.bf16.msra.mxu0 %v1321
    %1699 = vmatprep.mubr.bf16.mxu0 %v452
    %1700 = vmatmul.mubr.bf16.gmra.mrb[0].mxu0 %v451
    %v1701 = vpop.f32.mrb[0].mxu0
    %v1702 = vadd.f32 %v1659, %v1701
    %v1703 = vpop.f32.mrb[0].mxu0
    %v1704 = vadd.f32 %v1661, %v1703
    %v1705 = vpop.f32.mrb[0].mxu0
    %v1706 = vadd.f32 %v1663, %v1705
    %v1707 = vpop.f32.mrb[0].mxu0
    %v1708 = vadd.f32 %v1665, %v1707
    %1709 = vdwg.mxu0
    %1710 = vmatprep.subr.bf16.mxu0 %v1326
    %1711 = vmatpush1.bf16.msra.mxu0 %v1325
    %1712 = vmatprep.subr.bf16.mxu0 %v1330
    %1713 = vmatpush1.bf16.msra.mxu0 %v1329
    %1714 = vmatprep.subr.bf16.mxu0 %v1334
    %1715 = vmatpush1.bf16.msra.mxu0 %v1333
    %1716 = vmatprep.subr.bf16.mxu0 %v1338
    %1717 = vmatpush1.bf16.msra.mxu0 %v1337
    %1718 = vmatprep.subr.bf16.mxu0 %v1342
    %1719 = vmatpush1.bf16.msra.mxu0 %v1341
    %1720 = vmatprep.subr.bf16.mxu0 %v1346
    %1721 = vmatpush1.bf16.msra.mxu0 %v1345
    %1722 = vmatprep.subr.bf16.mxu0 %v1350
    %1723 = vmatpush1.bf16.msra.mxu0 %v1349
    %1724 = vmatprep.subr.bf16.mxu0 %v1354
    %1725 = vmatpush1.bf16.msra.mxu0 %v1353
    %1726 = vmatprep.subr.bf16.mxu0 0
    %1727 = vmatpush1.bf16.msra.mxu0 0
    %1728 = vmatprep.subr.bf16.mxu0 0
    %1729 = vmatpush1.bf16.msra.mxu0 0
    %1730 = vmatprep.subr.bf16.mxu0 0
    %1731 = vmatpush1.bf16.msra.mxu0 0
    %1732 = vmatprep.subr.bf16.mxu0 0
    %1733 = vmatpush1.bf16.msra.mxu0 0
    %1734 = vmatprep.subr.bf16.mxu0 0
    %1735 = vmatpush1.bf16.msra.mxu0 0
    %1736 = vmatprep.subr.bf16.mxu0 0
    %1737 = vmatpush1.bf16.msra.mxu0 0
    %1738 = vmatprep.subr.bf16.mxu0 0
    %1739 = vmatpush1.bf16.msra.mxu0 0
    %1740 = vmatprep.subr.bf16.mxu0 0
    %1741 = vmatpush1.bf16.msra.mxu0 0
    %1742 = vmatprep.mubr.bf16.mxu0 0
    %1743 = vmatmul.mubr.bf16.gmra.mrb[0].mxu0 %v453
    %v1744 = vpop.f32.mrb[0].mxu0
    %v1745 = vadd.f32 %v1702, %v1744
    %v1746 = vpop.f32.mrb[0].mxu0
    %v1747 = vadd.f32 %v1704, %v1746
    %v1748 = vpop.f32.mrb[0].mxu0
    %v1749 = vadd.f32 %v1706, %v1748
    %v1750 = vpop.f32.mrb[0].mxu0
    %v1751 = vadd.f32 %v1708, %v1750
    %1752 = vdwg.mxu0
    %1753 = vmatprep.subr.bf16.mxu0 %v1136
    %1754 = vmatpush1.bf16.msra.mxu0 %v1135
    %1755 = vmatprep.subr.bf16.mxu0 %v1140
    %1756 = vmatpush1.bf16.msra.mxu0 %v1139
    %1757 = vmatprep.subr.bf16.mxu0 %v1144
    %1758 = vmatpush1.bf16.msra.mxu0 %v1143
    %1759 = vmatprep.subr.bf16.mxu0 %v1148
    %1760 = vmatpush1.bf16.msra.mxu0 %v1147
    %1761 = vmatprep.subr.bf16.mxu0 %v1152
    %1762 = vmatpush1.bf16.msra.mxu0 %v1151
    %1763 = vmatprep.subr.bf16.mxu0 %v1156
    %1764 = vmatpush1.bf16.msra.mxu0 %v1155
    %1765 = vmatprep.subr.bf16.mxu0 %v1160
    %1766 = vmatpush1.bf16.msra.mxu0 %v1159
    %1767 = vmatprep.subr.bf16.mxu0 %v1164
    %1768 = vmatpush1.bf16.msra.mxu0 %v1163
    %1769 = vmatprep.subr.bf16.mxu0 %v1168
    %1770 = vmatpush1.bf16.msra.mxu0 %v1167
    %1771 = vmatprep.subr.bf16.mxu0 %v1172
    %1772 = vmatpush1.bf16.msra.mxu0 %v1171
    %1773 = vmatprep.subr.bf16.mxu0 %v1176
    %1774 = vmatpush1.bf16.msra.mxu0 %v1175
    %1775 = vmatprep.subr.bf16.mxu0 %v1180
    %1776 = vmatpush1.bf16.msra.mxu0 %v1179
    %1777 = vmatprep.subr.bf16.mxu0 %v1184
    %1778 = vmatpush1.bf16.msra.mxu0 %v1183
    %1779 = vmatprep.subr.bf16.mxu0 %v1188
    %1780 = vmatpush1.bf16.msra.mxu0 %v1187
    %1781 = vmatprep.subr.bf16.mxu0 %v1192
    %1782 = vmatpush1.bf16.msra.mxu0 %v1191
    %1783 = vmatprep.subr.bf16.mxu0 %v1196
    %1784 = vmatpush1.bf16.msra.mxu0 %v1195
    %1785 = vmatprep.mubr.bf16.mxu0 %v448
    %1786 = vmatmul.mubr.bf16.gmra.mrb[0].mxu0 %v447
    %v1787 = vpop.f32.mrb[0].mxu0
    %v1788 = vadd.f32 0.0, %v1787
    %v1789 = vpop.f32.mrb[0].mxu0
    %v1790 = vadd.f32 0.0, %v1789
    %v1791 = vpop.f32.mrb[0].mxu0
    %v1792 = vadd.f32 0.0, %v1791
    %v1793 = vpop.f32.mrb[0].mxu0
    %v1794 = vadd.f32 0.0, %v1793
    %1795 = vdwg.mxu0
    %1796 = vmatprep.subr.bf16.mxu0 %v1200
    %1797 = vmatpush1.bf16.msra.mxu0 %v1199
    %1798 = vmatprep.subr.bf16.mxu0 %v1204
    %1799 = vmatpush1.bf16.msra.mxu0 %v1203
    %1800 = vmatprep.subr.bf16.mxu0 %v1208
    %1801 = vmatpush1.bf16.msra.mxu0 %v1207
    %1802 = vmatprep.subr.bf16.mxu0 %v1212
    %1803 = vmatpush1.bf16.msra.mxu0 %v1211
    %1804 = vmatprep.subr.bf16.mxu0 %v1216
    %1805 = vmatpush1.bf16.msra.mxu0 %v1215
    %1806 = vmatprep.subr.bf16.mxu0 %v1220
    %1807 = vmatpush1.bf16.msra.mxu0 %v1219
    %1808 = vmatprep.subr.bf16.mxu0 %v1224
    %1809 = vmatpush1.bf16.msra.mxu0 %v1223
    %1810 = vmatprep.subr.bf16.mxu0 %v1228
    %1811 = vmatpush1.bf16.msra.mxu0 %v1227
    %1812 = vmatprep.subr.bf16.mxu0 %v1232
    %1813 = vmatpush1.bf16.msra.mxu0 %v1231
    %1814 = vmatprep.subr.bf16.mxu0 %v1236
    %1815 = vmatpush1.bf16.msra.mxu0 %v1235
    %1816 = vmatprep.subr.bf16.mxu0 %v1240
    %1817 = vmatpush1.bf16.msra.mxu0 %v1239
    %1818 = vmatprep.subr.bf16.mxu0 %v1244
    %1819 = vmatpush1.bf16.msra.mxu0 %v1243
    %1820 = vmatprep.subr.bf16.mxu0 %v1248
    %1821 = vmatpush1.bf16.msra.mxu0 %v1247
    %1822 = vmatprep.subr.bf16.mxu0 %v1252
    %1823 = vmatpush1.bf16.msra.mxu0 %v1251
    %1824 = vmatprep.subr.bf16.mxu0 %v1256
    %1825 = vmatpush1.bf16.msra.mxu0 %v1255
    %1826 = vmatprep.subr.bf16.mxu0 %v1260
    %1827 = vmatpush1.bf16.msra.mxu0 %v1259
    %1828 = vmatprep.mubr.bf16.mxu0 %v450
    %1829 = vmatmul.mubr.bf16.gmra.mrb[0].mxu0 %v449
    %v1830 = vpop.f32.mrb[0].mxu0
    %v1831 = vadd.f32 %v1788, %v1830
    %v1832 = vpop.f32.mrb[0].mxu0
    %v1833 = vadd.f32 %v1790, %v1832
    %v1834 = vpop.f32.mrb[0].mxu0
    %v1835 = vadd.f32 %v1792, %v1834
    %v1836 = vpop.f32.mrb[0].mxu0
    %v1837 = vadd.f32 %v1794, %v1836
    %1838 = vdwg.mxu0
    %1839 = vmatprep.subr.bf16.mxu0 %v1264
    %1840 = vmatpush1.bf16.msra.mxu0 %v1263
    %1841 = vmatprep.subr.bf16.mxu0 %v1268
    %1842 = vmatpush1.bf16.msra.mxu0 %v1267
    %1843 = vmatprep.subr.bf16.mxu0 %v1272
    %1844 = vmatpush1.bf16.msra.mxu0 %v1271
    %1845 = vmatprep.subr.bf16.mxu0 %v1276
    %1846 = vmatpush1.bf16.msra.mxu0 %v1275
    %1847 = vmatprep.subr.bf16.mxu0 %v1280
    %1848 = vmatpush1.bf16.msra.mxu0 %v1279
    %1849 = vmatprep.subr.bf16.mxu0 %v1284
    %1850 = vmatpush1.bf16.msra.mxu0 %v1283
    %1851 = vmatprep.subr.bf16.mxu0 %v1288
    %1852 = vmatpush1.bf16.msra.mxu0 %v1287
    %1853 = vmatprep.subr.bf16.mxu0 %v1292
    %1854 = vmatpush1.bf16.msra.mxu0 %v1291
    %1855 = vmatprep.subr.bf16.mxu0 %v1296
    %1856 = vmatpush1.bf16.msra.mxu0 %v1295
    %1857 = vmatprep.subr.bf16.mxu0 %v1300
    %1858 = vmatpush1.bf16.msra.mxu0 %v1299
    %1859 = vmatprep.subr.bf16.mxu0 %v1304
    %1860 = vmatpush1.bf16.msra.mxu0 %v1303
    %1861 = vmatprep.subr.bf16.mxu0 %v1308
    %1862 = vmatpush1.bf16.msra.mxu0 %v1307
    %1863 = vmatprep.subr.bf16.mxu0 %v1312
    %1864 = vmatpush1.bf16.msra.mxu0 %v1311
    %1865 = vmatprep.subr.bf16.mxu0 %v1316
    %1866 = vmatpush1.bf16.msra.mxu0 %v1315
    %1867 = vmatprep.subr.bf16.mxu0 %v1320
    %1868 = vmatpush1.bf16.msra.mxu0 %v1319
    %1869 = vmatprep.subr.bf16.mxu0 %v1324
    %1870 = vmatpush1.bf16.msra.mxu0 %v1323
    %1871 = vmatprep.mubr.bf16.mxu0 %v452
    %1872 = vmatmul.mubr.bf16.gmra.mrb[0].mxu0 %v451
    %v1873 = vpop.f32.mrb[0].mxu0
    %v1874 = vadd.f32 %v1831, %v1873
    %v1875 = vpop.f32.mrb[0].mxu0
    %v1876 = vadd.f32 %v1833, %v1875
    %v1877 = vpop.f32.mrb[0].mxu0
    %v1878 = vadd.f32 %v1835, %v1877
    %v1879 = vpop.f32.mrb[0].mxu0
    %v1880 = vadd.f32 %v1837, %v1879
    %1881 = vdwg.mxu0
    %1882 = vmatprep.subr.bf16.mxu0 %v1328
    %1883 = vmatpush1.bf16.msra.mxu0 %v1327
    %1884 = vmatprep.subr.bf16.mxu0 %v1332
    %1885 = vmatpush1.bf16.msra.mxu0 %v1331
    %1886 = vmatprep.subr.bf16.mxu0 %v1336
    %1887 = vmatpush1.bf16.msra.mxu0 %v1335
    %1888 = vmatprep.subr.bf16.mxu0 %v1340
    %1889 = vmatpush1.bf16.msra.mxu0 %v1339
    %1890 = vmatprep.subr.bf16.mxu0 %v1344
    %1891 = vmatpush1.bf16.msra.mxu0 %v1343
    %1892 = vmatprep.subr.bf16.mxu0 %v1348
    %1893 = vmatpush1.bf16.msra.mxu0 %v1347
    %1894 = vmatprep.subr.bf16.mxu0 %v1352
    %1895 = vmatpush1.bf16.msra.mxu0 %v1351
    %1896 = vmatprep.subr.bf16.mxu0 %v1356
    %1897 = vmatpush1.bf16.msra.mxu0 %v1355
    %1898 = vmatprep.subr.bf16.mxu0 0
    %1899 = vmatpush1.bf16.msra.mxu0 0
    %1900 = vmatprep.subr.bf16.mxu0 0
    %1901 = vmatpush1.bf16.msra.mxu0 0
    %1902 = vmatprep.subr.bf16.mxu0 0
    %1903 = vmatpush1.bf16.msra.mxu0 0
    %1904 = vmatprep.subr.bf16.mxu0 0
    %1905 = vmatpush1.bf16.msra.mxu0 0
    %1906 = vmatprep.subr.bf16.mxu0 0
    %1907 = vmatpush1.bf16.msra.mxu0 0
    %1908 = vmatprep.subr.bf16.mxu0 0
    %1909 = vmatpush1.bf16.msra.mxu0 0
    %1910 = vmatprep.subr.bf16.mxu0 0
    %1911 = vmatpush1.bf16.msra.mxu0 0
    %1912 = vmatprep.subr.bf16.mxu0 0
    %1913 = vmatpush1.bf16.msra.mxu0 0
    %1914 = vmatprep.mubr.bf16.mxu0 0
    %1915 = vmatmul.mubr.bf16.gmra.mrb[0].mxu0 %v453
    %v1916 = vpop.f32.mrb[0].mxu0
    %v1917 = vadd.f32 %v1874, %v1916
    %v1918 = vpop.f32.mrb[0].mxu0
    %v1919 = vadd.f32 %v1876, %v1918
    %v1920 = vpop.f32.mrb[0].mxu0
    %v1921 = vadd.f32 %v1878, %v1920
    %v1922 = vpop.f32.mrb[0].mxu0
    %v1923 = vadd.f32 %v1880, %v1922
    %1924 = vdwg.mxu0
    %v1925 = vpack.c.bf16 %v1749, %v1745
    %v1926 = vpack.c.bf16 %v1751, %v1747
    %v1927 = vpack.c.bf16 %v1921, %v1917
    %v1928 = vpack.c.bf16 %v1923, %v1919
    %v1929 = vld [vmem:[%s2] sm:$0xf]
    %v1931 = vlaneseq
    %v1932 = vshrl.u32 %v1931, 7
    %v1933 = vsub.s32 0, %v1932
    %v1934 = vrot.slane %v1929, %v1933
    %v1935 = vlaneseq
    %v1936 = vshrl.u32 %v1935, 7
    %v1937 = vsub.s32 1, %v1936
    %v1938 = vrot.slane %v1929, %v1937
    %v1939 = vlaneseq
    %v1940 = vshrl.u32 %v1939, 7
    %v1941 = vsub.s32 2, %v1940
    %v1942 = vrot.slane %v1929, %v1941
    %v1943 = vlaneseq
    %v1944 = vshrl.u32 %v1943, 7
    %v1945 = vsub.s32 3, %v1944
    %v1946 = vrot.slane %v1929, %v1945
    %v1951 = vpack.c.bf16 %v1934, %v1934
    %v1952 = vpack.c.bf16 %v1938, %v1938
    %v1953 = vpack.c.bf16 %v1942, %v1942
    %v1954 = vpack.c.bf16 %v1946, %v1946
    %v1956 = vpack.i.b16 %v1951, %v1951
    %v1958 = vlaneseq
    %v1959 = vshrl.u32 %v1958, 7
    %v1960 = vsub.s32 0, %v1959
    %v1961 = vrot.slane %v1956, %v1960
    %v1963 = vpack.i.b16 %v1952, %v1952
    %v1965 = vlaneseq
    %v1966 = vshrl.u32 %v1965, 7
    %v1967 = vsub.s32 0, %v1966
    %v1968 = vrot.slane %v1963, %v1967
    %v1970 = vpack.i.b16 %v1953, %v1953
    %v1972 = vlaneseq
    %v1973 = vshrl.u32 %v1972, 7
    %v1974 = vsub.s32 0, %v1973
    %v1975 = vrot.slane %v1970, %v1974
    %v1977 = vpack.i.b16 %v1954, %v1954
    %v1979 = vlaneseq
    %v1980 = vshrl.u32 %v1979, 7
    %v1981 = vsub.s32 0, %v1980
    %v1982 = vrot.slane %v1977, %v1981
    %v1983 = vadd.bf16 %v1925, %v1961
    %v1984 = vadd.bf16 %v1926, %v1968
    %v1985 = vadd.bf16 %v1927, %v1975
    %v1986 = vadd.bf16 %v1928, %v1982
    %vm1987 = vcmp.gt.bf16.partialorder %v1983, 0
    %vm1988 = vcmp.gt.bf16.partialorder %v1984, 0
    %vm1989 = vcmp.gt.bf16.partialorder %v1985, 0
    %vm1990 = vcmp.gt.bf16.partialorder %v1986, 0
    %v1991 = vmul.bf16 %v1983, 1036860877
    %v1992 = vmul.bf16 %v1984, 1036860877
    %v1993 = vmul.bf16 %v1985, 1036860877
    %v1994 = vmul.bf16 %v1986, 1036860877
    %v1995 = vsel %vm1987, %v1983, %v1991
    %v1996 = vsel %vm1988, %v1984, %v1992
    %v1997 = vsel %vm1989, %v1985, %v1993
    %v1998 = vsel %vm1990, %v1986, %v1994
    %v1999 = vld [vmem:[#allocation7] sm:$0xff]
    %v2000 = vld [vmem:[#allocation7 + $0x8] sm:$0xff]
    %v2001 = vld [vmem:[#allocation7 + $0x10] sm:$0xff]
    %v2002 = vld [vmem:[#allocation7 + $0x18] sm:$0xff]
    %v2003 = vld [vmem:[#allocation7 + $0x20] sm:$0xff]
    %v2004 = vld [vmem:[#allocation7 + $0x28] sm:$0xff]
    %v2005 = vld [vmem:[#allocation7 + $0x30] sm:$0xff]
    %v2006 = vld [vmem:[#allocation7 + $0x38] sm:$0xff]
    %v2007 = vld [vmem:[#allocation7 + $0x40] sm:$0xff]
    %v2008 = vld [vmem:[#allocation7 + $0x48] sm:$0xff]
    %v2009 = vld [vmem:[#allocation7 + $0x50] sm:$0xff]
    %v2010 = vld [vmem:[#allocation7 + $0x58] sm:$0xff]
    %v2011 = vld [vmem:[#allocation7 + $0x60] sm:$0xff]
    %v2012 = vld [vmem:[#allocation7 + $0x68] sm:$0xff]
    %v2013 = vld [vmem:[#allocation7 + $0x70] sm:$0xff]
    %v2014 = vld [vmem:[#allocation7 + $0x78] sm:$0xff]
    %v2015 = vld [vmem:[#allocation7 + $0x80] sm:$0xff]
    %v2016 = vld [vmem:[#allocation7 + $0x88] sm:$0xff]
    %v2017 = vld [vmem:[#allocation7 + $0x90] sm:$0xff]
    %v2018 = vld [vmem:[#allocation7 + $0x98] sm:$0xff]
    %v2019 = vld [vmem:[#allocation7 + $0xa0] sm:$0xff]
    %v2020 = vld [vmem:[#allocation7 + $0xa8] sm:$0xff]
    %v2021 = vld [vmem:[#allocation7 + $0xb0] sm:$0xff]
    %v2022 = vld [vmem:[#allocation7 + $0xb8] sm:$0xff]
    %v2023 = vld [vmem:[#allocation7 + $0xc0] sm:$0xff]
    %v2024 = vld [vmem:[#allocation7 + $0xc8] sm:$0xff]
    %v2025 = vld [vmem:[#allocation7 + $0xd0] sm:$0xff]
    %v2026 = vld [vmem:[#allocation7 + $0xd8] sm:$0xff]
    %v2027 = vld [vmem:[#allocation7 + $0xe0] sm:$0xff]
    %v2028 = vld [vmem:[#allocation7 + $0xe8] sm:$0xff]
    %v2029 = vld [vmem:[#allocation7 + $0xf0] sm:$0xff]
    %v2030 = vld [vmem:[#allocation7 + $0xf8] sm:$0xff]
    %v2031 = vld [vmem:[#allocation7 + $0x100] sm:$0xff]
    %v2032 = vld [vmem:[#allocation7 + $0x108] sm:$0xff]
    %v2033 = vld [vmem:[#allocation7 + $0x110] sm:$0xff]
    %v2034 = vld [vmem:[#allocation7 + $0x118] sm:$0xff]
    %v2035 = vld [vmem:[#allocation7 + $0x120] sm:$0xff]
    %v2036 = vld [vmem:[#allocation7 + $0x128] sm:$0xff]
    %v2037 = vld [vmem:[#allocation7 + $0x130] sm:$0xff]
    %v2038 = vld [vmem:[#allocation7 + $0x138] sm:$0xff]
    %v2039 = vld [vmem:[#allocation7 + $0x140] sm:$0xff]
    %v2040 = vld [vmem:[#allocation7 + $0x148] sm:$0xff]
    %v2041 = vld [vmem:[#allocation7 + $0x150] sm:$0xff]
    %v2042 = vld [vmem:[#allocation7 + $0x158] sm:$0xff]
    %v2043 = vld [vmem:[#allocation7 + $0x160] sm:$0xff]
    %v2044 = vld [vmem:[#allocation7 + $0x168] sm:$0xff]
    %v2045 = vld [vmem:[#allocation7 + $0x170] sm:$0xff]
    %v2046 = vld [vmem:[#allocation7 + $0x178] sm:$0xff]
    %v2047 = vld [vmem:[#allocation7 + $0x180] sm:$0xff]
    %v2048 = vld [vmem:[#allocation7 + $0x188] sm:$0xff]
    %v2049 = vld [vmem:[#allocation7 + $0x190] sm:$0xff]
    %v2050 = vld [vmem:[#allocation7 + $0x198] sm:$0xff]
    %v2051 = vld [vmem:[#allocation7 + $0x1a0] sm:$0xff]
    %v2052 = vld [vmem:[#allocation7 + $0x1a8] sm:$0xff]
    %v2053 = vld [vmem:[#allocation7 + $0x1b0] sm:$0xff]
    %v2054 = vld [vmem:[#allocation7 + $0x1b8] sm:$0xff]
    %v2055 = vld [vmem:[#allocation7 + $0x1c0] sm:$0xff]
    %v2056 = vld [vmem:[#allocation7 + $0x1c8] sm:$0xff]
    %v2057 = vld [vmem:[#allocation7 + $0x1d0] sm:$0xff]
    %v2058 = vld [vmem:[#allocation7 + $0x1d8] sm:$0xff]
    %v2059 = vld [vmem:[#allocation7 + $0x1e0] sm:$0xff]
    %v2060 = vld [vmem:[#allocation7 + $0x1e8] sm:$0xff]
    %v2061 = vld [vmem:[#allocation7 + $0x1f0] sm:$0xff]
    %v2062 = vld [vmem:[#allocation7 + $0x1f8] sm:$0xff]
    %v2127 = vunpack.c.l.b16 %v1999
    %v2128 = vunpack.c.h.b16 %v1999
    %v2129 = vunpack.c.l.b16 %v2000
    %v2130 = vunpack.c.h.b16 %v2000
    %v2131 = vunpack.c.l.b16 %v2001
    %v2132 = vunpack.c.h.b16 %v2001
    %v2133 = vunpack.c.l.b16 %v2002
    %v2134 = vunpack.c.h.b16 %v2002
    %v2135 = vunpack.c.l.b16 %v2003
    %v2136 = vunpack.c.h.b16 %v2003
    %v2137 = vunpack.c.l.b16 %v2004
    %v2138 = vunpack.c.h.b16 %v2004
    %v2139 = vunpack.c.l.b16 %v2005
    %v2140 = vunpack.c.h.b16 %v2005
    %v2141 = vunpack.c.l.b16 %v2006
    %v2142 = vunpack.c.h.b16 %v2006
    %v2143 = vunpack.c.l.b16 %v2007
    %v2144 = vunpack.c.h.b16 %v2007
    %v2145 = vunpack.c.l.b16 %v2008
    %v2146 = vunpack.c.h.b16 %v2008
    %v2147 = vunpack.c.l.b16 %v2009
    %v2148 = vunpack.c.h.b16 %v2009
    %v2149 = vunpack.c.l.b16 %v2010
    %v2150 = vunpack.c.h.b16 %v2010
    %v2151 = vunpack.c.l.b16 %v2011
    %v2152 = vunpack.c.h.b16 %v2011
    %v2153 = vunpack.c.l.b16 %v2012
    %v2154 = vunpack.c.h.b16 %v2012
    %v2155 = vunpack.c.l.b16 %v2013
    %v2156 = vunpack.c.h.b16 %v2013
    %v2157 = vunpack.c.l.b16 %v2014
    %v2158 = vunpack.c.h.b16 %v2014
    %v2159 = vunpack.c.l.b16 %v2015
    %v2160 = vunpack.c.h.b16 %v2015
    %v2161 = vunpack.c.l.b16 %v2016
    %v2162 = vunpack.c.h.b16 %v2016
    %v2163 = vunpack.c.l.b16 %v2017
    %v2164 = vunpack.c.h.b16 %v2017
    %v2165 = vunpack.c.l.b16 %v2018
    %v2166 = vunpack.c.h.b16 %v2018
    %v2167 = vunpack.c.l.b16 %v2019
    %v2168 = vunpack.c.h.b16 %v2019
    %v2169 = vunpack.c.l.b16 %v2020
    %v2170 = vunpack.c.h.b16 %v2020
    %v2171 = vunpack.c.l.b16 %v2021
    %v2172 = vunpack.c.h.b16 %v2021
    %v2173 = vunpack.c.l.b16 %v2022
    %v2174 = vunpack.c.h.b16 %v2022
    %v2175 = vunpack.c.l.b16 %v2023
    %v2176 = vunpack.c.h.b16 %v2023
    %v2177 = vunpack.c.l.b16 %v2024
    %v2178 = vunpack.c.h.b16 %v2024
    %v2179 = vunpack.c.l.b16 %v2025
    %v2180 = vunpack.c.h.b16 %v2025
    %v2181 = vunpack.c.l.b16 %v2026
    %v2182 = vunpack.c.h.b16 %v2026
    %v2183 = vunpack.c.l.b16 %v2027
    %v2184 = vunpack.c.h.b16 %v2027
    %v2185 = vunpack.c.l.b16 %v2028
    %v2186 = vunpack.c.h.b16 %v2028
    %v2187 = vunpack.c.l.b16 %v2029
    %v2188 = vunpack.c.h.b16 %v2029
    %v2189 = vunpack.c.l.b16 %v2030
    %v2190 = vunpack.c.h.b16 %v2030
    %v2191 = vunpack.c.l.b16 %v2031
    %v2192 = vunpack.c.h.b16 %v2031
    %v2193 = vunpack.c.l.b16 %v2032
    %v2194 = vunpack.c.h.b16 %v2032
    %v2195 = vunpack.c.l.b16 %v2033
    %v2196 = vunpack.c.h.b16 %v2033
    %v2197 = vunpack.c.l.b16 %v2034
    %v2198 = vunpack.c.h.b16 %v2034
    %v2199 = vunpack.c.l.b16 %v2035
    %v2200 = vunpack.c.h.b16 %v2035
    %v2201 = vunpack.c.l.b16 %v2036
    %v2202 = vunpack.c.h.b16 %v2036
    %v2203 = vunpack.c.l.b16 %v2037
    %v2204 = vunpack.c.h.b16 %v2037
    %v2205 = vunpack.c.l.b16 %v2038
    %v2206 = vunpack.c.h.b16 %v2038
    %v2207 = vunpack.c.l.b16 %v2039
    %v2208 = vunpack.c.h.b16 %v2039
    %v2209 = vunpack.c.l.b16 %v2040
    %v2210 = vunpack.c.h.b16 %v2040
    %v2211 = vunpack.c.l.b16 %v2041
    %v2212 = vunpack.c.h.b16 %v2041
    %v2213 = vunpack.c.l.b16 %v2042
    %v2214 = vunpack.c.h.b16 %v2042
    %v2215 = vunpack.c.l.b16 %v2043
    %v2216 = vunpack.c.h.b16 %v2043
    %v2217 = vunpack.c.l.b16 %v2044
    %v2218 = vunpack.c.h.b16 %v2044
    %v2219 = vunpack.c.l.b16 %v2045
    %v2220 = vunpack.c.h.b16 %v2045
    %v2221 = vunpack.c.l.b16 %v2046
    %v2222 = vunpack.c.h.b16 %v2046
    %v2223 = vunpack.c.l.b16 %v2047
    %v2224 = vunpack.c.h.b16 %v2047
    %v2225 = vunpack.c.l.b16 %v2048
    %v2226 = vunpack.c.h.b16 %v2048
    %v2227 = vunpack.c.l.b16 %v2049
    %v2228 = vunpack.c.h.b16 %v2049
    %v2229 = vunpack.c.l.b16 %v2050
    %v2230 = vunpack.c.h.b16 %v2050
    %v2231 = vunpack.c.l.b16 %v2051
    %v2232 = vunpack.c.h.b16 %v2051
    %v2233 = vunpack.c.l.b16 %v2052
    %v2234 = vunpack.c.h.b16 %v2052
    %v2235 = vunpack.c.l.b16 %v2053
    %v2236 = vunpack.c.h.b16 %v2053
    %v2237 = vunpack.c.l.b16 %v2054
    %v2238 = vunpack.c.h.b16 %v2054
    %v2239 = vunpack.c.l.b16 %v2055
    %v2240 = vunpack.c.h.b16 %v2055
    %v2241 = vunpack.c.l.b16 %v2056
    %v2242 = vunpack.c.h.b16 %v2056
    %v2243 = vunpack.c.l.b16 %v2057
    %v2244 = vunpack.c.h.b16 %v2057
    %v2245 = vunpack.c.l.b16 %v2058
    %v2246 = vunpack.c.h.b16 %v2058
    %v2247 = vunpack.c.l.b16 %v2059
    %v2248 = vunpack.c.h.b16 %v2059
    %v2249 = vunpack.c.l.b16 %v2060
    %v2250 = vunpack.c.h.b16 %v2060
    %v2251 = vunpack.c.l.b16 %v2061
    %v2252 = vunpack.c.h.b16 %v2061
    %v2253 = vunpack.c.l.b16 %v2062
    %v2254 = vunpack.c.h.b16 %v2062
    %v2255 = vpack.c.b16 %v2129, %v2127
    %v2256 = vpack.c.b16 %v2130, %v2128
    %v2257 = vpack.c.b16 %v2133, %v2131
    %v2258 = vpack.c.b16 %v2134, %v2132
    %v2259 = vpack.c.b16 %v2137, %v2135
    %v2260 = vpack.c.b16 %v2138, %v2136
    %v2261 = vpack.c.b16 %v2141, %v2139
    %v2262 = vpack.c.b16 %v2142, %v2140
    %v2263 = vpack.c.b16 %v2145, %v2143
    %v2264 = vpack.c.b16 %v2146, %v2144
    %v2265 = vpack.c.b16 %v2149, %v2147
    %v2266 = vpack.c.b16 %v2150, %v2148
    %v2267 = vpack.c.b16 %v2153, %v2151
    %v2268 = vpack.c.b16 %v2154, %v2152
    %v2269 = vpack.c.b16 %v2157, %v2155
    %v2270 = vpack.c.b16 %v2158, %v2156
    %v2271 = vpack.c.b16 %v2161, %v2159
    %v2272 = vpack.c.b16 %v2162, %v2160
    %v2273 = vpack.c.b16 %v2165, %v2163
    %v2274 = vpack.c.b16 %v2166, %v2164
    %v2275 = vpack.c.b16 %v2169, %v2167
    %v2276 = vpack.c.b16 %v2170, %v2168
    %v2277 = vpack.c.b16 %v2173, %v2171
    %v2278 = vpack.c.b16 %v2174, %v2172
    %v2279 = vpack.c.b16 %v2177, %v2175
    %v2280 = vpack.c.b16 %v2178, %v2176
    %v2281 = vpack.c.b16 %v2181, %v2179
    %v2282 = vpack.c.b16 %v2182, %v2180
    %v2283 = vpack.c.b16 %v2185, %v2183
    %v2284 = vpack.c.b16 %v2186, %v2184
    %v2285 = vpack.c.b16 %v2189, %v2187
    %v2286 = vpack.c.b16 %v2190, %v2188
    %v2287 = vpack.c.b16 %v2193, %v2191
    %v2288 = vpack.c.b16 %v2194, %v2192
    %v2289 = vpack.c.b16 %v2197, %v2195
    %v2290 = vpack.c.b16 %v2198, %v2196
    %v2291 = vpack.c.b16 %v2201, %v2199
    %v2292 = vpack.c.b16 %v2202, %v2200
    %v2293 = vpack.c.b16 %v2205, %v2203
    %v2294 = vpack.c.b16 %v2206, %v2204
    %v2295 = vpack.c.b16 %v2209, %v2207
    %v2296 = vpack.c.b16 %v2210, %v2208
    %v2297 = vpack.c.b16 %v2213, %v2211
    %v2298 = vpack.c.b16 %v2214, %v2212
    %v2299 = vpack.c.b16 %v2217, %v2215
    %v2300 = vpack.c.b16 %v2218, %v2216
    %v2301 = vpack.c.b16 %v2221, %v2219
    %v2302 = vpack.c.b16 %v2222, %v2220
    %v2303 = vpack.c.b16 %v2225, %v2223
    %v2304 = vpack.c.b16 %v2226, %v2224
    %v2305 = vpack.c.b16 %v2229, %v2227
    %v2306 = vpack.c.b16 %v2230, %v2228
    %v2307 = vpack.c.b16 %v2233, %v2231
    %v2308 = vpack.c.b16 %v2234, %v2232
    %v2309 = vpack.c.b16 %v2237, %v2235
    %v2310 = vpack.c.b16 %v2238, %v2236
    %v2311 = vpack.c.b16 %v2241, %v2239
    %v2312 = vpack.c.b16 %v2242, %v2240
    %v2313 = vpack.c.b16 %v2245, %v2243
    %v2314 = vpack.c.b16 %v2246, %v2244
    %v2315 = vpack.c.b16 %v2249, %v2247
    %v2316 = vpack.c.b16 %v2250, %v2248
    %v2317 = vpack.c.b16 %v2253, %v2251
    %v2318 = vpack.c.b16 %v2254, %v2252
    %2383 = vmatprep.subr.bf16.mxu0 %v2256
    %2384 = vmatpush1.bf16.msra.mxu0 %v2255
    %2385 = vmatprep.subr.bf16.mxu0 %v2258
    %2386 = vmatpush1.bf16.msra.mxu0 %v2257
    %2387 = vmatprep.subr.bf16.mxu0 %v2260
    %2388 = vmatpush1.bf16.msra.mxu0 %v2259
    %2389 = vmatprep.subr.bf16.mxu0 %v2262
    %2390 = vmatpush1.bf16.msra.mxu0 %v2261
    %2391 = vmatprep.subr.bf16.mxu0 %v2264
    %2392 = vmatpush1.bf16.msra.mxu0 %v2263
    %2393 = vmatprep.subr.bf16.mxu0 %v2266
    %2394 = vmatpush1.bf16.msra.mxu0 %v2265
    %2395 = vmatprep.subr.bf16.mxu0 %v2268
    %2396 = vmatpush1.bf16.msra.mxu0 %v2267
    %2397 = vmatprep.subr.bf16.mxu0 %v2270
    %2398 = vmatpush1.bf16.msra.mxu0 %v2269
    %2399 = vmatprep.subr.bf16.mxu0 %v2272
    %2400 = vmatpush1.bf16.msra.mxu0 %v2271
    %2401 = vmatprep.subr.bf16.mxu0 %v2274
    %2402 = vmatpush1.bf16.msra.mxu0 %v2273
    %2403 = vmatprep.subr.bf16.mxu0 %v2276
    %2404 = vmatpush1.bf16.msra.mxu0 %v2275
    %2405 = vmatprep.subr.bf16.mxu0 %v2278
    %2406 = vmatpush1.bf16.msra.mxu0 %v2277
    %2407 = vmatprep.subr.bf16.mxu0 %v2280
    %2408 = vmatpush1.bf16.msra.mxu0 %v2279
    %2409 = vmatprep.subr.bf16.mxu0 %v2282
    %2410 = vmatpush1.bf16.msra.mxu0 %v2281
    %2411 = vmatprep.subr.bf16.mxu0 %v2284
    %2412 = vmatpush1.bf16.msra.mxu0 %v2283
    %2413 = vmatprep.subr.bf16.mxu0 %v2286
    %2414 = vmatpush1.bf16.msra.mxu0 %v2285
    %2415 = vmatprep.mubr.bf16.mxu0 %v1996
    %2416 = vmatmul.mubr.bf16.gmra.mrb[0].mxu0 %v1995
    %v2417 = vpop.f32.mrb[0].mxu0
    %v2418 = vadd.f32 0.0, %v2417
    %v2419 = vpop.f32.mrb[0].mxu0
    %v2420 = vadd.f32 0.0, %v2419
    %v2421 = vpop.f32.mrb[0].mxu0
    %v2422 = vadd.f32 0.0, %v2421
    %v2423 = vpop.f32.mrb[0].mxu0
    %v2424 = vadd.f32 0.0, %v2423
    %2425 = vdwg.mxu0
    %2426 = vmatprep.subr.bf16.mxu0 %v2288
    %2427 = vmatpush1.bf16.msra.mxu0 %v2287
    %2428 = vmatprep.subr.bf16.mxu0 %v2290
    %2429 = vmatpush1.bf16.msra.mxu0 %v2289
    %2430 = vmatprep.subr.bf16.mxu0 %v2292
    %2431 = vmatpush1.bf16.msra.mxu0 %v2291
    %2432 = vmatprep.subr.bf16.mxu0 %v2294
    %2433 = vmatpush1.bf16.msra.mxu0 %v2293
    %2434 = vmatprep.subr.bf16.mxu0 %v2296
    %2435 = vmatpush1.bf16.msra.mxu0 %v2295
    %2436 = vmatprep.subr.bf16.mxu0 %v2298
    %2437 = vmatpush1.bf16.msra.mxu0 %v2297
    %2438 = vmatprep.subr.bf16.mxu0 %v2300
    %2439 = vmatpush1.bf16.msra.mxu0 %v2299
    %2440 = vmatprep.subr.bf16.mxu0 %v2302
    %2441 = vmatpush1.bf16.msra.mxu0 %v2301
    %2442 = vmatprep.subr.bf16.mxu0 %v2304
    %2443 = vmatpush1.bf16.msra.mxu0 %v2303
    %2444 = vmatprep.subr.bf16.mxu0 %v2306
    %2445 = vmatpush1.bf16.msra.mxu0 %v2305
    %2446 = vmatprep.subr.bf16.mxu0 %v2308
    %2447 = vmatpush1.bf16.msra.mxu0 %v2307
    %2448 = vmatprep.subr.bf16.mxu0 %v2310
    %2449 = vmatpush1.bf16.msra.mxu0 %v2309
    %2450 = vmatprep.subr.bf16.mxu0 %v2312
    %2451 = vmatpush1.bf16.msra.mxu0 %v2311
    %2452 = vmatprep.subr.bf16.mxu0 %v2314
    %2453 = vmatpush1.bf16.msra.mxu0 %v2313
    %2454 = vmatprep.subr.bf16.mxu0 %v2316
    %2455 = vmatpush1.bf16.msra.mxu0 %v2315
    %2456 = vmatprep.subr.bf16.mxu0 %v2318
    %2457 = vmatpush1.bf16.msra.mxu0 %v2317
    %2458 = vmatprep.mubr.bf16.mxu0 %v1998
    %2459 = vmatmul.mubr.bf16.gmra.mrb[0].mxu0 %v1997
    %v2460 = vpop.f32.mrb[0].mxu0
    %v2461 = vadd.f32 %v2418, %v2460
    %v2462 = vpop.f32.mrb[0].mxu0
    %v2463 = vadd.f32 %v2420, %v2462
    %v2464 = vpop.f32.mrb[0].mxu0
    %v2465 = vadd.f32 %v2422, %v2464
    %v2466 = vpop.f32.mrb[0].mxu0
    %v2467 = vadd.f32 %v2424, %v2466
    %2468 = vdwg.mxu0
    %v2469 = vpack.c.bf16 %v2465, %v2461
    %v2470 = vpack.c.bf16 %v2467, %v2463
    %v2471 = vld [vmem:[#allocation8] sm:$0x3]
    %v2473 = vlaneseq
    %v2474 = vshrl.u32 %v2473, 7
    %v2475 = vsub.s32 0, %v2474
    %v2476 = vrot.slane %v2471, %v2475
    %v2477 = vlaneseq
    %v2478 = vshrl.u32 %v2477, 7
    %v2479 = vsub.s32 1, %v2478
    %v2480 = vrot.slane %v2471, %v2479
    %v2483 = vpack.c.bf16 %v2476, %v2476
    %v2484 = vpack.c.bf16 %v2480, %v2480
    %v2486 = vpack.i.b16 %v2483, %v2483
    %v2488 = vlaneseq
    %v2489 = vshrl.u32 %v2488, 7
    %v2490 = vsub.s32 0, %v2489
    %v2491 = vrot.slane %v2486, %v2490
    %v2493 = vpack.i.b16 %v2484, %v2484
    %v2495 = vlaneseq
    %v2496 = vshrl.u32 %v2495, 7
    %v2497 = vsub.s32 0, %v2496
    %v2498 = vrot.slane %v2493, %v2497
    %v2499 = vadd.bf16 %v2469, %v2491
    %v2500 = vadd.bf16 %v2470, %v2498
    %vm2501 = vcmp.gt.bf16.partialorder %v2499, 0
    %vm2502 = vcmp.gt.bf16.partialorder %v2500, 0
    %v2503 = vmul.bf16 %v2499, 1036860877
    %v2504 = vmul.bf16 %v2500, 1036860877
    %v2505 = vsel %vm2501, %v2499, %v2503
    %v2506 = vsel %vm2502, %v2500, %v2504
    %v2507 = vld [vmem:[#allocation10] sm:$0xf]
    %v2508 = vld [vmem:[#allocation10 + $0x4] sm:$0xf]
    %v2509 = vld [vmem:[#allocation10 + $0x8] sm:$0xf]
    %v2510 = vld [vmem:[#allocation10 + $0xc] sm:$0xf]
    %v2511 = vld [vmem:[#allocation10 + $0x10] sm:$0xf]
    %v2512 = vld [vmem:[#allocation10 + $0x14] sm:$0xf]
    %v2513 = vld [vmem:[#allocation10 + $0x18] sm:$0xf]
    %v2514 = vld [vmem:[#allocation10 + $0x1c] sm:$0xf]
    %v2515 = vld [vmem:[#allocation10 + $0x20] sm:$0xf]
    %v2516 = vld [vmem:[#allocation10 + $0x24] sm:$0xf]
    %v2517 = vld [vmem:[#allocation10 + $0x28] sm:$0xf]
    %v2518 = vld [vmem:[#allocation10 + $0x2c] sm:$0xf]
    %v2519 = vld [vmem:[#allocation10 + $0x30] sm:$0xf]
    %v2520 = vld [vmem:[#allocation10 + $0x34] sm:$0xf]
    %v2521 = vld [vmem:[#allocation10 + $0x38] sm:$0xf]
    %v2522 = vld [vmem:[#allocation10 + $0x3c] sm:$0xf]
    %v2523 = vld [vmem:[#allocation10 + $0x40] sm:$0xf]
    %v2524 = vld [vmem:[#allocation10 + $0x44] sm:$0xf]
    %v2525 = vld [vmem:[#allocation10 + $0x48] sm:$0xf]
    %v2526 = vld [vmem:[#allocation10 + $0x4c] sm:$0xf]
    %v2527 = vld [vmem:[#allocation10 + $0x50] sm:$0xf]
    %v2528 = vld [vmem:[#allocation10 + $0x54] sm:$0xf]
    %v2529 = vld [vmem:[#allocation10 + $0x58] sm:$0xf]
    %v2530 = vld [vmem:[#allocation10 + $0x5c] sm:$0xf]
    %v2531 = vld [vmem:[#allocation10 + $0x60] sm:$0xf]
    %v2532 = vld [vmem:[#allocation10 + $0x64] sm:$0xf]
    %v2533 = vld [vmem:[#allocation10 + $0x68] sm:$0xf]
    %v2534 = vld [vmem:[#allocation10 + $0x6c] sm:$0xf]
    %v2535 = vld [vmem:[#allocation10 + $0x70] sm:$0xf]
    %v2536 = vld [vmem:[#allocation10 + $0x74] sm:$0xf]
    %v2537 = vld [vmem:[#allocation10 + $0x78] sm:$0xf]
    %v2538 = vld [vmem:[#allocation10 + $0x7c] sm:$0xf]
    %v2571 = vunpack.c.l.b16 %v2507
    %v2572 = vunpack.c.l.b16 %v2508
    %v2573 = vunpack.c.l.b16 %v2509
    %v2574 = vunpack.c.l.b16 %v2510
    %v2575 = vunpack.c.l.b16 %v2511
    %v2576 = vunpack.c.l.b16 %v2512
    %v2577 = vunpack.c.l.b16 %v2513
    %v2578 = vunpack.c.l.b16 %v2514
    %v2579 = vunpack.c.l.b16 %v2515
    %v2580 = vunpack.c.l.b16 %v2516
    %v2581 = vunpack.c.l.b16 %v2517
    %v2582 = vunpack.c.l.b16 %v2518
    %v2583 = vunpack.c.l.b16 %v2519
    %v2584 = vunpack.c.l.b16 %v2520
    %v2585 = vunpack.c.l.b16 %v2521
    %v2586 = vunpack.c.l.b16 %v2522
    %v2587 = vunpack.c.l.b16 %v2523
    %v2588 = vunpack.c.l.b16 %v2524
    %v2589 = vunpack.c.l.b16 %v2525
    %v2590 = vunpack.c.l.b16 %v2526
    %v2591 = vunpack.c.l.b16 %v2527
    %v2592 = vunpack.c.l.b16 %v2528
    %v2593 = vunpack.c.l.b16 %v2529
    %v2594 = vunpack.c.l.b16 %v2530
    %v2595 = vunpack.c.l.b16 %v2531
    %v2596 = vunpack.c.l.b16 %v2532
    %v2597 = vunpack.c.l.b16 %v2533
    %v2598 = vunpack.c.l.b16 %v2534
    %v2599 = vunpack.c.l.b16 %v2535
    %v2600 = vunpack.c.l.b16 %v2536
    %v2601 = vunpack.c.l.b16 %v2537
    %v2602 = vunpack.c.l.b16 %v2538
    %v2603 = vpack.c.b16 %v2572, %v2571
    %v2604 = vpack.c.b16 %v2574, %v2573
    %v2605 = vpack.c.b16 %v2576, %v2575
    %v2606 = vpack.c.b16 %v2578, %v2577
    %v2607 = vpack.c.b16 %v2580, %v2579
    %v2608 = vpack.c.b16 %v2582, %v2581
    %v2609 = vpack.c.b16 %v2584, %v2583
    %v2610 = vpack.c.b16 %v2586, %v2585
    %v2611 = vpack.c.b16 %v2588, %v2587
    %v2612 = vpack.c.b16 %v2590, %v2589
    %v2613 = vpack.c.b16 %v2592, %v2591
    %v2614 = vpack.c.b16 %v2594, %v2593
    %v2615 = vpack.c.b16 %v2596, %v2595
    %v2616 = vpack.c.b16 %v2598, %v2597
    %v2617 = vpack.c.b16 %v2600, %v2599
    %v2618 = vpack.c.b16 %v2602, %v2601
    %2635 = vmatprep.subr.bf16.mxu0 0
    %2636 = vmatpush1.bf16.msra.mxu0 %v2603
    %2637 = vmatprep.subr.bf16.mxu0 0
    %2638 = vmatpush1.bf16.msra.mxu0 %v2604
    %2639 = vmatprep.subr.bf16.mxu0 0
    %2640 = vmatpush1.bf16.msra.mxu0 %v2605
    %2641 = vmatprep.subr.bf16.mxu0 0
    %2642 = vmatpush1.bf16.msra.mxu0 %v2606
    %2643 = vmatprep.subr.bf16.mxu0 0
    %2644 = vmatpush1.bf16.msra.mxu0 %v2607
    %2645 = vmatprep.subr.bf16.mxu0 0
    %2646 = vmatpush1.bf16.msra.mxu0 %v2608
    %2647 = vmatprep.subr.bf16.mxu0 0
    %2648 = vmatpush1.bf16.msra.mxu0 %v2609
    %2649 = vmatprep.subr.bf16.mxu0 0
    %2650 = vmatpush1.bf16.msra.mxu0 %v2610
    %2651 = vmatprep.subr.bf16.mxu0 0
    %2652 = vmatpush1.bf16.msra.mxu0 %v2611
    %2653 = vmatprep.subr.bf16.mxu0 0
    %2654 = vmatpush1.bf16.msra.mxu0 %v2612
    %2655 = vmatprep.subr.bf16.mxu0 0
    %2656 = vmatpush1.bf16.msra.mxu0 %v2613
    %2657 = vmatprep.subr.bf16.mxu0 0
    %2658 = vmatpush1.bf16.msra.mxu0 %v2614
    %2659 = vmatprep.subr.bf16.mxu0 0
    %2660 = vmatpush1.bf16.msra.mxu0 %v2615
    %2661 = vmatprep.subr.bf16.mxu0 0
    %2662 = vmatpush1.bf16.msra.mxu0 %v2616
    %2663 = vmatprep.subr.bf16.mxu0 0
    %2664 = vmatpush1.bf16.msra.mxu0 %v2617
    %2665 = vmatprep.subr.bf16.mxu0 0
    %2666 = vmatpush1.bf16.msra.mxu0 %v2618
    %2667 = vmatprep.mubr.bf16.mxu0 %v2506
    %2668 = vmatmul.mubr.bf16.gmra.mrb[0].mxu0 %v2505
    %v2669 = vpop.f32.mrb[0].mxu0
    %v2670 = vadd.f32 0.0, %v2669
    %v2671 = vpop.f32.mrb[0].mxu0
    %v2672 = vpop.f32.mrb[0].mxu0
    %v2673 = vadd.f32 0.0, %v2672
    %v2674 = vpop.f32.mrb[0].mxu0
    %2675 = vdwg.mxu0
    %v2676 = vpack.c.bf16 %v2673, %v2670
    %v2677 = vld [vmem:[%s6] sm:$0x1]
    %v2678 = vpack.c.bf16 %v2677, %v2677
    %v2680 = vpack.i.b16 %v2678, %v2678
    %v2682 = vlaneseq
    %v2683 = vshrl.u32 %v2682, 7
    %v2684 = vsub.s32 0, %v2683
    %v2685 = vrot.slane %v2680, %v2684
    %v2686 = vadd.bf16 %v2676, %v2685
    %vm2687 = vcmp.gt.bf16.partialorder %v2686, 0
    %v2688 = vmul.bf16 %v2686, 1036860877
    %v2689 = vsel %vm2687, %v2686, %v2688
    %v2690 = vld [vmem:[#allocation11] sm:$0xf]
    %v2691 = vld [vmem:[#allocation11 + $0x4] sm:$0xf]
    %v2692 = vld [vmem:[#allocation11 + $0x8] sm:$0xf]
    %v2693 = vld [vmem:[#allocation11 + $0xc] sm:$0xf]
    %v2694 = vld [vmem:[#allocation11 + $0x10] sm:$0xf]
    %v2695 = vld [vmem:[#allocation11 + $0x14] sm:$0xf]
    %v2696 = vld [vmem:[#allocation11 + $0x18] sm:$0xf]
    %v2697 = vld [vmem:[#allocation11 + $0x1c] sm:$0xf]
    %v2698 = vld [vmem:[#allocation11 + $0x20] sm:$0xf]
    %v2699 = vld [vmem:[#allocation11 + $0x24] sm:$0xf]
    %v2700 = vld [vmem:[#allocation11 + $0x28] sm:$0xf]
    %v2701 = vld [vmem:[#allocation11 + $0x2c] sm:$0xf]
    %v2702 = vld [vmem:[#allocation11 + $0x30] sm:$0xf]
    %v2703 = vld [vmem:[#allocation11 + $0x34] sm:$0xf]
    %v2704 = vld [vmem:[#allocation11 + $0x38] sm:$0xf]
    %v2705 = vld [vmem:[#allocation11 + $0x3c] sm:$0xf]
    %v2722 = vunpack.c.l.b16 %v2690
    %v2723 = vunpack.c.l.b16 %v2691
    %v2724 = vunpack.c.l.b16 %v2692
    %v2725 = vunpack.c.l.b16 %v2693
    %v2726 = vunpack.c.l.b16 %v2694
    %v2727 = vunpack.c.l.b16 %v2695
    %v2728 = vunpack.c.l.b16 %v2696
    %v2729 = vunpack.c.l.b16 %v2697
    %v2730 = vunpack.c.l.b16 %v2698
    %v2731 = vunpack.c.l.b16 %v2699
    %v2732 = vunpack.c.l.b16 %v2700
    %v2733 = vunpack.c.l.b16 %v2701
    %v2734 = vunpack.c.l.b16 %v2702
    %v2735 = vunpack.c.l.b16 %v2703
    %v2736 = vunpack.c.l.b16 %v2704
    %v2737 = vunpack.c.l.b16 %v2705
    %v2738 = vpack.c.b16 %v2723, %v2722
    %v2739 = vpack.c.b16 %v2725, %v2724
    %v2740 = vpack.c.b16 %v2727, %v2726
    %v2741 = vpack.c.b16 %v2729, %v2728
    %v2742 = vpack.c.b16 %v2731, %v2730
    %v2743 = vpack.c.b16 %v2733, %v2732
    %v2744 = vpack.c.b16 %v2735, %v2734
    %v2745 = vpack.c.b16 %v2737, %v2736
    %2754 = vmatprep.subr.bf16.mxu0 0
    %2755 = vmatpush1.bf16.msra.mxu0 %v2738
    %2756 = vmatprep.subr.bf16.mxu0 0
    %2757 = vmatpush1.bf16.msra.mxu0 %v2739
    %2758 = vmatprep.subr.bf16.mxu0 0
    %2759 = vmatpush1.bf16.msra.mxu0 %v2740
    %2760 = vmatprep.subr.bf16.mxu0 0
    %2761 = vmatpush1.bf16.msra.mxu0 %v2741
    %2762 = vmatprep.subr.bf16.mxu0 0
    %2763 = vmatpush1.bf16.msra.mxu0 %v2742
    %2764 = vmatprep.subr.bf16.mxu0 0
    %2765 = vmatpush1.bf16.msra.mxu0 %v2743
    %2766 = vmatprep.subr.bf16.mxu0 0
    %2767 = vmatpush1.bf16.msra.mxu0 %v2744
    %2768 = vmatprep.subr.bf16.mxu0 0
    %2769 = vmatpush1.bf16.msra.mxu0 %v2745
    %2770 = vmatprep.subr.bf16.mxu0 0
    %2771 = vmatpush1.bf16.msra.mxu0 0
    %2772 = vmatprep.subr.bf16.mxu0 0
    %2773 = vmatpush1.bf16.msra.mxu0 0
    %2774 = vmatprep.subr.bf16.mxu0 0
    %2775 = vmatpush1.bf16.msra.mxu0 0
    %2776 = vmatprep.subr.bf16.mxu0 0
    %2777 = vmatpush1.bf16.msra.mxu0 0
    %2778 = vmatprep.subr.bf16.mxu0 0
    %2779 = vmatpush1.bf16.msra.mxu0 0
    %2780 = vmatprep.subr.bf16.mxu0 0
    %2781 = vmatpush1.bf16.msra.mxu0 0
    %2782 = vmatprep.subr.bf16.mxu0 0
    %2783 = vmatpush1.bf16.msra.mxu0 0
    %2784 = vmatprep.subr.bf16.mxu0 0
    %2785 = vmatpush1.bf16.msra.mxu0 0
    %2786 = vmatprep.mubr.bf16.mxu0 0
    %2787 = vmatmul.mubr.bf16.gmra.mrb[0].mxu0 %v2689
    %v2788 = vpop.f32.mrb[0].mxu0
    %v2789 = vadd.f32 0.0, %v2788
    %v2790 = vpop.f32.mrb[0].mxu0
    %v2791 = vpop.f32.mrb[0].mxu0
    %v2792 = vadd.f32 0.0, %v2791
    %v2793 = vpop.f32.mrb[0].mxu0
    %2794 = vdwg.mxu0
    %v2795 = vpack.c.bf16 %v2792, %v2789
    %v2796 = vld [vmem:[%s8] sm:$0x1]
    %v2797 = vpack.c.bf16 %v2796, %v2796
    %v2799 = vpack.i.b16 %v2797, %v2797
    %v2801 = vlaneseq
    %v2802 = vshrl.u32 %v2801, 7
    %v2803 = vsub.s32 0, %v2802
    %v2804 = vrot.slane %v2799, %v2803
    %v2805 = vadd.bf16 %v2795, %v2804
    %vm2806 = vcmp.gt.bf16.partialorder %v2805, 0
    %v2807 = vmul.bf16 %v2805, 1036860877
    %v2808 = vsel %vm2806, %v2805, %v2807
    %v2809 = vld [vmem:[#allocation13] sm:$0xf]
    %v2810 = vld [vmem:[#allocation13 + $0x4] sm:$0xf]
    %v2811 = vld [vmem:[#allocation13 + $0x8] sm:$0xf]
    %v2812 = vld [vmem:[#allocation13 + $0xc] sm:$0xf]
    %v2813 = vld [vmem:[#allocation13 + $0x10] sm:$0xf]
    %v2814 = vld [vmem:[#allocation13 + $0x14] sm:$0xf]
    %v2815 = vld [vmem:[#allocation13 + $0x18] sm:$0xf]
    %v2816 = vld [vmem:[#allocation13 + $0x1c] sm:$0xf]
    %v2817 = vld [vmem:[#allocation13 + $0x20] sm:$0xf]
    %v2818 = vld [vmem:[#allocation13 + $0x24] sm:$0xf]
    %v2819 = vld [vmem:[#allocation13 + $0x28] sm:$0xf]
    %v2820 = vld [vmem:[#allocation13 + $0x2c] sm:$0xf]
    %v2821 = vld [vmem:[#allocation13 + $0x30] sm:$0xf]
    %v2822 = vld [vmem:[#allocation13 + $0x34] sm:$0xf]
    %v2823 = vld [vmem:[#allocation13 + $0x38] sm:$0xf]
    %v2824 = vld [vmem:[#allocation13 + $0x3c] sm:$0xf]
    %v2841 = vunpack.c.l.b16 %v2809
    %v2842 = vunpack.c.l.b16 %v2810
    %v2843 = vunpack.c.l.b16 %v2811
    %v2844 = vunpack.c.l.b16 %v2812
    %v2845 = vunpack.c.l.b16 %v2813
    %v2846 = vunpack.c.l.b16 %v2814
    %v2847 = vunpack.c.l.b16 %v2815
    %v2848 = vunpack.c.l.b16 %v2816
    %v2849 = vunpack.c.l.b16 %v2817
    %v2850 = vunpack.c.l.b16 %v2818
    %v2851 = vunpack.c.l.b16 %v2819
    %v2852 = vunpack.c.l.b16 %v2820
    %v2853 = vunpack.c.l.b16 %v2821
    %v2854 = vunpack.c.l.b16 %v2822
    %v2855 = vunpack.c.l.b16 %v2823
    %v2856 = vunpack.c.l.b16 %v2824
    %v2857 = vpack.c.b16 %v2842, %v2841
    %v2858 = vpack.c.b16 %v2844, %v2843
    %v2859 = vpack.c.b16 %v2846, %v2845
    %v2860 = vpack.c.b16 %v2848, %v2847
    %v2861 = vpack.c.b16 %v2850, %v2849
    %v2862 = vpack.c.b16 %v2852, %v2851
    %v2863 = vpack.c.b16 %v2854, %v2853
    %v2864 = vpack.c.b16 %v2856, %v2855
    %2873 = vmatprep.subr.bf16.mxu0 0
    %2874 = vmatpush1.bf16.msra.mxu0 %v2857
    %2875 = vmatprep.subr.bf16.mxu0 0
    %2876 = vmatpush1.bf16.msra.mxu0 %v2858
    %2877 = vmatprep.subr.bf16.mxu0 0
    %2878 = vmatpush1.bf16.msra.mxu0 %v2859
    %2879 = vmatprep.subr.bf16.mxu0 0
    %2880 = vmatpush1.bf16.msra.mxu0 %v2860
    %2881 = vmatprep.subr.bf16.mxu0 0
    %2882 = vmatpush1.bf16.msra.mxu0 %v2861
    %2883 = vmatprep.subr.bf16.mxu0 0
    %2884 = vmatpush1.bf16.msra.mxu0 %v2862
    %2885 = vmatprep.subr.bf16.mxu0 0
    %2886 = vmatpush1.bf16.msra.mxu0 %v2863
    %2887 = vmatprep.subr.bf16.mxu0 0
    %2888 = vmatpush1.bf16.msra.mxu0 %v2864
    %2889 = vmatprep.subr.bf16.mxu0 0
    %2890 = vmatpush1.bf16.msra.mxu0 0
    %2891 = vmatprep.subr.bf16.mxu0 0
    %2892 = vmatpush1.bf16.msra.mxu0 0
    %2893 = vmatprep.subr.bf16.mxu0 0
    %2894 = vmatpush1.bf16.msra.mxu0 0
    %2895 = vmatprep.subr.bf16.mxu0 0
    %2896 = vmatpush1.bf16.msra.mxu0 0
    %2897 = vmatprep.subr.bf16.mxu0 0
    %2898 = vmatpush1.bf16.msra.mxu0 0
    %2899 = vmatprep.subr.bf16.mxu0 0
    %2900 = vmatpush1.bf16.msra.mxu0 0
    %2901 = vmatprep.subr.bf16.mxu0 0
    %2902 = vmatpush1.bf16.msra.mxu0 0
    %2903 = vmatprep.subr.bf16.mxu0 0
    %2904 = vmatpush1.bf16.msra.mxu0 0
    %2905 = vmatprep.mubr.bf16.mxu0 0
    %2906 = vmatmul.mubr.bf16.gmra.mrb[0].mxu0 %v2808
    %v2907 = vpop.f32.mrb[0].mxu0
    %v2908 = vadd.f32 0.0, %v2907
    %v2909 = vpop.f32.mrb[0].mxu0
    %v2910 = vpop.f32.mrb[0].mxu0
    %v2911 = vadd.f32 0.0, %v2910
    %v2912 = vpop.f32.mrb[0].mxu0
    %2913 = vdwg.mxu0
    %v2914 = vpack.c.bf16 %v2911, %v2908
    %v2915 = vld [vmem:[%s10] sm:$0x1]
    %v2916 = vpack.c.bf16 %v2915, %v2915
    %v2918 = vpack.i.b16 %v2916, %v2916
    %v2920 = vlaneseq
    %v2921 = vshrl.u32 %v2920, 7
    %v2922 = vsub.s32 0, %v2921
    %v2923 = vrot.slane %v2918, %v2922
    %v2924 = vadd.bf16 %v2914, %v2923
    %vm2925 = vcmp.gt.bf16.partialorder %v2924, 0
    %v2926 = vmul.bf16 %v2924, 1036860877
    %v2927 = vsel %vm2925, %v2924, %v2926
    %v2928 = vld [vmem:[#allocation14] sm:$0xff]
    %v2929 = vld [vmem:[#allocation14 + $0x8] sm:$0xff]
    %v2930 = vld [vmem:[#allocation14 + $0x10] sm:$0xff]
    %v2931 = vld [vmem:[#allocation14 + $0x18] sm:$0xff]
    %v2932 = vld [vmem:[#allocation14 + $0x20] sm:$0xff]
    %v2933 = vld [vmem:[#allocation14 + $0x28] sm:$0xff]
    %v2934 = vld [vmem:[#allocation14 + $0x30] sm:$0xff]
    %v2935 = vld [vmem:[#allocation14 + $0x38] sm:$0xff]
    %v2936 = vld [vmem:[#allocation14 + $0x40] sm:$0xff]
    %v2937 = vld [vmem:[#allocation14 + $0x48] sm:$0xff]
    %v2938 = vld [vmem:[#allocation14 + $0x50] sm:$0xff]
    %v2939 = vld [vmem:[#allocation14 + $0x58] sm:$0xff]
    %v2940 = vld [vmem:[#allocation14 + $0x60] sm:$0xff]
    %v2941 = vld [vmem:[#allocation14 + $0x68] sm:$0xff]
    %v2942 = vld [vmem:[#allocation14 + $0x70] sm:$0xff]
    %v2943 = vld [vmem:[#allocation14 + $0x78] sm:$0xff]
    %v2960 = vunpack.c.l.b16 %v2928
    %v2961 = vunpack.c.h.b16 %v2928
    %v2962 = vunpack.c.l.b16 %v2929
    %v2963 = vunpack.c.h.b16 %v2929
    %v2964 = vunpack.c.l.b16 %v2930
    %v2965 = vunpack.c.h.b16 %v2930
    %v2966 = vunpack.c.l.b16 %v2931
    %v2967 = vunpack.c.h.b16 %v2931
    %v2968 = vunpack.c.l.b16 %v2932
    %v2969 = vunpack.c.h.b16 %v2932
    %v2970 = vunpack.c.l.b16 %v2933
    %v2971 = vunpack.c.h.b16 %v2933
    %v2972 = vunpack.c.l.b16 %v2934
    %v2973 = vunpack.c.h.b16 %v2934
    %v2974 = vunpack.c.l.b16 %v2935
    %v2975 = vunpack.c.h.b16 %v2935
    %v2976 = vunpack.c.l.b16 %v2936
    %v2977 = vunpack.c.h.b16 %v2936
    %v2978 = vunpack.c.l.b16 %v2937
    %v2979 = vunpack.c.h.b16 %v2937
    %v2980 = vunpack.c.l.b16 %v2938
    %v2981 = vunpack.c.h.b16 %v2938
    %v2982 = vunpack.c.l.b16 %v2939
    %v2983 = vunpack.c.h.b16 %v2939
    %v2984 = vunpack.c.l.b16 %v2940
    %v2985 = vunpack.c.h.b16 %v2940
    %v2986 = vunpack.c.l.b16 %v2941
    %v2987 = vunpack.c.h.b16 %v2941
    %v2988 = vunpack.c.l.b16 %v2942
    %v2989 = vunpack.c.h.b16 %v2942
    %v2990 = vunpack.c.l.b16 %v2943
    %v2991 = vunpack.c.h.b16 %v2943
    %v2992 = vpack.c.b16 %v2962, %v2960
    %v2993 = vpack.c.b16 %v2963, %v2961
    %v2994 = vpack.c.b16 %v2966, %v2964
    %v2995 = vpack.c.b16 %v2967, %v2965
    %v2996 = vpack.c.b16 %v2970, %v2968
    %v2997 = vpack.c.b16 %v2971, %v2969
    %v2998 = vpack.c.b16 %v2974, %v2972
    %v2999 = vpack.c.b16 %v2975, %v2973
    %v3000 = vpack.c.b16 %v2978, %v2976
    %v3001 = vpack.c.b16 %v2979, %v2977
    %v3002 = vpack.c.b16 %v2982, %v2980
    %v3003 = vpack.c.b16 %v2983, %v2981
    %v3004 = vpack.c.b16 %v2986, %v2984
    %v3005 = vpack.c.b16 %v2987, %v2985
    %v3006 = vpack.c.b16 %v2990, %v2988
    %v3007 = vpack.c.b16 %v2991, %v2989
    %3024 = vmatprep.subr.bf16.mxu0 %v2993
    %3025 = vmatpush1.bf16.msra.mxu0 %v2992
    %3026 = vmatprep.subr.bf16.mxu0 %v2995
    %3027 = vmatpush1.bf16.msra.mxu0 %v2994
    %3028 = vmatprep.subr.bf16.mxu0 %v2997
    %3029 = vmatpush1.bf16.msra.mxu0 %v2996
    %3030 = vmatprep.subr.bf16.mxu0 %v2999
    %3031 = vmatpush1.bf16.msra.mxu0 %v2998
    %3032 = vmatprep.subr.bf16.mxu0 %v3001
    %3033 = vmatpush1.bf16.msra.mxu0 %v3000
    %3034 = vmatprep.subr.bf16.mxu0 %v3003
    %3035 = vmatpush1.bf16.msra.mxu0 %v3002
    %3036 = vmatprep.subr.bf16.mxu0 %v3005
    %3037 = vmatpush1.bf16.msra.mxu0 %v3004
    %3038 = vmatprep.subr.bf16.mxu0 %v3007
    %3039 = vmatpush1.bf16.msra.mxu0 %v3006
    %3040 = vmatprep.subr.bf16.mxu0 0
    %3041 = vmatpush1.bf16.msra.mxu0 0
    %3042 = vmatprep.subr.bf16.mxu0 0
    %3043 = vmatpush1.bf16.msra.mxu0 0
    %3044 = vmatprep.subr.bf16.mxu0 0
    %3045 = vmatpush1.bf16.msra.mxu0 0
    %3046 = vmatprep.subr.bf16.mxu0 0
    %3047 = vmatpush1.bf16.msra.mxu0 0
    %3048 = vmatprep.subr.bf16.mxu0 0
    %3049 = vmatpush1.bf16.msra.mxu0 0
    %3050 = vmatprep.subr.bf16.mxu0 0
    %3051 = vmatpush1.bf16.msra.mxu0 0
    %3052 = vmatprep.subr.bf16.mxu0 0
    %3053 = vmatpush1.bf16.msra.mxu0 0
    %3054 = vmatprep.subr.bf16.mxu0 0
    %3055 = vmatpush1.bf16.msra.mxu0 0
    %3056 = vmatprep.mubr.bf16.mxu0 0
    %3057 = vmatmul.mubr.bf16.gmra.mrb[0].mxu0 %v2927
    %v3058 = vpop.f32.mrb[0].mxu0
    %v3059 = vadd.f32 0.0, %v3058
    %v3060 = vpop.f32.mrb[0].mxu0
    %v3061 = vadd.f32 0.0, %v3060
    %v3062 = vpop.f32.mrb[0].mxu0
    %v3063 = vadd.f32 0.0, %v3062
    %v3064 = vpop.f32.mrb[0].mxu0
    %v3065 = vadd.f32 0.0, %v3064
    %3066 = vdwg.mxu0
    %v3067 = vpack.c.bf16 %v3063, %v3059
    %v3068 = vpack.c.bf16 %v3065, %v3061
    %v3069 = vld [vmem:[%s12] sm:$0x3]
    %v3071 = vlaneseq
    %v3072 = vshrl.u32 %v3071, 7
    %v3073 = vsub.s32 0, %v3072
    %v3074 = vrot.slane %v3069, %v3073
    %v3075 = vlaneseq
    %v3076 = vshrl.u32 %v3075, 7
    %v3077 = vsub.s32 1, %v3076
    %v3078 = vrot.slane %v3069, %v3077
    %v3081 = vpack.c.bf16 %v3074, %v3074
    %v3082 = vpack.c.bf16 %v3078, %v3078
    %v3084 = vpack.i.b16 %v3081, %v3081
    %v3086 = vlaneseq
    %v3087 = vshrl.u32 %v3086, 7
    %v3088 = vsub.s32 0, %v3087
    %v3089 = vrot.slane %v3084, %v3088
    %v3091 = vpack.i.b16 %v3082, %v3082
    %v3093 = vlaneseq
    %v3094 = vshrl.u32 %v3093, 7
    %v3095 = vsub.s32 0, %v3094
    %v3096 = vrot.slane %v3091, %v3095
    %v3097 = vadd.bf16 %v3067, %v3089
    %v3098 = vadd.bf16 %v3068, %v3096
    %vm3099 = vcmp.gt.bf16.partialorder %v3097, 0
    %vm3100 = vcmp.gt.bf16.partialorder %v3098, 0
    %v3101 = vmul.bf16 %v3097, 1036860877
    %v3102 = vmul.bf16 %v3098, 1036860877
    %v3103 = vsel %vm3099, %v3097, %v3101
    %v3104 = vsel %vm3100, %v3098, %v3102
    %v3105 = vld [vmem:[#allocation16] sm:$0xff]
    %v3106 = vld [vmem:[#allocation16 + $0x8] sm:$0xff]
    %v3107 = vld [vmem:[#allocation16 + $0x10] sm:$0xff]
    %v3108 = vld [vmem:[#allocation16 + $0x18] sm:$0xff]
    %v3109 = vld [vmem:[#allocation16 + $0x20] sm:$0xff]
    %v3110 = vld [vmem:[#allocation16 + $0x28] sm:$0xff]
    %v3111 = vld [vmem:[#allocation16 + $0x30] sm:$0xff]
    %v3112 = vld [vmem:[#allocation16 + $0x38] sm:$0xff]
    %v3113 = vld [vmem:[#allocation16 + $0x40] sm:$0xff]
    %v3114 = vld [vmem:[#allocation16 + $0x48] sm:$0xff]
    %v3115 = vld [vmem:[#allocation16 + $0x50] sm:$0xff]
    %v3116 = vld [vmem:[#allocation16 + $0x58] sm:$0xff]
    %v3117 = vld [vmem:[#allocation16 + $0x60] sm:$0xff]
    %v3118 = vld [vmem:[#allocation16 + $0x68] sm:$0xff]
    %v3119 = vld [vmem:[#allocation16 + $0x70] sm:$0xff]
    %v3120 = vld [vmem:[#allocation16 + $0x78] sm:$0xff]
    %v3121 = vld [vmem:[#allocation16 + $0x80] sm:$0xff]
    %v3122 = vld [vmem:[#allocation16 + $0x88] sm:$0xff]
    %v3123 = vld [vmem:[#allocation16 + $0x90] sm:$0xff]
    %v3124 = vld [vmem:[#allocation16 + $0x98] sm:$0xff]
    %v3125 = vld [vmem:[#allocation16 + $0xa0] sm:$0xff]
    %v3126 = vld [vmem:[#allocation16 + $0xa8] sm:$0xff]
    %v3127 = vld [vmem:[#allocation16 + $0xb0] sm:$0xff]
    %v3128 = vld [vmem:[#allocation16 + $0xb8] sm:$0xff]
    %v3129 = vld [vmem:[#allocation16 + $0xc0] sm:$0xff]
    %v3130 = vld [vmem:[#allocation16 + $0xc8] sm:$0xff]
    %v3131 = vld [vmem:[#allocation16 + $0xd0] sm:$0xff]
    %v3132 = vld [vmem:[#allocation16 + $0xd8] sm:$0xff]
    %v3133 = vld [vmem:[#allocation16 + $0xe0] sm:$0xff]
    %v3134 = vld [vmem:[#allocation16 + $0xe8] sm:$0xff]
    %v3135 = vld [vmem:[#allocation16 + $0xf0] sm:$0xff]
    %v3136 = vld [vmem:[#allocation16 + $0xf8] sm:$0xff]
    %v3137 = vld [vmem:[#allocation16 + $0x100] sm:$0xff]
    %v3138 = vld [vmem:[#allocation16 + $0x108] sm:$0xff]
    %v3139 = vld [vmem:[#allocation16 + $0x110] sm:$0xff]
    %v3140 = vld [vmem:[#allocation16 + $0x118] sm:$0xff]
    %v3141 = vld [vmem:[#allocation16 + $0x120] sm:$0xff]
    %v3142 = vld [vmem:[#allocation16 + $0x128] sm:$0xff]
    %v3143 = vld [vmem:[#allocation16 + $0x130] sm:$0xff]
    %v3144 = vld [vmem:[#allocation16 + $0x138] sm:$0xff]
    %v3145 = vld [vmem:[#allocation16 + $0x140] sm:$0xff]
    %v3146 = vld [vmem:[#allocation16 + $0x148] sm:$0xff]
    %v3147 = vld [vmem:[#allocation16 + $0x150] sm:$0xff]
    %v3148 = vld [vmem:[#allocation16 + $0x158] sm:$0xff]
    %v3149 = vld [vmem:[#allocation16 + $0x160] sm:$0xff]
    %v3150 = vld [vmem:[#allocation16 + $0x168] sm:$0xff]
    %v3151 = vld [vmem:[#allocation16 + $0x170] sm:$0xff]
    %v3152 = vld [vmem:[#allocation16 + $0x178] sm:$0xff]
    %v3153 = vld [vmem:[#allocation16 + $0x180] sm:$0xff]
    %v3154 = vld [vmem:[#allocation16 + $0x188] sm:$0xff]
    %v3155 = vld [vmem:[#allocation16 + $0x190] sm:$0xff]
    %v3156 = vld [vmem:[#allocation16 + $0x198] sm:$0xff]
    %v3157 = vld [vmem:[#allocation16 + $0x1a0] sm:$0xff]
    %v3158 = vld [vmem:[#allocation16 + $0x1a8] sm:$0xff]
    %v3159 = vld [vmem:[#allocation16 + $0x1b0] sm:$0xff]
    %v3160 = vld [vmem:[#allocation16 + $0x1b8] sm:$0xff]
    %v3161 = vld [vmem:[#allocation16 + $0x1c0] sm:$0xff]
    %v3162 = vld [vmem:[#allocation16 + $0x1c8] sm:$0xff]
    %v3163 = vld [vmem:[#allocation16 + $0x1d0] sm:$0xff]
    %v3164 = vld [vmem:[#allocation16 + $0x1d8] sm:$0xff]
    %v3165 = vld [vmem:[#allocation16 + $0x1e0] sm:$0xff]
    %v3166 = vld [vmem:[#allocation16 + $0x1e8] sm:$0xff]
    %v3167 = vld [vmem:[#allocation16 + $0x1f0] sm:$0xff]
    %v3168 = vld [vmem:[#allocation16 + $0x1f8] sm:$0xff]
    %v3233 = vunpack.c.l.b16 %v3105
    %v3234 = vunpack.c.h.b16 %v3105
    %v3235 = vunpack.c.l.b16 %v3106
    %v3236 = vunpack.c.h.b16 %v3106
    %v3237 = vunpack.c.l.b16 %v3107
    %v3238 = vunpack.c.h.b16 %v3107
    %v3239 = vunpack.c.l.b16 %v3108
    %v3240 = vunpack.c.h.b16 %v3108
    %v3241 = vunpack.c.l.b16 %v3109
    %v3242 = vunpack.c.h.b16 %v3109
    %v3243 = vunpack.c.l.b16 %v3110
    %v3244 = vunpack.c.h.b16 %v3110
    %v3245 = vunpack.c.l.b16 %v3111
    %v3246 = vunpack.c.h.b16 %v3111
    %v3247 = vunpack.c.l.b16 %v3112
    %v3248 = vunpack.c.h.b16 %v3112
    %v3249 = vunpack.c.l.b16 %v3113
    %v3250 = vunpack.c.h.b16 %v3113
    %v3251 = vunpack.c.l.b16 %v3114
    %v3252 = vunpack.c.h.b16 %v3114
    %v3253 = vunpack.c.l.b16 %v3115
    %v3254 = vunpack.c.h.b16 %v3115
    %v3255 = vunpack.c.l.b16 %v3116
    %v3256 = vunpack.c.h.b16 %v3116
    %v3257 = vunpack.c.l.b16 %v3117
    %v3258 = vunpack.c.h.b16 %v3117
    %v3259 = vunpack.c.l.b16 %v3118
    %v3260 = vunpack.c.h.b16 %v3118
    %v3261 = vunpack.c.l.b16 %v3119
    %v3262 = vunpack.c.h.b16 %v3119
    %v3263 = vunpack.c.l.b16 %v3120
    %v3264 = vunpack.c.h.b16 %v3120
    %v3265 = vunpack.c.l.b16 %v3121
    %v3266 = vunpack.c.h.b16 %v3121
    %v3267 = vunpack.c.l.b16 %v3122
    %v3268 = vunpack.c.h.b16 %v3122
    %v3269 = vunpack.c.l.b16 %v3123
    %v3270 = vunpack.c.h.b16 %v3123
    %v3271 = vunpack.c.l.b16 %v3124
    %v3272 = vunpack.c.h.b16 %v3124
    %v3273 = vunpack.c.l.b16 %v3125
    %v3274 = vunpack.c.h.b16 %v3125
    %v3275 = vunpack.c.l.b16 %v3126
    %v3276 = vunpack.c.h.b16 %v3126
    %v3277 = vunpack.c.l.b16 %v3127
    %v3278 = vunpack.c.h.b16 %v3127
    %v3279 = vunpack.c.l.b16 %v3128
    %v3280 = vunpack.c.h.b16 %v3128
    %v3281 = vunpack.c.l.b16 %v3129
    %v3282 = vunpack.c.h.b16 %v3129
    %v3283 = vunpack.c.l.b16 %v3130
    %v3284 = vunpack.c.h.b16 %v3130
    %v3285 = vunpack.c.l.b16 %v3131
    %v3286 = vunpack.c.h.b16 %v3131
    %v3287 = vunpack.c.l.b16 %v3132
    %v3288 = vunpack.c.h.b16 %v3132
    %v3289 = vunpack.c.l.b16 %v3133
    %v3290 = vunpack.c.h.b16 %v3133
    %v3291 = vunpack.c.l.b16 %v3134
    %v3292 = vunpack.c.h.b16 %v3134
    %v3293 = vunpack.c.l.b16 %v3135
    %v3294 = vunpack.c.h.b16 %v3135
    %v3295 = vunpack.c.l.b16 %v3136
    %v3296 = vunpack.c.h.b16 %v3136
    %v3297 = vunpack.c.l.b16 %v3137
    %v3298 = vunpack.c.h.b16 %v3137
    %v3299 = vunpack.c.l.b16 %v3138
    %v3300 = vunpack.c.h.b16 %v3138
    %v3301 = vunpack.c.l.b16 %v3139
    %v3302 = vunpack.c.h.b16 %v3139
    %v3303 = vunpack.c.l.b16 %v3140
    %v3304 = vunpack.c.h.b16 %v3140
    %v3305 = vunpack.c.l.b16 %v3141
    %v3306 = vunpack.c.h.b16 %v3141
    %v3307 = vunpack.c.l.b16 %v3142
    %v3308 = vunpack.c.h.b16 %v3142
    %v3309 = vunpack.c.l.b16 %v3143
    %v3310 = vunpack.c.h.b16 %v3143
    %v3311 = vunpack.c.l.b16 %v3144
    %v3312 = vunpack.c.h.b16 %v3144
    %v3313 = vunpack.c.l.b16 %v3145
    %v3314 = vunpack.c.h.b16 %v3145
    %v3315 = vunpack.c.l.b16 %v3146
    %v3316 = vunpack.c.h.b16 %v3146
    %v3317 = vunpack.c.l.b16 %v3147
    %v3318 = vunpack.c.h.b16 %v3147
    %v3319 = vunpack.c.l.b16 %v3148
    %v3320 = vunpack.c.h.b16 %v3148
    %v3321 = vunpack.c.l.b16 %v3149
    %v3322 = vunpack.c.h.b16 %v3149
    %v3323 = vunpack.c.l.b16 %v3150
    %v3324 = vunpack.c.h.b16 %v3150
    %v3325 = vunpack.c.l.b16 %v3151
    %v3326 = vunpack.c.h.b16 %v3151
    %v3327 = vunpack.c.l.b16 %v3152
    %v3328 = vunpack.c.h.b16 %v3152
    %v3329 = vunpack.c.l.b16 %v3153
    %v3330 = vunpack.c.h.b16 %v3153
    %v3331 = vunpack.c.l.b16 %v3154
    %v3332 = vunpack.c.h.b16 %v3154
    %v3333 = vunpack.c.l.b16 %v3155
    %v3334 = vunpack.c.h.b16 %v3155
    %v3335 = vunpack.c.l.b16 %v3156
    %v3336 = vunpack.c.h.b16 %v3156
    %v3337 = vunpack.c.l.b16 %v3157
    %v3338 = vunpack.c.h.b16 %v3157
    %v3339 = vunpack.c.l.b16 %v3158
    %v3340 = vunpack.c.h.b16 %v3158
    %v3341 = vunpack.c.l.b16 %v3159
    %v3342 = vunpack.c.h.b16 %v3159
    %v3343 = vunpack.c.l.b16 %v3160
    %v3344 = vunpack.c.h.b16 %v3160
    %v3345 = vunpack.c.l.b16 %v3161
    %v3346 = vunpack.c.h.b16 %v3161
    %v3347 = vunpack.c.l.b16 %v3162
    %v3348 = vunpack.c.h.b16 %v3162
    %v3349 = vunpack.c.l.b16 %v3163
    %v3350 = vunpack.c.h.b16 %v3163
    %v3351 = vunpack.c.l.b16 %v3164
    %v3352 = vunpack.c.h.b16 %v3164
    %v3353 = vunpack.c.l.b16 %v3165
    %v3354 = vunpack.c.h.b16 %v3165
    %v3355 = vunpack.c.l.b16 %v3166
    %v3356 = vunpack.c.h.b16 %v3166
    %v3357 = vunpack.c.l.b16 %v3167
    %v3358 = vunpack.c.h.b16 %v3167
    %v3359 = vunpack.c.l.b16 %v3168
    %v3360 = vunpack.c.h.b16 %v3168
    %v3361 = vpack.c.b16 %v3237, %v3233
    %v3362 = vpack.c.b16 %v3238, %v3234
    %v3363 = vpack.c.b16 %v3239, %v3235
    %v3364 = vpack.c.b16 %v3240, %v3236
    %v3365 = vpack.c.b16 %v3245, %v3241
    %v3366 = vpack.c.b16 %v3246, %v3242
    %v3367 = vpack.c.b16 %v3247, %v3243
    %v3368 = vpack.c.b16 %v3248, %v3244
    %v3369 = vpack.c.b16 %v3253, %v3249
    %v3370 = vpack.c.b16 %v3254, %v3250
    %v3371 = vpack.c.b16 %v3255, %v3251
    %v3372 = vpack.c.b16 %v3256, %v3252
    %v3373 = vpack.c.b16 %v3261, %v3257
    %v3374 = vpack.c.b16 %v3262, %v3258
    %v3375 = vpack.c.b16 %v3263, %v3259
    %v3376 = vpack.c.b16 %v3264, %v3260
    %v3377 = vpack.c.b16 %v3269, %v3265
    %v3378 = vpack.c.b16 %v3270, %v3266
    %v3379 = vpack.c.b16 %v3271, %v3267
    %v3380 = vpack.c.b16 %v3272, %v3268
    %v3381 = vpack.c.b16 %v3277, %v3273
    %v3382 = vpack.c.b16 %v3278, %v3274
    %v3383 = vpack.c.b16 %v3279, %v3275
    %v3384 = vpack.c.b16 %v3280, %v3276
    %v3385 = vpack.c.b16 %v3285, %v3281
    %v3386 = vpack.c.b16 %v3286, %v3282
    %v3387 = vpack.c.b16 %v3287, %v3283
    %v3388 = vpack.c.b16 %v3288, %v3284
    %v3389 = vpack.c.b16 %v3293, %v3289
    %v3390 = vpack.c.b16 %v3294, %v3290
    %v3391 = vpack.c.b16 %v3295, %v3291
    %v3392 = vpack.c.b16 %v3296, %v3292
    %v3393 = vpack.c.b16 %v3301, %v3297
    %v3394 = vpack.c.b16 %v3302, %v3298
    %v3395 = vpack.c.b16 %v3303, %v3299
    %v3396 = vpack.c.b16 %v3304, %v3300
    %v3397 = vpack.c.b16 %v3309, %v3305
    %v3398 = vpack.c.b16 %v3310, %v3306
    %v3399 = vpack.c.b16 %v3311, %v3307
    %v3400 = vpack.c.b16 %v3312, %v3308
    %v3401 = vpack.c.b16 %v3317, %v3313
    %v3402 = vpack.c.b16 %v3318, %v3314
    %v3403 = vpack.c.b16 %v3319, %v3315
    %v3404 = vpack.c.b16 %v3320, %v3316
    %v3405 = vpack.c.b16 %v3325, %v3321
    %v3406 = vpack.c.b16 %v3326, %v3322
    %v3407 = vpack.c.b16 %v3327, %v3323
    %v3408 = vpack.c.b16 %v3328, %v3324
    %v3409 = vpack.c.b16 %v3333, %v3329
    %v3410 = vpack.c.b16 %v3334, %v3330
    %v3411 = vpack.c.b16 %v3335, %v3331
    %v3412 = vpack.c.b16 %v3336, %v3332
    %v3413 = vpack.c.b16 %v3341, %v3337
    %v3414 = vpack.c.b16 %v3342, %v3338
    %v3415 = vpack.c.b16 %v3343, %v3339
    %v3416 = vpack.c.b16 %v3344, %v3340
    %v3417 = vpack.c.b16 %v3349, %v3345
    %v3418 = vpack.c.b16 %v3350, %v3346
    %v3419 = vpack.c.b16 %v3351, %v3347
    %v3420 = vpack.c.b16 %v3352, %v3348
    %v3421 = vpack.c.b16 %v3357, %v3353
    %v3422 = vpack.c.b16 %v3358, %v3354
    %v3423 = vpack.c.b16 %v3359, %v3355
    %v3424 = vpack.c.b16 %v3360, %v3356
    %3489 = vmatprep.subr.bf16.mxu0 %v3362
    %3490 = vmatpush1.bf16.msra.mxu0 %v3361
    %3491 = vmatprep.subr.bf16.mxu0 %v3366
    %3492 = vmatpush1.bf16.msra.mxu0 %v3365
    %3493 = vmatprep.subr.bf16.mxu0 %v3370
    %3494 = vmatpush1.bf16.msra.mxu0 %v3369
    %3495 = vmatprep.subr.bf16.mxu0 %v3374
    %3496 = vmatpush1.bf16.msra.mxu0 %v3373
    %3497 = vmatprep.subr.bf16.mxu0 %v3378
    %3498 = vmatpush1.bf16.msra.mxu0 %v3377
    %3499 = vmatprep.subr.bf16.mxu0 %v3382
    %3500 = vmatpush1.bf16.msra.mxu0 %v3381
    %3501 = vmatprep.subr.bf16.mxu0 %v3386
    %3502 = vmatpush1.bf16.msra.mxu0 %v3385
    %3503 = vmatprep.subr.bf16.mxu0 %v3390
    %3504 = vmatpush1.bf16.msra.mxu0 %v3389
    %3505 = vmatprep.subr.bf16.mxu0 %v3394
    %3506 = vmatpush1.bf16.msra.mxu0 %v3393
    %3507 = vmatprep.subr.bf16.mxu0 %v3398
    %3508 = vmatpush1.bf16.msra.mxu0 %v3397
    %3509 = vmatprep.subr.bf16.mxu0 %v3402
    %3510 = vmatpush1.bf16.msra.mxu0 %v3401
    %3511 = vmatprep.subr.bf16.mxu0 %v3406
    %3512 = vmatpush1.bf16.msra.mxu0 %v3405
    %3513 = vmatprep.subr.bf16.mxu0 %v3410
    %3514 = vmatpush1.bf16.msra.mxu0 %v3409
    %3515 = vmatprep.subr.bf16.mxu0 %v3414
    %3516 = vmatpush1.bf16.msra.mxu0 %v3413
    %3517 = vmatprep.subr.bf16.mxu0 %v3418
    %3518 = vmatpush1.bf16.msra.mxu0 %v3417
    %3519 = vmatprep.subr.bf16.mxu0 %v3422
    %3520 = vmatpush1.bf16.msra.mxu0 %v3421
    %3521 = vmatprep.mubr.bf16.mxu0 %v3104
    %3522 = vmatmul.mubr.bf16.gmra.mrb[0].mxu0 %v3103
    %v3523 = vpop.f32.mrb[0].mxu0
    %v3524 = vadd.f32 0.0, %v3523
    %v3525 = vpop.f32.mrb[0].mxu0
    %v3526 = vadd.f32 0.0, %v3525
    %v3527 = vpop.f32.mrb[0].mxu0
    %v3528 = vadd.f32 0.0, %v3527
    %v3529 = vpop.f32.mrb[0].mxu0
    %v3530 = vadd.f32 0.0, %v3529
    %3531 = vdwg.mxu0
    %3532 = vmatprep.subr.bf16.mxu0 %v3364
    %3533 = vmatpush1.bf16.msra.mxu0 %v3363
    %3534 = vmatprep.subr.bf16.mxu0 %v3368
    %3535 = vmatpush1.bf16.msra.mxu0 %v3367
    %3536 = vmatprep.subr.bf16.mxu0 %v3372
    %3537 = vmatpush1.bf16.msra.mxu0 %v3371
    %3538 = vmatprep.subr.bf16.mxu0 %v3376
    %3539 = vmatpush1.bf16.msra.mxu0 %v3375
    %3540 = vmatprep.subr.bf16.mxu0 %v3380
    %3541 = vmatpush1.bf16.msra.mxu0 %v3379
    %3542 = vmatprep.subr.bf16.mxu0 %v3384
    %3543 = vmatpush1.bf16.msra.mxu0 %v3383
    %3544 = vmatprep.subr.bf16.mxu0 %v3388
    %3545 = vmatpush1.bf16.msra.mxu0 %v3387
    %3546 = vmatprep.subr.bf16.mxu0 %v3392
    %3547 = vmatpush1.bf16.msra.mxu0 %v3391
    %3548 = vmatprep.subr.bf16.mxu0 %v3396
    %3549 = vmatpush1.bf16.msra.mxu0 %v3395
    %3550 = vmatprep.subr.bf16.mxu0 %v3400
    %3551 = vmatpush1.bf16.msra.mxu0 %v3399
    %3552 = vmatprep.subr.bf16.mxu0 %v3404
    %3553 = vmatpush1.bf16.msra.mxu0 %v3403
    %3554 = vmatprep.subr.bf16.mxu0 %v3408
    %3555 = vmatpush1.bf16.msra.mxu0 %v3407
    %3556 = vmatprep.subr.bf16.mxu0 %v3412
    %3557 = vmatpush1.bf16.msra.mxu0 %v3411
    %3558 = vmatprep.subr.bf16.mxu0 %v3416
    %3559 = vmatpush1.bf16.msra.mxu0 %v3415
    %3560 = vmatprep.subr.bf16.mxu0 %v3420
    %3561 = vmatpush1.bf16.msra.mxu0 %v3419
    %3562 = vmatprep.subr.bf16.mxu0 %v3424
    %3563 = vmatpush1.bf16.msra.mxu0 %v3423
    %3564 = vmatprep.mubr.bf16.mxu0 %v3104
    %3565 = vmatmul.mubr.bf16.gmra.mrb[0].mxu0 %v3103
    %v3566 = vpop.f32.mrb[0].mxu0
    %v3567 = vadd.f32 0.0, %v3566
    %v3568 = vpop.f32.mrb[0].mxu0
    %v3569 = vadd.f32 0.0, %v3568
    %v3570 = vpop.f32.mrb[0].mxu0
    %v3571 = vadd.f32 0.0, %v3570
    %v3572 = vpop.f32.mrb[0].mxu0
    %v3573 = vadd.f32 0.0, %v3572
    %3574 = vdwg.mxu0
    %v3575 = vpack.c.bf16 %v3528, %v3524
    %v3576 = vpack.c.bf16 %v3530, %v3526
    %v3577 = vpack.c.bf16 %v3571, %v3567
    %v3578 = vpack.c.bf16 %v3573, %v3569
    %v3579 = vld [vmem:[%s14] sm:$0xf]
    %v3581 = vlaneseq
    %v3582 = vshrl.u32 %v3581, 7
    %v3583 = vsub.s32 0, %v3582
    %v3584 = vrot.slane %v3579, %v3583
    %v3585 = vlaneseq
    %v3586 = vshrl.u32 %v3585, 7
    %v3587 = vsub.s32 1, %v3586
    %v3588 = vrot.slane %v3579, %v3587
    %v3589 = vlaneseq
    %v3590 = vshrl.u32 %v3589, 7
    %v3591 = vsub.s32 2, %v3590
    %v3592 = vrot.slane %v3579, %v3591
    %v3593 = vlaneseq
    %v3594 = vshrl.u32 %v3593, 7
    %v3595 = vsub.s32 3, %v3594
    %v3596 = vrot.slane %v3579, %v3595
    %v3601 = vpack.c.bf16 %v3584, %v3584
    %v3602 = vpack.c.bf16 %v3588, %v3588
    %v3603 = vpack.c.bf16 %v3592, %v3592
    %v3604 = vpack.c.bf16 %v3596, %v3596
    %v3606 = vpack.i.b16 %v3601, %v3601
    %v3608 = vlaneseq
    %v3609 = vshrl.u32 %v3608, 7
    %v3610 = vsub.s32 0, %v3609
    %v3611 = vrot.slane %v3606, %v3610
    %v3613 = vpack.i.b16 %v3602, %v3602
    %v3615 = vlaneseq
    %v3616 = vshrl.u32 %v3615, 7
    %v3617 = vsub.s32 0, %v3616
    %v3618 = vrot.slane %v3613, %v3617
    %v3620 = vpack.i.b16 %v3603, %v3603
    %v3622 = vlaneseq
    %v3623 = vshrl.u32 %v3622, 7
    %v3624 = vsub.s32 0, %v3623
    %v3625 = vrot.slane %v3620, %v3624
    %v3627 = vpack.i.b16 %v3604, %v3604
    %v3629 = vlaneseq
    %v3630 = vshrl.u32 %v3629, 7
    %v3631 = vsub.s32 0, %v3630
    %v3632 = vrot.slane %v3627, %v3631
    %v3633 = vadd.bf16 %v3575, %v3611
    %v3634 = vadd.bf16 %v3576, %v3618
    %v3635 = vadd.bf16 %v3577, %v3625
    %v3636 = vadd.bf16 %v3578, %v3632
    %vm3637 = vcmp.gt.bf16.partialorder %v3633, 0
    %vm3638 = vcmp.gt.bf16.partialorder %v3634, 0
    %vm3639 = vcmp.gt.bf16.partialorder %v3635, 0
    %vm3640 = vcmp.gt.bf16.partialorder %v3636, 0
    %v3641 = vmul.bf16 %v3633, 1036860877
    %v3642 = vmul.bf16 %v3634, 1036860877
    %v3643 = vmul.bf16 %v3635, 1036860877
    %v3644 = vmul.bf16 %v3636, 1036860877
    %v3645 = vsel %vm3637, %v3633, %v3641
    %v3646 = vsel %vm3638, %v3634, %v3642
    %v3647 = vsel %vm3639, %v3635, %v3643
    %v3648 = vsel %vm3640, %v3636, %v3644
    %v3649 = vld [vmem:[#allocation17] sm:$0xff]
    %v3650 = vld [vmem:[#allocation17 + $0x8] sm:$0xff]
    %v3651 = vld [vmem:[#allocation17 + $0x10] sm:$0xff]
    %v3652 = vld [vmem:[#allocation17 + $0x18] sm:$0xf]
    %v3653 = vld [vmem:[#allocation17 + $0x1c] sm:$0xff]
    %v3654 = vld [vmem:[#allocation17 + $0x24] sm:$0xff]
    %v3655 = vld [vmem:[#allocation17 + $0x2c] sm:$0xff]
    %v3656 = vld [vmem:[#allocation17 + $0x34] sm:$0xf]
    %v3657 = vld [vmem:[#allocation17 + $0x38] sm:$0xff]
    %v3658 = vld [vmem:[#allocation17 + $0x40] sm:$0xff]
    %v3659 = vld [vmem:[#allocation17 + $0x48] sm:$0xff]
    %v3660 = vld [vmem:[#allocation17 + $0x50] sm:$0xf]
    %v3661 = vld [vmem:[#allocation17 + $0x54] sm:$0xff]
    %v3662 = vld [vmem:[#allocation17 + $0x5c] sm:$0xff]
    %v3663 = vld [vmem:[#allocation17 + $0x64] sm:$0xff]
    %v3664 = vld [vmem:[#allocation17 + $0x6c] sm:$0xf]
    %v3665 = vld [vmem:[#allocation17 + $0x70] sm:$0xff]
    %v3666 = vld [vmem:[#allocation17 + $0x78] sm:$0xff]
    %v3667 = vld [vmem:[#allocation17 + $0x80] sm:$0xff]
    %v3668 = vld [vmem:[#allocation17 + $0x88] sm:$0xf]
    %v3669 = vld [vmem:[#allocation17 + $0x8c] sm:$0xff]
    %v3670 = vld [vmem:[#allocation17 + $0x94] sm:$0xff]
    %v3671 = vld [vmem:[#allocation17 + $0x9c] sm:$0xff]
    %v3672 = vld [vmem:[#allocation17 + $0xa4] sm:$0xf]
    %v3673 = vld [vmem:[#allocation17 + $0xa8] sm:$0xff]
    %v3674 = vld [vmem:[#allocation17 + $0xb0] sm:$0xff]
    %v3675 = vld [vmem:[#allocation17 + $0xb8] sm:$0xff]
    %v3676 = vld [vmem:[#allocation17 + $0xc0] sm:$0xf]
    %v3677 = vld [vmem:[#allocation17 + $0xc4] sm:$0xff]
    %v3678 = vld [vmem:[#allocation17 + $0xcc] sm:$0xff]
    %v3679 = vld [vmem:[#allocation17 + $0xd4] sm:$0xff]
    %v3680 = vld [vmem:[#allocation17 + $0xdc] sm:$0xf]
    %v3681 = vld [vmem:[#allocation17 + $0xe0] sm:$0xff]
    %v3682 = vld [vmem:[#allocation17 + $0xe8] sm:$0xff]
    %v3683 = vld [vmem:[#allocation17 + $0xf0] sm:$0xff]
    %v3684 = vld [vmem:[#allocation17 + $0xf8] sm:$0xf]
    %v3685 = vld [vmem:[#allocation17 + $0xfc] sm:$0xff]
    %v3686 = vld [vmem:[#allocation17 + $0x104] sm:$0xff]
    %v3687 = vld [vmem:[#allocation17 + $0x10c] sm:$0xff]
    %v3688 = vld [vmem:[#allocation17 + $0x114] sm:$0xf]
    %v3689 = vld [vmem:[#allocation17 + $0x118] sm:$0xff]
    %v3690 = vld [vmem:[#allocation17 + $0x120] sm:$0xff]
    %v3691 = vld [vmem:[#allocation17 + $0x128] sm:$0xff]
    %v3692 = vld [vmem:[#allocation17 + $0x130] sm:$0xf]
    %v3693 = vld [vmem:[#allocation17 + $0x134] sm:$0xff]
    %v3694 = vld [vmem:[#allocation17 + $0x13c] sm:$0xff]
    %v3695 = vld [vmem:[#allocation17 + $0x144] sm:$0xff]
    %v3696 = vld [vmem:[#allocation17 + $0x14c] sm:$0xf]
    %v3697 = vld [vmem:[#allocation17 + $0x150] sm:$0xff]
    %v3698 = vld [vmem:[#allocation17 + $0x158] sm:$0xff]
    %v3699 = vld [vmem:[#allocation17 + $0x160] sm:$0xff]
    %v3700 = vld [vmem:[#allocation17 + $0x168] sm:$0xf]
    %v3701 = vld [vmem:[#allocation17 + $0x16c] sm:$0xff]
    %v3702 = vld [vmem:[#allocation17 + $0x174] sm:$0xff]
    %v3703 = vld [vmem:[#allocation17 + $0x17c] sm:$0xff]
    %v3704 = vld [vmem:[#allocation17 + $0x184] sm:$0xf]
    %v3705 = vld [vmem:[#allocation17 + $0x188] sm:$0xff]
    %v3706 = vld [vmem:[#allocation17 + $0x190] sm:$0xff]
    %v3707 = vld [vmem:[#allocation17 + $0x198] sm:$0xff]
    %v3708 = vld [vmem:[#allocation17 + $0x1a0] sm:$0xf]
    %v3709 = vld [vmem:[#allocation17 + $0x1a4] sm:$0xff]
    %v3710 = vld [vmem:[#allocation17 + $0x1ac] sm:$0xff]
    %v3711 = vld [vmem:[#allocation17 + $0x1b4] sm:$0xff]
    %v3712 = vld [vmem:[#allocation17 + $0x1bc] sm:$0xf]
    %v3713 = vld [vmem:[#allocation17 + $0x1c0] sm:$0xff]
    %v3714 = vld [vmem:[#allocation17 + $0x1c8] sm:$0xff]
    %v3715 = vld [vmem:[#allocation17 + $0x1d0] sm:$0xff]
    %v3716 = vld [vmem:[#allocation17 + $0x1d8] sm:$0xf]
    %v3717 = vld [vmem:[#allocation17 + $0x1dc] sm:$0xff]
    %v3718 = vld [vmem:[#allocation17 + $0x1e4] sm:$0xff]
    %v3719 = vld [vmem:[#allocation17 + $0x1ec] sm:$0xff]
    %v3720 = vld [vmem:[#allocation17 + $0x1f4] sm:$0xf]
    %v3721 = vld [vmem:[#allocation17 + $0x1f8] sm:$0xff]
    %v3722 = vld [vmem:[#allocation17 + $0x200] sm:$0xff]
    %v3723 = vld [vmem:[#allocation17 + $0x208] sm:$0xff]
    %v3724 = vld [vmem:[#allocation17 + $0x210] sm:$0xf]
    %v3725 = vld [vmem:[#allocation17 + $0x214] sm:$0xff]
    %v3726 = vld [vmem:[#allocation17 + $0x21c] sm:$0xff]
    %v3727 = vld [vmem:[#allocation17 + $0x224] sm:$0xff]
    %v3728 = vld [vmem:[#allocation17 + $0x22c] sm:$0xf]
    %v3729 = vld [vmem:[#allocation17 + $0x230] sm:$0xff]
    %v3730 = vld [vmem:[#allocation17 + $0x238] sm:$0xff]
    %v3731 = vld [vmem:[#allocation17 + $0x240] sm:$0xff]
    %v3732 = vld [vmem:[#allocation17 + $0x248] sm:$0xf]
    %v3733 = vld [vmem:[#allocation17 + $0x24c] sm:$0xff]
    %v3734 = vld [vmem:[#allocation17 + $0x254] sm:$0xff]
    %v3735 = vld [vmem:[#allocation17 + $0x25c] sm:$0xff]
    %v3736 = vld [vmem:[#allocation17 + $0x264] sm:$0xf]
    %v3737 = vld [vmem:[#allocation17 + $0x268] sm:$0xff]
    %v3738 = vld [vmem:[#allocation17 + $0x270] sm:$0xff]
    %v3739 = vld [vmem:[#allocation17 + $0x278] sm:$0xff]
    %v3740 = vld [vmem:[#allocation17 + $0x280] sm:$0xf]
    %v3741 = vld [vmem:[#allocation17 + $0x284] sm:$0xff]
    %v3742 = vld [vmem:[#allocation17 + $0x28c] sm:$0xff]
    %v3743 = vld [vmem:[#allocation17 + $0x294] sm:$0xff]
    %v3744 = vld [vmem:[#allocation17 + $0x29c] sm:$0xf]
    %v3745 = vld [vmem:[#allocation17 + $0x2a0] sm:$0xff]
    %v3746 = vld [vmem:[#allocation17 + $0x2a8] sm:$0xff]
    %v3747 = vld [vmem:[#allocation17 + $0x2b0] sm:$0xff]
    %v3748 = vld [vmem:[#allocation17 + $0x2b8] sm:$0xf]
    %v3749 = vld [vmem:[#allocation17 + $0x2bc] sm:$0xff]
    %v3750 = vld [vmem:[#allocation17 + $0x2c4] sm:$0xff]
    %v3751 = vld [vmem:[#allocation17 + $0x2cc] sm:$0xff]
    %v3752 = vld [vmem:[#allocation17 + $0x2d4] sm:$0xf]
    %v3753 = vld [vmem:[#allocation17 + $0x2d8] sm:$0xff]
    %v3754 = vld [vmem:[#allocation17 + $0x2e0] sm:$0xff]
    %v3755 = vld [vmem:[#allocation17 + $0x2e8] sm:$0xff]
    %v3756 = vld [vmem:[#allocation17 + $0x2f0] sm:$0xf]
    %v3757 = vld [vmem:[#allocation17 + $0x2f4] sm:$0xff]
    %v3758 = vld [vmem:[#allocation17 + $0x2fc] sm:$0xff]
    %v3759 = vld [vmem:[#allocation17 + $0x304] sm:$0xff]
    %v3760 = vld [vmem:[#allocation17 + $0x30c] sm:$0xf]
    %v3761 = vld [vmem:[#allocation17 + $0x310] sm:$0xff]
    %v3762 = vld [vmem:[#allocation17 + $0x318] sm:$0xff]
    %v3763 = vld [vmem:[#allocation17 + $0x320] sm:$0xff]
    %v3764 = vld [vmem:[#allocation17 + $0x328] sm:$0xf]
    %v3765 = vld [vmem:[#allocation17 + $0x32c] sm:$0xff]
    %v3766 = vld [vmem:[#allocation17 + $0x334] sm:$0xff]
    %v3767 = vld [vmem:[#allocation17 + $0x33c] sm:$0xff]
    %v3768 = vld [vmem:[#allocation17 + $0x344] sm:$0xf]
    %v3769 = vld [vmem:[#allocation17 + $0x348] sm:$0xff]
    %v3770 = vld [vmem:[#allocation17 + $0x350] sm:$0xff]
    %v3771 = vld [vmem:[#allocation17 + $0x358] sm:$0xff]
    %v3772 = vld [vmem:[#allocation17 + $0x360] sm:$0xf]
    %v3773 = vld [vmem:[#allocation17 + $0x364] sm:$0xff]
    %v3774 = vld [vmem:[#allocation17 + $0x36c] sm:$0xff]
    %v3775 = vld [vmem:[#allocation17 + $0x374] sm:$0xff]
    %v3776 = vld [vmem:[#allocation17 + $0x37c] sm:$0xf]
    %v3777 = vld [vmem:[#allocation17 + $0x380] sm:$0xff]
    %v3778 = vld [vmem:[#allocation17 + $0x388] sm:$0xff]
    %v3779 = vld [vmem:[#allocation17 + $0x390] sm:$0xff]
    %v3780 = vld [vmem:[#allocation17 + $0x398] sm:$0xf]
    %v3781 = vld [vmem:[#allocation17 + $0x39c] sm:$0xff]
    %v3782 = vld [vmem:[#allocation17 + $0x3a4] sm:$0xff]
    %v3783 = vld [vmem:[#allocation17 + $0x3ac] sm:$0xff]
    %v3784 = vld [vmem:[#allocation17 + $0x3b4] sm:$0xf]
    %v3785 = vld [vmem:[#allocation17 + $0x3b8] sm:$0xff]
    %v3786 = vld [vmem:[#allocation17 + $0x3c0] sm:$0xff]
    %v3787 = vld [vmem:[#allocation17 + $0x3c8] sm:$0xff]
    %v3788 = vld [vmem:[#allocation17 + $0x3d0] sm:$0xf]
    %v3789 = vld [vmem:[#allocation17 + $0x3d4] sm:$0xff]
    %v3790 = vld [vmem:[#allocation17 + $0x3dc] sm:$0xff]
    %v3791 = vld [vmem:[#allocation17 + $0x3e4] sm:$0xff]
    %v3792 = vld [vmem:[#allocation17 + $0x3ec] sm:$0xf]
    %v3793 = vld [vmem:[#allocation17 + $0x3f0] sm:$0xff]
    %v3794 = vld [vmem:[#allocation17 + $0x3f8] sm:$0xff]
    %v3795 = vld [vmem:[#allocation17 + $0x400] sm:$0xff]
    %v3796 = vld [vmem:[#allocation17 + $0x408] sm:$0xf]
    %v3797 = vld [vmem:[#allocation17 + $0x40c] sm:$0xff]
    %v3798 = vld [vmem:[#allocation17 + $0x414] sm:$0xff]
    %v3799 = vld [vmem:[#allocation17 + $0x41c] sm:$0xff]
    %v3800 = vld [vmem:[#allocation17 + $0x424] sm:$0xf]
    %v3801 = vld [vmem:[#allocation17 + $0x428] sm:$0xff]
    %v3802 = vld [vmem:[#allocation17 + $0x430] sm:$0xff]
    %v3803 = vld [vmem:[#allocation17 + $0x438] sm:$0xff]
    %v3804 = vld [vmem:[#allocation17 + $0x440] sm:$0xf]
    %v3805 = vld [vmem:[#allocation17 + $0x444] sm:$0xff]
    %v3806 = vld [vmem:[#allocation17 + $0x44c] sm:$0xff]
    %v3807 = vld [vmem:[#allocation17 + $0x454] sm:$0xff]
    %v3808 = vld [vmem:[#allocation17 + $0x45c] sm:$0xf]
    %v3809 = vld [vmem:[#allocation17 + $0x460] sm:$0xff]
    %v3810 = vld [vmem:[#allocation17 + $0x468] sm:$0xff]
    %v3811 = vld [vmem:[#allocation17 + $0x470] sm:$0xff]
    %v3812 = vld [vmem:[#allocation17 + $0x478] sm:$0xf]
    %v3813 = vld [vmem:[#allocation17 + $0x47c] sm:$0xff]
    %v3814 = vld [vmem:[#allocation17 + $0x484] sm:$0xff]
    %v3815 = vld [vmem:[#allocation17 + $0x48c] sm:$0xff]
    %v3816 = vld [vmem:[#allocation17 + $0x494] sm:$0xf]
    %v3817 = vld [vmem:[#allocation17 + $0x498] sm:$0xff]
    %v3818 = vld [vmem:[#allocation17 + $0x4a0] sm:$0xff]
    %v3819 = vld [vmem:[#allocation17 + $0x4a8] sm:$0xff]
    %v3820 = vld [vmem:[#allocation17 + $0x4b0] sm:$0xf]
    %v3821 = vld [vmem:[#allocation17 + $0x4b4] sm:$0xff]
    %v3822 = vld [vmem:[#allocation17 + $0x4bc] sm:$0xff]
    %v3823 = vld [vmem:[#allocation17 + $0x4c4] sm:$0xff]
    %v3824 = vld [vmem:[#allocation17 + $0x4cc] sm:$0xf]
    %v3825 = vld [vmem:[#allocation17 + $0x4d0] sm:$0xff]
    %v3826 = vld [vmem:[#allocation17 + $0x4d8] sm:$0xff]
    %v3827 = vld [vmem:[#allocation17 + $0x4e0] sm:$0xff]
    %v3828 = vld [vmem:[#allocation17 + $0x4e8] sm:$0xf]
    %v3829 = vld [vmem:[#allocation17 + $0x4ec] sm:$0xff]
    %v3830 = vld [vmem:[#allocation17 + $0x4f4] sm:$0xff]
    %v3831 = vld [vmem:[#allocation17 + $0x4fc] sm:$0xff]
    %v3832 = vld [vmem:[#allocation17 + $0x504] sm:$0xf]
    %v3833 = vld [vmem:[#allocation17 + $0x508] sm:$0xff]
    %v3834 = vld [vmem:[#allocation17 + $0x510] sm:$0xff]
    %v3835 = vld [vmem:[#allocation17 + $0x518] sm:$0xff]
    %v3836 = vld [vmem:[#allocation17 + $0x520] sm:$0xf]
    %v3837 = vld [vmem:[#allocation17 + $0x524] sm:$0xff]
    %v3838 = vld [vmem:[#allocation17 + $0x52c] sm:$0xff]
    %v3839 = vld [vmem:[#allocation17 + $0x534] sm:$0xff]
    %v3840 = vld [vmem:[#allocation17 + $0x53c] sm:$0xf]
    %v3841 = vld [vmem:[#allocation17 + $0x540] sm:$0xff]
    %v3842 = vld [vmem:[#allocation17 + $0x548] sm:$0xff]
    %v3843 = vld [vmem:[#allocation17 + $0x550] sm:$0xff]
    %v3844 = vld [vmem:[#allocation17 + $0x558] sm:$0xf]
    %v3845 = vld [vmem:[#allocation17 + $0x55c] sm:$0xff]
    %v3846 = vld [vmem:[#allocation17 + $0x564] sm:$0xff]
    %v3847 = vld [vmem:[#allocation17 + $0x56c] sm:$0xff]
    %v3848 = vld [vmem:[#allocation17 + $0x574] sm:$0xf]
    %v3849 = vld [vmem:[#allocation17 + $0x578] sm:$0xff]
    %v3850 = vld [vmem:[#allocation17 + $0x580] sm:$0xff]
    %v3851 = vld [vmem:[#allocation17 + $0x588] sm:$0xff]
    %v3852 = vld [vmem:[#allocation17 + $0x590] sm:$0xf]
    %v3853 = vld [vmem:[#allocation17 + $0x594] sm:$0xff]
    %v3854 = vld [vmem:[#allocation17 + $0x59c] sm:$0xff]
    %v3855 = vld [vmem:[#allocation17 + $0x5a4] sm:$0xff]
    %v3856 = vld [vmem:[#allocation17 + $0x5ac] sm:$0xf]
    %v3857 = vld [vmem:[#allocation17 + $0x5b0] sm:$0xff]
    %v3858 = vld [vmem:[#allocation17 + $0x5b8] sm:$0xff]
    %v3859 = vld [vmem:[#allocation17 + $0x5c0] sm:$0xff]
    %v3860 = vld [vmem:[#allocation17 + $0x5c8] sm:$0xf]
    %v3861 = vld [vmem:[#allocation17 + $0x5cc] sm:$0xff]
    %v3862 = vld [vmem:[#allocation17 + $0x5d4] sm:$0xff]
    %v3863 = vld [vmem:[#allocation17 + $0x5dc] sm:$0xff]
    %v3864 = vld [vmem:[#allocation17 + $0x5e4] sm:$0xf]
    %v3865 = vld [vmem:[#allocation17 + $0x5e8] sm:$0xff]
    %v3866 = vld [vmem:[#allocation17 + $0x5f0] sm:$0xff]
    %v3867 = vld [vmem:[#allocation17 + $0x5f8] sm:$0xff]
    %v3868 = vld [vmem:[#allocation17 + $0x600] sm:$0xf]
    %v3869 = vld [vmem:[#allocation17 + $0x604] sm:$0xff]
    %v3870 = vld [vmem:[#allocation17 + $0x60c] sm:$0xff]
    %v3871 = vld [vmem:[#allocation17 + $0x614] sm:$0xff]
    %v3872 = vld [vmem:[#allocation17 + $0x61c] sm:$0xf]
    %v3873 = vld [vmem:[#allocation17 + $0x620] sm:$0xff]
    %v3874 = vld [vmem:[#allocation17 + $0x628] sm:$0xff]
    %v3875 = vld [vmem:[#allocation17 + $0x630] sm:$0xff]
    %v3876 = vld [vmem:[#allocation17 + $0x638] sm:$0xf]
    %v3877 = vld [vmem:[#allocation17 + $0x63c] sm:$0xff]
    %v3878 = vld [vmem:[#allocation17 + $0x644] sm:$0xff]
    %v3879 = vld [vmem:[#allocation17 + $0x64c] sm:$0xff]
    %v3880 = vld [vmem:[#allocation17 + $0x654] sm:$0xf]
    %v3881 = vld [vmem:[#allocation17 + $0x658] sm:$0xff]
    %v3882 = vld [vmem:[#allocation17 + $0x660] sm:$0xff]
    %v3883 = vld [vmem:[#allocation17 + $0x668] sm:$0xff]
    %v3884 = vld [vmem:[#allocation17 + $0x670] sm:$0xf]
    %v3885 = vld [vmem:[#allocation17 + $0x674] sm:$0xff]
    %v3886 = vld [vmem:[#allocation17 + $0x67c] sm:$0xff]
    %v3887 = vld [vmem:[#allocation17 + $0x684] sm:$0xff]
    %v3888 = vld [vmem:[#allocation17 + $0x68c] sm:$0xf]
    %v3889 = vld [vmem:[#allocation17 + $0x690] sm:$0xff]
    %v3890 = vld [vmem:[#allocation17 + $0x698] sm:$0xff]
    %v3891 = vld [vmem:[#allocation17 + $0x6a0] sm:$0xff]
    %v3892 = vld [vmem:[#allocation17 + $0x6a8] sm:$0xf]
    %v3893 = vld [vmem:[#allocation17 + $0x6ac] sm:$0xff]
    %v3894 = vld [vmem:[#allocation17 + $0x6b4] sm:$0xff]
    %v3895 = vld [vmem:[#allocation17 + $0x6bc] sm:$0xff]
    %v3896 = vld [vmem:[#allocation17 + $0x6c4] sm:$0xf]
    %v3897 = vld [vmem:[#allocation17 + $0x6c8] sm:$0xff]
    %v3898 = vld [vmem:[#allocation17 + $0x6d0] sm:$0xff]
    %v3899 = vld [vmem:[#allocation17 + $0x6d8] sm:$0xff]
    %v3900 = vld [vmem:[#allocation17 + $0x6e0] sm:$0xf]
    %v3901 = vld [vmem:[#allocation17 + $0x6e4] sm:$0xff]
    %v3902 = vld [vmem:[#allocation17 + $0x6ec] sm:$0xff]
    %v3903 = vld [vmem:[#allocation17 + $0x6f4] sm:$0xff]
    %v3904 = vld [vmem:[#allocation17 + $0x6fc] sm:$0xf]
    %v3905 = vld [vmem:[%s16] sm:$0xff]
    %v3907 = vlaneseq
    %v3908 = vshrl.u32 %v3907, 7
    %v3909 = vsub.s32 0, %v3908
    %v3910 = vrot.slane %v3905, %v3909
    %v3911 = vlaneseq
    %v3912 = vshrl.u32 %v3911, 7
    %v3913 = vsub.s32 1, %v3912
    %v3914 = vrot.slane %v3905, %v3913
    %v3915 = vlaneseq
    %v3916 = vshrl.u32 %v3915, 7
    %v3917 = vsub.s32 2, %v3916
    %v3918 = vrot.slane %v3905, %v3917
    %v3919 = vlaneseq
    %v3920 = vshrl.u32 %v3919, 7
    %v3921 = vsub.s32 3, %v3920
    %v3922 = vrot.slane %v3905, %v3921
    %v3923 = vlaneseq
    %v3924 = vshrl.u32 %v3923, 7
    %v3925 = vsub.s32 4, %v3924
    %v3926 = vrot.slane %v3905, %v3925
    %v3927 = vlaneseq
    %v3928 = vshrl.u32 %v3927, 7
    %v3929 = vsub.s32 5, %v3928
    %v3930 = vrot.slane %v3905, %v3929
    %v3931 = vlaneseq
    %v3932 = vshrl.u32 %v3931, 7
    %v3933 = vsub.s32 6, %v3932
    %v3934 = vrot.slane %v3905, %v3933
    %v4198 = vunpack.c.l.b16 %v3649
    %v4199 = vunpack.c.h.b16 %v3649
    %v4200 = vunpack.c.l.b16 %v3650
    %v4201 = vunpack.c.h.b16 %v3650
    %v4202 = vunpack.c.l.b16 %v3651
    %v4203 = vunpack.c.h.b16 %v3651
    %v4204 = vunpack.c.l.b16 %v3652
    %v4205 = vunpack.c.l.b16 %v3653
    %v4206 = vunpack.c.h.b16 %v3653
    %v4207 = vunpack.c.l.b16 %v3654
    %v4208 = vunpack.c.h.b16 %v3654
    %v4209 = vunpack.c.l.b16 %v3655
    %v4210 = vunpack.c.h.b16 %v3655
    %v4211 = vunpack.c.l.b16 %v3656
    %v4212 = vunpack.c.l.b16 %v3657
    %v4213 = vunpack.c.h.b16 %v3657
    %v4214 = vunpack.c.l.b16 %v3658
    %v4215 = vunpack.c.h.b16 %v3658
    %v4216 = vunpack.c.l.b16 %v3659
    %v4217 = vunpack.c.h.b16 %v3659
    %v4218 = vunpack.c.l.b16 %v3660
    %v4219 = vunpack.c.l.b16 %v3661
    %v4220 = vunpack.c.h.b16 %v3661
    %v4221 = vunpack.c.l.b16 %v3662
    %v4222 = vunpack.c.h.b16 %v3662
    %v4223 = vunpack.c.l.b16 %v3663
    %v4224 = vunpack.c.h.b16 %v3663
    %v4225 = vunpack.c.l.b16 %v3664
    %v4226 = vunpack.c.l.b16 %v3665
    %v4227 = vunpack.c.h.b16 %v3665
    %v4228 = vunpack.c.l.b16 %v3666
    %v4229 = vunpack.c.h.b16 %v3666
    %v4230 = vunpack.c.l.b16 %v3667
    %v4231 = vunpack.c.h.b16 %v3667
    %v4232 = vunpack.c.l.b16 %v3668
    %v4233 = vunpack.c.l.b16 %v3669
    %v4234 = vunpack.c.h.b16 %v3669
    %v4235 = vunpack.c.l.b16 %v3670
    %v4236 = vunpack.c.h.b16 %v3670
    %v4237 = vunpack.c.l.b16 %v3671
    %v4238 = vunpack.c.h.b16 %v3671
    %v4239 = vunpack.c.l.b16 %v3672
    %v4240 = vunpack.c.l.b16 %v3673
    %v4241 = vunpack.c.h.b16 %v3673
    %v4242 = vunpack.c.l.b16 %v3674
    %v4243 = vunpack.c.h.b16 %v3674
    %v4244 = vunpack.c.l.b16 %v3675
    %v4245 = vunpack.c.h.b16 %v3675
    %v4246 = vunpack.c.l.b16 %v3676
    %v4247 = vunpack.c.l.b16 %v3677
    %v4248 = vunpack.c.h.b16 %v3677
    %v4249 = vunpack.c.l.b16 %v3678
    %v4250 = vunpack.c.h.b16 %v3678
    %v4251 = vunpack.c.l.b16 %v3679
    %v4252 = vunpack.c.h.b16 %v3679
    %v4253 = vunpack.c.l.b16 %v3680
    %v4254 = vunpack.c.l.b16 %v3681
    %v4255 = vunpack.c.h.b16 %v3681
    %v4256 = vunpack.c.l.b16 %v3682
    %v4257 = vunpack.c.h.b16 %v3682
    %v4258 = vunpack.c.l.b16 %v3683
    %v4259 = vunpack.c.h.b16 %v3683
    %v4260 = vunpack.c.l.b16 %v3684
    %v4261 = vunpack.c.l.b16 %v3685
    %v4262 = vunpack.c.h.b16 %v3685
    %v4263 = vunpack.c.l.b16 %v3686
    %v4264 = vunpack.c.h.b16 %v3686
    %v4265 = vunpack.c.l.b16 %v3687
    %v4266 = vunpack.c.h.b16 %v3687
    %v4267 = vunpack.c.l.b16 %v3688
    %v4268 = vunpack.c.l.b16 %v3689
    %v4269 = vunpack.c.h.b16 %v3689
    %v4270 = vunpack.c.l.b16 %v3690
    %v4271 = vunpack.c.h.b16 %v3690
    %v4272 = vunpack.c.l.b16 %v3691
    %v4273 = vunpack.c.h.b16 %v3691
    %v4274 = vunpack.c.l.b16 %v3692
    %v4275 = vunpack.c.l.b16 %v3693
    %v4276 = vunpack.c.h.b16 %v3693
    %v4277 = vunpack.c.l.b16 %v3694
    %v4278 = vunpack.c.h.b16 %v3694
    %v4279 = vunpack.c.l.b16 %v3695
    %v4280 = vunpack.c.h.b16 %v3695
    %v4281 = vunpack.c.l.b16 %v3696
    %v4282 = vunpack.c.l.b16 %v3697
    %v4283 = vunpack.c.h.b16 %v3697
    %v4284 = vunpack.c.l.b16 %v3698
    %v4285 = vunpack.c.h.b16 %v3698
    %v4286 = vunpack.c.l.b16 %v3699
    %v4287 = vunpack.c.h.b16 %v3699
    %v4288 = vunpack.c.l.b16 %v3700
    %v4289 = vunpack.c.l.b16 %v3701
    %v4290 = vunpack.c.h.b16 %v3701
    %v4291 = vunpack.c.l.b16 %v3702
    %v4292 = vunpack.c.h.b16 %v3702
    %v4293 = vunpack.c.l.b16 %v3703
    %v4294 = vunpack.c.h.b16 %v3703
    %v4295 = vunpack.c.l.b16 %v3704
    %v4296 = vunpack.c.l.b16 %v3705
    %v4297 = vunpack.c.h.b16 %v3705
    %v4298 = vunpack.c.l.b16 %v3706
    %v4299 = vunpack.c.h.b16 %v3706
    %v4300 = vunpack.c.l.b16 %v3707
    %v4301 = vunpack.c.h.b16 %v3707
    %v4302 = vunpack.c.l.b16 %v3708
    %v4303 = vunpack.c.l.b16 %v3709
    %v4304 = vunpack.c.h.b16 %v3709
    %v4305 = vunpack.c.l.b16 %v3710
    %v4306 = vunpack.c.h.b16 %v3710
    %v4307 = vunpack.c.l.b16 %v3711
    %v4308 = vunpack.c.h.b16 %v3711
    %v4309 = vunpack.c.l.b16 %v3712
    %v4310 = vunpack.c.l.b16 %v3713
    %v4311 = vunpack.c.h.b16 %v3713
    %v4312 = vunpack.c.l.b16 %v3714
    %v4313 = vunpack.c.h.b16 %v3714
    %v4314 = vunpack.c.l.b16 %v3715
    %v4315 = vunpack.c.h.b16 %v3715
    %v4316 = vunpack.c.l.b16 %v3716
    %v4317 = vunpack.c.l.b16 %v3717
    %v4318 = vunpack.c.h.b16 %v3717
    %v4319 = vunpack.c.l.b16 %v3718
    %v4320 = vunpack.c.h.b16 %v3718
    %v4321 = vunpack.c.l.b16 %v3719
    %v4322 = vunpack.c.h.b16 %v3719
    %v4323 = vunpack.c.l.b16 %v3720
    %v4324 = vunpack.c.l.b16 %v3721
    %v4325 = vunpack.c.h.b16 %v3721
    %v4326 = vunpack.c.l.b16 %v3722
    %v4327 = vunpack.c.h.b16 %v3722
    %v4328 = vunpack.c.l.b16 %v3723
    %v4329 = vunpack.c.h.b16 %v3723
    %v4330 = vunpack.c.l.b16 %v3724
    %v4331 = vunpack.c.l.b16 %v3725
    %v4332 = vunpack.c.h.b16 %v3725
    %v4333 = vunpack.c.l.b16 %v3726
    %v4334 = vunpack.c.h.b16 %v3726
    %v4335 = vunpack.c.l.b16 %v3727
    %v4336 = vunpack.c.h.b16 %v3727
    %v4337 = vunpack.c.l.b16 %v3728
    %v4338 = vunpack.c.l.b16 %v3729
    %v4339 = vunpack.c.h.b16 %v3729
    %v4340 = vunpack.c.l.b16 %v3730
    %v4341 = vunpack.c.h.b16 %v3730
    %v4342 = vunpack.c.l.b16 %v3731
    %v4343 = vunpack.c.h.b16 %v3731
    %v4344 = vunpack.c.l.b16 %v3732
    %v4345 = vunpack.c.l.b16 %v3733
    %v4346 = vunpack.c.h.b16 %v3733
    %v4347 = vunpack.c.l.b16 %v3734
    %v4348 = vunpack.c.h.b16 %v3734
    %v4349 = vunpack.c.l.b16 %v3735
    %v4350 = vunpack.c.h.b16 %v3735
    %v4351 = vunpack.c.l.b16 %v3736
    %v4352 = vunpack.c.l.b16 %v3737
    %v4353 = vunpack.c.h.b16 %v3737
    %v4354 = vunpack.c.l.b16 %v3738
    %v4355 = vunpack.c.h.b16 %v3738
    %v4356 = vunpack.c.l.b16 %v3739
    %v4357 = vunpack.c.h.b16 %v3739
    %v4358 = vunpack.c.l.b16 %v3740
    %v4359 = vunpack.c.l.b16 %v3741
    %v4360 = vunpack.c.h.b16 %v3741
    %v4361 = vunpack.c.l.b16 %v3742
    %v4362 = vunpack.c.h.b16 %v3742
    %v4363 = vunpack.c.l.b16 %v3743
    %v4364 = vunpack.c.h.b16 %v3743
    %v4365 = vunpack.c.l.b16 %v3744
    %v4366 = vunpack.c.l.b16 %v3745
    %v4367 = vunpack.c.h.b16 %v3745
    %v4368 = vunpack.c.l.b16 %v3746
    %v4369 = vunpack.c.h.b16 %v3746
    %v4370 = vunpack.c.l.b16 %v3747
    %v4371 = vunpack.c.h.b16 %v3747
    %v4372 = vunpack.c.l.b16 %v3748
    %v4373 = vunpack.c.l.b16 %v3749
    %v4374 = vunpack.c.h.b16 %v3749
    %v4375 = vunpack.c.l.b16 %v3750
    %v4376 = vunpack.c.h.b16 %v3750
    %v4377 = vunpack.c.l.b16 %v3751
    %v4378 = vunpack.c.h.b16 %v3751
    %v4379 = vunpack.c.l.b16 %v3752
    %v4380 = vunpack.c.l.b16 %v3753
    %v4381 = vunpack.c.h.b16 %v3753
    %v4382 = vunpack.c.l.b16 %v3754
    %v4383 = vunpack.c.h.b16 %v3754
    %v4384 = vunpack.c.l.b16 %v3755
    %v4385 = vunpack.c.h.b16 %v3755
    %v4386 = vunpack.c.l.b16 %v3756
    %v4387 = vunpack.c.l.b16 %v3757
    %v4388 = vunpack.c.h.b16 %v3757
    %v4389 = vunpack.c.l.b16 %v3758
    %v4390 = vunpack.c.h.b16 %v3758
    %v4391 = vunpack.c.l.b16 %v3759
    %v4392 = vunpack.c.h.b16 %v3759
    %v4393 = vunpack.c.l.b16 %v3760
    %v4394 = vunpack.c.l.b16 %v3761
    %v4395 = vunpack.c.h.b16 %v3761
    %v4396 = vunpack.c.l.b16 %v3762
    %v4397 = vunpack.c.h.b16 %v3762
    %v4398 = vunpack.c.l.b16 %v3763
    %v4399 = vunpack.c.h.b16 %v3763
    %v4400 = vunpack.c.l.b16 %v3764
    %v4401 = vunpack.c.l.b16 %v3765
    %v4402 = vunpack.c.h.b16 %v3765
    %v4403 = vunpack.c.l.b16 %v3766
    %v4404 = vunpack.c.h.b16 %v3766
    %v4405 = vunpack.c.l.b16 %v3767
    %v4406 = vunpack.c.h.b16 %v3767
    %v4407 = vunpack.c.l.b16 %v3768
    %v4408 = vunpack.c.l.b16 %v3769
    %v4409 = vunpack.c.h.b16 %v3769
    %v4410 = vunpack.c.l.b16 %v3770
    %v4411 = vunpack.c.h.b16 %v3770
    %v4412 = vunpack.c.l.b16 %v3771
    %v4413 = vunpack.c.h.b16 %v3771
    %v4414 = vunpack.c.l.b16 %v3772
    %v4415 = vunpack.c.l.b16 %v3773
    %v4416 = vunpack.c.h.b16 %v3773
    %v4417 = vunpack.c.l.b16 %v3774
    %v4418 = vunpack.c.h.b16 %v3774
    %v4419 = vunpack.c.l.b16 %v3775
    %v4420 = vunpack.c.h.b16 %v3775
    %v4421 = vunpack.c.l.b16 %v3776
    %v4422 = vunpack.c.l.b16 %v3777
    %v4423 = vunpack.c.h.b16 %v3777
    %v4424 = vunpack.c.l.b16 %v3778
    %v4425 = vunpack.c.h.b16 %v3778
    %v4426 = vunpack.c.l.b16 %v3779
    %v4427 = vunpack.c.h.b16 %v3779
    %v4428 = vunpack.c.l.b16 %v3780
    %v4429 = vunpack.c.l.b16 %v3781
    %v4430 = vunpack.c.h.b16 %v3781
    %v4431 = vunpack.c.l.b16 %v3782
    %v4432 = vunpack.c.h.b16 %v3782
    %v4433 = vunpack.c.l.b16 %v3783
    %v4434 = vunpack.c.h.b16 %v3783
    %v4435 = vunpack.c.l.b16 %v3784
    %v4436 = vunpack.c.l.b16 %v3785
    %v4437 = vunpack.c.h.b16 %v3785
    %v4438 = vunpack.c.l.b16 %v3786
    %v4439 = vunpack.c.h.b16 %v3786
    %v4440 = vunpack.c.l.b16 %v3787
    %v4441 = vunpack.c.h.b16 %v3787
    %v4442 = vunpack.c.l.b16 %v3788
    %v4443 = vunpack.c.l.b16 %v3789
    %v4444 = vunpack.c.h.b16 %v3789
    %v4445 = vunpack.c.l.b16 %v3790
    %v4446 = vunpack.c.h.b16 %v3790
    %v4447 = vunpack.c.l.b16 %v3791
    %v4448 = vunpack.c.h.b16 %v3791
    %v4449 = vunpack.c.l.b16 %v3792
    %v4450 = vunpack.c.l.b16 %v3793
    %v4451 = vunpack.c.h.b16 %v3793
    %v4452 = vunpack.c.l.b16 %v3794
    %v4453 = vunpack.c.h.b16 %v3794
    %v4454 = vunpack.c.l.b16 %v3795
    %v4455 = vunpack.c.h.b16 %v3795
    %v4456 = vunpack.c.l.b16 %v3796
    %v4457 = vunpack.c.l.b16 %v3797
    %v4458 = vunpack.c.h.b16 %v3797
    %v4459 = vunpack.c.l.b16 %v3798
    %v4460 = vunpack.c.h.b16 %v3798
    %v4461 = vunpack.c.l.b16 %v3799
    %v4462 = vunpack.c.h.b16 %v3799
    %v4463 = vunpack.c.l.b16 %v3800
    %v4464 = vunpack.c.l.b16 %v3801
    %v4465 = vunpack.c.h.b16 %v3801
    %v4466 = vunpack.c.l.b16 %v3802
    %v4467 = vunpack.c.h.b16 %v3802
    %v4468 = vunpack.c.l.b16 %v3803
    %v4469 = vunpack.c.h.b16 %v3803
    %v4470 = vunpack.c.l.b16 %v3804
    %v4471 = vunpack.c.l.b16 %v3805
    %v4472 = vunpack.c.h.b16 %v3805
    %v4473 = vunpack.c.l.b16 %v3806
    %v4474 = vunpack.c.h.b16 %v3806
    %v4475 = vunpack.c.l.b16 %v3807
    %v4476 = vunpack.c.h.b16 %v3807
    %v4477 = vunpack.c.l.b16 %v3808
    %v4478 = vunpack.c.l.b16 %v3809
    %v4479 = vunpack.c.h.b16 %v3809
    %v4480 = vunpack.c.l.b16 %v3810
    %v4481 = vunpack.c.h.b16 %v3810
    %v4482 = vunpack.c.l.b16 %v3811
    %v4483 = vunpack.c.h.b16 %v3811
    %v4484 = vunpack.c.l.b16 %v3812
    %v4485 = vunpack.c.l.b16 %v3813
    %v4486 = vunpack.c.h.b16 %v3813
    %v4487 = vunpack.c.l.b16 %v3814
    %v4488 = vunpack.c.h.b16 %v3814
    %v4489 = vunpack.c.l.b16 %v3815
    %v4490 = vunpack.c.h.b16 %v3815
    %v4491 = vunpack.c.l.b16 %v3816
    %v4492 = vunpack.c.l.b16 %v3817
    %v4493 = vunpack.c.h.b16 %v3817
    %v4494 = vunpack.c.l.b16 %v3818
    %v4495 = vunpack.c.h.b16 %v3818
    %v4496 = vunpack.c.l.b16 %v3819
    %v4497 = vunpack.c.h.b16 %v3819
    %v4498 = vunpack.c.l.b16 %v3820
    %v4499 = vunpack.c.l.b16 %v3821
    %v4500 = vunpack.c.h.b16 %v3821
    %v4501 = vunpack.c.l.b16 %v3822
    %v4502 = vunpack.c.h.b16 %v3822
    %v4503 = vunpack.c.l.b16 %v3823
    %v4504 = vunpack.c.h.b16 %v3823
    %v4505 = vunpack.c.l.b16 %v3824
    %v4506 = vunpack.c.l.b16 %v3825
    %v4507 = vunpack.c.h.b16 %v3825
    %v4508 = vunpack.c.l.b16 %v3826
    %v4509 = vunpack.c.h.b16 %v3826
    %v4510 = vunpack.c.l.b16 %v3827
    %v4511 = vunpack.c.h.b16 %v3827
    %v4512 = vunpack.c.l.b16 %v3828
    %v4513 = vunpack.c.l.b16 %v3829
    %v4514 = vunpack.c.h.b16 %v3829
    %v4515 = vunpack.c.l.b16 %v3830
    %v4516 = vunpack.c.h.b16 %v3830
    %v4517 = vunpack.c.l.b16 %v3831
    %v4518 = vunpack.c.h.b16 %v3831
    %v4519 = vunpack.c.l.b16 %v3832
    %v4520 = vunpack.c.l.b16 %v3833
    %v4521 = vunpack.c.h.b16 %v3833
    %v4522 = vunpack.c.l.b16 %v3834
    %v4523 = vunpack.c.h.b16 %v3834
    %v4524 = vunpack.c.l.b16 %v3835
    %v4525 = vunpack.c.h.b16 %v3835
    %v4526 = vunpack.c.l.b16 %v3836
    %v4527 = vunpack.c.l.b16 %v3837
    %v4528 = vunpack.c.h.b16 %v3837
    %v4529 = vunpack.c.l.b16 %v3838
    %v4530 = vunpack.c.h.b16 %v3838
    %v4531 = vunpack.c.l.b16 %v3839
    %v4532 = vunpack.c.h.b16 %v3839
    %v4533 = vunpack.c.l.b16 %v3840
    %v4534 = vunpack.c.l.b16 %v3841
    %v4535 = vunpack.c.h.b16 %v3841
    %v4536 = vunpack.c.l.b16 %v3842
    %v4537 = vunpack.c.h.b16 %v3842
    %v4538 = vunpack.c.l.b16 %v3843
    %v4539 = vunpack.c.h.b16 %v3843
    %v4540 = vunpack.c.l.b16 %v3844
    %v4541 = vunpack.c.l.b16 %v3845
    %v4542 = vunpack.c.h.b16 %v3845
    %v4543 = vunpack.c.l.b16 %v3846
    %v4544 = vunpack.c.h.b16 %v3846
    %v4545 = vunpack.c.l.b16 %v3847
    %v4546 = vunpack.c.h.b16 %v3847
    %v4547 = vunpack.c.l.b16 %v3848
    %v4548 = vunpack.c.l.b16 %v3849
    %v4549 = vunpack.c.h.b16 %v3849
    %v4550 = vunpack.c.l.b16 %v3850
    %v4551 = vunpack.c.h.b16 %v3850
    %v4552 = vunpack.c.l.b16 %v3851
    %v4553 = vunpack.c.h.b16 %v3851
    %v4554 = vunpack.c.l.b16 %v3852
    %v4555 = vunpack.c.l.b16 %v3853
    %v4556 = vunpack.c.h.b16 %v3853
    %v4557 = vunpack.c.l.b16 %v3854
    %v4558 = vunpack.c.h.b16 %v3854
    %v4559 = vunpack.c.l.b16 %v3855
    %v4560 = vunpack.c.h.b16 %v3855
    %v4561 = vunpack.c.l.b16 %v3856
    %v4562 = vunpack.c.l.b16 %v3857
    %v4563 = vunpack.c.h.b16 %v3857
    %v4564 = vunpack.c.l.b16 %v3858
    %v4565 = vunpack.c.h.b16 %v3858
    %v4566 = vunpack.c.l.b16 %v3859
    %v4567 = vunpack.c.h.b16 %v3859
    %v4568 = vunpack.c.l.b16 %v3860
    %v4569 = vunpack.c.l.b16 %v3861
    %v4570 = vunpack.c.h.b16 %v3861
    %v4571 = vunpack.c.l.b16 %v3862
    %v4572 = vunpack.c.h.b16 %v3862
    %v4573 = vunpack.c.l.b16 %v3863
    %v4574 = vunpack.c.h.b16 %v3863
    %v4575 = vunpack.c.l.b16 %v3864
    %v4576 = vunpack.c.l.b16 %v3865
    %v4577 = vunpack.c.h.b16 %v3865
    %v4578 = vunpack.c.l.b16 %v3866
    %v4579 = vunpack.c.h.b16 %v3866
    %v4580 = vunpack.c.l.b16 %v3867
    %v4581 = vunpack.c.h.b16 %v3867
    %v4582 = vunpack.c.l.b16 %v3868
    %v4583 = vunpack.c.l.b16 %v3869
    %v4584 = vunpack.c.h.b16 %v3869
    %v4585 = vunpack.c.l.b16 %v3870
    %v4586 = vunpack.c.h.b16 %v3870
    %v4587 = vunpack.c.l.b16 %v3871
    %v4588 = vunpack.c.h.b16 %v3871
    %v4589 = vunpack.c.l.b16 %v3872
    %v4590 = vunpack.c.l.b16 %v3873
    %v4591 = vunpack.c.h.b16 %v3873
    %v4592 = vunpack.c.l.b16 %v3874
    %v4593 = vunpack.c.h.b16 %v3874
    %v4594 = vunpack.c.l.b16 %v3875
    %v4595 = vunpack.c.h.b16 %v3875
    %v4596 = vunpack.c.l.b16 %v3876
    %v4597 = vunpack.c.l.b16 %v3877
    %v4598 = vunpack.c.h.b16 %v3877
    %v4599 = vunpack.c.l.b16 %v3878
    %v4600 = vunpack.c.h.b16 %v3878
    %v4601 = vunpack.c.l.b16 %v3879
    %v4602 = vunpack.c.h.b16 %v3879
    %v4603 = vunpack.c.l.b16 %v3880
    %v4604 = vunpack.c.l.b16 %v3881
    %v4605 = vunpack.c.h.b16 %v3881
    %v4606 = vunpack.c.l.b16 %v3882
    %v4607 = vunpack.c.h.b16 %v3882
    %v4608 = vunpack.c.l.b16 %v3883
    %v4609 = vunpack.c.h.b16 %v3883
    %v4610 = vunpack.c.l.b16 %v3884
    %v4611 = vunpack.c.l.b16 %v3885
    %v4612 = vunpack.c.h.b16 %v3885
    %v4613 = vunpack.c.l.b16 %v3886
    %v4614 = vunpack.c.h.b16 %v3886
    %v4615 = vunpack.c.l.b16 %v3887
    %v4616 = vunpack.c.h.b16 %v3887
    %v4617 = vunpack.c.l.b16 %v3888
    %v4618 = vunpack.c.l.b16 %v3889
    %v4619 = vunpack.c.h.b16 %v3889
    %v4620 = vunpack.c.l.b16 %v3890
    %v4621 = vunpack.c.h.b16 %v3890
    %v4622 = vunpack.c.l.b16 %v3891
    %v4623 = vunpack.c.h.b16 %v3891
    %v4624 = vunpack.c.l.b16 %v3892
    %v4625 = vunpack.c.l.b16 %v3893
    %v4626 = vunpack.c.h.b16 %v3893
    %v4627 = vunpack.c.l.b16 %v3894
    %v4628 = vunpack.c.h.b16 %v3894
    %v4629 = vunpack.c.l.b16 %v3895
    %v4630 = vunpack.c.h.b16 %v3895
    %v4631 = vunpack.c.l.b16 %v3896
    %v4632 = vunpack.c.l.b16 %v3897
    %v4633 = vunpack.c.h.b16 %v3897
    %v4634 = vunpack.c.l.b16 %v3898
    %v4635 = vunpack.c.h.b16 %v3898
    %v4636 = vunpack.c.l.b16 %v3899
    %v4637 = vunpack.c.h.b16 %v3899
    %v4638 = vunpack.c.l.b16 %v3900
    %v4639 = vunpack.c.l.b16 %v3901
    %v4640 = vunpack.c.h.b16 %v3901
    %v4641 = vunpack.c.l.b16 %v3902
    %v4642 = vunpack.c.h.b16 %v3902
    %v4643 = vunpack.c.l.b16 %v3903
    %v4644 = vunpack.c.h.b16 %v3903
    %v4645 = vunpack.c.l.b16 %v3904
    %v4646 = vpack.c.b16 %v4205, %v4198
    %v4647 = vpack.c.b16 %v4206, %v4199
    %v4648 = vpack.c.b16 %v4207, %v4200
    %v4649 = vpack.c.b16 %v4208, %v4201
    %v4650 = vpack.c.b16 %v4209, %v4202
    %v4651 = vpack.c.b16 %v4210, %v4203
    %v4652 = vpack.c.b16 %v4211, %v4204
    %v4653 = vpack.c.b16 %v4219, %v4212
    %v4654 = vpack.c.b16 %v4220, %v4213
    %v4655 = vpack.c.b16 %v4221, %v4214
    %v4656 = vpack.c.b16 %v4222, %v4215
    %v4657 = vpack.c.b16 %v4223, %v4216
    %v4658 = vpack.c.b16 %v4224, %v4217
    %v4659 = vpack.c.b16 %v4225, %v4218
    %v4660 = vpack.c.b16 %v4233, %v4226
    %v4661 = vpack.c.b16 %v4234, %v4227
    %v4662 = vpack.c.b16 %v4235, %v4228
    %v4663 = vpack.c.b16 %v4236, %v4229
    %v4664 = vpack.c.b16 %v4237, %v4230
    %v4665 = vpack.c.b16 %v4238, %v4231
    %v4666 = vpack.c.b16 %v4239, %v4232
    %v4667 = vpack.c.b16 %v4247, %v4240
    %v4668 = vpack.c.b16 %v4248, %v4241
    %v4669 = vpack.c.b16 %v4249, %v4242
    %v4670 = vpack.c.b16 %v4250, %v4243
    %v4671 = vpack.c.b16 %v4251, %v4244
    %v4672 = vpack.c.b16 %v4252, %v4245
    %v4673 = vpack.c.b16 %v4253, %v4246
    %v4674 = vpack.c.b16 %v4261, %v4254
    %v4675 = vpack.c.b16 %v4262, %v4255
    %v4676 = vpack.c.b16 %v4263, %v4256
    %v4677 = vpack.c.b16 %v4264, %v4257
    %v4678 = vpack.c.b16 %v4265, %v4258
    %v4679 = vpack.c.b16 %v4266, %v4259
    %v4680 = vpack.c.b16 %v4267, %v4260
    %v4681 = vpack.c.b16 %v4275, %v4268
    %v4682 = vpack.c.b16 %v4276, %v4269
    %v4683 = vpack.c.b16 %v4277, %v4270
    %v4684 = vpack.c.b16 %v4278, %v4271
    %v4685 = vpack.c.b16 %v4279, %v4272
    %v4686 = vpack.c.b16 %v4280, %v4273
    %v4687 = vpack.c.b16 %v4281, %v4274
    %v4688 = vpack.c.b16 %v4289, %v4282
    %v4689 = vpack.c.b16 %v4290, %v4283
    %v4690 = vpack.c.b16 %v4291, %v4284
    %v4691 = vpack.c.b16 %v4292, %v4285
    %v4692 = vpack.c.b16 %v4293, %v4286
    %v4693 = vpack.c.b16 %v4294, %v4287
    %v4694 = vpack.c.b16 %v4295, %v4288
    %v4695 = vpack.c.b16 %v4303, %v4296
    %v4696 = vpack.c.b16 %v4304, %v4297
    %v4697 = vpack.c.b16 %v4305, %v4298
    %v4698 = vpack.c.b16 %v4306, %v4299
    %v4699 = vpack.c.b16 %v4307, %v4300
    %v4700 = vpack.c.b16 %v4308, %v4301
    %v4701 = vpack.c.b16 %v4309, %v4302
    %v4702 = vpack.c.b16 %v4317, %v4310
    %v4703 = vpack.c.b16 %v4318, %v4311
    %v4704 = vpack.c.b16 %v4319, %v4312
    %v4705 = vpack.c.b16 %v4320, %v4313
    %v4706 = vpack.c.b16 %v4321, %v4314
    %v4707 = vpack.c.b16 %v4322, %v4315
    %v4708 = vpack.c.b16 %v4323, %v4316
    %v4709 = vpack.c.b16 %v4331, %v4324
    %v4710 = vpack.c.b16 %v4332, %v4325
    %v4711 = vpack.c.b16 %v4333, %v4326
    %v4712 = vpack.c.b16 %v4334, %v4327
    %v4713 = vpack.c.b16 %v4335, %v4328
    %v4714 = vpack.c.b16 %v4336, %v4329
    %v4715 = vpack.c.b16 %v4337, %v4330
    %v4716 = vpack.c.b16 %v4345, %v4338
    %v4717 = vpack.c.b16 %v4346, %v4339
    %v4718 = vpack.c.b16 %v4347, %v4340
    %v4719 = vpack.c.b16 %v4348, %v4341
    %v4720 = vpack.c.b16 %v4349, %v4342
    %v4721 = vpack.c.b16 %v4350, %v4343
    %v4722 = vpack.c.b16 %v4351, %v4344
    %v4723 = vpack.c.b16 %v4359, %v4352
    %v4724 = vpack.c.b16 %v4360, %v4353
    %v4725 = vpack.c.b16 %v4361, %v4354
    %v4726 = vpack.c.b16 %v4362, %v4355
    %v4727 = vpack.c.b16 %v4363, %v4356
    %v4728 = vpack.c.b16 %v4364, %v4357
    %v4729 = vpack.c.b16 %v4365, %v4358
    %v4730 = vpack.c.b16 %v4373, %v4366
    %v4731 = vpack.c.b16 %v4374, %v4367
    %v4732 = vpack.c.b16 %v4375, %v4368
    %v4733 = vpack.c.b16 %v4376, %v4369
    %v4734 = vpack.c.b16 %v4377, %v4370
    %v4735 = vpack.c.b16 %v4378, %v4371
    %v4736 = vpack.c.b16 %v4379, %v4372
    %v4737 = vpack.c.b16 %v4387, %v4380
    %v4738 = vpack.c.b16 %v4388, %v4381
    %v4739 = vpack.c.b16 %v4389, %v4382
    %v4740 = vpack.c.b16 %v4390, %v4383
    %v4741 = vpack.c.b16 %v4391, %v4384
    %v4742 = vpack.c.b16 %v4392, %v4385
    %v4743 = vpack.c.b16 %v4393, %v4386
    %v4744 = vpack.c.b16 %v4401, %v4394
    %v4745 = vpack.c.b16 %v4402, %v4395
    %v4746 = vpack.c.b16 %v4403, %v4396
    %v4747 = vpack.c.b16 %v4404, %v4397
    %v4748 = vpack.c.b16 %v4405, %v4398
    %v4749 = vpack.c.b16 %v4406, %v4399
    %v4750 = vpack.c.b16 %v4407, %v4400
    %v4751 = vpack.c.b16 %v4415, %v4408
    %v4752 = vpack.c.b16 %v4416, %v4409
    %v4753 = vpack.c.b16 %v4417, %v4410
    %v4754 = vpack.c.b16 %v4418, %v4411
    %v4755 = vpack.c.b16 %v4419, %v4412
    %v4756 = vpack.c.b16 %v4420, %v4413
    %v4757 = vpack.c.b16 %v4421, %v4414
    %v4758 = vpack.c.b16 %v4429, %v4422
    %v4759 = vpack.c.b16 %v4430, %v4423
    %v4760 = vpack.c.b16 %v4431, %v4424
    %v4761 = vpack.c.b16 %v4432, %v4425
    %v4762 = vpack.c.b16 %v4433, %v4426
    %v4763 = vpack.c.b16 %v4434, %v4427
    %v4764 = vpack.c.b16 %v4435, %v4428
    %v4765 = vpack.c.b16 %v4443, %v4436
    %v4766 = vpack.c.b16 %v4444, %v4437
    %v4767 = vpack.c.b16 %v4445, %v4438
    %v4768 = vpack.c.b16 %v4446, %v4439
    %v4769 = vpack.c.b16 %v4447, %v4440
    %v4770 = vpack.c.b16 %v4448, %v4441
    %v4771 = vpack.c.b16 %v4449, %v4442
    %v4772 = vpack.c.b16 %v4457, %v4450
    %v4773 = vpack.c.b16 %v4458, %v4451
    %v4774 = vpack.c.b16 %v4459, %v4452
    %v4775 = vpack.c.b16 %v4460, %v4453
    %v4776 = vpack.c.b16 %v4461, %v4454
    %v4777 = vpack.c.b16 %v4462, %v4455
    %v4778 = vpack.c.b16 %v4463, %v4456
    %v4779 = vpack.c.b16 %v4471, %v4464
    %v4780 = vpack.c.b16 %v4472, %v4465
    %v4781 = vpack.c.b16 %v4473, %v4466
    %v4782 = vpack.c.b16 %v4474, %v4467
    %v4783 = vpack.c.b16 %v4475, %v4468
    %v4784 = vpack.c.b16 %v4476, %v4469
    %v4785 = vpack.c.b16 %v4477, %v4470
    %v4786 = vpack.c.b16 %v4485, %v4478
    %v4787 = vpack.c.b16 %v4486, %v4479
    %v4788 = vpack.c.b16 %v4487, %v4480
    %v4789 = vpack.c.b16 %v4488, %v4481
    %v4790 = vpack.c.b16 %v4489, %v4482
    %v4791 = vpack.c.b16 %v4490, %v4483
    %v4792 = vpack.c.b16 %v4491, %v4484
    %v4793 = vpack.c.b16 %v4499, %v4492
    %v4794 = vpack.c.b16 %v4500, %v4493
    %v4795 = vpack.c.b16 %v4501, %v4494
    %v4796 = vpack.c.b16 %v4502, %v4495
    %v4797 = vpack.c.b16 %v4503, %v4496
    %v4798 = vpack.c.b16 %v4504, %v4497
    %v4799 = vpack.c.b16 %v4505, %v4498
    %v4800 = vpack.c.b16 %v4513, %v4506
    %v4801 = vpack.c.b16 %v4514, %v4507
    %v4802 = vpack.c.b16 %v4515, %v4508
    %v4803 = vpack.c.b16 %v4516, %v4509
    %v4804 = vpack.c.b16 %v4517, %v4510
    %v4805 = vpack.c.b16 %v4518, %v4511
    %v4806 = vpack.c.b16 %v4519, %v4512
    %v4807 = vpack.c.b16 %v4527, %v4520
    %v4808 = vpack.c.b16 %v4528, %v4521
    %v4809 = vpack.c.b16 %v4529, %v4522
    %v4810 = vpack.c.b16 %v4530, %v4523
    %v4811 = vpack.c.b16 %v4531, %v4524
    %v4812 = vpack.c.b16 %v4532, %v4525
    %v4813 = vpack.c.b16 %v4533, %v4526
    %v4814 = vpack.c.b16 %v4541, %v4534
    %v4815 = vpack.c.b16 %v4542, %v4535
    %v4816 = vpack.c.b16 %v4543, %v4536
    %v4817 = vpack.c.b16 %v4544, %v4537
    %v4818 = vpack.c.b16 %v4545, %v4538
    %v4819 = vpack.c.b16 %v4546, %v4539
    %v4820 = vpack.c.b16 %v4547, %v4540
    %v4821 = vpack.c.b16 %v4555, %v4548
    %v4822 = vpack.c.b16 %v4556, %v4549
    %v4823 = vpack.c.b16 %v4557, %v4550
    %v4824 = vpack.c.b16 %v4558, %v4551
    %v4825 = vpack.c.b16 %v4559, %v4552
    %v4826 = vpack.c.b16 %v4560, %v4553
    %v4827 = vpack.c.b16 %v4561, %v4554
    %v4828 = vpack.c.b16 %v4569, %v4562
    %v4829 = vpack.c.b16 %v4570, %v4563
    %v4830 = vpack.c.b16 %v4571, %v4564
    %v4831 = vpack.c.b16 %v4572, %v4565
    %v4832 = vpack.c.b16 %v4573, %v4566
    %v4833 = vpack.c.b16 %v4574, %v4567
    %v4834 = vpack.c.b16 %v4575, %v4568
    %v4835 = vpack.c.b16 %v4583, %v4576
    %v4836 = vpack.c.b16 %v4584, %v4577
    %v4837 = vpack.c.b16 %v4585, %v4578
    %v4838 = vpack.c.b16 %v4586, %v4579
    %v4839 = vpack.c.b16 %v4587, %v4580
    %v4840 = vpack.c.b16 %v4588, %v4581
    %v4841 = vpack.c.b16 %v4589, %v4582
    %v4842 = vpack.c.b16 %v4597, %v4590
    %v4843 = vpack.c.b16 %v4598, %v4591
    %v4844 = vpack.c.b16 %v4599, %v4592
    %v4845 = vpack.c.b16 %v4600, %v4593
    %v4846 = vpack.c.b16 %v4601, %v4594
    %v4847 = vpack.c.b16 %v4602, %v4595
    %v4848 = vpack.c.b16 %v4603, %v4596
    %v4849 = vpack.c.b16 %v4611, %v4604
    %v4850 = vpack.c.b16 %v4612, %v4605
    %v4851 = vpack.c.b16 %v4613, %v4606
    %v4852 = vpack.c.b16 %v4614, %v4607
    %v4853 = vpack.c.b16 %v4615, %v4608
    %v4854 = vpack.c.b16 %v4616, %v4609
    %v4855 = vpack.c.b16 %v4617, %v4610
    %v4856 = vpack.c.b16 %v4625, %v4618
    %v4857 = vpack.c.b16 %v4626, %v4619
    %v4858 = vpack.c.b16 %v4627, %v4620
    %v4859 = vpack.c.b16 %v4628, %v4621
    %v4860 = vpack.c.b16 %v4629, %v4622
    %v4861 = vpack.c.b16 %v4630, %v4623
    %v4862 = vpack.c.b16 %v4631, %v4624
    %v4863 = vpack.c.b16 %v4639, %v4632
    %v4864 = vpack.c.b16 %v4640, %v4633
    %v4865 = vpack.c.b16 %v4641, %v4634
    %v4866 = vpack.c.b16 %v4642, %v4635
    %v4867 = vpack.c.b16 %v4643, %v4636
    %v4868 = vpack.c.b16 %v4644, %v4637
    %v4869 = vpack.c.b16 %v4645, %v4638
    %5094 = vmatprep.subr.bf16.mxu0 %v4647
    %5095 = vmatpush1.bf16.msra.mxu0 %v4646
    %5096 = vmatprep.subr.bf16.mxu0 %v4654
    %5097 = vmatpush1.bf16.msra.mxu0 %v4653
    %5098 = vmatprep.subr.bf16.mxu0 %v4661
    %5099 = vmatpush1.bf16.msra.mxu0 %v4660
    %5100 = vmatprep.subr.bf16.mxu0 %v4668
    %5101 = vmatpush1.bf16.msra.mxu0 %v4667
    %5102 = vmatprep.subr.bf16.mxu0 %v4675
    %5103 = vmatpush1.bf16.msra.mxu0 %v4674
    %5104 = vmatprep.subr.bf16.mxu0 %v4682
    %5105 = vmatpush1.bf16.msra.mxu0 %v4681
    %5106 = vmatprep.subr.bf16.mxu0 %v4689
    %5107 = vmatpush1.bf16.msra.mxu0 %v4688
    %5108 = vmatprep.subr.bf16.mxu0 %v4696
    %5109 = vmatpush1.bf16.msra.mxu0 %v4695
    %5110 = vmatprep.subr.bf16.mxu0 %v4703
    %5111 = vmatpush1.bf16.msra.mxu0 %v4702
    %5112 = vmatprep.subr.bf16.mxu0 %v4710
    %5113 = vmatpush1.bf16.msra.mxu0 %v4709
    %5114 = vmatprep.subr.bf16.mxu0 %v4717
    %5115 = vmatpush1.bf16.msra.mxu0 %v4716
    %5116 = vmatprep.subr.bf16.mxu0 %v4724
    %5117 = vmatpush1.bf16.msra.mxu0 %v4723
    %5118 = vmatprep.subr.bf16.mxu0 %v4731
    %5119 = vmatpush1.bf16.msra.mxu0 %v4730
    %5120 = vmatprep.subr.bf16.mxu0 %v4738
    %5121 = vmatpush1.bf16.msra.mxu0 %v4737
    %5122 = vmatprep.subr.bf16.mxu0 %v4745
    %5123 = vmatpush1.bf16.msra.mxu0 %v4744
    %5124 = vmatprep.subr.bf16.mxu0 %v4752
    %5125 = vmatpush1.bf16.msra.mxu0 %v4751
    %5126 = vmatprep.mubr.bf16.mxu0 %v3646
    %5127 = vmatmul.mubr.bf16.gmra.mrb[0].mxu0 %v3645
    %v5128 = vpop.f32.mrb[0].mxu0
    %v5129 = vadd.f32 %v3910, %v5128
    %v5130 = vpop.f32.mrb[0].mxu0
    %v5131 = vadd.f32 %v3914, %v5130
    %v5132 = vpop.f32.mrb[0].mxu0
    %v5133 = vadd.f32 %v3910, %v5132
    %v5134 = vpop.f32.mrb[0].mxu0
    %v5135 = vadd.f32 %v3914, %v5134
    %5136 = vdwg.mxu0
    %5137 = vmatprep.subr.bf16.mxu0 %v4759
    %5138 = vmatpush1.bf16.msra.mxu0 %v4758
    %5139 = vmatprep.subr.bf16.mxu0 %v4766
    %5140 = vmatpush1.bf16.msra.mxu0 %v4765
    %5141 = vmatprep.subr.bf16.mxu0 %v4773
    %5142 = vmatpush1.bf16.msra.mxu0 %v4772
    %5143 = vmatprep.subr.bf16.mxu0 %v4780
    %5144 = vmatpush1.bf16.msra.mxu0 %v4779
    %5145 = vmatprep.subr.bf16.mxu0 %v4787
    %5146 = vmatpush1.bf16.msra.mxu0 %v4786
    %5147 = vmatprep.subr.bf16.mxu0 %v4794
    %5148 = vmatpush1.bf16.msra.mxu0 %v4793
    %5149 = vmatprep.subr.bf16.mxu0 %v4801
    %5150 = vmatpush1.bf16.msra.mxu0 %v4800
    %5151 = vmatprep.subr.bf16.mxu0 %v4808
    %5152 = vmatpush1.bf16.msra.mxu0 %v4807
    %5153 = vmatprep.subr.bf16.mxu0 %v4815
    %5154 = vmatpush1.bf16.msra.mxu0 %v4814
    %5155 = vmatprep.subr.bf16.mxu0 %v4822
    %5156 = vmatpush1.bf16.msra.mxu0 %v4821
    %5157 = vmatprep.subr.bf16.mxu0 %v4829
    %5158 = vmatpush1.bf16.msra.mxu0 %v4828
    %5159 = vmatprep.subr.bf16.mxu0 %v4836
    %5160 = vmatpush1.bf16.msra.mxu0 %v4835
    %5161 = vmatprep.subr.bf16.mxu0 %v4843
    %5162 = vmatpush1.bf16.msra.mxu0 %v4842
    %5163 = vmatprep.subr.bf16.mxu0 %v4850
    %5164 = vmatpush1.bf16.msra.mxu0 %v4849
    %5165 = vmatprep.subr.bf16.mxu0 %v4857
    %5166 = vmatpush1.bf16.msra.mxu0 %v4856
    %5167 = vmatprep.subr.bf16.mxu0 %v4864
    %5168 = vmatpush1.bf16.msra.mxu0 %v4863
    %5169 = vmatprep.mubr.bf16.mxu0 %v3648
    %5170 = vmatmul.mubr.bf16.gmra.mrb[0].mxu0 %v3647
    %v5171 = vpop.f32.mrb[0].mxu0
    %v5172 = vadd.f32 %v5129, %v5171
    %v5173 = vpop.f32.mrb[0].mxu0
    %v5174 = vadd.f32 %v5131, %v5173
    %v5175 = vpop.f32.mrb[0].mxu0
    %v5176 = vadd.f32 %v5133, %v5175
    %v5177 = vpop.f32.mrb[0].mxu0
    %v5178 = vadd.f32 %v5135, %v5177
    %5179 = vdwg.mxu0
    %5180 = vmatprep.subr.bf16.mxu0 %v4649
    %5181 = vmatpush1.bf16.msra.mxu0 %v4648
    %5182 = vmatprep.subr.bf16.mxu0 %v4656
    %5183 = vmatpush1.bf16.msra.mxu0 %v4655
    %5184 = vmatprep.subr.bf16.mxu0 %v4663
    %5185 = vmatpush1.bf16.msra.mxu0 %v4662
    %5186 = vmatprep.subr.bf16.mxu0 %v4670
    %5187 = vmatpush1.bf16.msra.mxu0 %v4669
    %5188 = vmatprep.subr.bf16.mxu0 %v4677
    %5189 = vmatpush1.bf16.msra.mxu0 %v4676
    %5190 = vmatprep.subr.bf16.mxu0 %v4684
    %5191 = vmatpush1.bf16.msra.mxu0 %v4683
    %5192 = vmatprep.subr.bf16.mxu0 %v4691
    %5193 = vmatpush1.bf16.msra.mxu0 %v4690
    %5194 = vmatprep.subr.bf16.mxu0 %v4698
    %5195 = vmatpush1.bf16.msra.mxu0 %v4697
    %5196 = vmatprep.subr.bf16.mxu0 %v4705
    %5197 = vmatpush1.bf16.msra.mxu0 %v4704
    %5198 = vmatprep.subr.bf16.mxu0 %v4712
    %5199 = vmatpush1.bf16.msra.mxu0 %v4711
    %5200 = vmatprep.subr.bf16.mxu0 %v4719
    %5201 = vmatpush1.bf16.msra.mxu0 %v4718
    %5202 = vmatprep.subr.bf16.mxu0 %v4726
    %5203 = vmatpush1.bf16.msra.mxu0 %v4725
    %5204 = vmatprep.subr.bf16.mxu0 %v4733
    %5205 = vmatpush1.bf16.msra.mxu0 %v4732
    %5206 = vmatprep.subr.bf16.mxu0 %v4740
    %5207 = vmatpush1.bf16.msra.mxu0 %v4739
    %5208 = vmatprep.subr.bf16.mxu0 %v4747
    %5209 = vmatpush1.bf16.msra.mxu0 %v4746
    %5210 = vmatprep.subr.bf16.mxu0 %v4754
    %5211 = vmatpush1.bf16.msra.mxu0 %v4753
    %5212 = vmatprep.mubr.bf16.mxu0 %v3646
    %5213 = vmatmul.mubr.bf16.gmra.mrb[0].mxu0 %v3645
    %v5214 = vpop.f32.mrb[0].mxu0
    %v5215 = vadd.f32 %v3918, %v5214
    %v5216 = vpop.f32.mrb[0].mxu0
    %v5217 = vadd.f32 %v3922, %v5216
    %v5218 = vpop.f32.mrb[0].mxu0
    %v5219 = vadd.f32 %v3918, %v5218
    %v5220 = vpop.f32.mrb[0].mxu0
    %v5221 = vadd.f32 %v3922, %v5220
    %5222 = vdwg.mxu0
    %5223 = vmatprep.subr.bf16.mxu0 %v4761
    %5224 = vmatpush1.bf16.msra.mxu0 %v4760
    %5225 = vmatprep.subr.bf16.mxu0 %v4768
    %5226 = vmatpush1.bf16.msra.mxu0 %v4767
    %5227 = vmatprep.subr.bf16.mxu0 %v4775
    %5228 = vmatpush1.bf16.msra.mxu0 %v4774
    %5229 = vmatprep.subr.bf16.mxu0 %v4782
    %5230 = vmatpush1.bf16.msra.mxu0 %v4781
    %5231 = vmatprep.subr.bf16.mxu0 %v4789
    %5232 = vmatpush1.bf16.msra.mxu0 %v4788
    %5233 = vmatprep.subr.bf16.mxu0 %v4796
    %5234 = vmatpush1.bf16.msra.mxu0 %v4795
    %5235 = vmatprep.subr.bf16.mxu0 %v4803
    %5236 = vmatpush1.bf16.msra.mxu0 %v4802
    %5237 = vmatprep.subr.bf16.mxu0 %v4810
    %5238 = vmatpush1.bf16.msra.mxu0 %v4809
    %5239 = vmatprep.subr.bf16.mxu0 %v4817
    %5240 = vmatpush1.bf16.msra.mxu0 %v4816
    %5241 = vmatprep.subr.bf16.mxu0 %v4824
    %5242 = vmatpush1.bf16.msra.mxu0 %v4823
    %5243 = vmatprep.subr.bf16.mxu0 %v4831
    %5244 = vmatpush1.bf16.msra.mxu0 %v4830
    %5245 = vmatprep.subr.bf16.mxu0 %v4838
    %5246 = vmatpush1.bf16.msra.mxu0 %v4837
    %5247 = vmatprep.subr.bf16.mxu0 %v4845
    %5248 = vmatpush1.bf16.msra.mxu0 %v4844
    %5249 = vmatprep.subr.bf16.mxu0 %v4852
    %5250 = vmatpush1.bf16.msra.mxu0 %v4851
    %5251 = vmatprep.subr.bf16.mxu0 %v4859
    %5252 = vmatpush1.bf16.msra.mxu0 %v4858
    %5253 = vmatprep.subr.bf16.mxu0 %v4866
    %5254 = vmatpush1.bf16.msra.mxu0 %v4865
    %5255 = vmatprep.mubr.bf16.mxu0 %v3648
    %5256 = vmatmul.mubr.bf16.gmra.mrb[0].mxu0 %v3647
    %v5257 = vpop.f32.mrb[0].mxu0
    %v5258 = vadd.f32 %v5215, %v5257
    %v5259 = vpop.f32.mrb[0].mxu0
    %v5260 = vadd.f32 %v5217, %v5259
    %v5261 = vpop.f32.mrb[0].mxu0
    %v5262 = vadd.f32 %v5219, %v5261
    %v5263 = vpop.f32.mrb[0].mxu0
    %v5264 = vadd.f32 %v5221, %v5263
    %5265 = vdwg.mxu0
    %5266 = vmatprep.subr.bf16.mxu0 %v4651
    %5267 = vmatpush1.bf16.msra.mxu0 %v4650
    %5268 = vmatprep.subr.bf16.mxu0 %v4658
    %5269 = vmatpush1.bf16.msra.mxu0 %v4657
    %5270 = vmatprep.subr.bf16.mxu0 %v4665
    %5271 = vmatpush1.bf16.msra.mxu0 %v4664
    %5272 = vmatprep.subr.bf16.mxu0 %v4672
    %5273 = vmatpush1.bf16.msra.mxu0 %v4671
    %5274 = vmatprep.subr.bf16.mxu0 %v4679
    %5275 = vmatpush1.bf16.msra.mxu0 %v4678
    %5276 = vmatprep.subr.bf16.mxu0 %v4686
    %5277 = vmatpush1.bf16.msra.mxu0 %v4685
    %5278 = vmatprep.subr.bf16.mxu0 %v4693
    %5279 = vmatpush1.bf16.msra.mxu0 %v4692
    %5280 = vmatprep.subr.bf16.mxu0 %v4700
    %5281 = vmatpush1.bf16.msra.mxu0 %v4699
    %5282 = vmatprep.subr.bf16.mxu0 %v4707
    %5283 = vmatpush1.bf16.msra.mxu0 %v4706
    %5284 = vmatprep.subr.bf16.mxu0 %v4714
    %5285 = vmatpush1.bf16.msra.mxu0 %v4713
    %5286 = vmatprep.subr.bf16.mxu0 %v4721
    %5287 = vmatpush1.bf16.msra.mxu0 %v4720
    %5288 = vmatprep.subr.bf16.mxu0 %v4728
    %5289 = vmatpush1.bf16.msra.mxu0 %v4727
    %5290 = vmatprep.subr.bf16.mxu0 %v4735
    %5291 = vmatpush1.bf16.msra.mxu0 %v4734
    %5292 = vmatprep.subr.bf16.mxu0 %v4742
    %5293 = vmatpush1.bf16.msra.mxu0 %v4741
    %5294 = vmatprep.subr.bf16.mxu0 %v4749
    %5295 = vmatpush1.bf16.msra.mxu0 %v4748
    %5296 = vmatprep.subr.bf16.mxu0 %v4756
    %5297 = vmatpush1.bf16.msra.mxu0 %v4755
    %5298 = vmatprep.mubr.bf16.mxu0 %v3646
    %5299 = vmatmul.mubr.bf16.gmra.mrb[0].mxu0 %v3645
    %v5300 = vpop.f32.mrb[0].mxu0
    %v5301 = vadd.f32 %v3926, %v5300
    %v5302 = vpop.f32.mrb[0].mxu0
    %v5303 = vadd.f32 %v3930, %v5302
    %v5304 = vpop.f32.mrb[0].mxu0
    %v5305 = vadd.f32 %v3926, %v5304
    %v5306 = vpop.f32.mrb[0].mxu0
    %v5307 = vadd.f32 %v3930, %v5306
    %5308 = vdwg.mxu0
    %5309 = vmatprep.subr.bf16.mxu0 %v4763
    %5310 = vmatpush1.bf16.msra.mxu0 %v4762
    %5311 = vmatprep.subr.bf16.mxu0 %v4770
    %5312 = vmatpush1.bf16.msra.mxu0 %v4769
    %5313 = vmatprep.subr.bf16.mxu0 %v4777
    %5314 = vmatpush1.bf16.msra.mxu0 %v4776
    %5315 = vmatprep.subr.bf16.mxu0 %v4784
    %5316 = vmatpush1.bf16.msra.mxu0 %v4783
    %5317 = vmatprep.subr.bf16.mxu0 %v4791
    %5318 = vmatpush1.bf16.msra.mxu0 %v4790
    %5319 = vmatprep.subr.bf16.mxu0 %v4798
    %5320 = vmatpush1.bf16.msra.mxu0 %v4797
    %5321 = vmatprep.subr.bf16.mxu0 %v4805
    %5322 = vmatpush1.bf16.msra.mxu0 %v4804
    %5323 = vmatprep.subr.bf16.mxu0 %v4812
    %5324 = vmatpush1.bf16.msra.mxu0 %v4811
    %5325 = vmatprep.subr.bf16.mxu0 %v4819
    %5326 = vmatpush1.bf16.msra.mxu0 %v4818
    %5327 = vmatprep.subr.bf16.mxu0 %v4826
    %5328 = vmatpush1.bf16.msra.mxu0 %v4825
    %5329 = vmatprep.subr.bf16.mxu0 %v4833
    %5330 = vmatpush1.bf16.msra.mxu0 %v4832
    %5331 = vmatprep.subr.bf16.mxu0 %v4840
    %5332 = vmatpush1.bf16.msra.mxu0 %v4839
    %5333 = vmatprep.subr.bf16.mxu0 %v4847
    %5334 = vmatpush1.bf16.msra.mxu0 %v4846
    %5335 = vmatprep.subr.bf16.mxu0 %v4854
    %5336 = vmatpush1.bf16.msra.mxu0 %v4853
    %5337 = vmatprep.subr.bf16.mxu0 %v4861
    %5338 = vmatpush1.bf16.msra.mxu0 %v4860
    %5339 = vmatprep.subr.bf16.mxu0 %v4868
    %5340 = vmatpush1.bf16.msra.mxu0 %v4867
    %5341 = vmatprep.mubr.bf16.mxu0 %v3648
    %5342 = vmatmul.mubr.bf16.gmra.mrb[0].mxu0 %v3647
    %v5343 = vpop.f32.mrb[0].mxu0
    %v5344 = vadd.f32 %v5301, %v5343
    %v5345 = vpop.f32.mrb[0].mxu0
    %v5346 = vadd.f32 %v5303, %v5345
    %v5347 = vpop.f32.mrb[0].mxu0
    %v5348 = vadd.f32 %v5305, %v5347
    %v5349 = vpop.f32.mrb[0].mxu0
    %v5350 = vadd.f32 %v5307, %v5349
    %5351 = vdwg.mxu0
    %5352 = vmatprep.subr.bf16.mxu0 0
    %5353 = vmatpush1.bf16.msra.mxu0 %v4652
    %5354 = vmatprep.subr.bf16.mxu0 0
    %5355 = vmatpush1.bf16.msra.mxu0 %v4659
    %5356 = vmatprep.subr.bf16.mxu0 0
    %5357 = vmatpush1.bf16.msra.mxu0 %v4666
    %5358 = vmatprep.subr.bf16.mxu0 0
    %5359 = vmatpush1.bf16.msra.mxu0 %v4673
    %5360 = vmatprep.subr.bf16.mxu0 0
    %5361 = vmatpush1.bf16.msra.mxu0 %v4680
    %5362 = vmatprep.subr.bf16.mxu0 0
    %5363 = vmatpush1.bf16.msra.mxu0 %v4687
    %5364 = vmatprep.subr.bf16.mxu0 0
    %5365 = vmatpush1.bf16.msra.mxu0 %v4694
    %5366 = vmatprep.subr.bf16.mxu0 0
    %5367 = vmatpush1.bf16.msra.mxu0 %v4701
    %5368 = vmatprep.subr.bf16.mxu0 0
    %5369 = vmatpush1.bf16.msra.mxu0 %v4708
    %5370 = vmatprep.subr.bf16.mxu0 0
    %5371 = vmatpush1.bf16.msra.mxu0 %v4715
    %5372 = vmatprep.subr.bf16.mxu0 0
    %5373 = vmatpush1.bf16.msra.mxu0 %v4722
    %5374 = vmatprep.subr.bf16.mxu0 0
    %5375 = vmatpush1.bf16.msra.mxu0 %v4729
    %5376 = vmatprep.subr.bf16.mxu0 0
    %5377 = vmatpush1.bf16.msra.mxu0 %v4736
    %5378 = vmatprep.subr.bf16.mxu0 0
    %5379 = vmatpush1.bf16.msra.mxu0 %v4743
    %5380 = vmatprep.subr.bf16.mxu0 0
    %5381 = vmatpush1.bf16.msra.mxu0 %v4750
    %5382 = vmatprep.subr.bf16.mxu0 0
    %5383 = vmatpush1.bf16.msra.mxu0 %v4757
    %5384 = vmatprep.mubr.bf16.mxu0 %v3646
    %5385 = vmatmul.mubr.bf16.gmra.mrb[0].mxu0 %v3645
    %v5386 = vpop.f32.mrb[0].mxu0
    %v5387 = vadd.f32 %v3934, %v5386
    %v5388 = vpop.f32.mrb[0].mxu0
    %v5389 = vpop.f32.mrb[0].mxu0
    %v5390 = vadd.f32 %v3934, %v5389
    %v5391 = vpop.f32.mrb[0].mxu0
    %5392 = vdwg.mxu0
    %5393 = vmatprep.subr.bf16.mxu0 0
    %5394 = vmatpush1.bf16.msra.mxu0 %v4764
    %5395 = vmatprep.subr.bf16.mxu0 0
    %5396 = vmatpush1.bf16.msra.mxu0 %v4771
    %5397 = vmatprep.subr.bf16.mxu0 0
    %5398 = vmatpush1.bf16.msra.mxu0 %v4778
    %5399 = vmatprep.subr.bf16.mxu0 0
    %5400 = vmatpush1.bf16.msra.mxu0 %v4785
    %5401 = vmatprep.subr.bf16.mxu0 0
    %5402 = vmatpush1.bf16.msra.mxu0 %v4792
    %5403 = vmatprep.subr.bf16.mxu0 0
    %5404 = vmatpush1.bf16.msra.mxu0 %v4799
    %5405 = vmatprep.subr.bf16.mxu0 0
    %5406 = vmatpush1.bf16.msra.mxu0 %v4806
    %5407 = vmatprep.subr.bf16.mxu0 0
    %5408 = vmatpush1.bf16.msra.mxu0 %v4813
    %5409 = vmatprep.subr.bf16.mxu0 0
    %5410 = vmatpush1.bf16.msra.mxu0 %v4820
    %5411 = vmatprep.subr.bf16.mxu0 0
    %5412 = vmatpush1.bf16.msra.mxu0 %v4827
    %5413 = vmatprep.subr.bf16.mxu0 0
    %5414 = vmatpush1.bf16.msra.mxu0 %v4834
    %5415 = vmatprep.subr.bf16.mxu0 0
    %5416 = vmatpush1.bf16.msra.mxu0 %v4841
    %5417 = vmatprep.subr.bf16.mxu0 0
    %5418 = vmatpush1.bf16.msra.mxu0 %v4848
    %5419 = vmatprep.subr.bf16.mxu0 0
    %5420 = vmatpush1.bf16.msra.mxu0 %v4855
    %5421 = vmatprep.subr.bf16.mxu0 0
    %5422 = vmatpush1.bf16.msra.mxu0 %v4862
    %5423 = vmatprep.subr.bf16.mxu0 0
    %5424 = vmatpush1.bf16.msra.mxu0 %v4869
    %5425 = vmatprep.mubr.bf16.mxu0 %v3648
    %5426 = vmatmul.mubr.bf16.gmra.mrb[0].mxu0 %v3647
    %v5427 = vpop.f32.mrb[0].mxu0
    %v5428 = vadd.f32 %v5387, %v5427
    %v5429 = vpop.f32.mrb[0].mxu0
    %v5430 = vpop.f32.mrb[0].mxu0
    %v5431 = vadd.f32 %v5390, %v5430
    %v5432 = vpop.f32.mrb[0].mxu0
    %5433 = vdwg.mxu0
    %v5434 = vxor.u32 %v5172, 2147483648
    %v5435 = vxor.u32 %v5174, 2147483648
    %v5436 = vxor.u32 %v5258, 2147483648
    %v5437 = vxor.u32 %v5260, 2147483648
    %v5438 = vxor.u32 %v5344, 2147483648
    %v5439 = vxor.u32 %v5346, 2147483648
    %v5440 = vxor.u32 %v5428, 2147483648
    %v5441 = vxor.u32 %v5176, 2147483648
    %v5442 = vxor.u32 %v5178, 2147483648
    %v5443 = vxor.u32 %v5262, 2147483648
    %v5444 = vxor.u32 %v5264, 2147483648
    %v5445 = vxor.u32 %v5348, 2147483648
    %v5446 = vxor.u32 %v5350, 2147483648
    %v5447 = vxor.u32 %v5431, 2147483648
    %v5448 = vmul.f32 %v5434, 1.442695
    %v5449 = vpow.pop %v5448
    %v5450 = vmul.f32 %v5435, 1.442695
    %v5451 = vpow.pop %v5450
    %v5452 = vmul.f32 %v5436, 1.442695
    %v5453 = vpow.pop %v5452
    %v5454 = vmul.f32 %v5437, 1.442695
    %v5455 = vpow.pop %v5454
    %v5456 = vmul.f32 %v5438, 1.442695
    %v5457 = vpow.pop %v5456
    %v5458 = vmul.f32 %v5439, 1.442695
    %v5459 = vpow.pop %v5458
    %v5460 = vmul.f32 %v5440, 1.442695
    %v5461 = vpow.pop %v5460
    %v5462 = vmul.f32 %v5441, 1.442695
    %v5463 = vpow.pop %v5462
    %v5464 = vmul.f32 %v5442, 1.442695
    %v5465 = vpow.pop %v5464
    %v5466 = vmul.f32 %v5443, 1.442695
    %v5467 = vpow.pop %v5466
    %v5468 = vmul.f32 %v5444, 1.442695
    %v5469 = vpow.pop %v5468
    %v5470 = vmul.f32 %v5445, 1.442695
    %v5471 = vpow.pop %v5470
    %v5472 = vmul.f32 %v5446, 1.442695
    %v5473 = vpow.pop %v5472
    %v5474 = vmul.f32 %v5447, 1.442695
    %v5475 = vpow.pop %v5474
    %v5476 = vadd.f32 %v5449, 1.0
    %v5477 = vadd.f32 %v5451, 1.0
    %v5478 = vadd.f32 %v5453, 1.0
    %v5479 = vadd.f32 %v5455, 1.0
    %v5480 = vadd.f32 %v5457, 1.0
    %v5481 = vadd.f32 %v5459, 1.0
    %v5482 = vadd.f32 %v5461, 1.0
    %v5483 = vadd.f32 %v5463, 1.0
    %v5484 = vadd.f32 %v5465, 1.0
    %v5485 = vadd.f32 %v5467, 1.0
    %v5486 = vadd.f32 %v5469, 1.0
    %v5487 = vadd.f32 %v5471, 1.0
    %v5488 = vadd.f32 %v5473, 1.0
    %v5489 = vadd.f32 %v5475, 1.0
    %v5490 = vrcp.pop %v5476
    %v5491 = vmul.f32 1.0, %v5490
    %v5492 = vrcp.pop %v5477
    %v5493 = vmul.f32 1.0, %v5492
    %v5494 = vrcp.pop %v5478
    %v5495 = vmul.f32 1.0, %v5494
    %v5496 = vrcp.pop %v5479
    %v5497 = vmul.f32 1.0, %v5496
    %v5498 = vrcp.pop %v5480
    %v5499 = vmul.f32 1.0, %v5498
    %v5500 = vrcp.pop %v5481
    %v5501 = vmul.f32 1.0, %v5500
    %v5502 = vrcp.pop %v5482
    %v5503 = vmul.f32 1.0, %v5502
    %v5504 = vrcp.pop %v5483
    %v5505 = vmul.f32 1.0, %v5504
    %v5506 = vrcp.pop %v5484
    %v5507 = vmul.f32 1.0, %v5506
    %v5508 = vrcp.pop %v5485
    %v5509 = vmul.f32 1.0, %v5508
    %v5510 = vrcp.pop %v5486
    %v5511 = vmul.f32 1.0, %v5510
    %v5512 = vrcp.pop %v5487
    %v5513 = vmul.f32 1.0, %v5512
    %v5514 = vrcp.pop %v5488
    %v5515 = vmul.f32 1.0, %v5514
    %v5516 = vrcp.pop %v5489
    %v5517 = vmul.f32 1.0, %v5516
    %5518 = vst [vmem:[#allocation19] sm:$0xff] %v5491
    %5519 = vst [vmem:[#allocation19 + $0x8] sm:$0xff] %v5493
    %5520 = vst [vmem:[#allocation19 + $0x10] sm:$0xff] %v5495
    %5521 = vst [vmem:[#allocation19 + $0x18] sm:$0xff] %v5497
    %5522 = vst [vmem:[#allocation19 + $0x20] sm:$0xff] %v5499
    %5523 = vst [vmem:[#allocation19 + $0x28] sm:$0xff] %v5501
    %5524 = vst [vmem:[#allocation19 + $0x30] sm:$0xff] %v5503
    %5525 = vst [vmem:[#allocation19 + $0x38] sm:$0xff] %v5505
    %5526 = vst [vmem:[#allocation19 + $0x40] sm:$0xff] %v5507
    %5527 = vst [vmem:[#allocation19 + $0x48] sm:$0xff] %v5509
    %5528 = vst [vmem:[#allocation19 + $0x50] sm:$0xff] %v5511
    %5529 = vst [vmem:[#allocation19 + $0x58] sm:$0xff] %v5513
    %5530 = vst [vmem:[#allocation19 + $0x60] sm:$0xff] %v5515
    %5531 = vst [vmem:[#allocation19 + $0x68] sm:$0xff] %v5517
    // Predicated region
    $region110: #{tpu_custom_call.1} parent=1 // pred_check
      _
    $region111: #{tpu_custom_call.1} parent=1 // pred_check_branch
      %5533 = sbr.rel (0) target = $region113
    $region112: #{tpu_custom_call.1} parent=1 // pred_region
      %s5535 = ssub.s32 1792, 1792
      %5536 = vsyncadd [#allocation4], %s5535
      %s5537 = sshll.u32 [#allocation19], 4
      %s5538 = int_to_ptr.vmem [resolvable:$true] %s5537
      %5543 = dma.vmem_to_hbm [thread:$0]  %s5538, 1792, %s17, [#allocation4], 896, 896, 56
    $region113: #{tpu_custom_call.1} parent=1 // pred_fallthru
      _
    // Predicated region
    $region114: #{tpu_custom_call.1} parent=1 // pred_check
      _
    $region115: #{tpu_custom_call.1} parent=1 // pred_check_branch
      %5545 = sbr.rel (0) target = $region117
    $region116: #{tpu_custom_call.1} parent=1 // pred_region
      %5546 = dma.done [#allocation4], 1792
    $region117: #{tpu_custom_call.1} parent=1 // pred_fallthru
      _
    %5547 = vsyncpa [#allocation3], 1
    %5548 = vsyncpa [#allocation6], 1
    %5549 = vsyncpa [#allocation9], 1
    %5550 = vsyncpa [#allocation12], 1
    %5551 = vsyncpa [#allocation15], 1
    %5552 = vsyncpa [#allocation18], 1
    %5553 = vsyncpa [#allocation4], 1

</llo_original>
